<compile_context>
chip_gen: v7x
topology: tpu7x:2x2x1
jax: 0.10.0
libtpu: 0.0.40
codegen_flags: <defaults>
</compile_context>

<pallas_src>
import functools

import jax
import jax.numpy as jnp
import numpy as np
from jax.experimental import pallas as pl
from jax.experimental.pallas import tpu as pltpu

_VMEM_LIMIT = 48 * 1024 * 1024   # fits v7x's 64 MiB VMEM, raised vs. defaults


def _round_up(x, m):
    return (x + m - 1) // m * m


def _tile_and_pad(n, max_tile):
    tile = min(_round_up(n, 8), max_tile)   # multiple of 8 (sublane constraint)
    return tile, _round_up(n, tile)


def _pad_rows(x, n_pad):
    n = x.shape[0]
    if n == n_pad:
        return x
    pad = [(0, n_pad - n)] + [(0, 0)] * (x.ndim - 1)
    return jnp.pad(x, pad)


# --------------------------------------------------------------------------
# Fused bidirectional GRU kernel (PyTorch nn.GRU semantics, h0 = 0).
#   x block: (TILE_N, T, E) batch-major; out block: (TILE_N, T, 2H)
#   wih: (E, 6H)  columns = [fwd r|z|n , bwd r|z|n]     (pre-fused host-side)
#   whh: (2H, 6H) block-diagonal, rows = [h_fwd ; h_bwd]
# --------------------------------------------------------------------------
def _bigru_kernel(x_ref, wih_ref, whh_ref, bih_ref, bhh_ref, out_ref, *, H, T):
    G = 3 * H
    wih = wih_ref[...]          # (E, 6H)
    whh = whh_ref[...]          # (2H, 6H)
    bih = bih_ref[...]          # (1, 6H)
    bhh = bhh_ref[...]          # (1, 6H)
    TN = x_ref.shape[0]

    # Hoisted input-gate projections: independent across timesteps, so these
    # MXU pushes stay off the serial h -> h dependency chain.
    gi = [jnp.dot(x_ref[:, t, :], wih, preferred_element_type=jnp.float32) + bih
          for t in range(T)]                                     # T x (TN, 6H)

    h_f = jnp.zeros((TN, H), jnp.float32)
    h_b = jnp.zeros((TN, H), jnp.float32)
    for i in range(T):                                           # static unroll
        tf, tb = i, T - 1 - i
        h_cat = jnp.concatenate([h_f, h_b], axis=1)              # (TN, 2H)
        # One MXU push per step for BOTH directions (block-diagonal W_hh).
        gh = jnp.dot(h_cat, whh, preferred_element_type=jnp.float32) + bhh
        gif, ghf = gi[tf][:, :G], gh[:, :G]
        gib, ghb = gi[tb][:, G:], gh[:, G:]
        # forward direction, time tf
        r = jax.nn.sigmoid(gif[:, :H] + ghf[:, :H])
        z = jax.nn.sigmoid(gif[:, H:2 * H] + ghf[:, H:2 * H])
        n = jnp.tanh(gif[:, 2 * H:] + r * ghf[:, 2 * H:])
        h_f = (1.0 - z) * n + z * h_f
        out_ref[:, tf, :H] = h_f
        # backward direction, time tb
        r = jax.nn.sigmoid(gib[:, :H] + ghb[:, :H])
        z = jax.nn.sigmoid(gib[:, H:2 * H] + ghb[:, H:2 * H])
        n = jnp.tanh(gib[:, 2 * H:] + r * ghb[:, 2 * H:])
        h_b = (1.0 - z) * n + z * h_b
        out_ref[:, tb, H:] = h_b


def bigru(x, p_fwd, p_bwd, *, max_tile=128):
    # x: (N, T, E); per-direction torch weights: (3H,in),(3H,H),(3H,),(3H,)
    N, T, E = x.shape
    wih_f, whh_f, bih_f, bhh_f = p_fwd
    wih_b, whh_b, bih_b, bhh_b = p_bwd
    H = whh_f.shape[1]
    G = 3 * H

    # Host-side weight fusion (tiny): side-by-side input weights and a
    # block-diagonal hidden weight so fwd+bwd share one matmul per step.
    wih_cat = jnp.concatenate([wih_f.T, wih_b.T], axis=1)                # (E, 6H)
    bih_cat = jnp.concatenate([bih_f, bih_b]).reshape(1, 2 * G)
    zblk = jnp.zeros((H, G), jnp.float32)
    whh_cat = jnp.concatenate(
        [jnp.concatenate([whh_f.T, zblk], axis=1),
         jnp.concatenate([zblk, whh_b.T], axis=1)], axis=0)              # (2H, 6H)
    bhh_cat = jnp.concatenate([bhh_f, bhh_b]).reshape(1, 2 * G)

    tile_n, n_pad = _tile_and_pad(N, max_tile)
    x_p = _pad_rows(x.astype(jnp.float32), n_pad)
    grid = (n_pad // tile_n,)

    kern = functools.partial(_bigru_kernel, H=H, T=T)
    out = pl.pallas_call(
        kern,
        out_shape=jax.ShapeDtypeStruct((n_pad, T, 2 * H), jnp.float32),
        grid=grid,
        in_specs=[
            pl.BlockSpec((tile_n, T, E), lambda n: (n, 0, 0)),
            pl.BlockSpec((E, 2 * G), lambda n: (0, 0)),
            pl.BlockSpec((2 * H, 2 * G), lambda n: (0, 0)),
            pl.BlockSpec((1, 2 * G), lambda n: (0, 0)),
            pl.BlockSpec((1, 2 * G), lambda n: (0, 0)),
        ],
        out_specs=pl.BlockSpec((tile_n, T, 2 * H), lambda n: (n, 0, 0)),
        compiler_params=pltpu.CompilerParams(
            dimension_semantics=("parallel",),
            vmem_limit_bytes=_VMEM_LIMIT),
    )(x_p, wih_cat, whh_cat, bih_cat, bhh_cat)
    return out[:N]


# --------------------------------------------------------------------------
# Attention kernels (vectorized over the batch tile, lane-dense outputs).
#   u = tanh(h @ Wa + ba); alpha = softmax_T(u . c); v = sum_T alpha * h
# The sentence-level variant also fuses the classifier Linear.
# --------------------------------------------------------------------------
def _attn_core(h_ref, wa, ba, c, T):
    TN = h_ref.shape[0]
    D = h_ref.shape[2]
    h_cols = [h_ref[:, t, :] for t in range(T)]                  # T x (TN, D)
    s_cols = []
    for t in range(T):
        u_t = jnp.tanh(jnp.dot(h_cols[t], wa,
                               preferred_element_type=jnp.float32) + ba)   # (TN, A)
        s_cols.append(jnp.sum(u_t * c, axis=1, keepdims=True))             # (TN, 1)
    s = jnp.concatenate(s_cols, axis=1)                          # (TN, T)
    m = jnp.max(s, axis=1, keepdims=True)
    e = jnp.exp(s - m)
    alpha = e / jnp.sum(e, axis=1, keepdims=True)                # (TN, T)
    v = jnp.zeros((TN, D), jnp.float32)
    for t in range(T):
        v = v + alpha[:, t:t + 1] * h_cols[t]
    return v, alpha


def _attn_kernel(h_ref, wa_ref, ba_ref, c_ref, v_ref, a_ref, *, T):
    v, alpha = _attn_core(h_ref, wa_ref[...], ba_ref[...], c_ref[...], T)
    v_ref[...] = v
    a_ref[...] = alpha


def _attn_cls_kernel(h_ref, wa_ref, ba_ref, c_ref, wc_ref, bc_ref,
                     v_ref, a_ref, o_ref, *, T):
    v, alpha = _attn_core(h_ref, wa_ref[...], ba_ref[...], c_ref[...], T)
    v_ref[...] = v
    a_ref[...] = alpha
    o_ref[...] = (jnp.dot(v, wc_ref[...], preferred_element_type=jnp.float32)
                  + bc_ref[...])


def attention(h, w_a, b_a, ctx, cls_w=None, cls_b=None, *, max_tile=256):
    # h: (N, T, D); w_a: (A, D); b_a: (A,); ctx: (1, A)
    # Optional fused classifier: cls_w (C, D), cls_b (C,)
    N, T, D = h.shape
    A = w_a.shape[0]
    tile_n, n_pad = _tile_and_pad(N, max_tile)
    h_p = _pad_rows(h, n_pad)
    grid = (n_pad // tile_n,)
    cparams = pltpu.CompilerParams(dimension_semantics=("parallel",),
                                   vmem_limit_bytes=_VMEM_LIMIT)

    in_specs = [
        pl.BlockSpec((tile_n, T, D), lambda n: (n, 0, 0)),
        pl.BlockSpec((D, A), lambda n: (0, 0)),
        pl.BlockSpec((1, A), lambda n: (0, 0)),
        pl.BlockSpec((1, A), lambda n: (0, 0)),
    ]
    args = [h_p, w_a.T, b_a.reshape(1, -1), ctx.reshape(1, -1)]
    out_shapes = [jax.ShapeDtypeStruct((n_pad, D), jnp.float32),
                  jax.ShapeDtypeStruct((n_pad, T), jnp.float32)]
    out_specs = [pl.BlockSpec((tile_n, D), lambda n: (n, 0)),
                 pl.BlockSpec((tile_n, T), lambda n: (n, 0))]

    if cls_w is None:
        kern = functools.partial(_attn_kernel, T=T)
    else:
        C = cls_w.shape[0]
        kern = functools.partial(_attn_cls_kernel, T=T)
        in_specs += [pl.BlockSpec((D, C), lambda n: (0, 0)),
                     pl.BlockSpec((1, C), lambda n: (0, 0))]
        args += [cls_w.T, cls_b.reshape(1, -1)]
        out_shapes.append(jax.ShapeDtypeStruct((n_pad, C), jnp.float32))
        out_specs.append(pl.BlockSpec((tile_n, C), lambda n: (n, 0)))

    outs = pl.pallas_call(
        kern,
        out_shape=tuple(out_shapes),
        grid=grid,
        in_specs=in_specs,
        out_specs=tuple(out_specs),
        compiler_params=cparams,
    )(*args)
    return tuple(o[:N] for o in outs)


# --------------------------------------------------------------------------
# Full HAN forward (Pallas kernels + minimal JAX glue).
# --------------------------------------------------------------------------
def han_forward(params, input_docs, return_hidden=False):
    B, S, W = input_docs.shape
    docs_flat = input_docs.reshape(B * S, W)
    # TODO(synk): embedding lookup is a data-dependent row gather; kept as plain-JAX glue.
    word_embeds = jnp.take(params['emb'], docs_flat, axis=0)                 # (B*S, W, E)

    word_gru_out = bigru(word_embeds, params['wgru_f'], params['wgru_b'])    # (B*S, W, 2Hw)
    sent_vectors, word_alpha = attention(word_gru_out, *params['wattn'])     # (B*S, 2Hw), (B*S, W)
    sent_vectors = sent_vectors.reshape(B, S, -1)

    sent_gru_out = bigru(sent_vectors, params['sgru_f'], params['sgru_b'])   # (B, S, 2Hs)
    doc_vectors, sent_alpha, logits = attention(
        sent_gru_out, *params['sattn'], *params['cls'])                      # (B,2Hs),(B,S),(B,C)

    word_alpha = word_alpha.reshape(B, S, W)
    if return_hidden:
        return logits, jnp.maximum(doc_vectors, 0.0), word_alpha, sent_alpha
    return logits, word_alpha, sent_alpha


# --------------------------------------------------------------------------
# Pure-JAX reference (mirrors the PyTorch module) for verification.
# --------------------------------------------------------------------------
def _gru_ref(x, w_ih, w_hh, b_ih, b_hh, reverse):
    H = w_hh.shape[1]

    def cell(h, x_t):
        gi = x_t @ w_ih.T + b_ih
        gh = h @ w_hh.T + b_hh
        ir, iz, inn = jnp.split(gi, 3, axis=-1)
        hr, hz, hn = jnp.split(gh, 3, axis=-1)
        r = jax.nn.sigmoid(ir + hr)
        z = jax.nn.sigmoid(iz + hz)
        n = jnp.tanh(inn + r * hn)
        h_new = (1.0 - z) * n + z * h
        return h_new, h_new

    xs = jnp.swapaxes(x, 0, 1)
    if reverse:
        xs = xs[::-1]
    h0 = jnp.zeros((x.shape[0], H), jnp.float32)
    _, hs = jax.lax.scan(cell, h0, xs)
    if reverse:
        hs = hs[::-1]
    return jnp.swapaxes(hs, 0, 1)


def _attn_ref(h, wa, ba, ctx):
    u = jnp.tanh(jnp.einsum('ntd,ad->nta', h, wa) + ba)
    s = jnp.sum(u * ctx.reshape(1, 1, -1), axis=-1, keepdims=True)
    alpha = jax.nn.softmax(s, axis=1)
    return jnp.sum(alpha * h, axis=1), alpha[..., 0]


def ref_forward(params, docs, return_hidden=False):
    B, S, W = docs.shape
    flat = docs.reshape(B * S, W)
    we = params['emb'][flat]
    wg = jnp.concatenate([_gru_ref(we, *params['wgru_f'], reverse=False),
                          _gru_ref(we, *params['wgru_b'], reverse=True)], axis=-1)
    sv, wa_scores = _attn_ref(wg, *params['wattn'])
    sv = sv.reshape(B, S, -1)
    sg = jnp.concatenate([_gru_ref(sv, *params['sgru_f'], reverse=False),
                          _gru_ref(sv, *params['sgru_b'], reverse=True)], axis=-1)
    dv, sa_scores = _attn_ref(sg, *params['sattn'])
    out = dv @ params['cls'][0].T + params['cls'][1]
    wa_scores = wa_scores.reshape(B, S, -1)
    if return_hidden:
        return out, jax.nn.relu(dv), wa_scores, sa_scores
    return out, wa_scores, sa_scores


# --------------------------------------------------------------------------
if __name__ == "__main__":
    V, E = 32, 16            # vocab, embedding dim
    Hw, Aw = 8, 8            # word GRU hidden, word attention dim
    Hs, As = 8, 8            # sent GRU hidden, sent attention dim
    C = 7                    # num classes
    B, S, W = 2, 3, 8        # batch, sentences, words

    key = jax.random.PRNGKey(0)
    ks = jax.random.split(key, 26)

    def U(k, shape, s=0.25):
        return jax.random.uniform(k, shape, jnp.float32, -s, s)

    params = {
        'emb': U(ks[0], (V, E), 0.5),
        'wgru_f': (U(ks[1], (3 * Hw, E)), U(ks[2], (3 * Hw, Hw)),
                   U(ks[3], (3 * Hw,)), U(ks[4], (3 * Hw,))),
        'wgru_b': (U(ks[5], (3 * Hw, E)), U(ks[6], (3 * Hw, Hw)),
                   U(ks[7], (3 * Hw,)), U(ks[8], (3 * Hw,))),
        'wattn': (U(ks[9], (Aw, 2 * Hw)), U(ks[10], (Aw,)), U(ks[11], (1, Aw))),
        'sgru_f': (U(ks[12], (3 * Hs, 2 * Hw)), U(ks[13], (3 * Hs, Hs)),
                   U(ks[14], (3 * Hs,)), U(ks[15], (3 * Hs,))),
        'sgru_b': (U(ks[16], (3 * Hs, 2 * Hw)), U(ks[17], (3 * Hs, Hs)),
                   U(ks[18], (3 * Hs,)), U(ks[19], (3 * Hs,))),
        'sattn': (U(ks[20], (As, 2 * Hs)), U(ks[21], (As,)), U(ks[22], (1, As))),
        'cls': (U(ks[23], (C, 2 * Hs)), U(ks[24], (C,))),
    }

    input_docs = jax.random.randint(ks[25], (B, S, W), 0, V, dtype=jnp.int32)

    fwd = jax.jit(han_forward, static_argnames=('return_hidden',))
    out, hidden, wa_scores, sa_scores = fwd(params, input_docs, return_hidden=True)
    jax.block_until_ready((out, hidden, wa_scores, sa_scores))

    r_out, r_hidden, r_wa, r_sa = ref_forward(params, input_docs, return_hidden=True)
    np.testing.assert_allclose(np.asarray(out), np.asarray(r_out), atol=2e-3, rtol=2e-3)
    np.testing.assert_allclose(np.asarray(hidden), np.asarray(r_hidden), atol=2e-3, rtol=2e-3)
    np.testing.assert_allclose(np.asarray(wa_scores), np.asarray(r_wa), atol=2e-3, rtol=2e-3)
    np.testing.assert_allclose(np.asarray(sa_scores), np.asarray(r_sa), atol=2e-3, rtol=2e-3)

    assert out.shape == (B, C)
    assert hidden.shape == (B, 2 * Hs)
    assert wa_scores.shape == (B, S, W)
    assert sa_scores.shape == (B, S)

    print("KERNEL_OK")
</pallas_src>

<mosaic_0001>
module attributes {stable_mosaic.version = 11 : i64} {
  func.func @_attn_kernel(%arg0: i32, %arg1: memref<8x8x16xf32, #tpu.memory_space<vmem>>, %arg2: memref<16x8xf32, #tpu.memory_space<vmem>>, %arg3: memref<1x8xf32, #tpu.memory_space<vmem>>, %arg4: memref<1x8xf32, #tpu.memory_space<vmem>>, %arg5: memref<8x16xf32, #tpu.memory_space<vmem>>, %arg6: memref<8x8xf32, #tpu.memory_space<vmem>>) attributes {dimension_semantics = [#tpu.dimension_semantics<parallel>], iteration_bounds = array<i64: 1>, scalar_prefetch = 0 : i64, scratch_operands = 0 : i64, tpu.core_type = #tpu.core_type<tc>, window_params = [{transform_indices = @transform_0, window_bounds = array<i64: 8, 8, 16>}, {pipeline_mode = #tpu.pipeline_mode<synchronous>, transform_indices = @transform_1, window_bounds = array<i64: 16, 8>}, {pipeline_mode = #tpu.pipeline_mode<synchronous>, transform_indices = @transform_2, window_bounds = array<i64: 1, 8>}, {pipeline_mode = #tpu.pipeline_mode<synchronous>, transform_indices = @transform_3, window_bounds = array<i64: 1, 8>}, {transform_indices = @transform_4, window_bounds = array<i64: 8, 16>}, {transform_indices = @transform_5, window_bounds = array<i64: 8, 8>}]} {
    %c0 = arith.constant 0 : index
    %c0_0 = arith.constant 0 : index
    %0 = vector.load %arg2[%c0, %c0_0] : memref<16x8xf32, #tpu.memory_space<vmem>>, vector<16x8xf32>
    %c0_1 = arith.constant 0 : index
    %c0_2 = arith.constant 0 : index
    %1 = vector.load %arg3[%c0_1, %c0_2] : memref<1x8xf32, #tpu.memory_space<vmem>>, vector<1x8xf32>
    %c0_3 = arith.constant 0 : index
    %c0_4 = arith.constant 0 : index
    %2 = vector.load %arg4[%c0_3, %c0_4] : memref<1x8xf32, #tpu.memory_space<vmem>>, vector<1x8xf32>
    %c0_5 = arith.constant 0 : index
    %c0_6 = arith.constant 0 : index
    %c0_7 = arith.constant 0 : index
    %3 = vector.load %arg1[%c0_5, %c0_6, %c0_7] : memref<8x8x16xf32, #tpu.memory_space<vmem>>, vector<8x1x16xf32>
    %4 = vector.shape_cast %3 : vector<8x1x16xf32> to vector<8x16xf32>
    %c0_8 = arith.constant 0 : index
    %c1 = arith.constant 1 : index
    %c0_9 = arith.constant 0 : index
    %5 = vector.load %arg1[%c0_8, %c1, %c0_9] : memref<8x8x16xf32, #tpu.memory_space<vmem>>, vector<8x1x16xf32>
    %6 = vector.shape_cast %5 : vector<8x1x16xf32> to vector<8x16xf32>
    %c0_10 = arith.constant 0 : index
    %c2 = arith.constant 2 : index
    %c0_11 = arith.constant 0 : index
    %7 = vector.load %arg1[%c0_10, %c2, %c0_11] : memref<8x8x16xf32, #tpu.memory_space<vmem>>, vector<8x1x16xf32>
    %8 = vector.shape_cast %7 : vector<8x1x16xf32> to vector<8x16xf32>
    %c0_12 = arith.constant 0 : index
    %c3 = arith.constant 3 : index
    %c0_13 = arith.constant 0 : index
    %9 = vector.load %arg1[%c0_12, %c3, %c0_13] : memref<8x8x16xf32, #tpu.memory_space<vmem>>, vector<8x1x16xf32>
    %10 = vector.shape_cast %9 : vector<8x1x16xf32> to vector<8x16xf32>
    %c0_14 = arith.constant 0 : index
    %c4 = arith.constant 4 : index
    %c0_15 = arith.constant 0 : index
    %11 = vector.load %arg1[%c0_14, %c4, %c0_15] : memref<8x8x16xf32, #tpu.memory_space<vmem>>, vector<8x1x16xf32>
    %12 = vector.shape_cast %11 : vector<8x1x16xf32> to vector<8x16xf32>
    %c0_16 = arith.constant 0 : index
    %c5 = arith.constant 5 : index
    %c0_17 = arith.constant 0 : index
    %13 = vector.load %arg1[%c0_16, %c5, %c0_17] : memref<8x8x16xf32, #tpu.memory_space<vmem>>, vector<8x1x16xf32>
    %14 = vector.shape_cast %13 : vector<8x1x16xf32> to vector<8x16xf32>
    %c0_18 = arith.constant 0 : index
    %c6 = arith.constant 6 : index
    %c0_19 = arith.constant 0 : index
    %15 = vector.load %arg1[%c0_18, %c6, %c0_19] : memref<8x8x16xf32, #tpu.memory_space<vmem>>, vector<8x1x16xf32>
    %16 = vector.shape_cast %15 : vector<8x1x16xf32> to vector<8x16xf32>
    %c0_20 = arith.constant 0 : index
    %c7 = arith.constant 7 : index
    %c0_21 = arith.constant 0 : index
    %17 = vector.load %arg1[%c0_20, %c7, %c0_21] : memref<8x8x16xf32, #tpu.memory_space<vmem>>, vector<8x1x16xf32>
    %18 = vector.shape_cast %17 : vector<8x1x16xf32> to vector<8x16xf32>
    %cst = arith.constant dense<0.000000e+00> : vector<8x8xf32>
    %19 = tpu.matmul %4, %0, %cst {dimension_numbers = #tpu.dot_dimension_numbers<[1], [0], [0], [1], [0, 0, 1, 1], [], []>} : vector<8x16xf32>, vector<16x8xf32>, vector<8x8xf32> -> vector<8x8xf32>
    %20 = vector.broadcast %1 : vector<1x8xf32> to vector<8x8xf32>
    %21 = arith.addf %19, %20 : vector<8x8xf32>
    %22 = math.tanh %21 : vector<8x8xf32>
    %23 = vector.broadcast %2 : vector<1x8xf32> to vector<8x8xf32>
    %24 = arith.mulf %22, %23 : vector<8x8xf32>
    %cst_22 = arith.constant dense<0.000000e+00> : vector<8xf32>
    %25 = vector.multi_reduction <add>, %24, %cst_22 [1] : vector<8x8xf32> to vector<8xf32>
    %26 = vector.shape_cast %25 : vector<8xf32> to vector<8x1xf32>
    %cst_23 = arith.constant dense<0.000000e+00> : vector<8x8xf32>
    %27 = tpu.matmul %6, %0, %cst_23 {dimension_numbers = #tpu.dot_dimension_numbers<[1], [0], [0], [1], [0, 0, 1, 1], [], []>} : vector<8x16xf32>, vector<16x8xf32>, vector<8x8xf32> -> vector<8x8xf32>
    %28 = vector.broadcast %1 : vector<1x8xf32> to vector<8x8xf32>
    %29 = arith.addf %27, %28 : vector<8x8xf32>
    %30 = math.tanh %29 : vector<8x8xf32>
    %31 = vector.broadcast %2 : vector<1x8xf32> to vector<8x8xf32>
    %32 = arith.mulf %30, %31 : vector<8x8xf32>
    %cst_24 = arith.constant dense<0.000000e+00> : vector<8xf32>
    %33 = vector.multi_reduction <add>, %32, %cst_24 [1] : vector<8x8xf32> to vector<8xf32>
    %34 = vector.shape_cast %33 : vector<8xf32> to vector<8x1xf32>
    %cst_25 = arith.constant dense<0.000000e+00> : vector<8x8xf32>
    %35 = tpu.matmul %8, %0, %cst_25 {dimension_numbers = #tpu.dot_dimension_numbers<[1], [0], [0], [1], [0, 0, 1, 1], [], []>} : vector<8x16xf32>, vector<16x8xf32>, vector<8x8xf32> -> vector<8x8xf32>
    %36 = vector.broadcast %1 : vector<1x8xf32> to vector<8x8xf32>
    %37 = arith.addf %35, %36 : vector<8x8xf32>
    %38 = math.tanh %37 : vector<8x8xf32>
    %39 = vector.broadcast %2 : vector<1x8xf32> to vector<8x8xf32>
    %40 = arith.mulf %38, %39 : vector<8x8xf32>
    %cst_26 = arith.constant dense<0.000000e+00> : vector<8xf32>
    %41 = vector.multi_reduction <add>, %40, %cst_26 [1] : vector<8x8xf32> to vector<8xf32>
    %42 = vector.shape_cast %41 : vector<8xf32> to vector<8x1xf32>
    %cst_27 = arith.constant dense<0.000000e+00> : vector<8x8xf32>
    %43 = tpu.matmul %10, %0, %cst_27 {dimension_numbers = #tpu.dot_dimension_numbers<[1], [0], [0], [1], [0, 0, 1, 1], [], []>} : vector<8x16xf32>, vector<16x8xf32>, vector<8x8xf32> -> vector<8x8xf32>
    %44 = vector.broadcast %1 : vector<1x8xf32> to vector<8x8xf32>
    %45 = arith.addf %43, %44 : vector<8x8xf32>
    %46 = math.tanh %45 : vector<8x8xf32>
    %47 = vector.broadcast %2 : vector<1x8xf32> to vector<8x8xf32>
    %48 = arith.mulf %46, %47 : vector<8x8xf32>
    %cst_28 = arith.constant dense<0.000000e+00> : vector<8xf32>
    %49 = vector.multi_reduction <add>, %48, %cst_28 [1] : vector<8x8xf32> to vector<8xf32>
    %50 = vector.shape_cast %49 : vector<8xf32> to vector<8x1xf32>
    %cst_29 = arith.constant dense<0.000000e+00> : vector<8x8xf32>
    %51 = tpu.matmul %12, %0, %cst_29 {dimension_numbers = #tpu.dot_dimension_numbers<[1], [0], [0], [1], [0, 0, 1, 1], [], []>} : vector<8x16xf32>, vector<16x8xf32>, vector<8x8xf32> -> vector<8x8xf32>
    %52 = vector.broadcast %1 : vector<1x8xf32> to vector<8x8xf32>
    %53 = arith.addf %51, %52 : vector<8x8xf32>
    %54 = math.tanh %53 : vector<8x8xf32>
    %55 = vector.broadcast %2 : vector<1x8xf32> to vector<8x8xf32>
    %56 = arith.mulf %54, %55 : vector<8x8xf32>
    %cst_30 = arith.constant dense<0.000000e+00> : vector<8xf32>
    %57 = vector.multi_reduction <add>, %56, %cst_30 [1] : vector<8x8xf32> to vector<8xf32>
    %58 = vector.shape_cast %57 : vector<8xf32> to vector<8x1xf32>
    %cst_31 = arith.constant dense<0.000000e+00> : vector<8x8xf32>
    %59 = tpu.matmul %14, %0, %cst_31 {dimension_numbers = #tpu.dot_dimension_numbers<[1], [0], [0], [1], [0, 0, 1, 1], [], []>} : vector<8x16xf32>, vector<16x8xf32>, vector<8x8xf32> -> vector<8x8xf32>
    %60 = vector.broadcast %1 : vector<1x8xf32> to vector<8x8xf32>
    %61 = arith.addf %59, %60 : vector<8x8xf32>
    %62 = math.tanh %61 : vector<8x8xf32>
    %63 = vector.broadcast %2 : vector<1x8xf32> to vector<8x8xf32>
    %64 = arith.mulf %62, %63 : vector<8x8xf32>
    %cst_32 = arith.constant dense<0.000000e+00> : vector<8xf32>
    %65 = vector.multi_reduction <add>, %64, %cst_32 [1] : vector<8x8xf32> to vector<8xf32>
    %66 = vector.shape_cast %65 : vector<8xf32> to vector<8x1xf32>
    %cst_33 = arith.constant dense<0.000000e+00> : vector<8x8xf32>
    %67 = tpu.matmul %16, %0, %cst_33 {dimension_numbers = #tpu.dot_dimension_numbers<[1], [0], [0], [1], [0, 0, 1, 1], [], []>} : vector<8x16xf32>, vector<16x8xf32>, vector<8x8xf32> -> vector<8x8xf32>
    %68 = vector.broadcast %1 : vector<1x8xf32> to vector<8x8xf32>
    %69 = arith.addf %67, %68 : vector<8x8xf32>
    %70 = math.tanh %69 : vector<8x8xf32>
    %71 = vector.broadcast %2 : vector<1x8xf32> to vector<8x8xf32>
    %72 = arith.mulf %70, %71 : vector<8x8xf32>
    %cst_34 = arith.constant dense<0.000000e+00> : vector<8xf32>
    %73 = vector.multi_reduction <add>, %72, %cst_34 [1] : vector<8x8xf32> to vector<8xf32>
    %74 = vector.shape_cast %73 : vector<8xf32> to vector<8x1xf32>
    %cst_35 = arith.constant dense<0.000000e+00> : vector<8x8xf32>
    %75 = tpu.matmul %18, %0, %cst_35 {dimension_numbers = #tpu.dot_dimension_numbers<[1], [0], [0], [1], [0, 0, 1, 1], [], []>} : vector<8x16xf32>, vector<16x8xf32>, vector<8x8xf32> -> vector<8x8xf32>
    %76 = vector.broadcast %1 : vector<1x8xf32> to vector<8x8xf32>
    %77 = arith.addf %75, %76 : vector<8x8xf32>
    %78 = math.tanh %77 : vector<8x8xf32>
    %79 = vector.broadcast %2 : vector<1x8xf32> to vector<8x8xf32>
    %80 = arith.mulf %78, %79 : vector<8x8xf32>
    %cst_36 = arith.constant dense<0.000000e+00> : vector<8xf32>
    %81 = vector.multi_reduction <add>, %80, %cst_36 [1] : vector<8x8xf32> to vector<8xf32>
    %82 = vector.shape_cast %81 : vector<8xf32> to vector<8x1xf32>
    %83 = tpu.concatenate %26, %34, %42, %50, %58, %66, %74, %82 in 1 : vector<8x1xf32>, vector<8x1xf32>, vector<8x1xf32>, vector<8x1xf32>, vector<8x1xf32>, vector<8x1xf32>, vector<8x1xf32>, vector<8x1xf32> -> vector<8x8xf32>
    %cst_37 = arith.constant dense<0xFF800000> : vector<8xf32>
    %84 = vector.multi_reduction <maximumf>, %83, %cst_37 [1] : vector<8x8xf32> to vector<8xf32>
    %85 = vector.shape_cast %84 : vector<8xf32> to vector<8x1xf32>
    %86 = vector.broadcast %85 : vector<8x1xf32> to vector<8x8xf32>
    %87 = arith.subf %83, %86 : vector<8x8xf32>
    %88 = math.exp %87 : vector<8x8xf32>
    %cst_38 = arith.constant dense<0.000000e+00> : vector<8xf32>
    %89 = vector.multi_reduction <add>, %88, %cst_38 [1] : vector<8x8xf32> to vector<8xf32>
    %90 = vector.shape_cast %89 : vector<8xf32> to vector<8x1xf32>
    %91 = vector.broadcast %90 : vector<8x1xf32> to vector<8x8xf32>
    %92 = arith.divf %88, %91 : vector<8x8xf32>
    %cst_39 = arith.constant 0.000000e+00 : f32
    %93 = vector.broadcast %cst_39 : f32 to vector<8x16xf32>
    %94 = vector.extract_strided_slice %92 {offsets = [0, 0], sizes = [8, 1], strides = [1, 1]} : vector<8x8xf32> to vector<8x1xf32>
    %95 = vector.broadcast %94 : vector<8x1xf32> to vector<8x16xf32>
    %96 = arith.mulf %95, %4 : vector<8x16xf32>
    %97 = arith.addf %93, %96 : vector<8x16xf32>
    %98 = vector.extract_strided_slice %92 {offsets = [0, 1], sizes = [8, 1], strides = [1, 1]} : vector<8x8xf32> to vector<8x1xf32>
    %99 = vector.broadcast %98 : vector<8x1xf32> to vector<8x16xf32>
    %100 = arith.mulf %99, %6 : vector<8x16xf32>
    %101 = arith.addf %97, %100 : vector<8x16xf32>
    %102 = vector.extract_strided_slice %92 {offsets = [0, 2], sizes = [8, 1], strides = [1, 1]} : vector<8x8xf32> to vector<8x1xf32>
    %103 = vector.broadcast %102 : vector<8x1xf32> to vector<8x16xf32>
    %104 = arith.mulf %103, %8 : vector<8x16xf32>
    %105 = arith.addf %101, %104 : vector<8x16xf32>
    %106 = vector.extract_strided_slice %92 {offsets = [0, 3], sizes = [8, 1], strides = [1, 1]} : vector<8x8xf32> to vector<8x1xf32>
    %107 = vector.broadcast %106 : vector<8x1xf32> to vector<8x16xf32>
    %108 = arith.mulf %107, %10 : vector<8x16xf32>
    %109 = arith.addf %105, %108 : vector<8x16xf32>
    %110 = vector.extract_strided_slice %92 {offsets = [0, 4], sizes = [8, 1], strides = [1, 1]} : vector<8x8xf32> to vector<8x1xf32>
    %111 = vector.broadcast %110 : vector<8x1xf32> to vector<8x16xf32>
    %112 = arith.mulf %111, %12 : vector<8x16xf32>
    %113 = arith.addf %109, %112 : vector<8x16xf32>
    %114 = vector.extract_strided_slice %92 {offsets = [0, 5], sizes = [8, 1], strides = [1, 1]} : vector<8x8xf32> to vector<8x1xf32>
    %115 = vector.broadcast %114 : vector<8x1xf32> to vector<8x16xf32>
    %116 = arith.mulf %115, %14 : vector<8x16xf32>
    %117 = arith.addf %113, %116 : vector<8x16xf32>
    %118 = vector.extract_strided_slice %92 {offsets = [0, 6], sizes = [8, 1], strides = [1, 1]} : vector<8x8xf32> to vector<8x1xf32>
    %119 = vector.broadcast %118 : vector<8x1xf32> to vector<8x16xf32>
    %120 = arith.mulf %119, %16 : vector<8x16xf32>
    %121 = arith.addf %117, %120 : vector<8x16xf32>
    %122 = vector.extract_strided_slice %92 {offsets = [0, 7], sizes = [8, 1], strides = [1, 1]} : vector<8x8xf32> to vector<8x1xf32>
    %123 = vector.broadcast %122 : vector<8x1xf32> to vector<8x16xf32>
    %124 = arith.mulf %123, %18 : vector<8x16xf32>
    %125 = arith.addf %121, %124 : vector<8x16xf32>
    %c0_40 = arith.constant 0 : index
    %c0_41 = arith.constant 0 : index
    %126 = vector.load %arg5[%c0_40, %c0_41] : memref<8x16xf32, #tpu.memory_space<vmem>>, vector<8x16xf32>
    tpu.vector_store %arg5[%c0_40, %c0_41], %125 {strides = array<i32>} : memref<8x16xf32, #tpu.memory_space<vmem>>, vector<8x16xf32>,
    %c0_42 = arith.constant 0 : index
    %c0_43 = arith.constant 0 : index
    %127 = vector.load %arg6[%c0_42, %c0_43] : memref<8x8xf32, #tpu.memory_space<vmem>>, vector<8x8xf32>
    tpu.vector_store %arg6[%c0_42, %c0_43], %92 {strides = array<i32>} : memref<8x8xf32, #tpu.memory_space<vmem>>, vector<8x8xf32>,
    return
  }
  func.func @transform_0(%arg0: i32) -> (i32, i32, i32) {
    %c0_i32 = arith.constant 0 : i32
    %c0_i32_0 = arith.constant 0 : i32
    %c0_i32_1 = arith.constant 0 : i32
    return %arg0, %c0_i32, %c0_i32_0 : i32, i32, i32
  }
  func.func @transform_1(%arg0: i32) -> (i32, i32) {
    %c0_i32 = arith.constant 0 : i32
    %c0_i32_0 = arith.constant 0 : i32
    %c0_i32_1 = arith.constant 0 : i32
    return %c0_i32, %c0_i32_0 : i32, i32
  }
  func.func @transform_2(%arg0: i32) -> (i32, i32) {
    %c0_i32 = arith.constant 0 : i32
    %c0_i32_0 = arith.constant 0 : i32
    %c0_i32_1 = arith.constant 0 : i32
    return %c0_i32, %c0_i32_0 : i32, i32
  }
  func.func @transform_3(%arg0: i32) -> (i32, i32) {
    %c0_i32 = arith.constant 0 : i32
    %c0_i32_0 = arith.constant 0 : i32
    %c0_i32_1 = arith.constant 0 : i32
    return %c0_i32, %c0_i32_0 : i32, i32
  }
  func.func @transform_4(%arg0: i32) -> (i32, i32) {
    %c0_i32 = arith.constant 0 : i32
    %c0_i32_0 = arith.constant 0 : i32
    return %arg0, %c0_i32 : i32, i32
  }
  func.func @transform_5(%arg0: i32) -> (i32, i32) {
    %c0_i32 = arith.constant 0 : i32
    %c0_i32_0 = arith.constant 0 : i32
    return %arg0, %c0_i32 : i32, i32
  }
}

module attributes {stable_mosaic.version = 11 : i64} {
  func.func @_bigru_kernel(%arg0: i32, %arg1: memref<8x3x16xf32, #tpu.memory_space<vmem>>, %arg2: memref<16x48xf32, #tpu.memory_space<vmem>>, %arg3: memref<16x48xf32, #tpu.memory_space<vmem>>, %arg4: memref<1x48xf32, #tpu.memory_space<vmem>>, %arg5: memref<1x48xf32, #tpu.memory_space<vmem>>, %arg6: memref<8x3x16xf32, #tpu.memory_space<vmem>>) attributes {dimension_semantics = [#tpu.dimension_semantics<parallel>], iteration_bounds = array<i64: 1>, scalar_prefetch = 0 : i64, scratch_operands = 0 : i64, tpu.core_type = #tpu.core_type<tc>, window_params = [{transform_indices = @transform_0, window_bounds = array<i64: 8, 3, 16>}, {pipeline_mode = #tpu.pipeline_mode<synchronous>, transform_indices = @transform_1, window_bounds = array<i64: 16, 48>}, {pipeline_mode = #tpu.pipeline_mode<synchronous>, transform_indices = @transform_2, window_bounds = array<i64: 16, 48>}, {pipeline_mode = #tpu.pipeline_mode<synchronous>, transform_indices = @transform_3, window_bounds = array<i64: 1, 48>}, {pipeline_mode = #tpu.pipeline_mode<synchronous>, transform_indices = @transform_4, window_bounds = array<i64: 1, 48>}, {transform_indices = @transform_5, window_bounds = array<i64: 8, 3, 16>}]} {
    %c0 = arith.constant 0 : index
    %c0_0 = arith.constant 0 : index
    %0 = vector.load %arg2[%c0, %c0_0] : memref<16x48xf32, #tpu.memory_space<vmem>>, vector<16x48xf32>
    %c0_1 = arith.constant 0 : index
    %c0_2 = arith.constant 0 : index
    %1 = vector.load %arg3[%c0_1, %c0_2] : memref<16x48xf32, #tpu.memory_space<vmem>>, vector<16x48xf32>
    %c0_3 = arith.constant 0 : index
    %c0_4 = arith.constant 0 : index
    %2 = vector.load %arg4[%c0_3, %c0_4] : memref<1x48xf32, #tpu.memory_space<vmem>>, vector<1x48xf32>
    %c0_5 = arith.constant 0 : index
    %c0_6 = arith.constant 0 : index
    %3 = vector.load %arg5[%c0_5, %c0_6] : memref<1x48xf32, #tpu.memory_space<vmem>>, vector<1x48xf32>
    %c0_7 = arith.constant 0 : index
    %c0_8 = arith.constant 0 : index
    %c0_9 = arith.constant 0 : index
    %4 = vector.load %arg1[%c0_7, %c0_8, %c0_9] : memref<8x3x16xf32, #tpu.memory_space<vmem>>, vector<8x1x16xf32>
    %5 = vector.shape_cast %4 : vector<8x1x16xf32> to vector<8x16xf32>
    %cst = arith.constant dense<0.000000e+00> : vector<8x48xf32>
    %6 = tpu.matmul %5, %0, %cst {dimension_numbers = #tpu.dot_dimension_numbers<[1], [0], [0], [1], [0, 0, 1, 1], [], []>} : vector<8x16xf32>, vector<16x48xf32>, vector<8x48xf32> -> vector<8x48xf32>
    %7 = vector.broadcast %2 : vector<1x48xf32> to vector<8x48xf32>
    %8 = arith.addf %6, %7 : vector<8x48xf32>
    %c0_10 = arith.constant 0 : index
    %c1 = arith.constant 1 : index
    %c0_11 = arith.constant 0 : index
    %9 = vector.load %arg1[%c0_10, %c1, %c0_11] : memref<8x3x16xf32, #tpu.memory_space<vmem>>, vector<8x1x16xf32>
    %10 = vector.shape_cast %9 : vector<8x1x16xf32> to vector<8x16xf32>
    %cst_12 = arith.constant dense<0.000000e+00> : vector<8x48xf32>
    %11 = tpu.matmul %10, %0, %cst_12 {dimension_numbers = #tpu.dot_dimension_numbers<[1], [0], [0], [1], [0, 0, 1, 1], [], []>} : vector<8x16xf32>, vector<16x48xf32>, vector<8x48xf32> -> vector<8x48xf32>
    %12 = vector.broadcast %2 : vector<1x48xf32> to vector<8x48xf32>
    %13 = arith.addf %11, %12 : vector<8x48xf32>
    %c0_13 = arith.constant 0 : index
    %c2 = arith.constant 2 : index
    %c0_14 = arith.constant 0 : index
    %14 = vector.load %arg1[%c0_13, %c2, %c0_14] : memref<8x3x16xf32, #tpu.memory_space<vmem>>, vector<8x1x16xf32>
    %15 = vector.shape_cast %14 : vector<8x1x16xf32> to vector<8x16xf32>
    %cst_15 = arith.constant dense<0.000000e+00> : vector<8x48xf32>
    %16 = tpu.matmul %15, %0, %cst_15 {dimension_numbers = #tpu.dot_dimension_numbers<[1], [0], [0], [1], [0, 0, 1, 1], [], []>} : vector<8x16xf32>, vector<16x48xf32>, vector<8x48xf32> -> vector<8x48xf32>
    %17 = vector.broadcast %2 : vector<1x48xf32> to vector<8x48xf32>
    %18 = arith.addf %16, %17 : vector<8x48xf32>
    %cst_16 = arith.constant 0.000000e+00 : f32
    %19 = vector.broadcast %cst_16 : f32 to vector<8x8xf32>
    %cst_17 = arith.constant 0.000000e+00 : f32
    %20 = vector.broadcast %cst_17 : f32 to vector<8x8xf32>
    %21 = tpu.concatenate %19, %20 in 1 : vector<8x8xf32>, vector<8x8xf32> -> vector<8x16xf32>
    %cst_18 = arith.constant dense<0.000000e+00> : vector<8x48xf32>
    %22 = tpu.matmul %21, %1, %cst_18 {dimension_numbers = #tpu.dot_dimension_numbers<[1], [0], [0], [1], [0, 0, 1, 1], [], []>} : vector<8x16xf32>, vector<16x48xf32>, vector<8x48xf32> -> vector<8x48xf32>
    %23 = vector.broadcast %3 : vector<1x48xf32> to vector<8x48xf32>
    %24 = arith.addf %22, %23 : vector<8x48xf32>
    %25 = vector.extract_strided_slice %8 {offsets = [0, 0], sizes = [8, 24], strides = [1, 1]} : vector<8x48xf32> to vector<8x24xf32>
    %26 = vector.extract_strided_slice %24 {offsets = [0, 0], sizes = [8, 24], strides = [1, 1]} : vector<8x48xf32> to vector<8x24xf32>
    %27 = vector.extract_strided_slice %18 {offsets = [0, 24], sizes = [8, 24], strides = [1, 1]} : vector<8x48xf32> to vector<8x24xf32>
    %28 = vector.extract_strided_slice %24 {offsets = [0, 24], sizes = [8, 24], strides = [1, 1]} : vector<8x48xf32> to vector<8x24xf32>
    %29 = vector.extract_strided_slice %25 {offsets = [0, 0], sizes = [8, 8], strides = [1, 1]} : vector<8x24xf32> to vector<8x8xf32>
    %30 = vector.extract_strided_slice %26 {offsets = [0, 0], sizes = [8, 8], strides = [1, 1]} : vector<8x24xf32> to vector<8x8xf32>
    %31 = arith.addf %29, %30 : vector<8x8xf32>
    %32 = arith.negf %31 : vector<8x8xf32>
    %33 = math.exp %32 : vector<8x8xf32>
    %cst_19 = arith.constant 1.000000e+00 : f32
    %34 = vector.broadcast %cst_19 : f32 to vector<8x8xf32>
    %35 = arith.addf %34, %33 : vector<8x8xf32>
    %36 = arith.divf %34, %35 : vector<8x8xf32>
    %37 = vector.extract_strided_slice %25 {offsets = [0, 8], sizes = [8, 8], strides = [1, 1]} : vector<8x24xf32> to vector<8x8xf32>
    %38 = vector.extract_strided_slice %26 {offsets = [0, 8], sizes = [8, 8], strides = [1, 1]} : vector<8x24xf32> to vector<8x8xf32>
    %39 = arith.addf %37, %38 : vector<8x8xf32>
    %40 = arith.negf %39 : vector<8x8xf32>
    %41 = math.exp %40 : vector<8x8xf32>
    %cst_20 = arith.constant 1.000000e+00 : f32
    %42 = vector.broadcast %cst_20 : f32 to vector<8x8xf32>
    %43 = arith.addf %42, %41 : vector<8x8xf32>
    %44 = arith.divf %42, %43 : vector<8x8xf32>
    %45 = vector.extract_strided_slice %25 {offsets = [0, 16], sizes = [8, 8], strides = [1, 1]} : vector<8x24xf32> to vector<8x8xf32>
    %46 = vector.extract_strided_slice %26 {offsets = [0, 16], sizes = [8, 8], strides = [1, 1]} : vector<8x24xf32> to vector<8x8xf32>
    %47 = arith.mulf %36, %46 : vector<8x8xf32>
    %48 = arith.addf %45, %47 : vector<8x8xf32>
    %49 = math.tanh %48 : vector<8x8xf32>
    %cst_21 = arith.constant 1.000000e+00 : f32
    %50 = vector.broadcast %cst_21 : f32 to vector<8x8xf32>
    %51 = arith.subf %50, %44 : vector<8x8xf32>
    %52 = arith.mulf %51, %49 : vector<8x8xf32>
    %53 = arith.mulf %44, %19 : vector<8x8xf32>
    %54 = arith.addf %52, %53 : vector<8x8xf32>
    %c0_22 = arith.constant 0 : index
    %c0_23 = arith.constant 0 : index
    %c0_24 = arith.constant 0 : index
    %55 = vector.load %arg6[%c0_22, %c0_23, %c0_24] : memref<8x3x16xf32, #tpu.memory_space<vmem>>, vector<8x1x8xf32>
    %56 = vector.shape_cast %55 : vector<8x1x8xf32> to vector<8x8xf32>
    %57 = vector.shape_cast %54 : vector<8x8xf32> to vector<8x1x8xf32>
    tpu.vector_store %arg6[%c0_22, %c0_23, %c0_24], %57 {strides = array<i32>} : memref<8x3x16xf32, #tpu.memory_space<vmem>>, vector<8x1x8xf32>,
    %58 = vector.extract_strided_slice %27 {offsets = [0, 0], sizes = [8, 8], strides = [1, 1]} : vector<8x24xf32> to vector<8x8xf32>
    %59 = vector.extract_strided_slice %28 {offsets = [0, 0], sizes = [8, 8], strides = [1, 1]} : vector<8x24xf32> to vector<8x8xf32>
    %60 = arith.addf %58, %59 : vector<8x8xf32>
    %61 = arith.negf %60 : vector<8x8xf32>
    %62 = math.exp %61 : vector<8x8xf32>
    %cst_25 = arith.constant 1.000000e+00 : f32
    %63 = vector.broadcast %cst_25 : f32 to vector<8x8xf32>
    %64 = arith.addf %63, %62 : vector<8x8xf32>
    %65 = arith.divf %63, %64 : vector<8x8xf32>
    %66 = vector.extract_strided_slice %27 {offsets = [0, 8], sizes = [8, 8], strides = [1, 1]} : vector<8x24xf32> to vector<8x8xf32>
    %67 = vector.extract_strided_slice %28 {offsets = [0, 8], sizes = [8, 8], strides = [1, 1]} : vector<8x24xf32> to vector<8x8xf32>
    %68 = arith.addf %66, %67 : vector<8x8xf32>
    %69 = arith.negf %68 : vector<8x8xf32>
    %70 = math.exp %69 : vector<8x8xf32>
    %cst_26 = arith.constant 1.000000e+00 : f32
    %71 = vector.broadcast %cst_26 : f32 to vector<8x8xf32>
    %72 = arith.addf %71, %70 : vector<8x8xf32>
    %73 = arith.divf %71, %72 : vector<8x8xf32>
    %74 = vector.extract_strided_slice %27 {offsets = [0, 16], sizes = [8, 8], strides = [1, 1]} : vector<8x24xf32> to vector<8x8xf32>
    %75 = vector.extract_strided_slice %28 {offsets = [0, 16], sizes = [8, 8], strides = [1, 1]} : vector<8x24xf32> to vector<8x8xf32>
    %76 = arith.mulf %65, %75 : vector<8x8xf32>
    %77 = arith.addf %74, %76 : vector<8x8xf32>
    %78 = math.tanh %77 : vector<8x8xf32>
    %cst_27 = arith.constant 1.000000e+00 : f32
    %79 = vector.broadcast %cst_27 : f32 to vector<8x8xf32>
    %80 = arith.subf %79, %73 : vector<8x8xf32>
    %81 = arith.mulf %80, %78 : vector<8x8xf32>
    %82 = arith.mulf %73, %20 : vector<8x8xf32>
    %83 = arith.addf %81, %82 : vector<8x8xf32>
    %c0_28 = arith.constant 0 : index
    %c2_29 = arith.constant 2 : index
    %c8 = arith.constant 8 : index
    %84 = vector.load %arg6[%c0_28, %c2_29, %c8] : memref<8x3x16xf32, #tpu.memory_space<vmem>>, vector<8x1x8xf32>
    %85 = vector.shape_cast %84 : vector<8x1x8xf32> to vector<8x8xf32>
    %86 = vector.shape_cast %83 : vector<8x8xf32> to vector<8x1x8xf32>
    tpu.vector_store %arg6[%c0_28, %c2_29, %c8], %86 {strides = array<i32>} : memref<8x3x16xf32, #tpu.memory_space<vmem>>, vector<8x1x8xf32>,
    %87 = tpu.concatenate %54, %83 in 1 : vector<8x8xf32>, vector<8x8xf32> -> vector<8x16xf32>
    %cst_30 = arith.constant dense<0.000000e+00> : vector<8x48xf32>
    %88 = tpu.matmul %87, %1, %cst_30 {dimension_numbers = #tpu.dot_dimension_numbers<[1], [0], [0], [1], [0, 0, 1, 1], [], []>} : vector<8x16xf32>, vector<16x48xf32>, vector<8x48xf32> -> vector<8x48xf32>
    %89 = vector.broadcast %3 : vector<1x48xf32> to vector<8x48xf32>
    %90 = arith.addf %88, %89 : vector<8x48xf32>
    %91 = vector.extract_strided_slice %13 {offsets = [0, 0], sizes = [8, 24], strides = [1, 1]} : vector<8x48xf32> to vector<8x24xf32>
    %92 = vector.extract_strided_slice %90 {offsets = [0, 0], sizes = [8, 24], strides = [1, 1]} : vector<8x48xf32> to vector<8x24xf32>
    %93 = vector.extract_strided_slice %13 {offsets = [0, 24], sizes = [8, 24], strides = [1, 1]} : vector<8x48xf32> to vector<8x24xf32>
    %94 = vector.extract_strided_slice %90 {offsets = [0, 24], sizes = [8, 24], strides = [1, 1]} : vector<8x48xf32> to vector<8x24xf32>
    %95 = vector.extract_strided_slice %91 {offsets = [0, 0], sizes = [8, 8], strides = [1, 1]} : vector<8x24xf32> to vector<8x8xf32>
    %96 = vector.extract_strided_slice %92 {offsets = [0, 0], sizes = [8, 8], strides = [1, 1]} : vector<8x24xf32> to vector<8x8xf32>
    %97 = arith.addf %95, %96 : vector<8x8xf32>
    %98 = arith.negf %97 : vector<8x8xf32>
    %99 = math.exp %98 : vector<8x8xf32>
    %cst_31 = arith.constant 1.000000e+00 : f32
    %100 = vector.broadcast %cst_31 : f32 to vector<8x8xf32>
    %101 = arith.addf %100, %99 : vector<8x8xf32>
    %102 = arith.divf %100, %101 : vector<8x8xf32>
    %103 = vector.extract_strided_slice %91 {offsets = [0, 8], sizes = [8, 8], strides = [1, 1]} : vector<8x24xf32> to vector<8x8xf32>
    %104 = vector.extract_strided_slice %92 {offsets = [0, 8], sizes = [8, 8], strides = [1, 1]} : vector<8x24xf32> to vector<8x8xf32>
    %105 = arith.addf %103, %104 : vector<8x8xf32>
    %106 = arith.negf %105 : vector<8x8xf32>
    %107 = math.exp %106 : vector<8x8xf32>
    %cst_32 = arith.constant 1.000000e+00 : f32
    %108 = vector.broadcast %cst_32 : f32 to vector<8x8xf32>
    %109 = arith.addf %108, %107 : vector<8x8xf32>
    %110 = arith.divf %108, %109 : vector<8x8xf32>
    %111 = vector.extract_strided_slice %91 {offsets = [0, 16], sizes = [8, 8], strides = [1, 1]} : vector<8x24xf32> to vector<8x8xf32>
    %112 = vector.extract_strided_slice %92 {offsets = [0, 16], sizes = [8, 8], strides = [1, 1]} : vector<8x24xf32> to vector<8x8xf32>
    %113 = arith.mulf %102, %112 : vector<8x8xf32>
    %114 = arith.addf %111, %113 : vector<8x8xf32>
    %115 = math.tanh %114 : vector<8x8xf32>
    %cst_33 = arith.constant 1.000000e+00 : f32
    %116 = vector.broadcast %cst_33 : f32 to vector<8x8xf32>
    %117 = arith.subf %116, %110 : vector<8x8xf32>
    %118 = arith.mulf %117, %115 : vector<8x8xf32>
    %119 = arith.mulf %110, %54 : vector<8x8xf32>
    %120 = arith.addf %118, %119 : vector<8x8xf32>
    %c0_34 = arith.constant 0 : index
    %c1_35 = arith.constant 1 : index
    %c0_36 = arith.constant 0 : index
    %121 = vector.load %arg6[%c0_34, %c1_35, %c0_36] : memref<8x3x16xf32, #tpu.memory_space<vmem>>, vector<8x1x8xf32>
    %122 = vector.shape_cast %121 : vector<8x1x8xf32> to vector<8x8xf32>
    %123 = vector.shape_cast %120 : vector<8x8xf32> to vector<8x1x8xf32>
    tpu.vector_store %arg6[%c0_34, %c1_35, %c0_36], %123 {strides = array<i32>} : memref<8x3x16xf32, #tpu.memory_space<vmem>>, vector<8x1x8xf32>,
    %124 = vector.extract_strided_slice %93 {offsets = [0, 0], sizes = [8, 8], strides = [1, 1]} : vector<8x24xf32> to vector<8x8xf32>
    %125 = vector.extract_strided_slice %94 {offsets = [0, 0], sizes = [8, 8], strides = [1, 1]} : vector<8x24xf32> to vector<8x8xf32>
    %126 = arith.addf %124, %125 : vector<8x8xf32>
    %127 = arith.negf %126 : vector<8x8xf32>
    %128 = math.exp %127 : vector<8x8xf32>
    %cst_37 = arith.constant 1.000000e+00 : f32
    %129 = vector.broadcast %cst_37 : f32 to vector<8x8xf32>
    %130 = arith.addf %129, %128 : vector<8x8xf32>
    %131 = arith.divf %129, %130 : vector<8x8xf32>
    %132 = vector.extract_strided_slice %93 {offsets = [0, 8], sizes = [8, 8], strides = [1, 1]} : vector<8x24xf32> to vector<8x8xf32>
    %133 = vector.extract_strided_slice %94 {offsets = [0, 8], sizes = [8, 8], strides = [1, 1]} : vector<8x24xf32> to vector<8x8xf32>
    %134 = arith.addf %132, %133 : vector<8x8xf32>
    %135 = arith.negf %134 : vector<8x8xf32>
    %136 = math.exp %135 : vector<8x8xf32>
    %cst_38 = arith.constant 1.000000e+00 : f32
    %137 = vector.broadcast %cst_38 : f32 to vector<8x8xf32>
    %138 = arith.addf %137, %136 : vector<8x8xf32>
    %139 = arith.divf %137, %138 : vector<8x8xf32>
    %140 = vector.extract_strided_slice %93 {offsets = [0, 16], sizes = [8, 8], strides = [1, 1]} : vector<8x24xf32> to vector<8x8xf32>
    %141 = vector.extract_strided_slice %94 {offsets = [0, 16], sizes = [8, 8], strides = [1, 1]} : vector<8x24xf32> to vector<8x8xf32>
    %142 = arith.mulf %131, %141 : vector<8x8xf32>
    %143 = arith.addf %140, %142 : vector<8x8xf32>
    %144 = math.tanh %143 : vector<8x8xf32>
    %cst_39 = arith.constant 1.000000e+00 : f32
    %145 = vector.broadcast %cst_39 : f32 to vector<8x8xf32>
    %146 = arith.subf %145, %139 : vector<8x8xf32>
    %147 = arith.mulf %146, %144 : vector<8x8xf32>
    %148 = arith.mulf %139, %83 : vector<8x8xf32>
    %149 = arith.addf %147, %148 : vector<8x8xf32>
    %c0_40 = arith.constant 0 : index
    %c1_41 = arith.constant 1 : index
    %c8_42 = arith.constant 8 : index
    %150 = vector.load %arg6[%c0_40, %c1_41, %c8_42] : memref<8x3x16xf32, #tpu.memory_space<vmem>>, vector<8x1x8xf32>
    %151 = vector.shape_cast %150 : vector<8x1x8xf32> to vector<8x8xf32>
    %152 = vector.shape_cast %149 : vector<8x8xf32> to vector<8x1x8xf32>
    tpu.vector_store %arg6[%c0_40, %c1_41, %c8_42], %152 {strides = array<i32>} : memref<8x3x16xf32, #tpu.memory_space<vmem>>, vector<8x1x8xf32>,
    %153 = tpu.concatenate %120, %149 in 1 : vector<8x8xf32>, vector<8x8xf32> -> vector<8x16xf32>
    %cst_43 = arith.constant dense<0.000000e+00> : vector<8x48xf32>
    %154 = tpu.matmul %153, %1, %cst_43 {dimension_numbers = #tpu.dot_dimension_numbers<[1], [0], [0], [1], [0, 0, 1, 1], [], []>} : vector<8x16xf32>, vector<16x48xf32>, vector<8x48xf32> -> vector<8x48xf32>
    %155 = vector.broadcast %3 : vector<1x48xf32> to vector<8x48xf32>
    %156 = arith.addf %154, %155 : vector<8x48xf32>
    %157 = vector.extract_strided_slice %18 {offsets = [0, 0], sizes = [8, 24], strides = [1, 1]} : vector<8x48xf32> to vector<8x24xf32>
    %158 = vector.extract_strided_slice %156 {offsets = [0, 0], sizes = [8, 24], strides = [1, 1]} : vector<8x48xf32> to vector<8x24xf32>
    %159 = vector.extract_strided_slice %8 {offsets = [0, 24], sizes = [8, 24], strides = [1, 1]} : vector<8x48xf32> to vector<8x24xf32>
    %160 = vector.extract_strided_slice %156 {offsets = [0, 24], sizes = [8, 24], strides = [1, 1]} : vector<8x48xf32> to vector<8x24xf32>
    %161 = vector.extract_strided_slice %157 {offsets = [0, 0], sizes = [8, 8], strides = [1, 1]} : vector<8x24xf32> to vector<8x8xf32>
    %162 = vector.extract_strided_slice %158 {offsets = [0, 0], sizes = [8, 8], strides = [1, 1]} : vector<8x24xf32> to vector<8x8xf32>
    %163 = arith.addf %161, %162 : vector<8x8xf32>
    %164 = arith.negf %163 : vector<8x8xf32>
    %165 = math.exp %164 : vector<8x8xf32>
    %cst_44 = arith.constant 1.000000e+00 : f32
    %166 = vector.broadcast %cst_44 : f32 to vector<8x8xf32>
    %167 = arith.addf %166, %165 : vector<8x8xf32>
    %168 = arith.divf %166, %167 : vector<8x8xf32>
    %169 = vector.extract_strided_slice %157 {offsets = [0, 8], sizes = [8, 8], strides = [1, 1]} : vector<8x24xf32> to vector<8x8xf32>
    %170 = vector.extract_strided_slice %158 {offsets = [0, 8], sizes = [8, 8], strides = [1, 1]} : vector<8x24xf32> to vector<8x8xf32>
    %171 = arith.addf %169, %170 : vector<8x8xf32>
    %172 = arith.negf %171 : vector<8x8xf32>
    %173 = math.exp %172 : vector<8x8xf32>
    %cst_45 = arith.constant 1.000000e+00 : f32
    %174 = vector.broadcast %cst_45 : f32 to vector<8x8xf32>
    %175 = arith.addf %174, %173 : vector<8x8xf32>
    %176 = arith.divf %174, %175 : vector<8x8xf32>
    %177 = vector.extract_strided_slice %157 {offsets = [0, 16], sizes = [8, 8], strides = [1, 1]} : vector<8x24xf32> to vector<8x8xf32>
    %178 = vector.extract_strided_slice %158 {offsets = [0, 16], sizes = [8, 8], strides = [1, 1]} : vector<8x24xf32> to vector<8x8xf32>
    %179 = arith.mulf %168, %178 : vector<8x8xf32>
    %180 = arith.addf %177, %179 : vector<8x8xf32>
    %181 = math.tanh %180 : vector<8x8xf32>
    %cst_46 = arith.constant 1.000000e+00 : f32
    %182 = vector.broadcast %cst_46 : f32 to vector<8x8xf32>
    %183 = arith.subf %182, %176 : vector<8x8xf32>
    %184 = arith.mulf %183, %181 : vector<8x8xf32>
    %185 = arith.mulf %176, %120 : vector<8x8xf32>
    %186 = arith.addf %184, %185 : vector<8x8xf32>
    %c0_47 = arith.constant 0 : index
    %c2_48 = arith.constant 2 : index
    %c0_49 = arith.constant 0 : index
    %187 = vector.load %arg6[%c0_47, %c2_48, %c0_49] : memref<8x3x16xf32, #tpu.memory_space<vmem>>, vector<8x1x8xf32>
    %188 = vector.shape_cast %187 : vector<8x1x8xf32> to vector<8x8xf32>
    %189 = vector.shape_cast %186 : vector<8x8xf32> to vector<8x1x8xf32>
    tpu.vector_store %arg6[%c0_47, %c2_48, %c0_49], %189 {strides = array<i32>} : memref<8x3x16xf32, #tpu.memory_space<vmem>>, vector<8x1x8xf32>,
    %190 = vector.extract_strided_slice %159 {offsets = [0, 0], sizes = [8, 8], strides = [1, 1]} : vector<8x24xf32> to vector<8x8xf32>
    %191 = vector.extract_strided_slice %160 {offsets = [0, 0], sizes = [8, 8], strides = [1, 1]} : vector<8x24xf32> to vector<8x8xf32>
    %192 = arith.addf %190, %191 : vector<8x8xf32>
    %193 = arith.negf %192 : vector<8x8xf32>
    %194 = math.exp %193 : vector<8x8xf32>
    %cst_50 = arith.constant 1.000000e+00 : f32
    %195 = vector.broadcast %cst_50 : f32 to vector<8x8xf32>
    %196 = arith.addf %195, %194 : vector<8x8xf32>
    %197 = arith.divf %195, %196 : vector<8x8xf32>
    %198 = vector.extract_strided_slice %159 {offsets = [0, 8], sizes = [8, 8], strides = [1, 1]} : vector<8x24xf32> to vector<8x8xf32>
    %199 = vector.extract_strided_slice %160 {offsets = [0, 8], sizes = [8, 8], strides = [1, 1]} : vector<8x24xf32> to vector<8x8xf32>
    %200 = arith.addf %198, %199 : vector<8x8xf32>
    %201 = arith.negf %200 : vector<8x8xf32>
    %202 = math.exp %201 : vector<8x8xf32>
    %cst_51 = arith.constant 1.000000e+00 : f32
    %203 = vector.broadcast %cst_51 : f32 to vector<8x8xf32>
    %204 = arith.addf %203, %202 : vector<8x8xf32>
    %205 = arith.divf %203, %204 : vector<8x8xf32>
    %206 = vector.extract_strided_slice %159 {offsets = [0, 16], sizes = [8, 8], strides = [1, 1]} : vector<8x24xf32> to vector<8x8xf32>
    %207 = vector.extract_strided_slice %160 {offsets = [0, 16], sizes = [8, 8], strides = [1, 1]} : vector<8x24xf32> to vector<8x8xf32>
    %208 = arith.mulf %197, %207 : vector<8x8xf32>
    %209 = arith.addf %206, %208 : vector<8x8xf32>
    %210 = math.tanh %209 : vector<8x8xf32>
    %cst_52 = arith.constant 1.000000e+00 : f32
    %211 = vector.broadcast %cst_52 : f32 to vector<8x8xf32>
    %212 = arith.subf %211, %205 : vector<8x8xf32>
    %213 = arith.mulf %212, %210 : vector<8x8xf32>
    %214 = arith.mulf %205, %149 : vector<8x8xf32>
    %215 = arith.addf %213, %214 : vector<8x8xf32>
    %c0_53 = arith.constant 0 : index
    %c0_54 = arith.constant 0 : index
    %c8_55 = arith.constant 8 : index
    %216 = vector.load %arg6[%c0_53, %c0_54, %c8_55] : memref<8x3x16xf32, #tpu.memory_space<vmem>>, vector<8x1x8xf32>
    %217 = vector.shape_cast %216 : vector<8x1x8xf32> to vector<8x8xf32>
    %218 = vector.shape_cast %215 : vector<8x8xf32> to vector<8x1x8xf32>
    tpu.vector_store %arg6[%c0_53, %c0_54, %c8_55], %218 {strides = array<i32>} : memref<8x3x16xf32, #tpu.memory_space<vmem>>, vector<8x1x8xf32>,
    return
  }
  func.func @transform_0(%arg0: i32) -> (i32, i32, i32) {
    %c0_i32 = arith.constant 0 : i32
    %c0_i32_0 = arith.constant 0 : i32
    %c0_i32_1 = arith.constant 0 : i32
    return %arg0, %c0_i32, %c0_i32_0 : i32, i32, i32
  }
  func.func @transform_1(%arg0: i32) -> (i32, i32) {
    %c0_i32 = arith.constant 0 : i32
    %c0_i32_0 = arith.constant 0 : i32
    %c0_i32_1 = arith.constant 0 : i32
    return %c0_i32, %c0_i32_0 : i32, i32
  }
  func.func @transform_2(%arg0: i32) -> (i32, i32) {
    %c0_i32 = arith.constant 0 : i32
    %c0_i32_0 = arith.constant 0 : i32
    %c0_i32_1 = arith.constant 0 : i32
    return %c0_i32, %c0_i32_0 : i32, i32
  }
  func.func @transform_3(%arg0: i32) -> (i32, i32) {
    %c0_i32 = arith.constant 0 : i32
    %c0_i32_0 = arith.constant 0 : i32
    %c0_i32_1 = arith.constant 0 : i32
    return %c0_i32, %c0_i32_0 : i32, i32
  }
  func.func @transform_4(%arg0: i32) -> (i32, i32) {
    %c0_i32 = arith.constant 0 : i32
    %c0_i32_0 = arith.constant 0 : i32
    %c0_i32_1 = arith.constant 0 : i32
    return %c0_i32, %c0_i32_0 : i32, i32
  }
  func.func @transform_5(%arg0: i32) -> (i32, i32, i32) {
    %c0_i32 = arith.constant 0 : i32
    %c0_i32_0 = arith.constant 0 : i32
    %c0_i32_1 = arith.constant 0 : i32
    return %arg0, %c0_i32, %c0_i32_0 : i32, i32, i32
  }
}

module attributes {stable_mosaic.version = 11 : i64} {
  func.func @_bigru_kernel(%arg0: i32, %arg1: memref<8x8x16xf32, #tpu.memory_space<vmem>>, %arg2: memref<16x48xf32, #tpu.memory_space<vmem>>, %arg3: memref<16x48xf32, #tpu.memory_space<vmem>>, %arg4: memref<1x48xf32, #tpu.memory_space<vmem>>, %arg5: memref<1x48xf32, #tpu.memory_space<vmem>>, %arg6: memref<8x8x16xf32, #tpu.memory_space<vmem>>) attributes {dimension_semantics = [#tpu.dimension_semantics<parallel>], iteration_bounds = array<i64: 1>, scalar_prefetch = 0 : i64, scratch_operands = 0 : i64, tpu.core_type = #tpu.core_type<tc>, window_params = [{transform_indices = @transform_0, window_bounds = array<i64: 8, 8, 16>}, {pipeline_mode = #tpu.pipeline_mode<synchronous>, transform_indices = @transform_1, window_bounds = array<i64: 16, 48>}, {pipeline_mode = #tpu.pipeline_mode<synchronous>, transform_indices = @transform_2, window_bounds = array<i64: 16, 48>}, {pipeline_mode = #tpu.pipeline_mode<synchronous>, transform_indices = @transform_3, window_bounds = array<i64: 1, 48>}, {pipeline_mode = #tpu.pipeline_mode<synchronous>, transform_indices = @transform_4, window_bounds = array<i64: 1, 48>}, {transform_indices = @transform_5, window_bounds = array<i64: 8, 8, 16>}]} {
    %c0 = arith.constant 0 : index
    %c0_0 = arith.constant 0 : index
    %0 = vector.load %arg2[%c0, %c0_0] : memref<16x48xf32, #tpu.memory_space<vmem>>, vector<16x48xf32>
    %c0_1 = arith.constant 0 : index
    %c0_2 = arith.constant 0 : index
    %1 = vector.load %arg3[%c0_1, %c0_2] : memref<16x48xf32, #tpu.memory_space<vmem>>, vector<16x48xf32>
    %c0_3 = arith.constant 0 : index
    %c0_4 = arith.constant 0 : index
    %2 = vector.load %arg4[%c0_3, %c0_4] : memref<1x48xf32, #tpu.memory_space<vmem>>, vector<1x48xf32>
    %c0_5 = arith.constant 0 : index
    %c0_6 = arith.constant 0 : index
    %3 = vector.load %arg5[%c0_5, %c0_6] : memref<1x48xf32, #tpu.memory_space<vmem>>, vector<1x48xf32>
    %c0_7 = arith.constant 0 : index
    %c0_8 = arith.constant 0 : index
    %c0_9 = arith.constant 0 : index
    %4 = vector.load %arg1[%c0_7, %c0_8, %c0_9] : memref<8x8x16xf32, #tpu.memory_space<vmem>>, vector<8x1x16xf32>
    %5 = vector.shape_cast %4 : vector<8x1x16xf32> to vector<8x16xf32>
    %cst = arith.constant dense<0.000000e+00> : vector<8x48xf32>
    %6 = tpu.matmul %5, %0, %cst {dimension_numbers = #tpu.dot_dimension_numbers<[1], [0], [0], [1], [0, 0, 1, 1], [], []>} : vector<8x16xf32>, vector<16x48xf32>, vector<8x48xf32> -> vector<8x48xf32>
    %7 = vector.broadcast %2 : vector<1x48xf32> to vector<8x48xf32>
    %8 = arith.addf %6, %7 : vector<8x48xf32>
    %c0_10 = arith.constant 0 : index
    %c1 = arith.constant 1 : index
    %c0_11 = arith.constant 0 : index
    %9 = vector.load %arg1[%c0_10, %c1, %c0_11] : memref<8x8x16xf32, #tpu.memory_space<vmem>>, vector<8x1x16xf32>
    %10 = vector.shape_cast %9 : vector<8x1x16xf32> to vector<8x16xf32>
    %cst_12 = arith.constant dense<0.000000e+00> : vector<8x48xf32>
    %11 = tpu.matmul %10, %0, %cst_12 {dimension_numbers = #tpu.dot_dimension_numbers<[1], [0], [0], [1], [0, 0, 1, 1], [], []>} : vector<8x16xf32>, vector<16x48xf32>, vector<8x48xf32> -> vector<8x48xf32>
    %12 = vector.broadcast %2 : vector<1x48xf32> to vector<8x48xf32>
    %13 = arith.addf %11, %12 : vector<8x48xf32>
    %c0_13 = arith.constant 0 : index
    %c2 = arith.constant 2 : index
    %c0_14 = arith.constant 0 : index
    %14 = vector.load %arg1[%c0_13, %c2, %c0_14] : memref<8x8x16xf32, #tpu.memory_space<vmem>>, vector<8x1x16xf32>
    %15 = vector.shape_cast %14 : vector<8x1x16xf32> to vector<8x16xf32>
    %cst_15 = arith.constant dense<0.000000e+00> : vector<8x48xf32>
    %16 = tpu.matmul %15, %0, %cst_15 {dimension_numbers = #tpu.dot_dimension_numbers<[1], [0], [0], [1], [0, 0, 1, 1], [], []>} : vector<8x16xf32>, vector<16x48xf32>, vector<8x48xf32> -> vector<8x48xf32>
    %17 = vector.broadcast %2 : vector<1x48xf32> to vector<8x48xf32>
    %18 = arith.addf %16, %17 : vector<8x48xf32>
    %c0_16 = arith.constant 0 : index
    %c3 = arith.constant 3 : index
    %c0_17 = arith.constant 0 : index
    %19 = vector.load %arg1[%c0_16, %c3, %c0_17] : memref<8x8x16xf32, #tpu.memory_space<vmem>>, vector<8x1x16xf32>
    %20 = vector.shape_cast %19 : vector<8x1x16xf32> to vector<8x16xf32>
    %cst_18 = arith.constant dense<0.000000e+00> : vector<8x48xf32>
    %21 = tpu.matmul %20, %0, %cst_18 {dimension_numbers = #tpu.dot_dimension_numbers<[1], [0], [0], [1], [0, 0, 1, 1], [], []>} : vector<8x16xf32>, vector<16x48xf32>, vector<8x48xf32> -> vector<8x48xf32>
    %22 = vector.broadcast %2 : vector<1x48xf32> to vector<8x48xf32>
    %23 = arith.addf %21, %22 : vector<8x48xf32>
    %c0_19 = arith.constant 0 : index
    %c4 = arith.constant 4 : index
    %c0_20 = arith.constant 0 : index
    %24 = vector.load %arg1[%c0_19, %c4, %c0_20] : memref<8x8x16xf32, #tpu.memory_space<vmem>>, vector<8x1x16xf32>
    %25 = vector.shape_cast %24 : vector<8x1x16xf32> to vector<8x16xf32>
    %cst_21 = arith.constant dense<0.000000e+00> : vector<8x48xf32>
    %26 = tpu.matmul %25, %0, %cst_21 {dimension_numbers = #tpu.dot_dimension_numbers<[1], [0], [0], [1], [0, 0, 1, 1], [], []>} : vector<8x16xf32>, vector<16x48xf32>, vector<8x48xf32> -> vector<8x48xf32>
    %27 = vector.broadcast %2 : vector<1x48xf32> to vector<8x48xf32>
    %28 = arith.addf %26, %27 : vector<8x48xf32>
    %c0_22 = arith.constant 0 : index
    %c5 = arith.constant 5 : index
    %c0_23 = arith.constant 0 : index
    %29 = vector.load %arg1[%c0_22, %c5, %c0_23] : memref<8x8x16xf32, #tpu.memory_space<vmem>>, vector<8x1x16xf32>
    %30 = vector.shape_cast %29 : vector<8x1x16xf32> to vector<8x16xf32>
    %cst_24 = arith.constant dense<0.000000e+00> : vector<8x48xf32>
    %31 = tpu.matmul %30, %0, %cst_24 {dimension_numbers = #tpu.dot_dimension_numbers<[1], [0], [0], [1], [0, 0, 1, 1], [], []>} : vector<8x16xf32>, vector<16x48xf32>, vector<8x48xf32> -> vector<8x48xf32>
    %32 = vector.broadcast %2 : vector<1x48xf32> to vector<8x48xf32>
    %33 = arith.addf %31, %32 : vector<8x48xf32>
    %c0_25 = arith.constant 0 : index
    %c6 = arith.constant 6 : index
    %c0_26 = arith.constant 0 : index
    %34 = vector.load %arg1[%c0_25, %c6, %c0_26] : memref<8x8x16xf32, #tpu.memory_space<vmem>>, vector<8x1x16xf32>
    %35 = vector.shape_cast %34 : vector<8x1x16xf32> to vector<8x16xf32>
    %cst_27 = arith.constant dense<0.000000e+00> : vector<8x48xf32>
    %36 = tpu.matmul %35, %0, %cst_27 {dimension_numbers = #tpu.dot_dimension_numbers<[1], [0], [0], [1], [0, 0, 1, 1], [], []>} : vector<8x16xf32>, vector<16x48xf32>, vector<8x48xf32> -> vector<8x48xf32>
    %37 = vector.broadcast %2 : vector<1x48xf32> to vector<8x48xf32>
    %38 = arith.addf %36, %37 : vector<8x48xf32>
    %c0_28 = arith.constant 0 : index
    %c7 = arith.constant 7 : index
    %c0_29 = arith.constant 0 : index
    %39 = vector.load %arg1[%c0_28, %c7, %c0_29] : memref<8x8x16xf32, #tpu.memory_space<vmem>>, vector<8x1x16xf32>
    %40 = vector.shape_cast %39 : vector<8x1x16xf32> to vector<8x16xf32>
    %cst_30 = arith.constant dense<0.000000e+00> : vector<8x48xf32>
    %41 = tpu.matmul %40, %0, %cst_30 {dimension_numbers = #tpu.dot_dimension_numbers<[1], [0], [0], [1], [0, 0, 1, 1], [], []>} : vector<8x16xf32>, vector<16x48xf32>, vector<8x48xf32> -> vector<8x48xf32>
    %42 = vector.broadcast %2 : vector<1x48xf32> to vector<8x48xf32>
    %43 = arith.addf %41, %42 : vector<8x48xf32>
    %cst_31 = arith.constant 0.000000e+00 : f32
    %44 = vector.broadcast %cst_31 : f32 to vector<8x8xf32>
    %cst_32 = arith.constant 0.000000e+00 : f32
    %45 = vector.broadcast %cst_32 : f32 to vector<8x8xf32>
    %46 = tpu.concatenate %44, %45 in 1 : vector<8x8xf32>, vector<8x8xf32> -> vector<8x16xf32>
    %cst_33 = arith.constant dense<0.000000e+00> : vector<8x48xf32>
    %47 = tpu.matmul %46, %1, %cst_33 {dimension_numbers = #tpu.dot_dimension_numbers<[1], [0], [0], [1], [0, 0, 1, 1], [], []>} : vector<8x16xf32>, vector<16x48xf32>, vector<8x48xf32> -> vector<8x48xf32>
    %48 = vector.broadcast %3 : vector<1x48xf32> to vector<8x48xf32>
    %49 = arith.addf %47, %48 : vector<8x48xf32>
    %50 = vector.extract_strided_slice %8 {offsets = [0, 0], sizes = [8, 24], strides = [1, 1]} : vector<8x48xf32> to vector<8x24xf32>
    %51 = vector.extract_strided_slice %49 {offsets = [0, 0], sizes = [8, 24], strides = [1, 1]} : vector<8x48xf32> to vector<8x24xf32>
    %52 = vector.extract_strided_slice %43 {offsets = [0, 24], sizes = [8, 24], strides = [1, 1]} : vector<8x48xf32> to vector<8x24xf32>
    %53 = vector.extract_strided_slice %49 {offsets = [0, 24], sizes = [8, 24], strides = [1, 1]} : vector<8x48xf32> to vector<8x24xf32>
    %54 = vector.extract_strided_slice %50 {offsets = [0, 0], sizes = [8, 8], strides = [1, 1]} : vector<8x24xf32> to vector<8x8xf32>
    %55 = vector.extract_strided_slice %51 {offsets = [0, 0], sizes = [8, 8], strides = [1, 1]} : vector<8x24xf32> to vector<8x8xf32>
    %56 = arith.addf %54, %55 : vector<8x8xf32>
    %57 = arith.negf %56 : vector<8x8xf32>
    %58 = math.exp %57 : vector<8x8xf32>
    %cst_34 = arith.constant 1.000000e+00 : f32
    %59 = vector.broadcast %cst_34 : f32 to vector<8x8xf32>
    %60 = arith.addf %59, %58 : vector<8x8xf32>
    %61 = arith.divf %59, %60 : vector<8x8xf32>
    %62 = vector.extract_strided_slice %50 {offsets = [0, 8], sizes = [8, 8], strides = [1, 1]} : vector<8x24xf32> to vector<8x8xf32>
    %63 = vector.extract_strided_slice %51 {offsets = [0, 8], sizes = [8, 8], strides = [1, 1]} : vector<8x24xf32> to vector<8x8xf32>
    %64 = arith.addf %62, %63 : vector<8x8xf32>
    %65 = arith.negf %64 : vector<8x8xf32>
    %66 = math.exp %65 : vector<8x8xf32>
    %cst_35 = arith.constant 1.000000e+00 : f32
    %67 = vector.broadcast %cst_35 : f32 to vector<8x8xf32>
    %68 = arith.addf %67, %66 : vector<8x8xf32>
    %69 = arith.divf %67, %68 : vector<8x8xf32>
    %70 = vector.extract_strided_slice %50 {offsets = [0, 16], sizes = [8, 8], strides = [1, 1]} : vector<8x24xf32> to vector<8x8xf32>
    %71 = vector.extract_strided_slice %51 {offsets = [0, 16], sizes = [8, 8], strides = [1, 1]} : vector<8x24xf32> to vector<8x8xf32>
    %72 = arith.mulf %61, %71 : vector<8x8xf32>
    %73 = arith.addf %70, %72 : vector<8x8xf32>
    %74 = math.tanh %73 : vector<8x8xf32>
    %cst_36 = arith.constant 1.000000e+00 : f32
    %75 = vector.broadcast %cst_36 : f32 to vector<8x8xf32>
    %76 = arith.subf %75, %69 : vector<8x8xf32>
    %77 = arith.mulf %76, %74 : vector<8x8xf32>
    %78 = arith.mulf %69, %44 : vector<8x8xf32>
    %79 = arith.addf %77, %78 : vector<8x8xf32>
    %c0_37 = arith.constant 0 : index
    %c0_38 = arith.constant 0 : index
    %c0_39 = arith.constant 0 : index
    %80 = vector.load %arg6[%c0_37, %c0_38, %c0_39] : memref<8x8x16xf32, #tpu.memory_space<vmem>>, vector<8x1x8xf32>
    %81 = vector.shape_cast %80 : vector<8x1x8xf32> to vector<8x8xf32>
    %82 = vector.shape_cast %79 : vector<8x8xf32> to vector<8x1x8xf32>
    tpu.vector_store %arg6[%c0_37, %c0_38, %c0_39], %82 {strides = array<i32>} : memref<8x8x16xf32, #tpu.memory_space<vmem>>, vector<8x1x8xf32>,
    %83 = vector.extract_strided_slice %52 {offsets = [0, 0], sizes = [8, 8], strides = [1, 1]} : vector<8x24xf32> to vector<8x8xf32>
    %84 = vector.extract_strided_slice %53 {offsets = [0, 0], sizes = [8, 8], strides = [1, 1]} : vector<8x24xf32> to vector<8x8xf32>
    %85 = arith.addf %83, %84 : vector<8x8xf32>
    %86 = arith.negf %85 : vector<8x8xf32>
    %87 = math.exp %86 : vector<8x8xf32>
    %cst_40 = arith.constant 1.000000e+00 : f32
    %88 = vector.broadcast %cst_40 : f32 to vector<8x8xf32>
    %89 = arith.addf %88, %87 : vector<8x8xf32>
    %90 = arith.divf %88, %89 : vector<8x8xf32>
    %91 = vector.extract_strided_slice %52 {offsets = [0, 8], sizes = [8, 8], strides = [1, 1]} : vector<8x24xf32> to vector<8x8xf32>
    %92 = vector.extract_strided_slice %53 {offsets = [0, 8], sizes = [8, 8], strides = [1, 1]} : vector<8x24xf32> to vector<8x8xf32>
    %93 = arith.addf %91, %92 : vector<8x8xf32>
    %94 = arith.negf %93 : vector<8x8xf32>
    %95 = math.exp %94 : vector<8x8xf32>
    %cst_41 = arith.constant 1.000000e+00 : f32
    %96 = vector.broadcast %cst_41 : f32 to vector<8x8xf32>
    %97 = arith.addf %96, %95 : vector<8x8xf32>
    %98 = arith.divf %96, %97 : vector<8x8xf32>
    %99 = vector.extract_strided_slice %52 {offsets = [0, 16], sizes = [8, 8], strides = [1, 1]} : vector<8x24xf32> to vector<8x8xf32>
    %100 = vector.extract_strided_slice %53 {offsets = [0, 16], sizes = [8, 8], strides = [1, 1]} : vector<8x24xf32> to vector<8x8xf32>
    %101 = arith.mulf %90, %100 : vector<8x8xf32>
    %102 = arith.addf %99, %101 : vector<8x8xf32>
    %103 = math.tanh %102 : vector<8x8xf32>
    %cst_42 = arith.constant 1.000000e+00 : f32
    %104 = vector.broadcast %cst_42 : f32 to vector<8x8xf32>
    %105 = arith.subf %104, %98 : vector<8x8xf32>
    %106 = arith.mulf %105, %103 : vector<8x8xf32>
    %107 = arith.mulf %98, %45 : vector<8x8xf32>
    %108 = arith.addf %106, %107 : vector<8x8xf32>
    %c0_43 = arith.constant 0 : index
    %c7_44 = arith.constant 7 : index
    %c8 = arith.constant 8 : index
    %109 = vector.load %arg6[%c0_43, %c7_44, %c8] : memref<8x8x16xf32, #tpu.memory_space<vmem>>, vector<8x1x8xf32>
    %110 = vector.shape_cast %109 : vector<8x1x8xf32> to vector<8x8xf32>
    %111 = vector.shape_cast %108 : vector<8x8xf32> to vector<8x1x8xf32>
    tpu.vector_store %arg6[%c0_43, %c7_44, %c8], %111 {strides = array<i32>} : memref<8x8x16xf32, #tpu.memory_space<vmem>>, vector<8x1x8xf32>,
    %112 = tpu.concatenate %79, %108 in 1 : vector<8x8xf32>, vector<8x8xf32> -> vector<8x16xf32>
    %cst_45 = arith.constant dense<0.000000e+00> : vector<8x48xf32>
    %113 = tpu.matmul %112, %1, %cst_45 {dimension_numbers = #tpu.dot_dimension_numbers<[1], [0], [0], [1], [0, 0, 1, 1], [], []>} : vector<8x16xf32>, vector<16x48xf32>, vector<8x48xf32> -> vector<8x48xf32>
    %114 = vector.broadcast %3 : vector<1x48xf32> to vector<8x48xf32>
    %115 = arith.addf %113, %114 : vector<8x48xf32>
    %116 = vector.extract_strided_slice %13 {offsets = [0, 0], sizes = [8, 24], strides = [1, 1]} : vector<8x48xf32> to vector<8x24xf32>
    %117 = vector.extract_strided_slice %115 {offsets = [0, 0], sizes = [8, 24], strides = [1, 1]} : vector<8x48xf32> to vector<8x24xf32>
    %118 = vector.extract_strided_slice %38 {offsets = [0, 24], sizes = [8, 24], strides = [1, 1]} : vector<8x48xf32> to vector<8x24xf32>
    %119 = vector.extract_strided_slice %115 {offsets = [0, 24], sizes = [8, 24], strides = [1, 1]} : vector<8x48xf32> to vector<8x24xf32>
    %120 = vector.extract_strided_slice %116 {offsets = [0, 0], sizes = [8, 8], strides = [1, 1]} : vector<8x24xf32> to vector<8x8xf32>
    %121 = vector.extract_strided_slice %117 {offsets = [0, 0], sizes = [8, 8], strides = [1, 1]} : vector<8x24xf32> to vector<8x8xf32>
    %122 = arith.addf %120, %121 : vector<8x8xf32>
    %123 = arith.negf %122 : vector<8x8xf32>
    %124 = math.exp %123 : vector<8x8xf32>
    %cst_46 = arith.constant 1.000000e+00 : f32
    %125 = vector.broadcast %cst_46 : f32 to vector<8x8xf32>
    %126 = arith.addf %125, %124 : vector<8x8xf32>
    %127 = arith.divf %125, %126 : vector<8x8xf32>
    %128 = vector.extract_strided_slice %116 {offsets = [0, 8], sizes = [8, 8], strides = [1, 1]} : vector<8x24xf32> to vector<8x8xf32>
    %129 = vector.extract_strided_slice %117 {offsets = [0, 8], sizes = [8, 8], strides = [1, 1]} : vector<8x24xf32> to vector<8x8xf32>
    %130 = arith.addf %128, %129 : vector<8x8xf32>
    %131 = arith.negf %130 : vector<8x8xf32>
    %132 = math.exp %131 : vector<8x8xf32>
    %cst_47 = arith.constant 1.000000e+00 : f32
    %133 = vector.broadcast %cst_47 : f32 to vector<8x8xf32>
    %134 = arith.addf %133, %132 : vector<8x8xf32>
    %135 = arith.divf %133, %134 : vector<8x8xf32>
    %136 = vector.extract_strided_slice %116 {offsets = [0, 16], sizes = [8, 8], strides = [1, 1]} : vector<8x24xf32> to vector<8x8xf32>
    %137 = vector.extract_strided_slice %117 {offsets = [0, 16], sizes = [8, 8], strides = [1, 1]} : vector<8x24xf32> to vector<8x8xf32>
    %138 = arith.mulf %127, %137 : vector<8x8xf32>
    %139 = arith.addf %136, %138 : vector<8x8xf32>
    %140 = math.tanh %139 : vector<8x8xf32>
    %cst_48 = arith.constant 1.000000e+00 : f32
    %141 = vector.broadcast %cst_48 : f32 to vector<8x8xf32>
    %142 = arith.subf %141, %135 : vector<8x8xf32>
    %143 = arith.mulf %142, %140 : vector<8x8xf32>
    %144 = arith.mulf %135, %79 : vector<8x8xf32>
    %145 = arith.addf %143, %144 : vector<8x8xf32>
    %c0_49 = arith.constant 0 : index
    %c1_50 = arith.constant 1 : index
    %c0_51 = arith.constant 0 : index
    %146 = vector.load %arg6[%c0_49, %c1_50, %c0_51] : memref<8x8x16xf32, #tpu.memory_space<vmem>>, vector<8x1x8xf32>
    %147 = vector.shape_cast %146 : vector<8x1x8xf32> to vector<8x8xf32>
    %148 = vector.shape_cast %145 : vector<8x8xf32> to vector<8x1x8xf32>
    tpu.vector_store %arg6[%c0_49, %c1_50, %c0_51], %148 {strides = array<i32>} : memref<8x8x16xf32, #tpu.memory_space<vmem>>, vector<8x1x8xf32>,
    %149 = vector.extract_strided_slice %118 {offsets = [0, 0], sizes = [8, 8], strides = [1, 1]} : vector<8x24xf32> to vector<8x8xf32>
    %150 = vector.extract_strided_slice %119 {offsets = [0, 0], sizes = [8, 8], strides = [1, 1]} : vector<8x24xf32> to vector<8x8xf32>
    %151 = arith.addf %149, %150 : vector<8x8xf32>
    %152 = arith.negf %151 : vector<8x8xf32>
    %153 = math.exp %152 : vector<8x8xf32>
    %cst_52 = arith.constant 1.000000e+00 : f32
    %154 = vector.broadcast %cst_52 : f32 to vector<8x8xf32>
    %155 = arith.addf %154, %153 : vector<8x8xf32>
    %156 = arith.divf %154, %155 : vector<8x8xf32>
    %157 = vector.extract_strided_slice %118 {offsets = [0, 8], sizes = [8, 8], strides = [1, 1]} : vector<8x24xf32> to vector<8x8xf32>
    %158 = vector.extract_strided_slice %119 {offsets = [0, 8], sizes = [8, 8], strides = [1, 1]} : vector<8x24xf32> to vector<8x8xf32>
    %159 = arith.addf %157, %158 : vector<8x8xf32>
    %160 = arith.negf %159 : vector<8x8xf32>
    %161 = math.exp %160 : vector<8x8xf32>
    %cst_53 = arith.constant 1.000000e+00 : f32
    %162 = vector.broadcast %cst_53 : f32 to vector<8x8xf32>
    %163 = arith.addf %162, %161 : vector<8x8xf32>
    %164 = arith.divf %162, %163 : vector<8x8xf32>
    %165 = vector.extract_strided_slice %118 {offsets = [0, 16], sizes = [8, 8], strides = [1, 1]} : vector<8x24xf32> to vector<8x8xf32>
    %166 = vector.extract_strided_slice %119 {offsets = [0, 16], sizes = [8, 8], strides = [1, 1]} : vector<8x24xf32> to vector<8x8xf32>
    %167 = arith.mulf %156, %166 : vector<8x8xf32>
    %168 = arith.addf %165, %167 : vector<8x8xf32>
    %169 = math.tanh %168 : vector<8x8xf32>
    %cst_54 = arith.constant 1.000000e+00 : f32
    %170 = vector.broadcast %cst_54 : f32 to vector<8x8xf32>
    %171 = arith.subf %170, %164 : vector<8x8xf32>
    %172 = arith.mulf %171, %169 : vector<8x8xf32>
    %173 = arith.mulf %164, %108 : vector<8x8xf32>
    %174 = arith.addf %172, %173 : vector<8x8xf32>
    %c0_55 = arith.constant 0 : index
    %c6_56 = arith.constant 6 : index
    %c8_57 = arith.constant 8 : index
    %175 = vector.load %arg6[%c0_55, %c6_56, %c8_57] : memref<8x8x16xf32, #tpu.memory_space<vmem>>, vector<8x1x8xf32>
    %176 = vector.shape_cast %175 : vector<8x1x8xf32> to vector<8x8xf32>
    %177 = vector.shape_cast %174 : vector<8x8xf32> to vector<8x1x8xf32>
    tpu.vector_store %arg6[%c0_55, %c6_56, %c8_57], %177 {strides = array<i32>} : memref<8x8x16xf32, #tpu.memory_space<vmem>>, vector<8x1x8xf32>,
    %178 = tpu.concatenate %145, %174 in 1 : vector<8x8xf32>, vector<8x8xf32> -> vector<8x16xf32>
    %cst_58 = arith.constant dense<0.000000e+00> : vector<8x48xf32>
    %179 = tpu.matmul %178, %1, %cst_58 {dimension_numbers = #tpu.dot_dimension_numbers<[1], [0], [0], [1], [0, 0, 1, 1], [], []>} : vector<8x16xf32>, vector<16x48xf32>, vector<8x48xf32> -> vector<8x48xf32>
    %180 = vector.broadcast %3 : vector<1x48xf32> to vector<8x48xf32>
    %181 = arith.addf %179, %180 : vector<8x48xf32>
    %182 = vector.extract_strided_slice %18 {offsets = [0, 0], sizes = [8, 24], strides = [1, 1]} : vector<8x48xf32> to vector<8x24xf32>
    %183 = vector.extract_strided_slice %181 {offsets = [0, 0], sizes = [8, 24], strides = [1, 1]} : vector<8x48xf32> to vector<8x24xf32>
    %184 = vector.extract_strided_slice %33 {offsets = [0, 24], sizes = [8, 24], strides = [1, 1]} : vector<8x48xf32> to vector<8x24xf32>
    %185 = vector.extract_strided_slice %181 {offsets = [0, 24], sizes = [8, 24], strides = [1, 1]} : vector<8x48xf32> to vector<8x24xf32>
    %186 = vector.extract_strided_slice %182 {offsets = [0, 0], sizes = [8, 8], strides = [1, 1]} : vector<8x24xf32> to vector<8x8xf32>
    %187 = vector.extract_strided_slice %183 {offsets = [0, 0], sizes = [8, 8], strides = [1, 1]} : vector<8x24xf32> to vector<8x8xf32>
    %188 = arith.addf %186, %187 : vector<8x8xf32>
    %189 = arith.negf %188 : vector<8x8xf32>
    %190 = math.exp %189 : vector<8x8xf32>
    %cst_59 = arith.constant 1.000000e+00 : f32
    %191 = vector.broadcast %cst_59 : f32 to vector<8x8xf32>
    %192 = arith.addf %191, %190 : vector<8x8xf32>
    %193 = arith.divf %191, %192 : vector<8x8xf32>
    %194 = vector.extract_strided_slice %182 {offsets = [0, 8], sizes = [8, 8], strides = [1, 1]} : vector<8x24xf32> to vector<8x8xf32>
    %195 = vector.extract_strided_slice %183 {offsets = [0, 8], sizes = [8, 8], strides = [1, 1]} : vector<8x24xf32> to vector<8x8xf32>
    %196 = arith.addf %194, %195 : vector<8x8xf32>
    %197 = arith.negf %196 : vector<8x8xf32>
    %198 = math.exp %197 : vector<8x8xf32>
    %cst_60 = arith.constant 1.000000e+00 : f32
    %199 = vector.broadcast %cst_60 : f32 to vector<8x8xf32>
    %200 = arith.addf %199, %198 : vector<8x8xf32>
    %201 = arith.divf %199, %200 : vector<8x8xf32>
    %202 = vector.extract_strided_slice %182 {offsets = [0, 16], sizes = [8, 8], strides = [1, 1]} : vector<8x24xf32> to vector<8x8xf32>
    %203 = vector.extract_strided_slice %183 {offsets = [0, 16], sizes = [8, 8], strides = [1, 1]} : vector<8x24xf32> to vector<8x8xf32>
    %204 = arith.mulf %193, %203 : vector<8x8xf32>
    %205 = arith.addf %202, %204 : vector<8x8xf32>
    %206 = math.tanh %205 : vector<8x8xf32>
    %cst_61 = arith.constant 1.000000e+00 : f32
    %207 = vector.broadcast %cst_61 : f32 to vector<8x8xf32>
    %208 = arith.subf %207, %201 : vector<8x8xf32>
    %209 = arith.mulf %208, %206 : vector<8x8xf32>
    %210 = arith.mulf %201, %145 : vector<8x8xf32>
    %211 = arith.addf %209, %210 : vector<8x8xf32>
    %c0_62 = arith.constant 0 : index
    %c2_63 = arith.constant 2 : index
    %c0_64 = arith.constant 0 : index
    %212 = vector.load %arg6[%c0_62, %c2_63, %c0_64] : memref<8x8x16xf32, #tpu.memory_space<vmem>>, vector<8x1x8xf32>
    %213 = vector.shape_cast %212 : vector<8x1x8xf32> to vector<8x8xf32>
    %214 = vector.shape_cast %211 : vector<8x8xf32> to vector<8x1x8xf32>
    tpu.vector_store %arg6[%c0_62, %c2_63, %c0_64], %214 {strides = array<i32>} : memref<8x8x16xf32, #tpu.memory_space<vmem>>, vector<8x1x8xf32>,
    %215 = vector.extract_strided_slice %184 {offsets = [0, 0], sizes = [8, 8], strides = [1, 1]} : vector<8x24xf32> to vector<8x8xf32>
    %216 = vector.extract_strided_slice %185 {offsets = [0, 0], sizes = [8, 8], strides = [1, 1]} : vector<8x24xf32> to vector<8x8xf32>
    %217 = arith.addf %215, %216 : vector<8x8xf32>
    %218 = arith.negf %217 : vector<8x8xf32>
    %219 = math.exp %218 : vector<8x8xf32>
    %cst_65 = arith.constant 1.000000e+00 : f32
    %220 = vector.broadcast %cst_65 : f32 to vector<8x8xf32>
    %221 = arith.addf %220, %219 : vector<8x8xf32>
    %222 = arith.divf %220, %221 : vector<8x8xf32>
    %223 = vector.extract_strided_slice %184 {offsets = [0, 8], sizes = [8, 8], strides = [1, 1]} : vector<8x24xf32> to vector<8x8xf32>
    %224 = vector.extract_strided_slice %185 {offsets = [0, 8], sizes = [8, 8], strides = [1, 1]} : vector<8x24xf32> to vector<8x8xf32>
    %225 = arith.addf %223, %224 : vector<8x8xf32>
    %226 = arith.negf %225 : vector<8x8xf32>
    %227 = math.exp %226 : vector<8x8xf32>
    %cst_66 = arith.constant 1.000000e+00 : f32
    %228 = vector.broadcast %cst_66 : f32 to vector<8x8xf32>
    %229 = arith.addf %228, %227 : vector<8x8xf32>
    %230 = arith.divf %228, %229 : vector<8x8xf32>
    %231 = vector.extract_strided_slice %184 {offsets = [0, 16], sizes = [8, 8], strides = [1, 1]} : vector<8x24xf32> to vector<8x8xf32>
    %232 = vector.extract_strided_slice %185 {offsets = [0, 16], sizes = [8, 8], strides = [1, 1]} : vector<8x24xf32> to vector<8x8xf32>
    %233 = arith.mulf %222, %232 : vector<8x8xf32>
    %234 = arith.addf %231, %233 : vector<8x8xf32>
    %235 = math.tanh %234 : vector<8x8xf32>
    %cst_67 = arith.constant 1.000000e+00 : f32
    %236 = vector.broadcast %cst_67 : f32 to vector<8x8xf32>
    %237 = arith.subf %236, %230 : vector<8x8xf32>
    %238 = arith.mulf %237, %235 : vector<8x8xf32>
    %239 = arith.mulf %230, %174 : vector<8x8xf32>
    %240 = arith.addf %238, %239 : vector<8x8xf32>
    %c0_68 = arith.constant 0 : index
    %c5_69 = arith.constant 5 : index
    %c8_70 = arith.constant 8 : index
    %241 = vector.load %arg6[%c0_68, %c5_69, %c8_70] : memref<8x8x16xf32, #tpu.memory_space<vmem>>, vector<8x1x8xf32>
    %242 = vector.shape_cast %241 : vector<8x1x8xf32> to vector<8x8xf32>
    %243 = vector.shape_cast %240 : vector<8x8xf32> to vector<8x1x8xf32>
    tpu.vector_store %arg6[%c0_68, %c5_69, %c8_70], %243 {strides = array<i32>} : memref<8x8x16xf32, #tpu.memory_space<vmem>>, vector<8x1x8xf32>,
    %244 = tpu.concatenate %211, %240 in 1 : vector<8x8xf32>, vector<8x8xf32> -> vector<8x16xf32>
    %cst_71 = arith.constant dense<0.000000e+00> : vector<8x48xf32>
    %245 = tpu.matmul %244, %1, %cst_71 {dimension_numbers = #tpu.dot_dimension_numbers<[1], [0], [0], [1], [0, 0, 1, 1], [], []>} : vector<8x16xf32>, vector<16x48xf32>, vector<8x48xf32> -> vector<8x48xf32>
    %246 = vector.broadcast %3 : vector<1x48xf32> to vector<8x48xf32>
    %247 = arith.addf %245, %246 : vector<8x48xf32>
    %248 = vector.extract_strided_slice %23 {offsets = [0, 0], sizes = [8, 24], strides = [1, 1]} : vector<8x48xf32> to vector<8x24xf32>
    %249 = vector.extract_strided_slice %247 {offsets = [0, 0], sizes = [8, 24], strides = [1, 1]} : vector<8x48xf32> to vector<8x24xf32>
    %250 = vector.extract_strided_slice %28 {offsets = [0, 24], sizes = [8, 24], strides = [1, 1]} : vector<8x48xf32> to vector<8x24xf32>
    %251 = vector.extract_strided_slice %247 {offsets = [0, 24], sizes = [8, 24], strides = [1, 1]} : vector<8x48xf32> to vector<8x24xf32>
    %252 = vector.extract_strided_slice %248 {offsets = [0, 0], sizes = [8, 8], strides = [1, 1]} : vector<8x24xf32> to vector<8x8xf32>
    %253 = vector.extract_strided_slice %249 {offsets = [0, 0], sizes = [8, 8], strides = [1, 1]} : vector<8x24xf32> to vector<8x8xf32>
    %254 = arith.addf %252, %253 : vector<8x8xf32>
    %255 = arith.negf %254 : vector<8x8xf32>
    %256 = math.exp %255 : vector<8x8xf32>
    %cst_72 = arith.constant 1.000000e+00 : f32
    %257 = vector.broadcast %cst_72 : f32 to vector<8x8xf32>
    %258 = arith.addf %257, %256 : vector<8x8xf32>
    %259 = arith.divf %257, %258 : vector<8x8xf32>
    %260 = vector.extract_strided_slice %248 {offsets = [0, 8], sizes = [8, 8], strides = [1, 1]} : vector<8x24xf32> to vector<8x8xf32>
    %261 = vector.extract_strided_slice %249 {offsets = [0, 8], sizes = [8, 8], strides = [1, 1]} : vector<8x24xf32> to vector<8x8xf32>
    %262 = arith.addf %260, %261 : vector<8x8xf32>
    %263 = arith.negf %262 : vector<8x8xf32>
    %264 = math.exp %263 : vector<8x8xf32>
    %cst_73 = arith.constant 1.000000e+00 : f32
    %265 = vector.broadcast %cst_73 : f32 to vector<8x8xf32>
    %266 = arith.addf %265, %264 : vector<8x8xf32>
    %267 = arith.divf %265, %266 : vector<8x8xf32>
    %268 = vector.extract_strided_slice %248 {offsets = [0, 16], sizes = [8, 8], strides = [1, 1]} : vector<8x24xf32> to vector<8x8xf32>
    %269 = vector.extract_strided_slice %249 {offsets = [0, 16], sizes = [8, 8], strides = [1, 1]} : vector<8x24xf32> to vector<8x8xf32>
    %270 = arith.mulf %259, %269 : vector<8x8xf32>
    %271 = arith.addf %268, %270 : vector<8x8xf32>
    %272 = math.tanh %271 : vector<8x8xf32>
    %cst_74 = arith.constant 1.000000e+00 : f32
    %273 = vector.broadcast %cst_74 : f32 to vector<8x8xf32>
    %274 = arith.subf %273, %267 : vector<8x8xf32>
    %275 = arith.mulf %274, %272 : vector<8x8xf32>
    %276 = arith.mulf %267, %211 : vector<8x8xf32>
    %277 = arith.addf %275, %276 : vector<8x8xf32>
    %c0_75 = arith.constant 0 : index
    %c3_76 = arith.constant 3 : index
    %c0_77 = arith.constant 0 : index
    %278 = vector.load %arg6[%c0_75, %c3_76, %c0_77] : memref<8x8x16xf32, #tpu.memory_space<vmem>>, vector<8x1x8xf32>
    %279 = vector.shape_cast %278 : vector<8x1x8xf32> to vector<8x8xf32>
    %280 = vector.shape_cast %277 : vector<8x8xf32> to vector<8x1x8xf32>
    tpu.vector_store %arg6[%c0_75, %c3_76, %c0_77], %280 {strides = array<i32>} : memref<8x8x16xf32, #tpu.memory_space<vmem>>, vector<8x1x8xf32>,
    %281 = vector.extract_strided_slice %250 {offsets = [0, 0], sizes = [8, 8], strides = [1, 1]} : vector<8x24xf32> to vector<8x8xf32>
    %282 = vector.extract_strided_slice %251 {offsets = [0, 0], sizes = [8, 8], strides = [1, 1]} : vector<8x24xf32> to vector<8x8xf32>
    %283 = arith.addf %281, %282 : vector<8x8xf32>
    %284 = arith.negf %283 : vector<8x8xf32>
    %285 = math.exp %284 : vector<8x8xf32>
    %cst_78 = arith.constant 1.000000e+00 : f32
    %286 = vector.broadcast %cst_78 : f32 to vector<8x8xf32>
    %287 = arith.addf %286, %285 : vector<8x8xf32>
    %288 = arith.divf %286, %287 : vector<8x8xf32>
    %289 = vector.extract_strided_slice %250 {offsets = [0, 8], sizes = [8, 8], strides = [1, 1]} : vector<8x24xf32> to vector<8x8xf32>
    %290 = vector.extract_strided_slice %251 {offsets = [0, 8], sizes = [8, 8], strides = [1, 1]} : vector<8x24xf32> to vector<8x8xf32>
    %291 = arith.addf %289, %290 : vector<8x8xf32>
    %292 = arith.negf %291 : vector<8x8xf32>
    %293 = math.exp %292 : vector<8x8xf32>
    %cst_79 = arith.constant 1.000000e+00 : f32
    %294 = vector.broadcast %cst_79 : f32 to vector<8x8xf32>
    %295 = arith.addf %294, %293 : vector<8x8xf32>
    %296 = arith.divf %294, %295 : vector<8x8xf32>
    %297 = vector.extract_strided_slice %250 {offsets = [0, 16], sizes = [8, 8], strides = [1, 1]} : vector<8x24xf32> to vector<8x8xf32>
    %298 = vector.extract_strided_slice %251 {offsets = [0, 16], sizes = [8, 8], strides = [1, 1]} : vector<8x24xf32> to vector<8x8xf32>
    %299 = arith.mulf %288, %298 : vector<8x8xf32>
    %300 = arith.addf %297, %299 : vector<8x8xf32>
    %301 = math.tanh %300 : vector<8x8xf32>
    %cst_80 = arith.constant 1.000000e+00 : f32
    %302 = vector.broadcast %cst_80 : f32 to vector<8x8xf32>
    %303 = arith.subf %302, %296 : vector<8x8xf32>
    %304 = arith.mulf %303, %301 : vector<8x8xf32>
    %305 = arith.mulf %296, %240 : vector<8x8xf32>
    %306 = arith.addf %304, %305 : vector<8x8xf32>
    %c0_81 = arith.constant 0 : index
    %c4_82 = arith.constant 4 : index
    %c8_83 = arith.constant 8 : index
    %307 = vector.load %arg6[%c0_81, %c4_82, %c8_83] : memref<8x8x16xf32, #tpu.memory_space<vmem>>, vector<8x1x8xf32>
    %308 = vector.shape_cast %307 : vector<8x1x8xf32> to vector<8x8xf32>
    %309 = vector.shape_cast %306 : vector<8x8xf32> to vector<8x1x8xf32>
    tpu.vector_store %arg6[%c0_81, %c4_82, %c8_83], %309 {strides = array<i32>} : memref<8x8x16xf32, #tpu.memory_space<vmem>>, vector<8x1x8xf32>,
    %310 = tpu.concatenate %277, %306 in 1 : vector<8x8xf32>, vector<8x8xf32> -> vector<8x16xf32>
    %cst_84 = arith.constant dense<0.000000e+00> : vector<8x48xf32>
    %311 = tpu.matmul %310, %1, %cst_84 {dimension_numbers = #tpu.dot_dimension_numbers<[1], [0], [0], [1], [0, 0, 1, 1], [], []>} : vector<8x16xf32>, vector<16x48xf32>, vector<8x48xf32> -> vector<8x48xf32>
    %312 = vector.broadcast %3 : vector<1x48xf32> to vector<8x48xf32>
    %313 = arith.addf %311, %312 : vector<8x48xf32>
    %314 = vector.extract_strided_slice %28 {offsets = [0, 0], sizes = [8, 24], strides = [1, 1]} : vector<8x48xf32> to vector<8x24xf32>
    %315 = vector.extract_strided_slice %313 {offsets = [0, 0], sizes = [8, 24], strides = [1, 1]} : vector<8x48xf32> to vector<8x24xf32>
    %316 = vector.extract_strided_slice %23 {offsets = [0, 24], sizes = [8, 24], strides = [1, 1]} : vector<8x48xf32> to vector<8x24xf32>
    %317 = vector.extract_strided_slice %313 {offsets = [0, 24], sizes = [8, 24], strides = [1, 1]} : vector<8x48xf32> to vector<8x24xf32>
    %318 = vector.extract_strided_slice %314 {offsets = [0, 0], sizes = [8, 8], strides = [1, 1]} : vector<8x24xf32> to vector<8x8xf32>
    %319 = vector.extract_strided_slice %315 {offsets = [0, 0], sizes = [8, 8], strides = [1, 1]} : vector<8x24xf32> to vector<8x8xf32>
    %320 = arith.addf %318, %319 : vector<8x8xf32>
    %321 = arith.negf %320 : vector<8x8xf32>
    %322 = math.exp %321 : vector<8x8xf32>
    %cst_85 = arith.constant 1.000000e+00 : f32
    %323 = vector.broadcast %cst_85 : f32 to vector<8x8xf32>
    %324 = arith.addf %323, %322 : vector<8x8xf32>
    %325 = arith.divf %323, %324 : vector<8x8xf32>
    %326 = vector.extract_strided_slice %314 {offsets = [0, 8], sizes = [8, 8], strides = [1, 1]} : vector<8x24xf32> to vector<8x8xf32>
    %327 = vector.extract_strided_slice %315 {offsets = [0, 8], sizes = [8, 8], strides = [1, 1]} : vector<8x24xf32> to vector<8x8xf32>
    %328 = arith.addf %326, %327 : vector<8x8xf32>
    %329 = arith.negf %328 : vector<8x8xf32>
    %330 = math.exp %329 : vector<8x8xf32>
    %cst_86 = arith.constant 1.000000e+00 : f32
    %331 = vector.broadcast %cst_86 : f32 to vector<8x8xf32>
    %332 = arith.addf %331, %330 : vector<8x8xf32>
    %333 = arith.divf %331, %332 : vector<8x8xf32>
    %334 = vector.extract_strided_slice %314 {offsets = [0, 16], sizes = [8, 8], strides = [1, 1]} : vector<8x24xf32> to vector<8x8xf32>
    %335 = vector.extract_strided_slice %315 {offsets = [0, 16], sizes = [8, 8], strides = [1, 1]} : vector<8x24xf32> to vector<8x8xf32>
    %336 = arith.mulf %325, %335 : vector<8x8xf32>
    %337 = arith.addf %334, %336 : vector<8x8xf32>
    %338 = math.tanh %337 : vector<8x8xf32>
    %cst_87 = arith.constant 1.000000e+00 : f32
    %339 = vector.broadcast %cst_87 : f32 to vector<8x8xf32>
    %340 = arith.subf %339, %333 : vector<8x8xf32>
    %341 = arith.mulf %340, %338 : vector<8x8xf32>
    %342 = arith.mulf %333, %277 : vector<8x8xf32>
    %343 = arith.addf %341, %342 : vector<8x8xf32>
    %c0_88 = arith.constant 0 : index
    %c4_89 = arith.constant 4 : index
    %c0_90 = arith.constant 0 : index
    %344 = vector.load %arg6[%c0_88, %c4_89, %c0_90] : memref<8x8x16xf32, #tpu.memory_space<vmem>>, vector<8x1x8xf32>
    %345 = vector.shape_cast %344 : vector<8x1x8xf32> to vector<8x8xf32>
    %346 = vector.shape_cast %343 : vector<8x8xf32> to vector<8x1x8xf32>
    tpu.vector_store %arg6[%c0_88, %c4_89, %c0_90], %346 {strides = array<i32>} : memref<8x8x16xf32, #tpu.memory_space<vmem>>, vector<8x1x8xf32>,
    %347 = vector.extract_strided_slice %316 {offsets = [0, 0], sizes = [8, 8], strides = [1, 1]} : vector<8x24xf32> to vector<8x8xf32>
    %348 = vector.extract_strided_slice %317 {offsets = [0, 0], sizes = [8, 8], strides = [1, 1]} : vector<8x24xf32> to vector<8x8xf32>
    %349 = arith.addf %347, %348 : vector<8x8xf32>
    %350 = arith.negf %349 : vector<8x8xf32>
    %351 = math.exp %350 : vector<8x8xf32>
    %cst_91 = arith.constant 1.000000e+00 : f32
    %352 = vector.broadcast %cst_91 : f32 to vector<8x8xf32>
    %353 = arith.addf %352, %351 : vector<8x8xf32>
    %354 = arith.divf %352, %353 : vector<8x8xf32>
    %355 = vector.extract_strided_slice %316 {offsets = [0, 8], sizes = [8, 8], strides = [1, 1]} : vector<8x24xf32> to vector<8x8xf32>
    %356 = vector.extract_strided_slice %317 {offsets = [0, 8], sizes = [8, 8], strides = [1, 1]} : vector<8x24xf32> to vector<8x8xf32>
    %357 = arith.addf %355, %356 : vector<8x8xf32>
    %358 = arith.negf %357 : vector<8x8xf32>
    %359 = math.exp %358 : vector<8x8xf32>
    %cst_92 = arith.constant 1.000000e+00 : f32
    %360 = vector.broadcast %cst_92 : f32 to vector<8x8xf32>
    %361 = arith.addf %360, %359 : vector<8x8xf32>
    %362 = arith.divf %360, %361 : vector<8x8xf32>
    %363 = vector.extract_strided_slice %316 {offsets = [0, 16], sizes = [8, 8], strides = [1, 1]} : vector<8x24xf32> to vector<8x8xf32>
    %364 = vector.extract_strided_slice %317 {offsets = [0, 16], sizes = [8, 8], strides = [1, 1]} : vector<8x24xf32> to vector<8x8xf32>
    %365 = arith.mulf %354, %364 : vector<8x8xf32>
    %366 = arith.addf %363, %365 : vector<8x8xf32>
    %367 = math.tanh %366 : vector<8x8xf32>
    %cst_93 = arith.constant 1.000000e+00 : f32
    %368 = vector.broadcast %cst_93 : f32 to vector<8x8xf32>
    %369 = arith.subf %368, %362 : vector<8x8xf32>
    %370 = arith.mulf %369, %367 : vector<8x8xf32>
    %371 = arith.mulf %362, %306 : vector<8x8xf32>
    %372 = arith.addf %370, %371 : vector<8x8xf32>
    %c0_94 = arith.constant 0 : index
    %c3_95 = arith.constant 3 : index
    %c8_96 = arith.constant 8 : index
    %373 = vector.load %arg6[%c0_94, %c3_95, %c8_96] : memref<8x8x16xf32, #tpu.memory_space<vmem>>, vector<8x1x8xf32>
    %374 = vector.shape_cast %373 : vector<8x1x8xf32> to vector<8x8xf32>
    %375 = vector.shape_cast %372 : vector<8x8xf32> to vector<8x1x8xf32>
    tpu.vector_store %arg6[%c0_94, %c3_95, %c8_96], %375 {strides = array<i32>} : memref<8x8x16xf32, #tpu.memory_space<vmem>>, vector<8x1x8xf32>,
    %376 = tpu.concatenate %343, %372 in 1 : vector<8x8xf32>, vector<8x8xf32> -> vector<8x16xf32>
    %cst_97 = arith.constant dense<0.000000e+00> : vector<8x48xf32>
    %377 = tpu.matmul %376, %1, %cst_97 {dimension_numbers = #tpu.dot_dimension_numbers<[1], [0], [0], [1], [0, 0, 1, 1], [], []>} : vector<8x16xf32>, vector<16x48xf32>, vector<8x48xf32> -> vector<8x48xf32>
    %378 = vector.broadcast %3 : vector<1x48xf32> to vector<8x48xf32>
    %379 = arith.addf %377, %378 : vector<8x48xf32>
    %380 = vector.extract_strided_slice %33 {offsets = [0, 0], sizes = [8, 24], strides = [1, 1]} : vector<8x48xf32> to vector<8x24xf32>
    %381 = vector.extract_strided_slice %379 {offsets = [0, 0], sizes = [8, 24], strides = [1, 1]} : vector<8x48xf32> to vector<8x24xf32>
    %382 = vector.extract_strided_slice %18 {offsets = [0, 24], sizes = [8, 24], strides = [1, 1]} : vector<8x48xf32> to vector<8x24xf32>
    %383 = vector.extract_strided_slice %379 {offsets = [0, 24], sizes = [8, 24], strides = [1, 1]} : vector<8x48xf32> to vector<8x24xf32>
    %384 = vector.extract_strided_slice %380 {offsets = [0, 0], sizes = [8, 8], strides = [1, 1]} : vector<8x24xf32> to vector<8x8xf32>
    %385 = vector.extract_strided_slice %381 {offsets = [0, 0], sizes = [8, 8], strides = [1, 1]} : vector<8x24xf32> to vector<8x8xf32>
    %386 = arith.addf %384, %385 : vector<8x8xf32>
    %387 = arith.negf %386 : vector<8x8xf32>
    %388 = math.exp %387 : vector<8x8xf32>
    %cst_98 = arith.constant 1.000000e+00 : f32
    %389 = vector.broadcast %cst_98 : f32 to vector<8x8xf32>
    %390 = arith.addf %389, %388 : vector<8x8xf32>
    %391 = arith.divf %389, %390 : vector<8x8xf32>
    %392 = vector.extract_strided_slice %380 {offsets = [0, 8], sizes = [8, 8], strides = [1, 1]} : vector<8x24xf32> to vector<8x8xf32>
    %393 = vector.extract_strided_slice %381 {offsets = [0, 8], sizes = [8, 8], strides = [1, 1]} : vector<8x24xf32> to vector<8x8xf32>
    %394 = arith.addf %392, %393 : vector<8x8xf32>
    %395 = arith.negf %394 : vector<8x8xf32>
    %396 = math.exp %395 : vector<8x8xf32>
    %cst_99 = arith.constant 1.000000e+00 : f32
    %397 = vector.broadcast %cst_99 : f32 to vector<8x8xf32>
    %398 = arith.addf %397, %396 : vector<8x8xf32>
    %399 = arith.divf %397, %398 : vector<8x8xf32>
    %400 = vector.extract_strided_slice %380 {offsets = [0, 16], sizes = [8, 8], strides = [1, 1]} : vector<8x24xf32> to vector<8x8xf32>
    %401 = vector.extract_strided_slice %381 {offsets = [0, 16], sizes = [8, 8], strides = [1, 1]} : vector<8x24xf32> to vector<8x8xf32>
    %402 = arith.mulf %391, %401 : vector<8x8xf32>
    %403 = arith.addf %400, %402 : vector<8x8xf32>
    %404 = math.tanh %403 : vector<8x8xf32>
    %cst_100 = arith.constant 1.000000e+00 : f32
    %405 = vector.broadcast %cst_100 : f32 to vector<8x8xf32>
    %406 = arith.subf %405, %399 : vector<8x8xf32>
    %407 = arith.mulf %406, %404 : vector<8x8xf32>
    %408 = arith.mulf %399, %343 : vector<8x8xf32>
    %409 = arith.addf %407, %408 : vector<8x8xf32>
    %c0_101 = arith.constant 0 : index
    %c5_102 = arith.constant 5 : index
    %c0_103 = arith.constant 0 : index
    %410 = vector.load %arg6[%c0_101, %c5_102, %c0_103] : memref<8x8x16xf32, #tpu.memory_space<vmem>>, vector<8x1x8xf32>
    %411 = vector.shape_cast %410 : vector<8x1x8xf32> to vector<8x8xf32>
    %412 = vector.shape_cast %409 : vector<8x8xf32> to vector<8x1x8xf32>
    tpu.vector_store %arg6[%c0_101, %c5_102, %c0_103], %412 {strides = array<i32>} : memref<8x8x16xf32, #tpu.memory_space<vmem>>, vector<8x1x8xf32>,
    %413 = vector.extract_strided_slice %382 {offsets = [0, 0], sizes = [8, 8], strides = [1, 1]} : vector<8x24xf32> to vector<8x8xf32>
    %414 = vector.extract_strided_slice %383 {offsets = [0, 0], sizes = [8, 8], strides = [1, 1]} : vector<8x24xf32> to vector<8x8xf32>
    %415 = arith.addf %413, %414 : vector<8x8xf32>
    %416 = arith.negf %415 : vector<8x8xf32>
    %417 = math.exp %416 : vector<8x8xf32>
    %cst_104 = arith.constant 1.000000e+00 : f32
    %418 = vector.broadcast %cst_104 : f32 to vector<8x8xf32>
    %419 = arith.addf %418, %417 : vector<8x8xf32>
    %420 = arith.divf %418, %419 : vector<8x8xf32>
    %421 = vector.extract_strided_slice %382 {offsets = [0, 8], sizes = [8, 8], strides = [1, 1]} : vector<8x24xf32> to vector<8x8xf32>
    %422 = vector.extract_strided_slice %383 {offsets = [0, 8], sizes = [8, 8], strides = [1, 1]} : vector<8x24xf32> to vector<8x8xf32>
    %423 = arith.addf %421, %422 : vector<8x8xf32>
    %424 = arith.negf %423 : vector<8x8xf32>
    %425 = math.exp %424 : vector<8x8xf32>
    %cst_105 = arith.constant 1.000000e+00 : f32
    %426 = vector.broadcast %cst_105 : f32 to vector<8x8xf32>
    %427 = arith.addf %426, %425 : vector<8x8xf32>
    %428 = arith.divf %426, %427 : vector<8x8xf32>
    %429 = vector.extract_strided_slice %382 {offsets = [0, 16], sizes = [8, 8], strides = [1, 1]} : vector<8x24xf32> to vector<8x8xf32>
    %430 = vector.extract_strided_slice %383 {offsets = [0, 16], sizes = [8, 8], strides = [1, 1]} : vector<8x24xf32> to vector<8x8xf32>
    %431 = arith.mulf %420, %430 : vector<8x8xf32>
    %432 = arith.addf %429, %431 : vector<8x8xf32>
    %433 = math.tanh %432 : vector<8x8xf32>
    %cst_106 = arith.constant 1.000000e+00 : f32
    %434 = vector.broadcast %cst_106 : f32 to vector<8x8xf32>
    %435 = arith.subf %434, %428 : vector<8x8xf32>
    %436 = arith.mulf %435, %433 : vector<8x8xf32>
    %437 = arith.mulf %428, %372 : vector<8x8xf32>
    %438 = arith.addf %436, %437 : vector<8x8xf32>
    %c0_107 = arith.constant 0 : index
    %c2_108 = arith.constant 2 : index
    %c8_109 = arith.constant 8 : index
    %439 = vector.load %arg6[%c0_107, %c2_108, %c8_109] : memref<8x8x16xf32, #tpu.memory_space<vmem>>, vector<8x1x8xf32>
    %440 = vector.shape_cast %439 : vector<8x1x8xf32> to vector<8x8xf32>
    %441 = vector.shape_cast %438 : vector<8x8xf32> to vector<8x1x8xf32>
    tpu.vector_store %arg6[%c0_107, %c2_108, %c8_109], %441 {strides = array<i32>} : memref<8x8x16xf32, #tpu.memory_space<vmem>>, vector<8x1x8xf32>,
    %442 = tpu.concatenate %409, %438 in 1 : vector<8x8xf32>, vector<8x8xf32> -> vector<8x16xf32>
    %cst_110 = arith.constant dense<0.000000e+00> : vector<8x48xf32>
    %443 = tpu.matmul %442, %1, %cst_110 {dimension_numbers = #tpu.dot_dimension_numbers<[1], [0], [0], [1], [0, 0, 1, 1], [], []>} : vector<8x16xf32>, vector<16x48xf32>, vector<8x48xf32> -> vector<8x48xf32>
    %444 = vector.broadcast %3 : vector<1x48xf32> to vector<8x48xf32>
    %445 = arith.addf %443, %444 : vector<8x48xf32>
    %446 = vector.extract_strided_slice %38 {offsets = [0, 0], sizes = [8, 24], strides = [1, 1]} : vector<8x48xf32> to vector<8x24xf32>
    %447 = vector.extract_strided_slice %445 {offsets = [0, 0], sizes = [8, 24], strides = [1, 1]} : vector<8x48xf32> to vector<8x24xf32>
    %448 = vector.extract_strided_slice %13 {offsets = [0, 24], sizes = [8, 24], strides = [1, 1]} : vector<8x48xf32> to vector<8x24xf32>
    %449 = vector.extract_strided_slice %445 {offsets = [0, 24], sizes = [8, 24], strides = [1, 1]} : vector<8x48xf32> to vector<8x24xf32>
    %450 = vector.extract_strided_slice %446 {offsets = [0, 0], sizes = [8, 8], strides = [1, 1]} : vector<8x24xf32> to vector<8x8xf32>
    %451 = vector.extract_strided_slice %447 {offsets = [0, 0], sizes = [8, 8], strides = [1, 1]} : vector<8x24xf32> to vector<8x8xf32>
    %452 = arith.addf %450, %451 : vector<8x8xf32>
    %453 = arith.negf %452 : vector<8x8xf32>
    %454 = math.exp %453 : vector<8x8xf32>
    %cst_111 = arith.constant 1.000000e+00 : f32
    %455 = vector.broadcast %cst_111 : f32 to vector<8x8xf32>
    %456 = arith.addf %455, %454 : vector<8x8xf32>
    %457 = arith.divf %455, %456 : vector<8x8xf32>
    %458 = vector.extract_strided_slice %446 {offsets = [0, 8], sizes = [8, 8], strides = [1, 1]} : vector<8x24xf32> to vector<8x8xf32>
    %459 = vector.extract_strided_slice %447 {offsets = [0, 8], sizes = [8, 8], strides = [1, 1]} : vector<8x24xf32> to vector<8x8xf32>
    %460 = arith.addf %458, %459 : vector<8x8xf32>
    %461 = arith.negf %460 : vector<8x8xf32>
    %462 = math.exp %461 : vector<8x8xf32>
    %cst_112 = arith.constant 1.000000e+00 : f32
    %463 = vector.broadcast %cst_112 : f32 to vector<8x8xf32>
    %464 = arith.addf %463, %462 : vector<8x8xf32>
    %465 = arith.divf %463, %464 : vector<8x8xf32>
    %466 = vector.extract_strided_slice %446 {offsets = [0, 16], sizes = [8, 8], strides = [1, 1]} : vector<8x24xf32> to vector<8x8xf32>
    %467 = vector.extract_strided_slice %447 {offsets = [0, 16], sizes = [8, 8], strides = [1, 1]} : vector<8x24xf32> to vector<8x8xf32>
    %468 = arith.mulf %457, %467 : vector<8x8xf32>
    %469 = arith.addf %466, %468 : vector<8x8xf32>
    %470 = math.tanh %469 : vector<8x8xf32>
    %cst_113 = arith.constant 1.000000e+00 : f32
    %471 = vector.broadcast %cst_113 : f32 to vector<8x8xf32>
    %472 = arith.subf %471, %465 : vector<8x8xf32>
    %473 = arith.mulf %472, %470 : vector<8x8xf32>
    %474 = arith.mulf %465, %409 : vector<8x8xf32>
    %475 = arith.addf %473, %474 : vector<8x8xf32>
    %c0_114 = arith.constant 0 : index
    %c6_115 = arith.constant 6 : index
    %c0_116 = arith.constant 0 : index
    %476 = vector.load %arg6[%c0_114, %c6_115, %c0_116] : memref<8x8x16xf32, #tpu.memory_space<vmem>>, vector<8x1x8xf32>
    %477 = vector.shape_cast %476 : vector<8x1x8xf32> to vector<8x8xf32>
    %478 = vector.shape_cast %475 : vector<8x8xf32> to vector<8x1x8xf32>
    tpu.vector_store %arg6[%c0_114, %c6_115, %c0_116], %478 {strides = array<i32>} : memref<8x8x16xf32, #tpu.memory_space<vmem>>, vector<8x1x8xf32>,
    %479 = vector.extract_strided_slice %448 {offsets = [0, 0], sizes = [8, 8], strides = [1, 1]} : vector<8x24xf32> to vector<8x8xf32>
    %480 = vector.extract_strided_slice %449 {offsets = [0, 0], sizes = [8, 8], strides = [1, 1]} : vector<8x24xf32> to vector<8x8xf32>
    %481 = arith.addf %479, %480 : vector<8x8xf32>
    %482 = arith.negf %481 : vector<8x8xf32>
    %483 = math.exp %482 : vector<8x8xf32>
    %cst_117 = arith.constant 1.000000e+00 : f32
    %484 = vector.broadcast %cst_117 : f32 to vector<8x8xf32>
    %485 = arith.addf %484, %483 : vector<8x8xf32>
    %486 = arith.divf %484, %485 : vector<8x8xf32>
    %487 = vector.extract_strided_slice %448 {offsets = [0, 8], sizes = [8, 8], strides = [1, 1]} : vector<8x24xf32> to vector<8x8xf32>
    %488 = vector.extract_strided_slice %449 {offsets = [0, 8], sizes = [8, 8], strides = [1, 1]} : vector<8x24xf32> to vector<8x8xf32>
    %489 = arith.addf %487, %488 : vector<8x8xf32>
    %490 = arith.negf %489 : vector<8x8xf32>
    %491 = math.exp %490 : vector<8x8xf32>
    %cst_118 = arith.constant 1.000000e+00 : f32
    %492 = vector.broadcast %cst_118 : f32 to vector<8x8xf32>
    %493 = arith.addf %492, %491 : vector<8x8xf32>
    %494 = arith.divf %492, %493 : vector<8x8xf32>
    %495 = vector.extract_strided_slice %448 {offsets = [0, 16], sizes = [8, 8], strides = [1, 1]} : vector<8x24xf32> to vector<8x8xf32>
    %496 = vector.extract_strided_slice %449 {offsets = [0, 16], sizes = [8, 8], strides = [1, 1]} : vector<8x24xf32> to vector<8x8xf32>
    %497 = arith.mulf %486, %496 : vector<8x8xf32>
    %498 = arith.addf %495, %497 : vector<8x8xf32>
    %499 = math.tanh %498 : vector<8x8xf32>
    %cst_119 = arith.constant 1.000000e+00 : f32
    %500 = vector.broadcast %cst_119 : f32 to vector<8x8xf32>
    %501 = arith.subf %500, %494 : vector<8x8xf32>
    %502 = arith.mulf %501, %499 : vector<8x8xf32>
    %503 = arith.mulf %494, %438 : vector<8x8xf32>
    %504 = arith.addf %502, %503 : vector<8x8xf32>
    %c0_120 = arith.constant 0 : index
    %c1_121 = arith.constant 1 : index
    %c8_122 = arith.constant 8 : index
    %505 = vector.load %arg6[%c0_120, %c1_121, %c8_122] : memref<8x8x16xf32, #tpu.memory_space<vmem>>, vector<8x1x8xf32>
    %506 = vector.shape_cast %505 : vector<8x1x8xf32> to vector<8x8xf32>
    %507 = vector.shape_cast %504 : vector<8x8xf32> to vector<8x1x8xf32>
    tpu.vector_store %arg6[%c0_120, %c1_121, %c8_122], %507 {strides = array<i32>} : memref<8x8x16xf32, #tpu.memory_space<vmem>>, vector<8x1x8xf32>,
    %508 = tpu.concatenate %475, %504 in 1 : vector<8x8xf32>, vector<8x8xf32> -> vector<8x16xf32>
    %cst_123 = arith.constant dense<0.000000e+00> : vector<8x48xf32>
    %509 = tpu.matmul %508, %1, %cst_123 {dimension_numbers = #tpu.dot_dimension_numbers<[1], [0], [0], [1], [0, 0, 1, 1], [], []>} : vector<8x16xf32>, vector<16x48xf32>, vector<8x48xf32> -> vector<8x48xf32>
    %510 = vector.broadcast %3 : vector<1x48xf32> to vector<8x48xf32>
    %511 = arith.addf %509, %510 : vector<8x48xf32>
    %512 = vector.extract_strided_slice %43 {offsets = [0, 0], sizes = [8, 24], strides = [1, 1]} : vector<8x48xf32> to vector<8x24xf32>
    %513 = vector.extract_strided_slice %511 {offsets = [0, 0], sizes = [8, 24], strides = [1, 1]} : vector<8x48xf32> to vector<8x24xf32>
    %514 = vector.extract_strided_slice %8 {offsets = [0, 24], sizes = [8, 24], strides = [1, 1]} : vector<8x48xf32> to vector<8x24xf32>
    %515 = vector.extract_strided_slice %511 {offsets = [0, 24], sizes = [8, 24], strides = [1, 1]} : vector<8x48xf32> to vector<8x24xf32>
    %516 = vector.extract_strided_slice %512 {offsets = [0, 0], sizes = [8, 8], strides = [1, 1]} : vector<8x24xf32> to vector<8x8xf32>
    %517 = vector.extract_strided_slice %513 {offsets = [0, 0], sizes = [8, 8], strides = [1, 1]} : vector<8x24xf32> to vector<8x8xf32>
    %518 = arith.addf %516, %517 : vector<8x8xf32>
    %519 = arith.negf %518 : vector<8x8xf32>
    %520 = math.exp %519 : vector<8x8xf32>
    %cst_124 = arith.constant 1.000000e+00 : f32
    %521 = vector.broadcast %cst_124 : f32 to vector<8x8xf32>
    %522 = arith.addf %521, %520 : vector<8x8xf32>
    %523 = arith.divf %521, %522 : vector<8x8xf32>
    %524 = vector.extract_strided_slice %512 {offsets = [0, 8], sizes = [8, 8], strides = [1, 1]} : vector<8x24xf32> to vector<8x8xf32>
    %525 = vector.extract_strided_slice %513 {offsets = [0, 8], sizes = [8, 8], strides = [1, 1]} : vector<8x24xf32> to vector<8x8xf32>
    %526 = arith.addf %524, %525 : vector<8x8xf32>
    %527 = arith.negf %526 : vector<8x8xf32>
    %528 = math.exp %527 : vector<8x8xf32>
    %cst_125 = arith.constant 1.000000e+00 : f32
    %529 = vector.broadcast %cst_125 : f32 to vector<8x8xf32>
    %530 = arith.addf %529, %528 : vector<8x8xf32>
    %531 = arith.divf %529, %530 : vector<8x8xf32>
    %532 = vector.extract_strided_slice %512 {offsets = [0, 16], sizes = [8, 8], strides = [1, 1]} : vector<8x24xf32> to vector<8x8xf32>
    %533 = vector.extract_strided_slice %513 {offsets = [0, 16], sizes = [8, 8], strides = [1, 1]} : vector<8x24xf32> to vector<8x8xf32>
    %534 = arith.mulf %523, %533 : vector<8x8xf32>
    %535 = arith.addf %532, %534 : vector<8x8xf32>
    %536 = math.tanh %535 : vector<8x8xf32>
    %cst_126 = arith.constant 1.000000e+00 : f32
    %537 = vector.broadcast %cst_126 : f32 to vector<8x8xf32>
    %538 = arith.subf %537, %531 : vector<8x8xf32>
    %539 = arith.mulf %538, %536 : vector<8x8xf32>
    %540 = arith.mulf %531, %475 : vector<8x8xf32>
    %541 = arith.addf %539, %540 : vector<8x8xf32>
    %c0_127 = arith.constant 0 : index
    %c7_128 = arith.constant 7 : index
    %c0_129 = arith.constant 0 : index
    %542 = vector.load %arg6[%c0_127, %c7_128, %c0_129] : memref<8x8x16xf32, #tpu.memory_space<vmem>>, vector<8x1x8xf32>
    %543 = vector.shape_cast %542 : vector<8x1x8xf32> to vector<8x8xf32>
    %544 = vector.shape_cast %541 : vector<8x8xf32> to vector<8x1x8xf32>
    tpu.vector_store %arg6[%c0_127, %c7_128, %c0_129], %544 {strides = array<i32>} : memref<8x8x16xf32, #tpu.memory_space<vmem>>, vector<8x1x8xf32>,
    %545 = vector.extract_strided_slice %514 {offsets = [0, 0], sizes = [8, 8], strides = [1, 1]} : vector<8x24xf32> to vector<8x8xf32>
    %546 = vector.extract_strided_slice %515 {offsets = [0, 0], sizes = [8, 8], strides = [1, 1]} : vector<8x24xf32> to vector<8x8xf32>
    %547 = arith.addf %545, %546 : vector<8x8xf32>
    %548 = arith.negf %547 : vector<8x8xf32>
    %549 = math.exp %548 : vector<8x8xf32>
    %cst_130 = arith.constant 1.000000e+00 : f32
    %550 = vector.broadcast %cst_130 : f32 to vector<8x8xf32>
    %551 = arith.addf %550, %549 : vector<8x8xf32>
    %552 = arith.divf %550, %551 : vector<8x8xf32>
    %553 = vector.extract_strided_slice %514 {offsets = [0, 8], sizes = [8, 8], strides = [1, 1]} : vector<8x24xf32> to vector<8x8xf32>
    %554 = vector.extract_strided_slice %515 {offsets = [0, 8], sizes = [8, 8], strides = [1, 1]} : vector<8x24xf32> to vector<8x8xf32>
    %555 = arith.addf %553, %554 : vector<8x8xf32>
    %556 = arith.negf %555 : vector<8x8xf32>
    %557 = math.exp %556 : vector<8x8xf32>
    %cst_131 = arith.constant 1.000000e+00 : f32
    %558 = vector.broadcast %cst_131 : f32 to vector<8x8xf32>
    %559 = arith.addf %558, %557 : vector<8x8xf32>
    %560 = arith.divf %558, %559 : vector<8x8xf32>
    %561 = vector.extract_strided_slice %514 {offsets = [0, 16], sizes = [8, 8], strides = [1, 1]} : vector<8x24xf32> to vector<8x8xf32>
    %562 = vector.extract_strided_slice %515 {offsets = [0, 16], sizes = [8, 8], strides = [1, 1]} : vector<8x24xf32> to vector<8x8xf32>
    %563 = arith.mulf %552, %562 : vector<8x8xf32>
    %564 = arith.addf %561, %563 : vector<8x8xf32>
    %565 = math.tanh %564 : vector<8x8xf32>
    %cst_132 = arith.constant 1.000000e+00 : f32
    %566 = vector.broadcast %cst_132 : f32 to vector<8x8xf32>
    %567 = arith.subf %566, %560 : vector<8x8xf32>
    %568 = arith.mulf %567, %565 : vector<8x8xf32>
    %569 = arith.mulf %560, %504 : vector<8x8xf32>
    %570 = arith.addf %568, %569 : vector<8x8xf32>
    %c0_133 = arith.constant 0 : index
    %c0_134 = arith.constant 0 : index
    %c8_135 = arith.constant 8 : index
    %571 = vector.load %arg6[%c0_133, %c0_134, %c8_135] : memref<8x8x16xf32, #tpu.memory_space<vmem>>, vector<8x1x8xf32>
    %572 = vector.shape_cast %571 : vector<8x1x8xf32> to vector<8x8xf32>
    %573 = vector.shape_cast %570 : vector<8x8xf32> to vector<8x1x8xf32>
    tpu.vector_store %arg6[%c0_133, %c0_134, %c8_135], %573 {strides = array<i32>} : memref<8x8x16xf32, #tpu.memory_space<vmem>>, vector<8x1x8xf32>,
    return
  }
  func.func @transform_0(%arg0: i32) -> (i32, i32, i32) {
    %c0_i32 = arith.constant 0 : i32
    %c0_i32_0 = arith.constant 0 : i32
    %c0_i32_1 = arith.constant 0 : i32
    return %arg0, %c0_i32, %c0_i32_0 : i32, i32, i32
  }
  func.func @transform_1(%arg0: i32) -> (i32, i32) {
    %c0_i32 = arith.constant 0 : i32
    %c0_i32_0 = arith.constant 0 : i32
    %c0_i32_1 = arith.constant 0 : i32
    return %c0_i32, %c0_i32_0 : i32, i32
  }
  func.func @transform_2(%arg0: i32) -> (i32, i32) {
    %c0_i32 = arith.constant 0 : i32
    %c0_i32_0 = arith.constant 0 : i32
    %c0_i32_1 = arith.constant 0 : i32
    return %c0_i32, %c0_i32_0 : i32, i32
  }
  func.func @transform_3(%arg0: i32) -> (i32, i32) {
    %c0_i32 = arith.constant 0 : i32
    %c0_i32_0 = arith.constant 0 : i32
    %c0_i32_1 = arith.constant 0 : i32
    return %c0_i32, %c0_i32_0 : i32, i32
  }
  func.func @transform_4(%arg0: i32) -> (i32, i32) {
    %c0_i32 = arith.constant 0 : i32
    %c0_i32_0 = arith.constant 0 : i32
    %c0_i32_1 = arith.constant 0 : i32
    return %c0_i32, %c0_i32_0 : i32, i32
  }
  func.func @transform_5(%arg0: i32) -> (i32, i32, i32) {
    %c0_i32 = arith.constant 0 : i32
    %c0_i32_0 = arith.constant 0 : i32
    %c0_i32_1 = arith.constant 0 : i32
    return %arg0, %c0_i32, %c0_i32_0 : i32, i32, i32
  }
}

module attributes {stable_mosaic.version = 11 : i64} {
  func.func @_attn_cls_kernel(%arg0: i32, %arg1: memref<8x3x16xf32, #tpu.memory_space<vmem>>, %arg2: memref<16x8xf32, #tpu.memory_space<vmem>>, %arg3: memref<1x8xf32, #tpu.memory_space<vmem>>, %arg4: memref<1x8xf32, #tpu.memory_space<vmem>>, %arg5: memref<16x7xf32, #tpu.memory_space<vmem>>, %arg6: memref<1x7xf32, #tpu.memory_space<vmem>>, %arg7: memref<8x16xf32, #tpu.memory_space<vmem>>, %arg8: memref<8x3xf32, #tpu.memory_space<vmem>>, %arg9: memref<8x7xf32, #tpu.memory_space<vmem>>) attributes {dimension_semantics = [#tpu.dimension_semantics<parallel>], iteration_bounds = array<i64: 1>, scalar_prefetch = 0 : i64, scratch_operands = 0 : i64, tpu.core_type = #tpu.core_type<tc>, window_params = [{transform_indices = @transform_0, window_bounds = array<i64: 8, 3, 16>}, {pipeline_mode = #tpu.pipeline_mode<synchronous>, transform_indices = @transform_1, window_bounds = array<i64: 16, 8>}, {pipeline_mode = #tpu.pipeline_mode<synchronous>, transform_indices = @transform_2, window_bounds = array<i64: 1, 8>}, {pipeline_mode = #tpu.pipeline_mode<synchronous>, transform_indices = @transform_3, window_bounds = array<i64: 1, 8>}, {pipeline_mode = #tpu.pipeline_mode<synchronous>, transform_indices = @transform_4, window_bounds = array<i64: 16, 7>}, {pipeline_mode = #tpu.pipeline_mode<synchronous>, transform_indices = @transform_5, window_bounds = array<i64: 1, 7>}, {transform_indices = @transform_6, window_bounds = array<i64: 8, 16>}, {transform_indices = @transform_7, window_bounds = array<i64: 8, 3>}, {transform_indices = @transform_8, window_bounds = array<i64: 8, 7>}]} {
    %c0 = arith.constant 0 : index
    %c0_0 = arith.constant 0 : index
    %0 = vector.load %arg2[%c0, %c0_0] : memref<16x8xf32, #tpu.memory_space<vmem>>, vector<16x8xf32>
    %c0_1 = arith.constant 0 : index
    %c0_2 = arith.constant 0 : index
    %1 = vector.load %arg3[%c0_1, %c0_2] : memref<1x8xf32, #tpu.memory_space<vmem>>, vector<1x8xf32>
    %c0_3 = arith.constant 0 : index
    %c0_4 = arith.constant 0 : index
    %2 = vector.load %arg4[%c0_3, %c0_4] : memref<1x8xf32, #tpu.memory_space<vmem>>, vector<1x8xf32>
    %c0_5 = arith.constant 0 : index
    %c0_6 = arith.constant 0 : index
    %c0_7 = arith.constant 0 : index
    %3 = vector.load %arg1[%c0_5, %c0_6, %c0_7] : memref<8x3x16xf32, #tpu.memory_space<vmem>>, vector<8x1x16xf32>
    %4 = vector.shape_cast %3 : vector<8x1x16xf32> to vector<8x16xf32>
    %c0_8 = arith.constant 0 : index
    %c1 = arith.constant 1 : index
    %c0_9 = arith.constant 0 : index
    %5 = vector.load %arg1[%c0_8, %c1, %c0_9] : memref<8x3x16xf32, #tpu.memory_space<vmem>>, vector<8x1x16xf32>
    %6 = vector.shape_cast %5 : vector<8x1x16xf32> to vector<8x16xf32>
    %c0_10 = arith.constant 0 : index
    %c2 = arith.constant 2 : index
    %c0_11 = arith.constant 0 : index
    %7 = vector.load %arg1[%c0_10, %c2, %c0_11] : memref<8x3x16xf32, #tpu.memory_space<vmem>>, vector<8x1x16xf32>
    %8 = vector.shape_cast %7 : vector<8x1x16xf32> to vector<8x16xf32>
    %cst = arith.constant dense<0.000000e+00> : vector<8x8xf32>
    %9 = tpu.matmul %4, %0, %cst {dimension_numbers = #tpu.dot_dimension_numbers<[1], [0], [0], [1], [0, 0, 1, 1], [], []>} : vector<8x16xf32>, vector<16x8xf32>, vector<8x8xf32> -> vector<8x8xf32>
    %10 = vector.broadcast %1 : vector<1x8xf32> to vector<8x8xf32>
    %11 = arith.addf %9, %10 : vector<8x8xf32>
    %12 = math.tanh %11 : vector<8x8xf32>
    %13 = vector.broadcast %2 : vector<1x8xf32> to vector<8x8xf32>
    %14 = arith.mulf %12, %13 : vector<8x8xf32>
    %cst_12 = arith.constant dense<0.000000e+00> : vector<8xf32>
    %15 = vector.multi_reduction <add>, %14, %cst_12 [1] : vector<8x8xf32> to vector<8xf32>
    %16 = vector.shape_cast %15 : vector<8xf32> to vector<8x1xf32>
    %cst_13 = arith.constant dense<0.000000e+00> : vector<8x8xf32>
    %17 = tpu.matmul %6, %0, %cst_13 {dimension_numbers = #tpu.dot_dimension_numbers<[1], [0], [0], [1], [0, 0, 1, 1], [], []>} : vector<8x16xf32>, vector<16x8xf32>, vector<8x8xf32> -> vector<8x8xf32>
    %18 = vector.broadcast %1 : vector<1x8xf32> to vector<8x8xf32>
    %19 = arith.addf %17, %18 : vector<8x8xf32>
    %20 = math.tanh %19 : vector<8x8xf32>
    %21 = vector.broadcast %2 : vector<1x8xf32> to vector<8x8xf32>
    %22 = arith.mulf %20, %21 : vector<8x8xf32>
    %cst_14 = arith.constant dense<0.000000e+00> : vector<8xf32>
    %23 = vector.multi_reduction <add>, %22, %cst_14 [1] : vector<8x8xf32> to vector<8xf32>
    %24 = vector.shape_cast %23 : vector<8xf32> to vector<8x1xf32>
    %cst_15 = arith.constant dense<0.000000e+00> : vector<8x8xf32>
    %25 = tpu.matmul %8, %0, %cst_15 {dimension_numbers = #tpu.dot_dimension_numbers<[1], [0], [0], [1], [0, 0, 1, 1], [], []>} : vector<8x16xf32>, vector<16x8xf32>, vector<8x8xf32> -> vector<8x8xf32>
    %26 = vector.broadcast %1 : vector<1x8xf32> to vector<8x8xf32>
    %27 = arith.addf %25, %26 : vector<8x8xf32>
    %28 = math.tanh %27 : vector<8x8xf32>
    %29 = vector.broadcast %2 : vector<1x8xf32> to vector<8x8xf32>
    %30 = arith.mulf %28, %29 : vector<8x8xf32>
    %cst_16 = arith.constant dense<0.000000e+00> : vector<8xf32>
    %31 = vector.multi_reduction <add>, %30, %cst_16 [1] : vector<8x8xf32> to vector<8xf32>
    %32 = vector.shape_cast %31 : vector<8xf32> to vector<8x1xf32>
    %33 = tpu.concatenate %16, %24, %32 in 1 : vector<8x1xf32>, vector<8x1xf32>, vector<8x1xf32> -> vector<8x3xf32>
    %cst_17 = arith.constant dense<0xFF800000> : vector<8xf32>
    %34 = vector.multi_reduction <maximumf>, %33, %cst_17 [1] : vector<8x3xf32> to vector<8xf32>
    %35 = vector.shape_cast %34 : vector<8xf32> to vector<8x1xf32>
    %36 = vector.broadcast %35 : vector<8x1xf32> to vector<8x3xf32>
    %37 = arith.subf %33, %36 : vector<8x3xf32>
    %38 = math.exp %37 : vector<8x3xf32>
    %cst_18 = arith.constant dense<0.000000e+00> : vector<8xf32>
    %39 = vector.multi_reduction <add>, %38, %cst_18 [1] : vector<8x3xf32> to vector<8xf32>
    %40 = vector.shape_cast %39 : vector<8xf32> to vector<8x1xf32>
    %41 = vector.broadcast %40 : vector<8x1xf32> to vector<8x3xf32>
    %42 = arith.divf %38, %41 : vector<8x3xf32>
    %cst_19 = arith.constant 0.000000e+00 : f32
    %43 = vector.broadcast %cst_19 : f32 to vector<8x16xf32>
    %44 = vector.extract_strided_slice %42 {offsets = [0, 0], sizes = [8, 1], strides = [1, 1]} : vector<8x3xf32> to vector<8x1xf32>
    %45 = vector.broadcast %44 : vector<8x1xf32> to vector<8x16xf32>
    %46 = arith.mulf %45, %4 : vector<8x16xf32>
    %47 = arith.addf %43, %46 : vector<8x16xf32>
    %48 = vector.extract_strided_slice %42 {offsets = [0, 1], sizes = [8, 1], strides = [1, 1]} : vector<8x3xf32> to vector<8x1xf32>
    %49 = vector.broadcast %48 : vector<8x1xf32> to vector<8x16xf32>
    %50 = arith.mulf %49, %6 : vector<8x16xf32>
    %51 = arith.addf %47, %50 : vector<8x16xf32>
    %52 = vector.extract_strided_slice %42 {offsets = [0, 2], sizes = [8, 1], strides = [1, 1]} : vector<8x3xf32> to vector<8x1xf32>
    %53 = vector.broadcast %52 : vector<8x1xf32> to vector<8x16xf32>
    %54 = arith.mulf %53, %8 : vector<8x16xf32>
    %55 = arith.addf %51, %54 : vector<8x16xf32>
    %c0_20 = arith.constant 0 : index
    %c0_21 = arith.constant 0 : index
    %56 = vector.load %arg7[%c0_20, %c0_21] : memref<8x16xf32, #tpu.memory_space<vmem>>, vector<8x16xf32>
    tpu.vector_store %arg7[%c0_20, %c0_21], %55 {strides = array<i32>} : memref<8x16xf32, #tpu.memory_space<vmem>>, vector<8x16xf32>,
    %c0_22 = arith.constant 0 : index
    %c0_23 = arith.constant 0 : index
    %57 = vector.load %arg8[%c0_22, %c0_23] : memref<8x3xf32, #tpu.memory_space<vmem>>, vector<8x3xf32>
    tpu.vector_store %arg8[%c0_22, %c0_23], %42 {strides = array<i32>} : memref<8x3xf32, #tpu.memory_space<vmem>>, vector<8x3xf32>,
    %c0_24 = arith.constant 0 : index
    %c0_25 = arith.constant 0 : index
    %58 = vector.load %arg5[%c0_24, %c0_25] : memref<16x7xf32, #tpu.memory_space<vmem>>, vector<16x7xf32>
    %cst_26 = arith.constant dense<0.000000e+00> : vector<8x7xf32>
    %59 = tpu.matmul %55, %58, %cst_26 {dimension_numbers = #tpu.dot_dimension_numbers<[1], [0], [0], [1], [0, 0, 1, 1], [], []>} : vector<8x16xf32>, vector<16x7xf32>, vector<8x7xf32> -> vector<8x7xf32>
    %c0_27 = arith.constant 0 : index
    %c0_28 = arith.constant 0 : index
    %60 = vector.load %arg6[%c0_27, %c0_28] : memref<1x7xf32, #tpu.memory_space<vmem>>, vector<1x7xf32>
    %61 = vector.broadcast %60 : vector<1x7xf32> to vector<8x7xf32>
    %62 = arith.addf %59, %61 : vector<8x7xf32>
    %c0_29 = arith.constant 0 : index
    %c0_30 = arith.constant 0 : index
    %63 = vector.load %arg9[%c0_29, %c0_30] : memref<8x7xf32, #tpu.memory_space<vmem>>, vector<8x7xf32>
    tpu.vector_store %arg9[%c0_29, %c0_30], %62 {strides = array<i32>} : memref<8x7xf32, #tpu.memory_space<vmem>>, vector<8x7xf32>,
    return
  }
  func.func @transform_0(%arg0: i32) -> (i32, i32, i32) {
    %c0_i32 = arith.constant 0 : i32
    %c0_i32_0 = arith.constant 0 : i32
    %c0_i32_1 = arith.constant 0 : i32
    return %arg0, %c0_i32, %c0_i32_0 : i32, i32, i32
  }
  func.func @transform_1(%arg0: i32) -> (i32, i32) {
    %c0_i32 = arith.constant 0 : i32
    %c0_i32_0 = arith.constant 0 : i32
    %c0_i32_1 = arith.constant 0 : i32
    return %c0_i32, %c0_i32_0 : i32, i32
  }
  func.func @transform_2(%arg0: i32) -> (i32, i32) {
    %c0_i32 = arith.constant 0 : i32
    %c0_i32_0 = arith.constant 0 : i32
    %c0_i32_1 = arith.constant 0 : i32
    return %c0_i32, %c0_i32_0 : i32, i32
  }
  func.func @transform_3(%arg0: i32) -> (i32, i32) {
    %c0_i32 = arith.constant 0 : i32
    %c0_i32_0 = arith.constant 0 : i32
    %c0_i32_1 = arith.constant 0 : i32
    return %c0_i32, %c0_i32_0 : i32, i32
  }
  func.func @transform_4(%arg0: i32) -> (i32, i32) {
    %c0_i32 = arith.constant 0 : i32
    %c0_i32_0 = arith.constant 0 : i32
    %c0_i32_1 = arith.constant 0 : i32
    return %c0_i32, %c0_i32_0 : i32, i32
  }
  func.func @transform_5(%arg0: i32) -> (i32, i32) {
    %c0_i32 = arith.constant 0 : i32
    %c0_i32_0 = arith.constant 0 : i32
    %c0_i32_1 = arith.constant 0 : i32
    return %c0_i32, %c0_i32_0 : i32, i32
  }
  func.func @transform_6(%arg0: i32) -> (i32, i32) {
    %c0_i32 = arith.constant 0 : i32
    %c0_i32_0 = arith.constant 0 : i32
    return %arg0, %c0_i32 : i32, i32
  }
  func.func @transform_7(%arg0: i32) -> (i32, i32) {
    %c0_i32 = arith.constant 0 : i32
    %c0_i32_0 = arith.constant 0 : i32
    return %arg0, %c0_i32 : i32, i32
  }
  func.func @transform_8(%arg0: i32) -> (i32, i32) {
    %c0_i32 = arith.constant 0 : i32
    %c0_i32_0 = arith.constant 0 : i32
    return %arg0, %c0_i32 : i32, i32
  }
}

</mosaic_0001>

<llo_original>
// kernel: han_forward.7
$region0: #{han_forward.7}
  #allocation0 [shape = 'u32[]', space=smem, size = 0x4, offset = 0x4, fixed_abs, tag = 'smem constant byte address 0x4 - core index']
  #allocation1 [shape = 'u32[144,128]{1,0:T(1,128)}', space=vmem, size = 0x12000, scoped, tag = 'internal scratch']
  %s0 = inlined_call_operand.vmem [shape: f32[8,3,16], index: 0, kind: input, shape index: {}]
  %s1 = inlined_call_operand.vmem [shape: f32[16,8], index: 1, kind: input, shape index: {}]
  %s2 = inlined_call_operand.vmem [shape: f32[1,8], index: 2, kind: input, shape index: {}]
  %s3 = inlined_call_operand.vmem [shape: f32[1,8], index: 3, kind: input, shape index: {}]
  %s4 = inlined_call_operand.vmem [shape: f32[16,7], index: 4, kind: input, shape index: {}]
  %s5 = inlined_call_operand.vmem [shape: f32[1,7], index: 5, kind: input, shape index: {}]
  %s6 = inlined_call_operand.vmem [shape: f32[8,16], index: 6, kind: output, shape index: {0}]
  %s7 = inlined_call_operand.vmem [shape: f32[8,3], index: 7, kind: output, shape index: {1}]
  %s8 = inlined_call_operand.vmem [shape: f32[8,7], index: 8, kind: output, shape index: {2}]
  %9 = xla_tuple %s6, %s7, %s8
  %s10 = sld [smem:[#allocation0]]
  $region50: #{han_forward.7} parent=0
    _
  %s12 = ssub.s32 1, %s10
  %s13 = scalar_select 0, %s12, %s10
  // Predicated region
  $region2: #{han_forward.7} parent=0 // pred_check
    _
  $region3: #{han_forward.7} parent=0 // pred_check_branch
    %15 = sbr.rel (0) target = $region5
  $region4: #{han_forward.7} parent=0 // pred_region
    _
  $region5: #{han_forward.7} parent=0 // pred_fallthru
    _
  // Predicated region
  $region6: #{han_forward.7} parent=0 // pred_check
    _
  $region7: #{han_forward.7} parent=0 // pred_check_branch
    %17 = sbr.rel (0) target = $region9
  $region8: #{han_forward.7} parent=0 // pred_region
    _
  $region9: #{han_forward.7} parent=0 // pred_fallthru
    _
  // Predicated region
  $region10: #{han_forward.7} parent=0 // pred_check
    _
  $region11: #{han_forward.7} parent=0 // pred_check_branch
    %19 = sbr.rel (0) target = $region13
  $region12: #{han_forward.7} parent=0 // pred_region
    _
  $region13: #{han_forward.7} parent=0 // pred_fallthru
    _
  // Predicated region
  $region14: #{han_forward.7} parent=0 // pred_check
    _
  $region15: #{han_forward.7} parent=0 // pred_check_branch
    %21 = sbr.rel (0) target = $region17
  $region16: #{han_forward.7} parent=0 // pred_region
    _
  $region17: #{han_forward.7} parent=0 // pred_fallthru
    _
  // Predicated region
  $region18: #{han_forward.7} parent=0 // pred_check
    _
  $region19: #{han_forward.7} parent=0 // pred_check_branch
    %23 = sbr.rel (0) target = $region21
  $region20: #{han_forward.7} parent=0 // pred_region
    _
  $region21: #{han_forward.7} parent=0 // pred_fallthru
    _
  // Predicated region
  $region22: #{han_forward.7} parent=0 // pred_check
    _
  $region23: #{han_forward.7} parent=0 // pred_check_branch
    %25 = sbr.rel (0) target = $region25
  $region24: #{han_forward.7} parent=0 // pred_region
    _
  $region25: #{han_forward.7} parent=0 // pred_fallthru
    _
  %v26 = vld [vmem:[%s1] sm:$0xff]
  %v27 = vld [vmem:[%s1 + $0x8] sm:$0xff]
  %v28 = vld [vmem:[%s2] sm:$0x1]
  %v29 = vld [vmem:[%s3] sm:$0x1]
  %v30 = vld [vmem:[%s0] sm:$0x1]
  %v31 = vld [vmem:[%s0 + $0x4] sm:$0x1]
  %v32 = vld [vmem:[%s0 + $0x8] sm:$0x1]
  %v33 = vld [vmem:[%s0 + $0xc] sm:$0x1]
  %v34 = vld [vmem:[%s0 + $0x10] sm:$0x1]
  %v35 = vld [vmem:[%s0 + $0x14] sm:$0x1]
  %v36 = vld [vmem:[%s0 + $0x18] sm:$0x1]
  %v37 = vld [vmem:[%s0 + $0x1c] sm:$0x1]
  %v38 = vld [vmem:[%s0 + $0x1] sm:$0x1]
  %v39 = vld [vmem:[%s0 + $0x5] sm:$0x1]
  %v40 = vld [vmem:[%s0 + $0x9] sm:$0x1]
  %v41 = vld [vmem:[%s0 + $0xd] sm:$0x1]
  %v42 = vld [vmem:[%s0 + $0x11] sm:$0x1]
  %v43 = vld [vmem:[%s0 + $0x15] sm:$0x1]
  %v44 = vld [vmem:[%s0 + $0x19] sm:$0x1]
  %v45 = vld [vmem:[%s0 + $0x1d] sm:$0x1]
  %v46 = vld [vmem:[%s0 + $0x2] sm:$0x1]
  %v47 = vld [vmem:[%s0 + $0x6] sm:$0x1]
  %v48 = vld [vmem:[%s0 + $0xa] sm:$0x1]
  %v49 = vld [vmem:[%s0 + $0xe] sm:$0x1]
  %v50 = vld [vmem:[%s0 + $0x12] sm:$0x1]
  %v51 = vld [vmem:[%s0 + $0x16] sm:$0x1]
  %v52 = vld [vmem:[%s0 + $0x1a] sm:$0x1]
  %v53 = vld [vmem:[%s0 + $0x1e] sm:$0x1]
  %v55 = vlaneseq
  %v56 = vshrl.u32 %v55, 7
  %v57 = vsub.s32 0, %v56
  %v58 = vrot.slane %v28, %v57
  %v68 = vrot.slane %v31, 7
  %vm69 = vcmask 1041409
  %v70 = vsel %vm69, %v68, %v30
  %v71 = vrot.slane %v32, 6
  %vm72 = vcmask 1042434
  %v73 = vsel %vm72, %v71, %v70
  %v74 = vrot.slane %v33, 5
  %vm75 = vcmask 1043459
  %v76 = vsel %vm75, %v74, %v73
  %v77 = vrot.slane %v34, 4
  %vm78 = vcmask 1044484
  %v79 = vsel %vm78, %v77, %v76
  %v80 = vrot.slane %v35, 3
  %vm81 = vcmask 1045509
  %v82 = vsel %vm81, %v80, %v79
  %v83 = vrot.slane %v36, 2
  %vm84 = vcmask 1046534
  %v85 = vsel %vm84, %v83, %v82
  %v86 = vrot.slane %v37, 1
  %vm87 = vcmask 1047559
  %v88 = vsel %vm87, %v86, %v85
  %vm89 = vcmask 130048
  %v90 = vsel %vm89, %v88, 0
  %92 = vmatprep.subr.mxu0 0.0
  %93 = vmatpush1.msra.mxu0 %v26
  %94 = vmatprep.subr.mxu0 0.0
  %95 = vmatpush1.msra.mxu0 %v27
  %96 = vmatprep.subr.mxu0 0.0
  %97 = vmatpush1.msra.mxu0 0.0
  %98 = vmatprep.subr.mxu0 0.0
  %99 = vmatpush1.msra.mxu0 0.0
  %100 = vmatprep.subr.mxu0 0.0
  %101 = vmatpush1.msra.mxu0 0.0
  %102 = vmatprep.subr.mxu0 0.0
  %103 = vmatpush1.msra.mxu0 0.0
  %104 = vmatprep.subr.mxu0 0.0
  %105 = vmatpush1.msra.mxu0 0.0
  %106 = vmatprep.subr.mxu0 0.0
  %107 = vmatpush1.msra.mxu0 0.0
  %108 = vmatprep.subr.mxu0 0.0
  %109 = vmatpush1.msra.mxu0 0.0
  %110 = vmatprep.subr.mxu0 0.0
  %111 = vmatpush1.msra.mxu0 0.0
  %112 = vmatprep.subr.mxu0 0.0
  %113 = vmatpush1.msra.mxu0 0.0
  %114 = vmatprep.subr.mxu0 0.0
  %115 = vmatpush1.msra.mxu0 0.0
  %116 = vmatprep.subr.mxu0 0.0
  %117 = vmatpush1.msra.mxu0 0.0
  %118 = vmatprep.subr.mxu0 0.0
  %119 = vmatpush1.msra.mxu0 0.0
  %120 = vmatprep.subr.mxu0 0.0
  %121 = vmatpush1.msra.mxu0 0.0
  %122 = vmatprep.subr.mxu0 0.0
  %123 = vmatpush1.msra.mxu0 0.0
  %124 = vmatprep.subr.mxu0 0.0
  %125 = vmatpush1.msra.mxu0 0.0
  %126 = vmatprep.subr.mxu0 0.0
  %127 = vmatpush1.msra.mxu0 0.0
  %128 = vmatprep.subr.mxu0 0.0
  %129 = vmatpush1.msra.mxu0 0.0
  %130 = vmatprep.subr.mxu0 0.0
  %131 = vmatpush1.msra.mxu0 0.0
  %132 = vmatprep.subr.mxu0 0.0
  %133 = vmatpush1.msra.mxu0 0.0
  %134 = vmatprep.subr.mxu0 0.0
  %135 = vmatpush1.msra.mxu0 0.0
  %136 = vmatprep.subr.mxu0 0.0
  %137 = vmatpush1.msra.mxu0 0.0
  %138 = vmatprep.subr.mxu0 0.0
  %139 = vmatpush1.msra.mxu0 0.0
  %140 = vmatprep.subr.mxu0 0.0
  %141 = vmatpush1.msra.mxu0 0.0
  %142 = vmatprep.subr.mxu0 0.0
  %143 = vmatpush1.msra.mxu0 0.0
  %144 = vmatprep.subr.mxu0 0.0
  %145 = vmatpush1.msra.mxu0 0.0
  %146 = vmatprep.subr.mxu0 0.0
  %147 = vmatpush1.msra.mxu0 0.0
  %148 = vmatprep.subr.mxu0 0.0
  %149 = vmatpush1.msra.mxu0 0.0
  %150 = vmatprep.subr.mxu0 0.0
  %151 = vmatpush1.msra.mxu0 0.0
  %152 = vmatprep.subr.mxu0 0.0
  %153 = vmatpush1.msra.mxu0 0.0
  %154 = vmatprep.subr.mxu0 0.0
  %155 = vmatpush1.msra.mxu0 0.0
  %156 = vmatprep.mubr.f32.mxu0 0.0
  %157 = vmatmul.mubr.f32.gmra.mrb[0].mxu0 %v90
  %v158 = vpop.f32.mrb[0].mxu0
  %v159 = vadd.f32 %v58, %v158
  %v160 = vpop.f32.mrb[0].mxu0
  %161 = vdwg.mxu0
  %v162 = vtanh.pop %v159
  %v164 = vlaneseq
  %v165 = vshrl.u32 %v164, 7
  %v166 = vsub.s32 0, %v165
  %v167 = vrot.slane %v29, %v166
  %v169 = vmul.f32 %v162, %v167
  %vm170 = vcmask 64512
  %v171 = vsel %vm170, %v169, 0.0
  %172 = vadd.xlane.f32.xlu0 %v171
  %v173 = vpop.xlane.xlu0 %172
  %v182 = vrot.slane %v39, 7
  %v183 = vsel %vm69, %v182, %v38
  %v184 = vrot.slane %v40, 6
  %v185 = vsel %vm72, %v184, %v183
  %v186 = vrot.slane %v41, 5
  %v187 = vsel %vm75, %v186, %v185
  %v188 = vrot.slane %v42, 4
  %v189 = vsel %vm78, %v188, %v187
  %v190 = vrot.slane %v43, 3
  %v191 = vsel %vm81, %v190, %v189
  %v192 = vrot.slane %v44, 2
  %v193 = vsel %vm84, %v192, %v191
  %v194 = vrot.slane %v45, 1
  %v195 = vsel %vm87, %v194, %v193
  %v196 = vsel %vm89, %v195, 0
  %198 = vmatprep.subr.mxu0 0.0
  %199 = vmatpush1.msra.mxu0 %v26
  %200 = vmatprep.subr.mxu0 0.0
  %201 = vmatpush1.msra.mxu0 %v27
  %202 = vmatprep.subr.mxu0 0.0
  %203 = vmatpush1.msra.mxu0 0.0
  %204 = vmatprep.subr.mxu0 0.0
  %205 = vmatpush1.msra.mxu0 0.0
  %206 = vmatprep.subr.mxu0 0.0
  %207 = vmatpush1.msra.mxu0 0.0
  %208 = vmatprep.subr.mxu0 0.0
  %209 = vmatpush1.msra.mxu0 0.0
  %210 = vmatprep.subr.mxu0 0.0
  %211 = vmatpush1.msra.mxu0 0.0
  %212 = vmatprep.subr.mxu0 0.0
  %213 = vmatpush1.msra.mxu0 0.0
  %214 = vmatprep.subr.mxu0 0.0
  %215 = vmatpush1.msra.mxu0 0.0
  %216 = vmatprep.subr.mxu0 0.0
  %217 = vmatpush1.msra.mxu0 0.0
  %218 = vmatprep.subr.mxu0 0.0
  %219 = vmatpush1.msra.mxu0 0.0
  %220 = vmatprep.subr.mxu0 0.0
  %221 = vmatpush1.msra.mxu0 0.0
  %222 = vmatprep.subr.mxu0 0.0
  %223 = vmatpush1.msra.mxu0 0.0
  %224 = vmatprep.subr.mxu0 0.0
  %225 = vmatpush1.msra.mxu0 0.0
  %226 = vmatprep.subr.mxu0 0.0
  %227 = vmatpush1.msra.mxu0 0.0
  %228 = vmatprep.subr.mxu0 0.0
  %229 = vmatpush1.msra.mxu0 0.0
  %230 = vmatprep.subr.mxu0 0.0
  %231 = vmatpush1.msra.mxu0 0.0
  %232 = vmatprep.subr.mxu0 0.0
  %233 = vmatpush1.msra.mxu0 0.0
  %234 = vmatprep.subr.mxu0 0.0
  %235 = vmatpush1.msra.mxu0 0.0
  %236 = vmatprep.subr.mxu0 0.0
  %237 = vmatpush1.msra.mxu0 0.0
  %238 = vmatprep.subr.mxu0 0.0
  %239 = vmatpush1.msra.mxu0 0.0
  %240 = vmatprep.subr.mxu0 0.0
  %241 = vmatpush1.msra.mxu0 0.0
  %242 = vmatprep.subr.mxu0 0.0
  %243 = vmatpush1.msra.mxu0 0.0
  %244 = vmatprep.subr.mxu0 0.0
  %245 = vmatpush1.msra.mxu0 0.0
  %246 = vmatprep.subr.mxu0 0.0
  %247 = vmatpush1.msra.mxu0 0.0
  %248 = vmatprep.subr.mxu0 0.0
  %249 = vmatpush1.msra.mxu0 0.0
  %250 = vmatprep.subr.mxu0 0.0
  %251 = vmatpush1.msra.mxu0 0.0
  %252 = vmatprep.subr.mxu0 0.0
  %253 = vmatpush1.msra.mxu0 0.0
  %254 = vmatprep.subr.mxu0 0.0
  %255 = vmatpush1.msra.mxu0 0.0
  %256 = vmatprep.subr.mxu0 0.0
  %257 = vmatpush1.msra.mxu0 0.0
  %258 = vmatprep.subr.mxu0 0.0
  %259 = vmatpush1.msra.mxu0 0.0
  %260 = vmatprep.subr.mxu0 0.0
  %261 = vmatpush1.msra.mxu0 0.0
  %262 = vmatprep.mubr.f32.mxu0 0.0
  %263 = vmatmul.mubr.f32.gmra.mrb[0].mxu0 %v196
  %v264 = vpop.f32.mrb[0].mxu0
  %v265 = vadd.f32 %v58, %v264
  %v266 = vpop.f32.mrb[0].mxu0
  %267 = vdwg.mxu0
  %v268 = vtanh.pop %v265
  %v269 = vmul.f32 %v268, %v167
  %v270 = vsel %vm170, %v269, 0.0
  %271 = vadd.xlane.f32.xlu0 %v270
  %v272 = vpop.xlane.xlu0 %271
  %v281 = vrot.slane %v47, 7
  %v282 = vsel %vm69, %v281, %v46
  %v283 = vrot.slane %v48, 6
  %v284 = vsel %vm72, %v283, %v282
  %v285 = vrot.slane %v49, 5
  %v286 = vsel %vm75, %v285, %v284
  %v287 = vrot.slane %v50, 4
  %v288 = vsel %vm78, %v287, %v286
  %v289 = vrot.slane %v51, 3
  %v290 = vsel %vm81, %v289, %v288
  %v291 = vrot.slane %v52, 2
  %v292 = vsel %vm84, %v291, %v290
  %v293 = vrot.slane %v53, 1
  %v294 = vsel %vm87, %v293, %v292
  %v295 = vsel %vm89, %v294, 0
  %297 = vmatprep.subr.mxu0 0.0
  %298 = vmatpush1.msra.mxu0 %v26
  %299 = vmatprep.subr.mxu0 0.0
  %300 = vmatpush1.msra.mxu0 %v27
  %301 = vmatprep.subr.mxu0 0.0
  %302 = vmatpush1.msra.mxu0 0.0
  %303 = vmatprep.subr.mxu0 0.0
  %304 = vmatpush1.msra.mxu0 0.0
  %305 = vmatprep.subr.mxu0 0.0
  %306 = vmatpush1.msra.mxu0 0.0
  %307 = vmatprep.subr.mxu0 0.0
  %308 = vmatpush1.msra.mxu0 0.0
  %309 = vmatprep.subr.mxu0 0.0
  %310 = vmatpush1.msra.mxu0 0.0
  %311 = vmatprep.subr.mxu0 0.0
  %312 = vmatpush1.msra.mxu0 0.0
  %313 = vmatprep.subr.mxu0 0.0
  %314 = vmatpush1.msra.mxu0 0.0
  %315 = vmatprep.subr.mxu0 0.0
  %316 = vmatpush1.msra.mxu0 0.0
  %317 = vmatprep.subr.mxu0 0.0
  %318 = vmatpush1.msra.mxu0 0.0
  %319 = vmatprep.subr.mxu0 0.0
  %320 = vmatpush1.msra.mxu0 0.0
  %321 = vmatprep.subr.mxu0 0.0
  %322 = vmatpush1.msra.mxu0 0.0
  %323 = vmatprep.subr.mxu0 0.0
  %324 = vmatpush1.msra.mxu0 0.0
  %325 = vmatprep.subr.mxu0 0.0
  %326 = vmatpush1.msra.mxu0 0.0
  %327 = vmatprep.subr.mxu0 0.0
  %328 = vmatpush1.msra.mxu0 0.0
  %329 = vmatprep.subr.mxu0 0.0
  %330 = vmatpush1.msra.mxu0 0.0
  %331 = vmatprep.subr.mxu0 0.0
  %332 = vmatpush1.msra.mxu0 0.0
  %333 = vmatprep.subr.mxu0 0.0
  %334 = vmatpush1.msra.mxu0 0.0
  %335 = vmatprep.subr.mxu0 0.0
  %336 = vmatpush1.msra.mxu0 0.0
  %337 = vmatprep.subr.mxu0 0.0
  %338 = vmatpush1.msra.mxu0 0.0
  %339 = vmatprep.subr.mxu0 0.0
  %340 = vmatpush1.msra.mxu0 0.0
  %341 = vmatprep.subr.mxu0 0.0
  %342 = vmatpush1.msra.mxu0 0.0
  %343 = vmatprep.subr.mxu0 0.0
  %344 = vmatpush1.msra.mxu0 0.0
  %345 = vmatprep.subr.mxu0 0.0
  %346 = vmatpush1.msra.mxu0 0.0
  %347 = vmatprep.subr.mxu0 0.0
  %348 = vmatpush1.msra.mxu0 0.0
  %349 = vmatprep.subr.mxu0 0.0
  %350 = vmatpush1.msra.mxu0 0.0
  %351 = vmatprep.subr.mxu0 0.0
  %352 = vmatpush1.msra.mxu0 0.0
  %353 = vmatprep.subr.mxu0 0.0
  %354 = vmatpush1.msra.mxu0 0.0
  %355 = vmatprep.subr.mxu0 0.0
  %356 = vmatpush1.msra.mxu0 0.0
  %357 = vmatprep.subr.mxu0 0.0
  %358 = vmatpush1.msra.mxu0 0.0
  %359 = vmatprep.subr.mxu0 0.0
  %360 = vmatpush1.msra.mxu0 0.0
  %361 = vmatprep.mubr.f32.mxu0 0.0
  %362 = vmatmul.mubr.f32.gmra.mrb[0].mxu0 %v295
  %v363 = vpop.f32.mrb[0].mxu0
  %v364 = vadd.f32 %v58, %v363
  %v365 = vpop.f32.mrb[0].mxu0
  %366 = vdwg.mxu0
  %v367 = vtanh.pop %v364
  %v368 = vmul.f32 %v367, %v167
  %v369 = vsel %vm170, %v368, 0.0
  %370 = vadd.xlane.f32.xlu0 %v369
  %v371 = vpop.xlane.xlu0 %370
  %vm372 = vcmask 7168
  %v373 = vsel %vm372, %v173, %v272
  %vm374 = vcmask 15360
  %v375 = vsel %vm374, %v373, %v371
  %vm376 = vcmask 23552
  %v377 = vsel %vm376, %v375, -inf
  %378 = vmax.xlane.f32.xlu0 %v377
  %v379 = vpop.xlane.xlu0 %378
  %v380 = vsub.f32 %v375, %v379
  %v381 = vmul.f32 %v380, 1.442695
  %v382 = vpow.pop %v381
  %v383 = vsel %vm376, %v382, 0.0
  %384 = vadd.xlane.f32.xlu0 %v383
  %v385 = vpop.xlane.xlu0 %384
  %v386 = vrcp.pop %v385
  %v387 = vmul.f32 %v382, %v386
  %389 = vset.pattern.permute.xlu0 0
  %390 = vperm.xlu0 %389, %v387
  %v391 = vpop.permute.xlu0 %390
  %v394 = vmul.f32 %v391, %v88
  %v395 = vadd.f32 %v394, 0.0
  %396 = vset.pattern.permute.xlu0 1
  %397 = vperm.xlu0 %396, %v387
  %v398 = vpop.permute.xlu0 %397
  %v401 = vmul.f32 %v398, %v195
  %v402 = vadd.f32 %v395, %v401
  %403 = vset.pattern.permute.xlu0 2
  %404 = vperm.xlu0 %403, %v387
  %v405 = vpop.permute.xlu0 %404
  %v408 = vmul.f32 %v405, %v294
  %v409 = vadd.f32 %v402, %v408
  %410 = vst.msk [vmem:[%s6] sm:$0xff] %vm89, %v409
  %411 = vst.msk [vmem:[%s7] sm:$0xff] %vm376, %v387
  %v412 = vld [vmem:[%s4] sm:$0xff]
  %v413 = vld [vmem:[%s4 + $0x8] sm:$0xff]
  %v414 = vld [vmem:[%s5] sm:$0x1]
  %v416 = vlaneseq
  %v417 = vshrl.u32 %v416, 7
  %v418 = vsub.s32 0, %v417
  %v419 = vrot.slane %v414, %v418
  %v422 = vsel %vm89, %v409, 0
  %424 = vmatprep.subr.mxu0 0.0
  %425 = vmatpush1.msra.mxu0 %v412
  %426 = vmatprep.subr.mxu0 0.0
  %427 = vmatpush1.msra.mxu0 %v413
  %428 = vmatprep.subr.mxu0 0.0
  %429 = vmatpush1.msra.mxu0 0.0
  %430 = vmatprep.subr.mxu0 0.0
  %431 = vmatpush1.msra.mxu0 0.0
  %432 = vmatprep.subr.mxu0 0.0
  %433 = vmatpush1.msra.mxu0 0.0
  %434 = vmatprep.subr.mxu0 0.0
  %435 = vmatpush1.msra.mxu0 0.0
  %436 = vmatprep.subr.mxu0 0.0
  %437 = vmatpush1.msra.mxu0 0.0
  %438 = vmatprep.subr.mxu0 0.0
  %439 = vmatpush1.msra.mxu0 0.0
  %440 = vmatprep.subr.mxu0 0.0
  %441 = vmatpush1.msra.mxu0 0.0
  %442 = vmatprep.subr.mxu0 0.0
  %443 = vmatpush1.msra.mxu0 0.0
  %444 = vmatprep.subr.mxu0 0.0
  %445 = vmatpush1.msra.mxu0 0.0
  %446 = vmatprep.subr.mxu0 0.0
  %447 = vmatpush1.msra.mxu0 0.0
  %448 = vmatprep.subr.mxu0 0.0
  %449 = vmatpush1.msra.mxu0 0.0
  %450 = vmatprep.subr.mxu0 0.0
  %451 = vmatpush1.msra.mxu0 0.0
  %452 = vmatprep.subr.mxu0 0.0
  %453 = vmatpush1.msra.mxu0 0.0
  %454 = vmatprep.subr.mxu0 0.0
  %455 = vmatpush1.msra.mxu0 0.0
  %456 = vmatprep.subr.mxu0 0.0
  %457 = vmatpush1.msra.mxu0 0.0
  %458 = vmatprep.subr.mxu0 0.0
  %459 = vmatpush1.msra.mxu0 0.0
  %460 = vmatprep.subr.mxu0 0.0
  %461 = vmatpush1.msra.mxu0 0.0
  %462 = vmatprep.subr.mxu0 0.0
  %463 = vmatpush1.msra.mxu0 0.0
  %464 = vmatprep.subr.mxu0 0.0
  %465 = vmatpush1.msra.mxu0 0.0
  %466 = vmatprep.subr.mxu0 0.0
  %467 = vmatpush1.msra.mxu0 0.0
  %468 = vmatprep.subr.mxu0 0.0
  %469 = vmatpush1.msra.mxu0 0.0
  %470 = vmatprep.subr.mxu0 0.0
  %471 = vmatpush1.msra.mxu0 0.0
  %472 = vmatprep.subr.mxu0 0.0
  %473 = vmatpush1.msra.mxu0 0.0
  %474 = vmatprep.subr.mxu0 0.0
  %475 = vmatpush1.msra.mxu0 0.0
  %476 = vmatprep.subr.mxu0 0.0
  %477 = vmatpush1.msra.mxu0 0.0
  %478 = vmatprep.subr.mxu0 0.0
  %479 = vmatpush1.msra.mxu0 0.0
  %480 = vmatprep.subr.mxu0 0.0
  %481 = vmatpush1.msra.mxu0 0.0
  %482 = vmatprep.subr.mxu0 0.0
  %483 = vmatpush1.msra.mxu0 0.0
  %484 = vmatprep.subr.mxu0 0.0
  %485 = vmatpush1.msra.mxu0 0.0
  %486 = vmatprep.subr.mxu0 0.0
  %487 = vmatpush1.msra.mxu0 0.0
  %488 = vmatprep.mubr.f32.mxu0 0.0
  %489 = vmatmul.mubr.f32.gmra.mrb[0].mxu0 %v422
  %v490 = vpop.f32.mrb[0].mxu0
  %v491 = vadd.f32 %v419, %v490
  %v492 = vpop.f32.mrb[0].mxu0
  %493 = vdwg.mxu0
  %vm494 = vcmask 56320
  %495 = vst.msk [vmem:[%s8] sm:$0xff] %vm494, %v491
  // Predicated region
  $region26: #{han_forward.7} parent=0 // pred_check
    _
  $region27: #{han_forward.7} parent=0 // pred_check_branch
    %497 = sbr.rel (0) target = $region29
  $region28: #{han_forward.7} parent=0 // pred_region
    _
  $region29: #{han_forward.7} parent=0 // pred_fallthru
    _
  // Predicated region
  $region30: #{han_forward.7} parent=0 // pred_check
    _
  $region31: #{han_forward.7} parent=0 // pred_check_branch
    %499 = sbr.rel (0) target = $region33
  $region32: #{han_forward.7} parent=0 // pred_region
    _
  $region33: #{han_forward.7} parent=0 // pred_fallthru
    _
  // Predicated region
  $region34: #{han_forward.7} parent=0 // pred_check
    _
  $region35: #{han_forward.7} parent=0 // pred_check_branch
    %501 = sbr.rel (0) target = $region37
  $region36: #{han_forward.7} parent=0 // pred_region
    _
  $region37: #{han_forward.7} parent=0 // pred_fallthru
    _
  // Predicated region
  $region38: #{han_forward.7} parent=0 // pred_check
    _
  $region39: #{han_forward.7} parent=0 // pred_check_branch
    %503 = sbr.rel (0) target = $region41
  $region40: #{han_forward.7} parent=0 // pred_region
    _
  $region41: #{han_forward.7} parent=0 // pred_fallthru
    _
  // Predicated region
  $region42: #{han_forward.7} parent=0 // pred_check
    _
  $region43: #{han_forward.7} parent=0 // pred_check_branch
    %505 = sbr.rel (0) target = $region45
  $region44: #{han_forward.7} parent=0 // pred_region
    _
  $region45: #{han_forward.7} parent=0 // pred_fallthru
    _
  // Predicated region
  $region46: #{han_forward.7} parent=0 // pred_check
    _
  $region47: #{han_forward.7} parent=0 // pred_check_branch
    %507 = sbr.rel (0) target = $region49
  $region48: #{han_forward.7} parent=0 // pred_region
    _
  $region49: #{han_forward.7} parent=0 // pred_fallthru
    _

// kernel: han_forward.6
$region0: #{han_forward.6}
  #allocation0 [shape = 'u32[]', space=smem, size = 0x4, offset = 0x4, fixed_abs, tag = 'smem constant byte address 0x4 - core index']
  #allocation1 [shape = 'u32[144,128]{1,0:T(1,128)}', space=vmem, size = 0x12000, scoped, tag = 'internal scratch']
  %s0 = inlined_call_operand.vmem [shape: f32[8,3,16], index: 0, kind: input, shape index: {}]
  %s1 = inlined_call_operand.vmem [shape: f32[16,48], index: 1, kind: input, shape index: {}]
  %s2 = inlined_call_operand.vmem [shape: f32[16,48], index: 2, kind: input, shape index: {}]
  %s3 = inlined_call_operand.vmem [shape: f32[1,48], index: 3, kind: input, shape index: {}]
  %s4 = inlined_call_operand.vmem [shape: f32[1,48], index: 4, kind: input, shape index: {}]
  %s5 = inlined_call_operand.vmem [shape: f32[8,3,16], index: 5, kind: output, shape index: {}]
  %s6 = sld [smem:[#allocation0]]
  $region30: #{han_forward.6} parent=0
    _
  %s8 = ssub.s32 1, %s6
  %s9 = scalar_select 0, %s8, %s6
  // Predicated region
  $region2: #{han_forward.6} parent=0 // pred_check
    _
  $region3: #{han_forward.6} parent=0 // pred_check_branch
    %11 = sbr.rel (0) target = $region5
  $region4: #{han_forward.6} parent=0 // pred_region
    _
  $region5: #{han_forward.6} parent=0 // pred_fallthru
    _
  // Predicated region
  $region6: #{han_forward.6} parent=0 // pred_check
    _
  $region7: #{han_forward.6} parent=0 // pred_check_branch
    %13 = sbr.rel (0) target = $region9
  $region8: #{han_forward.6} parent=0 // pred_region
    _
  $region9: #{han_forward.6} parent=0 // pred_fallthru
    _
  // Predicated region
  $region10: #{han_forward.6} parent=0 // pred_check
    _
  $region11: #{han_forward.6} parent=0 // pred_check_branch
    %15 = sbr.rel (0) target = $region13
  $region12: #{han_forward.6} parent=0 // pred_region
    _
  $region13: #{han_forward.6} parent=0 // pred_fallthru
    _
  // Predicated region
  $region14: #{han_forward.6} parent=0 // pred_check
    _
  $region15: #{han_forward.6} parent=0 // pred_check_branch
    %17 = sbr.rel (0) target = $region17
  $region16: #{han_forward.6} parent=0 // pred_region
    _
  $region17: #{han_forward.6} parent=0 // pred_fallthru
    _
  // Predicated region
  $region18: #{han_forward.6} parent=0 // pred_check
    _
  $region19: #{han_forward.6} parent=0 // pred_check_branch
    %19 = sbr.rel (0) target = $region21
  $region20: #{han_forward.6} parent=0 // pred_region
    _
  $region21: #{han_forward.6} parent=0 // pred_fallthru
    _
  %v20 = vld [vmem:[%s1] sm:$0xff]
  %v21 = vld [vmem:[%s1 + $0x8] sm:$0xff]
  %v22 = vld [vmem:[%s2] sm:$0xff]
  %v23 = vld [vmem:[%s2 + $0x8] sm:$0xff]
  %v24 = vld [vmem:[%s3] sm:$0x1]
  %v25 = vld [vmem:[%s4] sm:$0x1]
  %v26 = vld [vmem:[%s0] sm:$0x1]
  %v27 = vld [vmem:[%s0 + $0x4] sm:$0x1]
  %v28 = vld [vmem:[%s0 + $0x8] sm:$0x1]
  %v29 = vld [vmem:[%s0 + $0xc] sm:$0x1]
  %v30 = vld [vmem:[%s0 + $0x10] sm:$0x1]
  %v31 = vld [vmem:[%s0 + $0x14] sm:$0x1]
  %v32 = vld [vmem:[%s0 + $0x18] sm:$0x1]
  %v33 = vld [vmem:[%s0 + $0x1c] sm:$0x1]
  %v35 = vlaneseq
  %v36 = vshrl.u32 %v35, 7
  %v37 = vsub.s32 0, %v36
  %v38 = vrot.slane %v24, %v37
  %v48 = vrot.slane %v27, 7
  %vm49 = vcmask 1041409
  %v50 = vsel %vm49, %v48, %v26
  %v51 = vrot.slane %v28, 6
  %vm52 = vcmask 1042434
  %v53 = vsel %vm52, %v51, %v50
  %v54 = vrot.slane %v29, 5
  %vm55 = vcmask 1043459
  %v56 = vsel %vm55, %v54, %v53
  %v57 = vrot.slane %v30, 4
  %vm58 = vcmask 1044484
  %v59 = vsel %vm58, %v57, %v56
  %v60 = vrot.slane %v31, 3
  %vm61 = vcmask 1045509
  %v62 = vsel %vm61, %v60, %v59
  %v63 = vrot.slane %v32, 2
  %vm64 = vcmask 1046534
  %v65 = vsel %vm64, %v63, %v62
  %v66 = vrot.slane %v33, 1
  %vm67 = vcmask 1047559
  %v68 = vsel %vm67, %v66, %v65
  %vm69 = vcmask 130048
  %v70 = vsel %vm69, %v68, 0
  %72 = vmatprep.subr.mxu0 0.0
  %73 = vmatpush1.msra.mxu0 %v20
  %74 = vmatprep.subr.mxu0 0.0
  %75 = vmatpush1.msra.mxu0 %v21
  %76 = vmatprep.subr.mxu0 0.0
  %77 = vmatpush1.msra.mxu0 0.0
  %78 = vmatprep.subr.mxu0 0.0
  %79 = vmatpush1.msra.mxu0 0.0
  %80 = vmatprep.subr.mxu0 0.0
  %81 = vmatpush1.msra.mxu0 0.0
  %82 = vmatprep.subr.mxu0 0.0
  %83 = vmatpush1.msra.mxu0 0.0
  %84 = vmatprep.subr.mxu0 0.0
  %85 = vmatpush1.msra.mxu0 0.0
  %86 = vmatprep.subr.mxu0 0.0
  %87 = vmatpush1.msra.mxu0 0.0
  %88 = vmatprep.subr.mxu0 0.0
  %89 = vmatpush1.msra.mxu0 0.0
  %90 = vmatprep.subr.mxu0 0.0
  %91 = vmatpush1.msra.mxu0 0.0
  %92 = vmatprep.subr.mxu0 0.0
  %93 = vmatpush1.msra.mxu0 0.0
  %94 = vmatprep.subr.mxu0 0.0
  %95 = vmatpush1.msra.mxu0 0.0
  %96 = vmatprep.subr.mxu0 0.0
  %97 = vmatpush1.msra.mxu0 0.0
  %98 = vmatprep.subr.mxu0 0.0
  %99 = vmatpush1.msra.mxu0 0.0
  %100 = vmatprep.subr.mxu0 0.0
  %101 = vmatpush1.msra.mxu0 0.0
  %102 = vmatprep.subr.mxu0 0.0
  %103 = vmatpush1.msra.mxu0 0.0
  %104 = vmatprep.subr.mxu0 0.0
  %105 = vmatpush1.msra.mxu0 0.0
  %106 = vmatprep.subr.mxu0 0.0
  %107 = vmatpush1.msra.mxu0 0.0
  %108 = vmatprep.subr.mxu0 0.0
  %109 = vmatpush1.msra.mxu0 0.0
  %110 = vmatprep.subr.mxu0 0.0
  %111 = vmatpush1.msra.mxu0 0.0
  %112 = vmatprep.subr.mxu0 0.0
  %113 = vmatpush1.msra.mxu0 0.0
  %114 = vmatprep.subr.mxu0 0.0
  %115 = vmatpush1.msra.mxu0 0.0
  %116 = vmatprep.subr.mxu0 0.0
  %117 = vmatpush1.msra.mxu0 0.0
  %118 = vmatprep.subr.mxu0 0.0
  %119 = vmatpush1.msra.mxu0 0.0
  %120 = vmatprep.subr.mxu0 0.0
  %121 = vmatpush1.msra.mxu0 0.0
  %122 = vmatprep.subr.mxu0 0.0
  %123 = vmatpush1.msra.mxu0 0.0
  %124 = vmatprep.subr.mxu0 0.0
  %125 = vmatpush1.msra.mxu0 0.0
  %126 = vmatprep.subr.mxu0 0.0
  %127 = vmatpush1.msra.mxu0 0.0
  %128 = vmatprep.subr.mxu0 0.0
  %129 = vmatpush1.msra.mxu0 0.0
  %130 = vmatprep.subr.mxu0 0.0
  %131 = vmatpush1.msra.mxu0 0.0
  %132 = vmatprep.subr.mxu0 0.0
  %133 = vmatpush1.msra.mxu0 0.0
  %134 = vmatprep.subr.mxu0 0.0
  %135 = vmatpush1.msra.mxu0 0.0
  %136 = vmatprep.mubr.f32.mxu0 0.0
  %137 = vmatmul.mubr.f32.gmra.mrb[0].mxu0 %v70
  %v138 = vpop.f32.mrb[0].mxu0
  %v139 = vadd.f32 %v38, %v138
  %v140 = vpop.f32.mrb[0].mxu0
  %141 = vdwg.mxu0
  %v142 = vld [vmem:[%s0 + $0x1] sm:$0x1]
  %v143 = vld [vmem:[%s0 + $0x5] sm:$0x1]
  %v144 = vld [vmem:[%s0 + $0x9] sm:$0x1]
  %v145 = vld [vmem:[%s0 + $0xd] sm:$0x1]
  %v146 = vld [vmem:[%s0 + $0x11] sm:$0x1]
  %v147 = vld [vmem:[%s0 + $0x15] sm:$0x1]
  %v148 = vld [vmem:[%s0 + $0x19] sm:$0x1]
  %v149 = vld [vmem:[%s0 + $0x1d] sm:$0x1]
  %v158 = vrot.slane %v143, 7
  %v159 = vsel %vm49, %v158, %v142
  %v160 = vrot.slane %v144, 6
  %v161 = vsel %vm52, %v160, %v159
  %v162 = vrot.slane %v145, 5
  %v163 = vsel %vm55, %v162, %v161
  %v164 = vrot.slane %v146, 4
  %v165 = vsel %vm58, %v164, %v163
  %v166 = vrot.slane %v147, 3
  %v167 = vsel %vm61, %v166, %v165
  %v168 = vrot.slane %v148, 2
  %v169 = vsel %vm64, %v168, %v167
  %v170 = vrot.slane %v149, 1
  %v171 = vsel %vm67, %v170, %v169
  %v172 = vsel %vm69, %v171, 0
  %174 = vmatprep.subr.mxu0 0.0
  %175 = vmatpush1.msra.mxu0 %v20
  %176 = vmatprep.subr.mxu0 0.0
  %177 = vmatpush1.msra.mxu0 %v21
  %178 = vmatprep.subr.mxu0 0.0
  %179 = vmatpush1.msra.mxu0 0.0
  %180 = vmatprep.subr.mxu0 0.0
  %181 = vmatpush1.msra.mxu0 0.0
  %182 = vmatprep.subr.mxu0 0.0
  %183 = vmatpush1.msra.mxu0 0.0
  %184 = vmatprep.subr.mxu0 0.0
  %185 = vmatpush1.msra.mxu0 0.0
  %186 = vmatprep.subr.mxu0 0.0
  %187 = vmatpush1.msra.mxu0 0.0
  %188 = vmatprep.subr.mxu0 0.0
  %189 = vmatpush1.msra.mxu0 0.0
  %190 = vmatprep.subr.mxu0 0.0
  %191 = vmatpush1.msra.mxu0 0.0
  %192 = vmatprep.subr.mxu0 0.0
  %193 = vmatpush1.msra.mxu0 0.0
  %194 = vmatprep.subr.mxu0 0.0
  %195 = vmatpush1.msra.mxu0 0.0
  %196 = vmatprep.subr.mxu0 0.0
  %197 = vmatpush1.msra.mxu0 0.0
  %198 = vmatprep.subr.mxu0 0.0
  %199 = vmatpush1.msra.mxu0 0.0
  %200 = vmatprep.subr.mxu0 0.0
  %201 = vmatpush1.msra.mxu0 0.0
  %202 = vmatprep.subr.mxu0 0.0
  %203 = vmatpush1.msra.mxu0 0.0
  %204 = vmatprep.subr.mxu0 0.0
  %205 = vmatpush1.msra.mxu0 0.0
  %206 = vmatprep.subr.mxu0 0.0
  %207 = vmatpush1.msra.mxu0 0.0
  %208 = vmatprep.subr.mxu0 0.0
  %209 = vmatpush1.msra.mxu0 0.0
  %210 = vmatprep.subr.mxu0 0.0
  %211 = vmatpush1.msra.mxu0 0.0
  %212 = vmatprep.subr.mxu0 0.0
  %213 = vmatpush1.msra.mxu0 0.0
  %214 = vmatprep.subr.mxu0 0.0
  %215 = vmatpush1.msra.mxu0 0.0
  %216 = vmatprep.subr.mxu0 0.0
  %217 = vmatpush1.msra.mxu0 0.0
  %218 = vmatprep.subr.mxu0 0.0
  %219 = vmatpush1.msra.mxu0 0.0
  %220 = vmatprep.subr.mxu0 0.0
  %221 = vmatpush1.msra.mxu0 0.0
  %222 = vmatprep.subr.mxu0 0.0
  %223 = vmatpush1.msra.mxu0 0.0
  %224 = vmatprep.subr.mxu0 0.0
  %225 = vmatpush1.msra.mxu0 0.0
  %226 = vmatprep.subr.mxu0 0.0
  %227 = vmatpush1.msra.mxu0 0.0
  %228 = vmatprep.subr.mxu0 0.0
  %229 = vmatpush1.msra.mxu0 0.0
  %230 = vmatprep.subr.mxu0 0.0
  %231 = vmatpush1.msra.mxu0 0.0
  %232 = vmatprep.subr.mxu0 0.0
  %233 = vmatpush1.msra.mxu0 0.0
  %234 = vmatprep.subr.mxu0 0.0
  %235 = vmatpush1.msra.mxu0 0.0
  %236 = vmatprep.subr.mxu0 0.0
  %237 = vmatpush1.msra.mxu0 0.0
  %238 = vmatprep.mubr.f32.mxu0 0.0
  %239 = vmatmul.mubr.f32.gmra.mrb[0].mxu0 %v172
  %v240 = vpop.f32.mrb[0].mxu0
  %v241 = vadd.f32 %v38, %v240
  %v242 = vpop.f32.mrb[0].mxu0
  %243 = vdwg.mxu0
  %v244 = vld [vmem:[%s0 + $0x2] sm:$0x1]
  %v245 = vld [vmem:[%s0 + $0x6] sm:$0x1]
  %v246 = vld [vmem:[%s0 + $0xa] sm:$0x1]
  %v247 = vld [vmem:[%s0 + $0xe] sm:$0x1]
  %v248 = vld [vmem:[%s0 + $0x12] sm:$0x1]
  %v249 = vld [vmem:[%s0 + $0x16] sm:$0x1]
  %v250 = vld [vmem:[%s0 + $0x1a] sm:$0x1]
  %v251 = vld [vmem:[%s0 + $0x1e] sm:$0x1]
  %v260 = vrot.slane %v245, 7
  %v261 = vsel %vm49, %v260, %v244
  %v262 = vrot.slane %v246, 6
  %v263 = vsel %vm52, %v262, %v261
  %v264 = vrot.slane %v247, 5
  %v265 = vsel %vm55, %v264, %v263
  %v266 = vrot.slane %v248, 4
  %v267 = vsel %vm58, %v266, %v265
  %v268 = vrot.slane %v249, 3
  %v269 = vsel %vm61, %v268, %v267
  %v270 = vrot.slane %v250, 2
  %v271 = vsel %vm64, %v270, %v269
  %v272 = vrot.slane %v251, 1
  %v273 = vsel %vm67, %v272, %v271
  %v274 = vsel %vm69, %v273, 0
  %276 = vmatprep.subr.mxu0 0.0
  %277 = vmatpush1.msra.mxu0 %v20
  %278 = vmatprep.subr.mxu0 0.0
  %279 = vmatpush1.msra.mxu0 %v21
  %280 = vmatprep.subr.mxu0 0.0
  %281 = vmatpush1.msra.mxu0 0.0
  %282 = vmatprep.subr.mxu0 0.0
  %283 = vmatpush1.msra.mxu0 0.0
  %284 = vmatprep.subr.mxu0 0.0
  %285 = vmatpush1.msra.mxu0 0.0
  %286 = vmatprep.subr.mxu0 0.0
  %287 = vmatpush1.msra.mxu0 0.0
  %288 = vmatprep.subr.mxu0 0.0
  %289 = vmatpush1.msra.mxu0 0.0
  %290 = vmatprep.subr.mxu0 0.0
  %291 = vmatpush1.msra.mxu0 0.0
  %292 = vmatprep.subr.mxu0 0.0
  %293 = vmatpush1.msra.mxu0 0.0
  %294 = vmatprep.subr.mxu0 0.0
  %295 = vmatpush1.msra.mxu0 0.0
  %296 = vmatprep.subr.mxu0 0.0
  %297 = vmatpush1.msra.mxu0 0.0
  %298 = vmatprep.subr.mxu0 0.0
  %299 = vmatpush1.msra.mxu0 0.0
  %300 = vmatprep.subr.mxu0 0.0
  %301 = vmatpush1.msra.mxu0 0.0
  %302 = vmatprep.subr.mxu0 0.0
  %303 = vmatpush1.msra.mxu0 0.0
  %304 = vmatprep.subr.mxu0 0.0
  %305 = vmatpush1.msra.mxu0 0.0
  %306 = vmatprep.subr.mxu0 0.0
  %307 = vmatpush1.msra.mxu0 0.0
  %308 = vmatprep.subr.mxu0 0.0
  %309 = vmatpush1.msra.mxu0 0.0
  %310 = vmatprep.subr.mxu0 0.0
  %311 = vmatpush1.msra.mxu0 0.0
  %312 = vmatprep.subr.mxu0 0.0
  %313 = vmatpush1.msra.mxu0 0.0
  %314 = vmatprep.subr.mxu0 0.0
  %315 = vmatpush1.msra.mxu0 0.0
  %316 = vmatprep.subr.mxu0 0.0
  %317 = vmatpush1.msra.mxu0 0.0
  %318 = vmatprep.subr.mxu0 0.0
  %319 = vmatpush1.msra.mxu0 0.0
  %320 = vmatprep.subr.mxu0 0.0
  %321 = vmatpush1.msra.mxu0 0.0
  %322 = vmatprep.subr.mxu0 0.0
  %323 = vmatpush1.msra.mxu0 0.0
  %324 = vmatprep.subr.mxu0 0.0
  %325 = vmatpush1.msra.mxu0 0.0
  %326 = vmatprep.subr.mxu0 0.0
  %327 = vmatpush1.msra.mxu0 0.0
  %328 = vmatprep.subr.mxu0 0.0
  %329 = vmatpush1.msra.mxu0 0.0
  %330 = vmatprep.subr.mxu0 0.0
  %331 = vmatpush1.msra.mxu0 0.0
  %332 = vmatprep.subr.mxu0 0.0
  %333 = vmatpush1.msra.mxu0 0.0
  %334 = vmatprep.subr.mxu0 0.0
  %335 = vmatpush1.msra.mxu0 0.0
  %336 = vmatprep.subr.mxu0 0.0
  %337 = vmatpush1.msra.mxu0 0.0
  %338 = vmatprep.subr.mxu0 0.0
  %339 = vmatpush1.msra.mxu0 0.0
  %340 = vmatprep.mubr.f32.mxu0 0.0
  %341 = vmatmul.mubr.f32.gmra.mrb[0].mxu0 %v274
  %v342 = vpop.f32.mrb[0].mxu0
  %v343 = vadd.f32 %v38, %v342
  %v344 = vpop.f32.mrb[0].mxu0
  %345 = vdwg.mxu0
  %v347 = vlaneseq
  %v348 = vshrl.u32 %v347, 7
  %v349 = vsub.s32 0, %v348
  %v350 = vrot.slane %v25, %v349
  %v353 = vsel %vm69, 0.0, 0
  %355 = vmatprep.subr.mxu0 0.0
  %356 = vmatpush1.msra.mxu0 %v22
  %357 = vmatprep.subr.mxu0 0.0
  %358 = vmatpush1.msra.mxu0 %v23
  %359 = vmatprep.subr.mxu0 0.0
  %360 = vmatpush1.msra.mxu0 0.0
  %361 = vmatprep.subr.mxu0 0.0
  %362 = vmatpush1.msra.mxu0 0.0
  %363 = vmatprep.subr.mxu0 0.0
  %364 = vmatpush1.msra.mxu0 0.0
  %365 = vmatprep.subr.mxu0 0.0
  %366 = vmatpush1.msra.mxu0 0.0
  %367 = vmatprep.subr.mxu0 0.0
  %368 = vmatpush1.msra.mxu0 0.0
  %369 = vmatprep.subr.mxu0 0.0
  %370 = vmatpush1.msra.mxu0 0.0
  %371 = vmatprep.subr.mxu0 0.0
  %372 = vmatpush1.msra.mxu0 0.0
  %373 = vmatprep.subr.mxu0 0.0
  %374 = vmatpush1.msra.mxu0 0.0
  %375 = vmatprep.subr.mxu0 0.0
  %376 = vmatpush1.msra.mxu0 0.0
  %377 = vmatprep.subr.mxu0 0.0
  %378 = vmatpush1.msra.mxu0 0.0
  %379 = vmatprep.subr.mxu0 0.0
  %380 = vmatpush1.msra.mxu0 0.0
  %381 = vmatprep.subr.mxu0 0.0
  %382 = vmatpush1.msra.mxu0 0.0
  %383 = vmatprep.subr.mxu0 0.0
  %384 = vmatpush1.msra.mxu0 0.0
  %385 = vmatprep.subr.mxu0 0.0
  %386 = vmatpush1.msra.mxu0 0.0
  %387 = vmatprep.subr.mxu0 0.0
  %388 = vmatpush1.msra.mxu0 0.0
  %389 = vmatprep.subr.mxu0 0.0
  %390 = vmatpush1.msra.mxu0 0.0
  %391 = vmatprep.subr.mxu0 0.0
  %392 = vmatpush1.msra.mxu0 0.0
  %393 = vmatprep.subr.mxu0 0.0
  %394 = vmatpush1.msra.mxu0 0.0
  %395 = vmatprep.subr.mxu0 0.0
  %396 = vmatpush1.msra.mxu0 0.0
  %397 = vmatprep.subr.mxu0 0.0
  %398 = vmatpush1.msra.mxu0 0.0
  %399 = vmatprep.subr.mxu0 0.0
  %400 = vmatpush1.msra.mxu0 0.0
  %401 = vmatprep.subr.mxu0 0.0
  %402 = vmatpush1.msra.mxu0 0.0
  %403 = vmatprep.subr.mxu0 0.0
  %404 = vmatpush1.msra.mxu0 0.0
  %405 = vmatprep.subr.mxu0 0.0
  %406 = vmatpush1.msra.mxu0 0.0
  %407 = vmatprep.subr.mxu0 0.0
  %408 = vmatpush1.msra.mxu0 0.0
  %409 = vmatprep.subr.mxu0 0.0
  %410 = vmatpush1.msra.mxu0 0.0
  %411 = vmatprep.subr.mxu0 0.0
  %412 = vmatpush1.msra.mxu0 0.0
  %413 = vmatprep.subr.mxu0 0.0
  %414 = vmatpush1.msra.mxu0 0.0
  %415 = vmatprep.subr.mxu0 0.0
  %416 = vmatpush1.msra.mxu0 0.0
  %417 = vmatprep.subr.mxu0 0.0
  %418 = vmatpush1.msra.mxu0 0.0
  %419 = vmatprep.mubr.f32.mxu0 0.0
  %420 = vmatmul.mubr.f32.gmra.mrb[0].mxu0 %v353
  %v421 = vpop.f32.mrb[0].mxu0
  %v422 = vadd.f32 %v350, %v421
  %v423 = vpop.f32.mrb[0].mxu0
  %424 = vdwg.mxu0
  %v425 = vadd.f32 %v139, %v422
  %v426 = vxor.u32 %v425, 2147483648
  %v427 = vmul.f32 %v426, 1.442695
  %v428 = vpow.pop %v427
  %v429 = vadd.f32 %v428, 1.0
  %v430 = vrcp.pop %v429
  %v431 = vmul.f32 1.0, %v430
  %433 = vrot.lane.b32.xlu0 %v422, 112
  %v434 = vpop.permute.xlu0 %433
  %v436 = vmul.f32 %v431, %v434
  %438 = vrot.lane.b32.xlu0 %v436, 16
  %v439 = vpop.permute.xlu0 %438
  %v441 = vadd.f32 %v139, %v439
  %v442 = vtanh.pop %v441
  %v443 = vsub.f32 1.0, %v431
  %445 = vrot.lane.b32.xlu0 %v442, 120
  %v446 = vpop.permute.xlu0 %445
  %v448 = vmul.f32 %v443, %v446
  %v449 = vmul.f32 %v431, 0.0
  %v450 = vadd.f32 %v448, %v449
  %v452 = vcombine.high %v450, %v450
  %v454 = vunpack.c.l.s4 1966171168
  %v455 = vunpack.c.0.s8 %v454
  %v456 = vlaneseq
  %v457 = vshrl.u32 %v456, 7
  %v458 = vsub.s32 %v455, %v457
  %v459 = vrot.slane %v450, %v458
  %v461 = vunpack.c.l.s4 1966171168
  %v462 = vunpack.c.0.s8 %v461
  %v463 = vlaneseq
  %v464 = vshrl.u32 %v463, 7
  %v465 = vsub.s32 %v462, %v464
  %v466 = vrot.slane %v452, %v465
  %v467 = vcombine.high %v459, %v459
  %v468 = vcombine.high %v466, %v466
  %v470 = vunpack.c.l.s4 1966171168
  %v471 = vunpack.c.0.s8 %v470
  %v472 = vlaneseq
  %v473 = vshrl.u32 %v472, 7
  %v474 = vsub.s32 %v471, %v473
  %v475 = vrot.slane %v459, %v474
  %v477 = vunpack.c.l.s4 1966171168
  %v478 = vunpack.c.0.s8 %v477
  %v479 = vlaneseq
  %v480 = vshrl.u32 %v479, 7
  %v481 = vsub.s32 %v478, %v480
  %v482 = vrot.slane %v466, %v481
  %v484 = vunpack.c.l.s4 1966171168
  %v485 = vunpack.c.0.s8 %v484
  %v486 = vlaneseq
  %v487 = vshrl.u32 %v486, 7
  %v488 = vsub.s32 %v485, %v487
  %v489 = vrot.slane %v467, %v488
  %v491 = vunpack.c.l.s4 1966171168
  %v492 = vunpack.c.0.s8 %v491
  %v493 = vlaneseq
  %v494 = vshrl.u32 %v493, 7
  %v495 = vsub.s32 %v492, %v494
  %v496 = vrot.slane %v468, %v495
  %v497 = vcombine.high %v475, %v475
  %v498 = vcombine.high %v482, %v482
  %v499 = vcombine.high %v489, %v489
  %v500 = vcombine.high %v496, %v496
  %v501 = vlaneseq
  %v502 = vshrl.u32 %v501, 7
  %v503 = vsub.s32 0, %v502
  %v504 = vrot.slane %v475, %v503
  %v505 = vlaneseq
  %v506 = vshrl.u32 %v505, 7
  %v507 = vsub.s32 0, %v506
  %v508 = vrot.slane %v489, %v507
  %v509 = vlaneseq
  %v510 = vshrl.u32 %v509, 7
  %v511 = vsub.s32 0, %v510
  %v512 = vrot.slane %v497, %v511
  %v513 = vlaneseq
  %v514 = vshrl.u32 %v513, 7
  %v515 = vsub.s32 0, %v514
  %v516 = vrot.slane %v499, %v515
  %v517 = vlaneseq
  %v518 = vshrl.u32 %v517, 7
  %v519 = vsub.s32 0, %v518
  %v520 = vrot.slane %v482, %v519
  %v521 = vlaneseq
  %v522 = vshrl.u32 %v521, 7
  %v523 = vsub.s32 0, %v522
  %v524 = vrot.slane %v496, %v523
  %v525 = vlaneseq
  %v526 = vshrl.u32 %v525, 7
  %v527 = vsub.s32 0, %v526
  %v528 = vrot.slane %v498, %v527
  %v529 = vlaneseq
  %v530 = vshrl.u32 %v529, 7
  %v531 = vsub.s32 0, %v530
  %v532 = vrot.slane %v500, %v531
  %533 = vrot.lane.b32.xlu0 %v504, 120
  %v534 = vpop.permute.xlu0 %533
  %535 = vrot.lane.b32.xlu0 %v508, 120
  %v536 = vpop.permute.xlu0 %535
  %537 = vrot.lane.b32.xlu0 %v512, 120
  %v538 = vpop.permute.xlu0 %537
  %539 = vrot.lane.b32.xlu0 %v516, 120
  %v540 = vpop.permute.xlu0 %539
  %541 = vrot.lane.b32.xlu0 %v520, 120
  %v542 = vpop.permute.xlu0 %541
  %543 = vrot.lane.b32.xlu0 %v524, 120
  %v544 = vpop.permute.xlu0 %543
  %545 = vrot.lane.b32.xlu0 %v528, 120
  %v546 = vpop.permute.xlu0 %545
  %547 = vrot.lane.b32.xlu0 %v532, 120
  %v548 = vpop.permute.xlu0 %547
  %vm557 = vcmask 57344
  %558 = vst.msk [vmem:[%s5] sm:$0x1] %vm557, %v534
  %559 = vst.msk [vmem:[%s5 + $0x4] sm:$0x1] %vm557, %v536
  %560 = vst.msk [vmem:[%s5 + $0x8] sm:$0x1] %vm557, %v538
  %561 = vst.msk [vmem:[%s5 + $0xc] sm:$0x1] %vm557, %v540
  %562 = vst.msk [vmem:[%s5 + $0x10] sm:$0x1] %vm557, %v542
  %563 = vst.msk [vmem:[%s5 + $0x14] sm:$0x1] %vm557, %v544
  %564 = vst.msk [vmem:[%s5 + $0x18] sm:$0x1] %vm557, %v546
  %565 = vst.msk [vmem:[%s5 + $0x1c] sm:$0x1] %vm557, %v548
  %v566 = vadd.f32 %v343, %v422
  %v567 = vxor.u32 %v566, 2147483648
  %v568 = vmul.f32 %v567, 1.442695
  %v569 = vpow.pop %v568
  %v570 = vadd.f32 %v569, 1.0
  %v571 = vrcp.pop %v570
  %v572 = vmul.f32 1.0, %v571
  %v573 = vmul.f32 %v572, %v434
  %575 = vrot.lane.b32.xlu0 %v573, 16
  %v576 = vpop.permute.xlu0 %575
  %v578 = vadd.f32 %v343, %v576
  %v579 = vtanh.pop %v578
  %v580 = vsub.f32 1.0, %v572
  %582 = vrot.lane.b32.xlu0 %v579, 120
  %v583 = vpop.permute.xlu0 %582
  %v585 = vmul.f32 %v580, %v583
  %v586 = vmul.f32 %v572, 0.0
  %v587 = vadd.f32 %v585, %v586
  %v589 = vcombine.high %v587, %v587
  %v591 = vunpack.c.l.s4 1966171168
  %v592 = vunpack.c.0.s8 %v591
  %v593 = vlaneseq
  %v594 = vshrl.u32 %v593, 7
  %v595 = vsub.s32 %v592, %v594
  %v596 = vrot.slane %v587, %v595
  %v598 = vunpack.c.l.s4 1966171168
  %v599 = vunpack.c.0.s8 %v598
  %v600 = vlaneseq
  %v601 = vshrl.u32 %v600, 7
  %v602 = vsub.s32 %v599, %v601
  %v603 = vrot.slane %v589, %v602
  %v604 = vcombine.high %v596, %v596
  %v605 = vcombine.high %v603, %v603
  %v607 = vunpack.c.l.s4 1966171168
  %v608 = vunpack.c.0.s8 %v607
  %v609 = vlaneseq
  %v610 = vshrl.u32 %v609, 7
  %v611 = vsub.s32 %v608, %v610
  %v612 = vrot.slane %v596, %v611
  %v614 = vunpack.c.l.s4 1966171168
  %v615 = vunpack.c.0.s8 %v614
  %v616 = vlaneseq
  %v617 = vshrl.u32 %v616, 7
  %v618 = vsub.s32 %v615, %v617
  %v619 = vrot.slane %v603, %v618
  %v621 = vunpack.c.l.s4 1966171168
  %v622 = vunpack.c.0.s8 %v621
  %v623 = vlaneseq
  %v624 = vshrl.u32 %v623, 7
  %v625 = vsub.s32 %v622, %v624
  %v626 = vrot.slane %v604, %v625
  %v628 = vunpack.c.l.s4 1966171168
  %v629 = vunpack.c.0.s8 %v628
  %v630 = vlaneseq
  %v631 = vshrl.u32 %v630, 7
  %v632 = vsub.s32 %v629, %v631
  %v633 = vrot.slane %v605, %v632
  %v634 = vcombine.high %v612, %v612
  %v635 = vcombine.high %v619, %v619
  %v636 = vcombine.high %v626, %v626
  %v637 = vcombine.high %v633, %v633
  %v638 = vlaneseq
  %v639 = vshrl.u32 %v638, 7
  %v640 = vsub.s32 0, %v639
  %v641 = vrot.slane %v612, %v640
  %v642 = vlaneseq
  %v643 = vshrl.u32 %v642, 7
  %v644 = vsub.s32 0, %v643
  %v645 = vrot.slane %v626, %v644
  %v646 = vlaneseq
  %v647 = vshrl.u32 %v646, 7
  %v648 = vsub.s32 0, %v647
  %v649 = vrot.slane %v634, %v648
  %v650 = vlaneseq
  %v651 = vshrl.u32 %v650, 7
  %v652 = vsub.s32 0, %v651
  %v653 = vrot.slane %v636, %v652
  %v654 = vlaneseq
  %v655 = vshrl.u32 %v654, 7
  %v656 = vsub.s32 0, %v655
  %v657 = vrot.slane %v619, %v656
  %v658 = vlaneseq
  %v659 = vshrl.u32 %v658, 7
  %v660 = vsub.s32 0, %v659
  %v661 = vrot.slane %v633, %v660
  %v662 = vlaneseq
  %v663 = vshrl.u32 %v662, 7
  %v664 = vsub.s32 0, %v663
  %v665 = vrot.slane %v635, %v664
  %v666 = vlaneseq
  %v667 = vshrl.u32 %v666, 7
  %v668 = vsub.s32 0, %v667
  %v669 = vrot.slane %v637, %v668
  %670 = vrot.lane.b32.xlu0 %v641, 104
  %v671 = vpop.permute.xlu0 %670
  %672 = vrot.lane.b32.xlu0 %v645, 104
  %v673 = vpop.permute.xlu0 %672
  %674 = vrot.lane.b32.xlu0 %v649, 104
  %v675 = vpop.permute.xlu0 %674
  %676 = vrot.lane.b32.xlu0 %v653, 104
  %v677 = vpop.permute.xlu0 %676
  %678 = vrot.lane.b32.xlu0 %v657, 104
  %v679 = vpop.permute.xlu0 %678
  %680 = vrot.lane.b32.xlu0 %v661, 104
  %v681 = vpop.permute.xlu0 %680
  %682 = vrot.lane.b32.xlu0 %v665, 104
  %v683 = vpop.permute.xlu0 %682
  %684 = vrot.lane.b32.xlu0 %v669, 104
  %v685 = vpop.permute.xlu0 %684
  %vm694 = vcmask 122944
  %695 = vst.msk [vmem:[%s5 + $0x2] sm:$0x1] %vm694, %v671
  %696 = vst.msk [vmem:[%s5 + $0x6] sm:$0x1] %vm694, %v673
  %697 = vst.msk [vmem:[%s5 + $0xa] sm:$0x1] %vm694, %v675
  %698 = vst.msk [vmem:[%s5 + $0xe] sm:$0x1] %vm694, %v677
  %699 = vst.msk [vmem:[%s5 + $0x12] sm:$0x1] %vm694, %v679
  %700 = vst.msk [vmem:[%s5 + $0x16] sm:$0x1] %vm694, %v681
  %701 = vst.msk [vmem:[%s5 + $0x1a] sm:$0x1] %vm694, %v683
  %702 = vst.msk [vmem:[%s5 + $0x1e] sm:$0x1] %vm694, %v685
  %703 = vrot.lane.b32.xlu0 %v450, 120
  %v704 = vpop.permute.xlu0 %703
  %706 = vrot.lane.b32.xlu0 %v587, 104
  %v707 = vpop.permute.xlu0 %706
  %vm709 = vcmask 64512
  %v710 = vsel %vm709, %v704, %v707
  %v712 = vsel %vm69, %v710, 0
  %714 = vmatprep.subr.mxu0 0.0
  %715 = vmatpush1.msra.mxu0 %v22
  %716 = vmatprep.subr.mxu0 0.0
  %717 = vmatpush1.msra.mxu0 %v23
  %718 = vmatprep.subr.mxu0 0.0
  %719 = vmatpush1.msra.mxu0 0.0
  %720 = vmatprep.subr.mxu0 0.0
  %721 = vmatpush1.msra.mxu0 0.0
  %722 = vmatprep.subr.mxu0 0.0
  %723 = vmatpush1.msra.mxu0 0.0
  %724 = vmatprep.subr.mxu0 0.0
  %725 = vmatpush1.msra.mxu0 0.0
  %726 = vmatprep.subr.mxu0 0.0
  %727 = vmatpush1.msra.mxu0 0.0
  %728 = vmatprep.subr.mxu0 0.0
  %729 = vmatpush1.msra.mxu0 0.0
  %730 = vmatprep.subr.mxu0 0.0
  %731 = vmatpush1.msra.mxu0 0.0
  %732 = vmatprep.subr.mxu0 0.0
  %733 = vmatpush1.msra.mxu0 0.0
  %734 = vmatprep.subr.mxu0 0.0
  %735 = vmatpush1.msra.mxu0 0.0
  %736 = vmatprep.subr.mxu0 0.0
  %737 = vmatpush1.msra.mxu0 0.0
  %738 = vmatprep.subr.mxu0 0.0
  %739 = vmatpush1.msra.mxu0 0.0
  %740 = vmatprep.subr.mxu0 0.0
  %741 = vmatpush1.msra.mxu0 0.0
  %742 = vmatprep.subr.mxu0 0.0
  %743 = vmatpush1.msra.mxu0 0.0
  %744 = vmatprep.subr.mxu0 0.0
  %745 = vmatpush1.msra.mxu0 0.0
  %746 = vmatprep.subr.mxu0 0.0
  %747 = vmatpush1.msra.mxu0 0.0
  %748 = vmatprep.subr.mxu0 0.0
  %749 = vmatpush1.msra.mxu0 0.0
  %750 = vmatprep.subr.mxu0 0.0
  %751 = vmatpush1.msra.mxu0 0.0
  %752 = vmatprep.subr.mxu0 0.0
  %753 = vmatpush1.msra.mxu0 0.0
  %754 = vmatprep.subr.mxu0 0.0
  %755 = vmatpush1.msra.mxu0 0.0
  %756 = vmatprep.subr.mxu0 0.0
  %757 = vmatpush1.msra.mxu0 0.0
  %758 = vmatprep.subr.mxu0 0.0
  %759 = vmatpush1.msra.mxu0 0.0
  %760 = vmatprep.subr.mxu0 0.0
  %761 = vmatpush1.msra.mxu0 0.0
  %762 = vmatprep.subr.mxu0 0.0
  %763 = vmatpush1.msra.mxu0 0.0
  %764 = vmatprep.subr.mxu0 0.0
  %765 = vmatpush1.msra.mxu0 0.0
  %766 = vmatprep.subr.mxu0 0.0
  %767 = vmatpush1.msra.mxu0 0.0
  %768 = vmatprep.subr.mxu0 0.0
  %769 = vmatpush1.msra.mxu0 0.0
  %770 = vmatprep.subr.mxu0 0.0
  %771 = vmatpush1.msra.mxu0 0.0
  %772 = vmatprep.subr.mxu0 0.0
  %773 = vmatpush1.msra.mxu0 0.0
  %774 = vmatprep.subr.mxu0 0.0
  %775 = vmatpush1.msra.mxu0 0.0
  %776 = vmatprep.subr.mxu0 0.0
  %777 = vmatpush1.msra.mxu0 0.0
  %778 = vmatprep.mubr.f32.mxu0 0.0
  %779 = vmatmul.mubr.f32.gmra.mrb[0].mxu0 %v712
  %v780 = vpop.f32.mrb[0].mxu0
  %v781 = vadd.f32 %v350, %v780
  %v782 = vpop.f32.mrb[0].mxu0
  %783 = vdwg.mxu0
  %v784 = vadd.f32 %v241, %v781
  %v785 = vxor.u32 %v784, 2147483648
  %v786 = vmul.f32 %v785, 1.442695
  %v787 = vpow.pop %v786
  %v788 = vadd.f32 %v787, 1.0
  %v789 = vrcp.pop %v788
  %v790 = vmul.f32 1.0, %v789
  %792 = vrot.lane.b32.xlu0 %v781, 112
  %v793 = vpop.permute.xlu0 %792
  %v795 = vmul.f32 %v790, %v793
  %797 = vrot.lane.b32.xlu0 %v795, 16
  %v798 = vpop.permute.xlu0 %797
  %v800 = vadd.f32 %v241, %v798
  %v801 = vtanh.pop %v800
  %v802 = vsub.f32 1.0, %v790
  %804 = vrot.lane.b32.xlu0 %v801, 120
  %v805 = vpop.permute.xlu0 %804
  %v807 = vmul.f32 %v802, %v805
  %v808 = vmul.f32 %v790, %v450
  %v809 = vadd.f32 %v807, %v808
  %v811 = vcombine.high %v809, %v809
  %v813 = vunpack.c.l.s4 1966171168
  %v814 = vunpack.c.0.s8 %v813
  %v815 = vlaneseq
  %v816 = vshrl.u32 %v815, 7
  %v817 = vsub.s32 %v814, %v816
  %v818 = vrot.slane %v809, %v817
  %v820 = vunpack.c.l.s4 1966171168
  %v821 = vunpack.c.0.s8 %v820
  %v822 = vlaneseq
  %v823 = vshrl.u32 %v822, 7
  %v824 = vsub.s32 %v821, %v823
  %v825 = vrot.slane %v811, %v824
  %v826 = vcombine.high %v818, %v818
  %v827 = vcombine.high %v825, %v825
  %v829 = vunpack.c.l.s4 1966171168
  %v830 = vunpack.c.0.s8 %v829
  %v831 = vlaneseq
  %v832 = vshrl.u32 %v831, 7
  %v833 = vsub.s32 %v830, %v832
  %v834 = vrot.slane %v818, %v833
  %v836 = vunpack.c.l.s4 1966171168
  %v837 = vunpack.c.0.s8 %v836
  %v838 = vlaneseq
  %v839 = vshrl.u32 %v838, 7
  %v840 = vsub.s32 %v837, %v839
  %v841 = vrot.slane %v825, %v840
  %v843 = vunpack.c.l.s4 1966171168
  %v844 = vunpack.c.0.s8 %v843
  %v845 = vlaneseq
  %v846 = vshrl.u32 %v845, 7
  %v847 = vsub.s32 %v844, %v846
  %v848 = vrot.slane %v826, %v847
  %v850 = vunpack.c.l.s4 1966171168
  %v851 = vunpack.c.0.s8 %v850
  %v852 = vlaneseq
  %v853 = vshrl.u32 %v852, 7
  %v854 = vsub.s32 %v851, %v853
  %v855 = vrot.slane %v827, %v854
  %v856 = vcombine.high %v834, %v834
  %v857 = vcombine.high %v841, %v841
  %v858 = vcombine.high %v848, %v848
  %v859 = vcombine.high %v855, %v855
  %v860 = vlaneseq
  %v861 = vshrl.u32 %v860, 7
  %v862 = vsub.s32 0, %v861
  %v863 = vrot.slane %v834, %v862
  %v864 = vlaneseq
  %v865 = vshrl.u32 %v864, 7
  %v866 = vsub.s32 0, %v865
  %v867 = vrot.slane %v848, %v866
  %v868 = vlaneseq
  %v869 = vshrl.u32 %v868, 7
  %v870 = vsub.s32 0, %v869
  %v871 = vrot.slane %v856, %v870
  %v872 = vlaneseq
  %v873 = vshrl.u32 %v872, 7
  %v874 = vsub.s32 0, %v873
  %v875 = vrot.slane %v858, %v874
  %v876 = vlaneseq
  %v877 = vshrl.u32 %v876, 7
  %v878 = vsub.s32 0, %v877
  %v879 = vrot.slane %v841, %v878
  %v880 = vlaneseq
  %v881 = vshrl.u32 %v880, 7
  %v882 = vsub.s32 0, %v881
  %v883 = vrot.slane %v855, %v882
  %v884 = vlaneseq
  %v885 = vshrl.u32 %v884, 7
  %v886 = vsub.s32 0, %v885
  %v887 = vrot.slane %v857, %v886
  %v888 = vlaneseq
  %v889 = vshrl.u32 %v888, 7
  %v890 = vsub.s32 0, %v889
  %v891 = vrot.slane %v859, %v890
  %892 = vrot.lane.b32.xlu0 %v863, 120
  %v893 = vpop.permute.xlu0 %892
  %894 = vrot.lane.b32.xlu0 %v867, 120
  %v895 = vpop.permute.xlu0 %894
  %896 = vrot.lane.b32.xlu0 %v871, 120
  %v897 = vpop.permute.xlu0 %896
  %898 = vrot.lane.b32.xlu0 %v875, 120
  %v899 = vpop.permute.xlu0 %898
  %900 = vrot.lane.b32.xlu0 %v879, 120
  %v901 = vpop.permute.xlu0 %900
  %902 = vrot.lane.b32.xlu0 %v883, 120
  %v903 = vpop.permute.xlu0 %902
  %904 = vrot.lane.b32.xlu0 %v887, 120
  %v905 = vpop.permute.xlu0 %904
  %906 = vrot.lane.b32.xlu0 %v891, 120
  %v907 = vpop.permute.xlu0 %906
  %916 = vst.msk [vmem:[%s5 + $0x1] sm:$0x1] %vm557, %v893
  %917 = vst.msk [vmem:[%s5 + $0x5] sm:$0x1] %vm557, %v895
  %918 = vst.msk [vmem:[%s5 + $0x9] sm:$0x1] %vm557, %v897
  %919 = vst.msk [vmem:[%s5 + $0xd] sm:$0x1] %vm557, %v899
  %920 = vst.msk [vmem:[%s5 + $0x11] sm:$0x1] %vm557, %v901
  %921 = vst.msk [vmem:[%s5 + $0x15] sm:$0x1] %vm557, %v903
  %922 = vst.msk [vmem:[%s5 + $0x19] sm:$0x1] %vm557, %v905
  %923 = vst.msk [vmem:[%s5 + $0x1d] sm:$0x1] %vm557, %v907
  %v924 = vmul.f32 %v790, %v587
  %v925 = vadd.f32 %v807, %v924
  %v927 = vcombine.high %v925, %v925
  %v929 = vunpack.c.l.s4 1966171168
  %v930 = vunpack.c.0.s8 %v929
  %v931 = vlaneseq
  %v932 = vshrl.u32 %v931, 7
  %v933 = vsub.s32 %v930, %v932
  %v934 = vrot.slane %v925, %v933
  %v936 = vunpack.c.l.s4 1966171168
  %v937 = vunpack.c.0.s8 %v936
  %v938 = vlaneseq
  %v939 = vshrl.u32 %v938, 7
  %v940 = vsub.s32 %v937, %v939
  %v941 = vrot.slane %v927, %v940
  %v942 = vcombine.high %v934, %v934
  %v943 = vcombine.high %v941, %v941
  %v945 = vunpack.c.l.s4 1966171168
  %v946 = vunpack.c.0.s8 %v945
  %v947 = vlaneseq
  %v948 = vshrl.u32 %v947, 7
  %v949 = vsub.s32 %v946, %v948
  %v950 = vrot.slane %v934, %v949
  %v952 = vunpack.c.l.s4 1966171168
  %v953 = vunpack.c.0.s8 %v952
  %v954 = vlaneseq
  %v955 = vshrl.u32 %v954, 7
  %v956 = vsub.s32 %v953, %v955
  %v957 = vrot.slane %v941, %v956
  %v959 = vunpack.c.l.s4 1966171168
  %v960 = vunpack.c.0.s8 %v959
  %v961 = vlaneseq
  %v962 = vshrl.u32 %v961, 7
  %v963 = vsub.s32 %v960, %v962
  %v964 = vrot.slane %v942, %v963
  %v966 = vunpack.c.l.s4 1966171168
  %v967 = vunpack.c.0.s8 %v966
  %v968 = vlaneseq
  %v969 = vshrl.u32 %v968, 7
  %v970 = vsub.s32 %v967, %v969
  %v971 = vrot.slane %v943, %v970
  %v972 = vcombine.high %v950, %v950
  %v973 = vcombine.high %v957, %v957
  %v974 = vcombine.high %v964, %v964
  %v975 = vcombine.high %v971, %v971
  %v976 = vlaneseq
  %v977 = vshrl.u32 %v976, 7
  %v978 = vsub.s32 0, %v977
  %v979 = vrot.slane %v950, %v978
  %v980 = vlaneseq
  %v981 = vshrl.u32 %v980, 7
  %v982 = vsub.s32 0, %v981
  %v983 = vrot.slane %v964, %v982
  %v984 = vlaneseq
  %v985 = vshrl.u32 %v984, 7
  %v986 = vsub.s32 0, %v985
  %v987 = vrot.slane %v972, %v986
  %v988 = vlaneseq
  %v989 = vshrl.u32 %v988, 7
  %v990 = vsub.s32 0, %v989
  %v991 = vrot.slane %v974, %v990
  %v992 = vlaneseq
  %v993 = vshrl.u32 %v992, 7
  %v994 = vsub.s32 0, %v993
  %v995 = vrot.slane %v957, %v994
  %v996 = vlaneseq
  %v997 = vshrl.u32 %v996, 7
  %v998 = vsub.s32 0, %v997
  %v999 = vrot.slane %v971, %v998
  %v1000 = vlaneseq
  %v1001 = vshrl.u32 %v1000, 7
  %v1002 = vsub.s32 0, %v1001
  %v1003 = vrot.slane %v973, %v1002
  %v1004 = vlaneseq
  %v1005 = vshrl.u32 %v1004, 7
  %v1006 = vsub.s32 0, %v1005
  %v1007 = vrot.slane %v975, %v1006
  %1008 = vrot.lane.b32.xlu0 %v979, 104
  %v1009 = vpop.permute.xlu0 %1008
  %1010 = vrot.lane.b32.xlu0 %v983, 104
  %v1011 = vpop.permute.xlu0 %1010
  %1012 = vrot.lane.b32.xlu0 %v987, 104
  %v1013 = vpop.permute.xlu0 %1012
  %1014 = vrot.lane.b32.xlu0 %v991, 104
  %v1015 = vpop.permute.xlu0 %1014
  %1016 = vrot.lane.b32.xlu0 %v995, 104
  %v1017 = vpop.permute.xlu0 %1016
  %1018 = vrot.lane.b32.xlu0 %v999, 104
  %v1019 = vpop.permute.xlu0 %1018
  %1020 = vrot.lane.b32.xlu0 %v1003, 104
  %v1021 = vpop.permute.xlu0 %1020
  %1022 = vrot.lane.b32.xlu0 %v1007, 104
  %v1023 = vpop.permute.xlu0 %1022
  %1032 = vst.msk [vmem:[%s5 + $0x1] sm:$0x1] %vm694, %v1009
  %1033 = vst.msk [vmem:[%s5 + $0x5] sm:$0x1] %vm694, %v1011
  %1034 = vst.msk [vmem:[%s5 + $0x9] sm:$0x1] %vm694, %v1013
  %1035 = vst.msk [vmem:[%s5 + $0xd] sm:$0x1] %vm694, %v1015
  %1036 = vst.msk [vmem:[%s5 + $0x11] sm:$0x1] %vm694, %v1017
  %1037 = vst.msk [vmem:[%s5 + $0x15] sm:$0x1] %vm694, %v1019
  %1038 = vst.msk [vmem:[%s5 + $0x19] sm:$0x1] %vm694, %v1021
  %1039 = vst.msk [vmem:[%s5 + $0x1d] sm:$0x1] %vm694, %v1023
  %1040 = vrot.lane.b32.xlu0 %v809, 120
  %v1041 = vpop.permute.xlu0 %1040
  %1043 = vrot.lane.b32.xlu0 %v925, 104
  %v1044 = vpop.permute.xlu0 %1043
  %v1046 = vsel %vm709, %v1041, %v1044
  %v1048 = vsel %vm69, %v1046, 0
  %1050 = vmatprep.subr.mxu0 0.0
  %1051 = vmatpush1.msra.mxu0 %v22
  %1052 = vmatprep.subr.mxu0 0.0
  %1053 = vmatpush1.msra.mxu0 %v23
  %1054 = vmatprep.subr.mxu0 0.0
  %1055 = vmatpush1.msra.mxu0 0.0
  %1056 = vmatprep.subr.mxu0 0.0
  %1057 = vmatpush1.msra.mxu0 0.0
  %1058 = vmatprep.subr.mxu0 0.0
  %1059 = vmatpush1.msra.mxu0 0.0
  %1060 = vmatprep.subr.mxu0 0.0
  %1061 = vmatpush1.msra.mxu0 0.0
  %1062 = vmatprep.subr.mxu0 0.0
  %1063 = vmatpush1.msra.mxu0 0.0
  %1064 = vmatprep.subr.mxu0 0.0
  %1065 = vmatpush1.msra.mxu0 0.0
  %1066 = vmatprep.subr.mxu0 0.0
  %1067 = vmatpush1.msra.mxu0 0.0
  %1068 = vmatprep.subr.mxu0 0.0
  %1069 = vmatpush1.msra.mxu0 0.0
  %1070 = vmatprep.subr.mxu0 0.0
  %1071 = vmatpush1.msra.mxu0 0.0
  %1072 = vmatprep.subr.mxu0 0.0
  %1073 = vmatpush1.msra.mxu0 0.0
  %1074 = vmatprep.subr.mxu0 0.0
  %1075 = vmatpush1.msra.mxu0 0.0
  %1076 = vmatprep.subr.mxu0 0.0
  %1077 = vmatpush1.msra.mxu0 0.0
  %1078 = vmatprep.subr.mxu0 0.0
  %1079 = vmatpush1.msra.mxu0 0.0
  %1080 = vmatprep.subr.mxu0 0.0
  %1081 = vmatpush1.msra.mxu0 0.0
  %1082 = vmatprep.subr.mxu0 0.0
  %1083 = vmatpush1.msra.mxu0 0.0
  %1084 = vmatprep.subr.mxu0 0.0
  %1085 = vmatpush1.msra.mxu0 0.0
  %1086 = vmatprep.subr.mxu0 0.0
  %1087 = vmatpush1.msra.mxu0 0.0
  %1088 = vmatprep.subr.mxu0 0.0
  %1089 = vmatpush1.msra.mxu0 0.0
  %1090 = vmatprep.subr.mxu0 0.0
  %1091 = vmatpush1.msra.mxu0 0.0
  %1092 = vmatprep.subr.mxu0 0.0
  %1093 = vmatpush1.msra.mxu0 0.0
  %1094 = vmatprep.subr.mxu0 0.0
  %1095 = vmatpush1.msra.mxu0 0.0
  %1096 = vmatprep.subr.mxu0 0.0
  %1097 = vmatpush1.msra.mxu0 0.0
  %1098 = vmatprep.subr.mxu0 0.0
  %1099 = vmatpush1.msra.mxu0 0.0
  %1100 = vmatprep.subr.mxu0 0.0
  %1101 = vmatpush1.msra.mxu0 0.0
  %1102 = vmatprep.subr.mxu0 0.0
  %1103 = vmatpush1.msra.mxu0 0.0
  %1104 = vmatprep.subr.mxu0 0.0
  %1105 = vmatpush1.msra.mxu0 0.0
  %1106 = vmatprep.subr.mxu0 0.0
  %1107 = vmatpush1.msra.mxu0 0.0
  %1108 = vmatprep.subr.mxu0 0.0
  %1109 = vmatpush1.msra.mxu0 0.0
  %1110 = vmatprep.subr.mxu0 0.0
  %1111 = vmatpush1.msra.mxu0 0.0
  %1112 = vmatprep.subr.mxu0 0.0
  %1113 = vmatpush1.msra.mxu0 0.0
  %1114 = vmatprep.mubr.f32.mxu0 0.0
  %1115 = vmatmul.mubr.f32.gmra.mrb[0].mxu0 %v1048
  %v1116 = vpop.f32.mrb[0].mxu0
  %v1117 = vadd.f32 %v350, %v1116
  %v1118 = vpop.f32.mrb[0].mxu0
  %1119 = vdwg.mxu0
  %v1120 = vadd.f32 %v343, %v1117
  %v1121 = vxor.u32 %v1120, 2147483648
  %v1122 = vmul.f32 %v1121, 1.442695
  %v1123 = vpow.pop %v1122
  %v1124 = vadd.f32 %v1123, 1.0
  %v1125 = vrcp.pop %v1124
  %v1126 = vmul.f32 1.0, %v1125
  %1128 = vrot.lane.b32.xlu0 %v1117, 112
  %v1129 = vpop.permute.xlu0 %1128
  %v1131 = vmul.f32 %v1126, %v1129
  %1133 = vrot.lane.b32.xlu0 %v1131, 16
  %v1134 = vpop.permute.xlu0 %1133
  %v1136 = vadd.f32 %v343, %v1134
  %v1137 = vtanh.pop %v1136
  %v1138 = vsub.f32 1.0, %v1126
  %1140 = vrot.lane.b32.xlu0 %v1137, 120
  %v1141 = vpop.permute.xlu0 %1140
  %v1143 = vmul.f32 %v1138, %v1141
  %v1144 = vmul.f32 %v1126, %v809
  %v1145 = vadd.f32 %v1143, %v1144
  %v1147 = vcombine.high %v1145, %v1145
  %v1149 = vunpack.c.l.s4 1966171168
  %v1150 = vunpack.c.0.s8 %v1149
  %v1151 = vlaneseq
  %v1152 = vshrl.u32 %v1151, 7
  %v1153 = vsub.s32 %v1150, %v1152
  %v1154 = vrot.slane %v1145, %v1153
  %v1156 = vunpack.c.l.s4 1966171168
  %v1157 = vunpack.c.0.s8 %v1156
  %v1158 = vlaneseq
  %v1159 = vshrl.u32 %v1158, 7
  %v1160 = vsub.s32 %v1157, %v1159
  %v1161 = vrot.slane %v1147, %v1160
  %v1162 = vcombine.high %v1154, %v1154
  %v1163 = vcombine.high %v1161, %v1161
  %v1165 = vunpack.c.l.s4 1966171168
  %v1166 = vunpack.c.0.s8 %v1165
  %v1167 = vlaneseq
  %v1168 = vshrl.u32 %v1167, 7
  %v1169 = vsub.s32 %v1166, %v1168
  %v1170 = vrot.slane %v1154, %v1169
  %v1172 = vunpack.c.l.s4 1966171168
  %v1173 = vunpack.c.0.s8 %v1172
  %v1174 = vlaneseq
  %v1175 = vshrl.u32 %v1174, 7
  %v1176 = vsub.s32 %v1173, %v1175
  %v1177 = vrot.slane %v1161, %v1176
  %v1179 = vunpack.c.l.s4 1966171168
  %v1180 = vunpack.c.0.s8 %v1179
  %v1181 = vlaneseq
  %v1182 = vshrl.u32 %v1181, 7
  %v1183 = vsub.s32 %v1180, %v1182
  %v1184 = vrot.slane %v1162, %v1183
  %v1186 = vunpack.c.l.s4 1966171168
  %v1187 = vunpack.c.0.s8 %v1186
  %v1188 = vlaneseq
  %v1189 = vshrl.u32 %v1188, 7
  %v1190 = vsub.s32 %v1187, %v1189
  %v1191 = vrot.slane %v1163, %v1190
  %v1192 = vcombine.high %v1170, %v1170
  %v1193 = vcombine.high %v1177, %v1177
  %v1194 = vcombine.high %v1184, %v1184
  %v1195 = vcombine.high %v1191, %v1191
  %v1196 = vlaneseq
  %v1197 = vshrl.u32 %v1196, 7
  %v1198 = vsub.s32 0, %v1197
  %v1199 = vrot.slane %v1170, %v1198
  %v1200 = vlaneseq
  %v1201 = vshrl.u32 %v1200, 7
  %v1202 = vsub.s32 0, %v1201
  %v1203 = vrot.slane %v1184, %v1202
  %v1204 = vlaneseq
  %v1205 = vshrl.u32 %v1204, 7
  %v1206 = vsub.s32 0, %v1205
  %v1207 = vrot.slane %v1192, %v1206
  %v1208 = vlaneseq
  %v1209 = vshrl.u32 %v1208, 7
  %v1210 = vsub.s32 0, %v1209
  %v1211 = vrot.slane %v1194, %v1210
  %v1212 = vlaneseq
  %v1213 = vshrl.u32 %v1212, 7
  %v1214 = vsub.s32 0, %v1213
  %v1215 = vrot.slane %v1177, %v1214
  %v1216 = vlaneseq
  %v1217 = vshrl.u32 %v1216, 7
  %v1218 = vsub.s32 0, %v1217
  %v1219 = vrot.slane %v1191, %v1218
  %v1220 = vlaneseq
  %v1221 = vshrl.u32 %v1220, 7
  %v1222 = vsub.s32 0, %v1221
  %v1223 = vrot.slane %v1193, %v1222
  %v1224 = vlaneseq
  %v1225 = vshrl.u32 %v1224, 7
  %v1226 = vsub.s32 0, %v1225
  %v1227 = vrot.slane %v1195, %v1226
  %1228 = vrot.lane.b32.xlu0 %v1199, 120
  %v1229 = vpop.permute.xlu0 %1228
  %1230 = vrot.lane.b32.xlu0 %v1203, 120
  %v1231 = vpop.permute.xlu0 %1230
  %1232 = vrot.lane.b32.xlu0 %v1207, 120
  %v1233 = vpop.permute.xlu0 %1232
  %1234 = vrot.lane.b32.xlu0 %v1211, 120
  %v1235 = vpop.permute.xlu0 %1234
  %1236 = vrot.lane.b32.xlu0 %v1215, 120
  %v1237 = vpop.permute.xlu0 %1236
  %1238 = vrot.lane.b32.xlu0 %v1219, 120
  %v1239 = vpop.permute.xlu0 %1238
  %1240 = vrot.lane.b32.xlu0 %v1223, 120
  %v1241 = vpop.permute.xlu0 %1240
  %1242 = vrot.lane.b32.xlu0 %v1227, 120
  %v1243 = vpop.permute.xlu0 %1242
  %1252 = vst.msk [vmem:[%s5 + $0x2] sm:$0x1] %vm557, %v1229
  %1253 = vst.msk [vmem:[%s5 + $0x6] sm:$0x1] %vm557, %v1231
  %1254 = vst.msk [vmem:[%s5 + $0xa] sm:$0x1] %vm557, %v1233
  %1255 = vst.msk [vmem:[%s5 + $0xe] sm:$0x1] %vm557, %v1235
  %1256 = vst.msk [vmem:[%s5 + $0x12] sm:$0x1] %vm557, %v1237
  %1257 = vst.msk [vmem:[%s5 + $0x16] sm:$0x1] %vm557, %v1239
  %1258 = vst.msk [vmem:[%s5 + $0x1a] sm:$0x1] %vm557, %v1241
  %1259 = vst.msk [vmem:[%s5 + $0x1e] sm:$0x1] %vm557, %v1243
  %v1260 = vadd.f32 %v139, %v1117
  %v1261 = vxor.u32 %v1260, 2147483648
  %v1262 = vmul.f32 %v1261, 1.442695
  %v1263 = vpow.pop %v1262
  %v1264 = vadd.f32 %v1263, 1.0
  %v1265 = vrcp.pop %v1264
  %v1266 = vmul.f32 1.0, %v1265
  %v1267 = vmul.f32 %v1266, %v1129
  %1269 = vrot.lane.b32.xlu0 %v1267, 16
  %v1270 = vpop.permute.xlu0 %1269
  %v1272 = vadd.f32 %v139, %v1270
  %v1273 = vtanh.pop %v1272
  %v1274 = vsub.f32 1.0, %v1266
  %1276 = vrot.lane.b32.xlu0 %v1273, 120
  %v1277 = vpop.permute.xlu0 %1276
  %v1279 = vmul.f32 %v1274, %v1277
  %v1280 = vmul.f32 %v1266, %v925
  %v1281 = vadd.f32 %v1279, %v1280
  %v1283 = vcombine.high %v1281, %v1281
  %v1285 = vunpack.c.l.s4 1966171168
  %v1286 = vunpack.c.0.s8 %v1285
  %v1287 = vlaneseq
  %v1288 = vshrl.u32 %v1287, 7
  %v1289 = vsub.s32 %v1286, %v1288
  %v1290 = vrot.slane %v1281, %v1289
  %v1292 = vunpack.c.l.s4 1966171168
  %v1293 = vunpack.c.0.s8 %v1292
  %v1294 = vlaneseq
  %v1295 = vshrl.u32 %v1294, 7
  %v1296 = vsub.s32 %v1293, %v1295
  %v1297 = vrot.slane %v1283, %v1296
  %v1298 = vcombine.high %v1290, %v1290
  %v1299 = vcombine.high %v1297, %v1297
  %v1301 = vunpack.c.l.s4 1966171168
  %v1302 = vunpack.c.0.s8 %v1301
  %v1303 = vlaneseq
  %v1304 = vshrl.u32 %v1303, 7
  %v1305 = vsub.s32 %v1302, %v1304
  %v1306 = vrot.slane %v1290, %v1305
  %v1308 = vunpack.c.l.s4 1966171168
  %v1309 = vunpack.c.0.s8 %v1308
  %v1310 = vlaneseq
  %v1311 = vshrl.u32 %v1310, 7
  %v1312 = vsub.s32 %v1309, %v1311
  %v1313 = vrot.slane %v1297, %v1312
  %v1315 = vunpack.c.l.s4 1966171168
  %v1316 = vunpack.c.0.s8 %v1315
  %v1317 = vlaneseq
  %v1318 = vshrl.u32 %v1317, 7
  %v1319 = vsub.s32 %v1316, %v1318
  %v1320 = vrot.slane %v1298, %v1319
  %v1322 = vunpack.c.l.s4 1966171168
  %v1323 = vunpack.c.0.s8 %v1322
  %v1324 = vlaneseq
  %v1325 = vshrl.u32 %v1324, 7
  %v1326 = vsub.s32 %v1323, %v1325
  %v1327 = vrot.slane %v1299, %v1326
  %v1328 = vcombine.high %v1306, %v1306
  %v1329 = vcombine.high %v1313, %v1313
  %v1330 = vcombine.high %v1320, %v1320
  %v1331 = vcombine.high %v1327, %v1327
  %v1332 = vlaneseq
  %v1333 = vshrl.u32 %v1332, 7
  %v1334 = vsub.s32 0, %v1333
  %v1335 = vrot.slane %v1306, %v1334
  %v1336 = vlaneseq
  %v1337 = vshrl.u32 %v1336, 7
  %v1338 = vsub.s32 0, %v1337
  %v1339 = vrot.slane %v1320, %v1338
  %v1340 = vlaneseq
  %v1341 = vshrl.u32 %v1340, 7
  %v1342 = vsub.s32 0, %v1341
  %v1343 = vrot.slane %v1328, %v1342
  %v1344 = vlaneseq
  %v1345 = vshrl.u32 %v1344, 7
  %v1346 = vsub.s32 0, %v1345
  %v1347 = vrot.slane %v1330, %v1346
  %v1348 = vlaneseq
  %v1349 = vshrl.u32 %v1348, 7
  %v1350 = vsub.s32 0, %v1349
  %v1351 = vrot.slane %v1313, %v1350
  %v1352 = vlaneseq
  %v1353 = vshrl.u32 %v1352, 7
  %v1354 = vsub.s32 0, %v1353
  %v1355 = vrot.slane %v1327, %v1354
  %v1356 = vlaneseq
  %v1357 = vshrl.u32 %v1356, 7
  %v1358 = vsub.s32 0, %v1357
  %v1359 = vrot.slane %v1329, %v1358
  %v1360 = vlaneseq
  %v1361 = vshrl.u32 %v1360, 7
  %v1362 = vsub.s32 0, %v1361
  %v1363 = vrot.slane %v1331, %v1362
  %1364 = vrot.lane.b32.xlu0 %v1335, 104
  %v1365 = vpop.permute.xlu0 %1364
  %1366 = vrot.lane.b32.xlu0 %v1339, 104
  %v1367 = vpop.permute.xlu0 %1366
  %1368 = vrot.lane.b32.xlu0 %v1343, 104
  %v1369 = vpop.permute.xlu0 %1368
  %1370 = vrot.lane.b32.xlu0 %v1347, 104
  %v1371 = vpop.permute.xlu0 %1370
  %1372 = vrot.lane.b32.xlu0 %v1351, 104
  %v1373 = vpop.permute.xlu0 %1372
  %1374 = vrot.lane.b32.xlu0 %v1355, 104
  %v1375 = vpop.permute.xlu0 %1374
  %1376 = vrot.lane.b32.xlu0 %v1359, 104
  %v1377 = vpop.permute.xlu0 %1376
  %1378 = vrot.lane.b32.xlu0 %v1363, 104
  %v1379 = vpop.permute.xlu0 %1378
  %1388 = vst.msk [vmem:[%s5] sm:$0x1] %vm694, %v1365
  %1389 = vst.msk [vmem:[%s5 + $0x4] sm:$0x1] %vm694, %v1367
  %1390 = vst.msk [vmem:[%s5 + $0x8] sm:$0x1] %vm694, %v1369
  %1391 = vst.msk [vmem:[%s5 + $0xc] sm:$0x1] %vm694, %v1371
  %1392 = vst.msk [vmem:[%s5 + $0x10] sm:$0x1] %vm694, %v1373
  %1393 = vst.msk [vmem:[%s5 + $0x14] sm:$0x1] %vm694, %v1375
  %1394 = vst.msk [vmem:[%s5 + $0x18] sm:$0x1] %vm694, %v1377
  %1395 = vst.msk [vmem:[%s5 + $0x1c] sm:$0x1] %vm694, %v1379
  // Predicated region
  $region22: #{han_forward.6} parent=0 // pred_check
    _
  $region23: #{han_forward.6} parent=0 // pred_check_branch
    %1397 = sbr.rel (0) target = $region25
  $region24: #{han_forward.6} parent=0 // pred_region
    _
  $region25: #{han_forward.6} parent=0 // pred_fallthru
    _
  // Predicated region
  $region26: #{han_forward.6} parent=0 // pred_check
    _
  $region27: #{han_forward.6} parent=0 // pred_check_branch
    %1399 = sbr.rel (0) target = $region29
  $region28: #{han_forward.6} parent=0 // pred_region
    _
  $region29: #{han_forward.6} parent=0 // pred_fallthru
    _

// kernel: han_forward.5
$region0: #{han_forward.5}
  #allocation0 [shape = 'u32[]', space=smem, size = 0x4, offset = 0x4, fixed_abs, tag = 'smem constant byte address 0x4 - core index']
  #allocation1 [shape = 'u32[144,128]{1,0:T(1,128)}', space=vmem, size = 0x12000, scoped, tag = 'internal scratch']
  %s0 = inlined_call_operand.vmem [shape: f32[8,8,16], index: 0, kind: input, shape index: {}]
  %s1 = inlined_call_operand.vmem [shape: f32[16,8], index: 1, kind: input, shape index: {}]
  %s2 = inlined_call_operand.vmem [shape: f32[1,8], index: 2, kind: input, shape index: {}]
  %s3 = inlined_call_operand.vmem [shape: f32[1,8], index: 3, kind: input, shape index: {}]
  %s4 = inlined_call_operand.vmem [shape: f32[8,16], index: 4, kind: output, shape index: {0}]
  %s5 = inlined_call_operand.vmem [shape: f32[8,8], index: 5, kind: output, shape index: {1}]
  %6 = xla_tuple %s4, %s5
  %s7 = sld [smem:[#allocation0]]
  $region34: #{han_forward.5} parent=0
    _
  %s9 = ssub.s32 1, %s7
  %s10 = scalar_select 0, %s9, %s7
  // Predicated region
  $region2: #{han_forward.5} parent=0 // pred_check
    _
  $region3: #{han_forward.5} parent=0 // pred_check_branch
    %12 = sbr.rel (0) target = $region5
  $region4: #{han_forward.5} parent=0 // pred_region
    _
  $region5: #{han_forward.5} parent=0 // pred_fallthru
    _
  // Predicated region
  $region6: #{han_forward.5} parent=0 // pred_check
    _
  $region7: #{han_forward.5} parent=0 // pred_check_branch
    %14 = sbr.rel (0) target = $region9
  $region8: #{han_forward.5} parent=0 // pred_region
    _
  $region9: #{han_forward.5} parent=0 // pred_fallthru
    _
  // Predicated region
  $region10: #{han_forward.5} parent=0 // pred_check
    _
  $region11: #{han_forward.5} parent=0 // pred_check_branch
    %16 = sbr.rel (0) target = $region13
  $region12: #{han_forward.5} parent=0 // pred_region
    _
  $region13: #{han_forward.5} parent=0 // pred_fallthru
    _
  // Predicated region
  $region14: #{han_forward.5} parent=0 // pred_check
    _
  $region15: #{han_forward.5} parent=0 // pred_check_branch
    %18 = sbr.rel (0) target = $region17
  $region16: #{han_forward.5} parent=0 // pred_region
    _
  $region17: #{han_forward.5} parent=0 // pred_fallthru
    _
  %v19 = vld [vmem:[%s1] sm:$0xff]
  %v20 = vld [vmem:[%s1 + $0x8] sm:$0xff]
  %v21 = vld [vmem:[%s2] sm:$0x1]
  %v22 = vld [vmem:[%s3] sm:$0x1]
  %v23 = vld [vmem:[%s0] sm:$0x1]
  %v24 = vld [vmem:[%s0 + $0x8] sm:$0x1]
  %v25 = vld [vmem:[%s0 + $0x10] sm:$0x1]
  %v26 = vld [vmem:[%s0 + $0x18] sm:$0x1]
  %v27 = vld [vmem:[%s0 + $0x20] sm:$0x1]
  %v28 = vld [vmem:[%s0 + $0x28] sm:$0x1]
  %v29 = vld [vmem:[%s0 + $0x30] sm:$0x1]
  %v30 = vld [vmem:[%s0 + $0x38] sm:$0x1]
  %v31 = vld [vmem:[%s0 + $0x1] sm:$0x1]
  %v32 = vld [vmem:[%s0 + $0x9] sm:$0x1]
  %v33 = vld [vmem:[%s0 + $0x11] sm:$0x1]
  %v34 = vld [vmem:[%s0 + $0x19] sm:$0x1]
  %v35 = vld [vmem:[%s0 + $0x21] sm:$0x1]
  %v36 = vld [vmem:[%s0 + $0x29] sm:$0x1]
  %v37 = vld [vmem:[%s0 + $0x31] sm:$0x1]
  %v38 = vld [vmem:[%s0 + $0x39] sm:$0x1]
  %v39 = vld [vmem:[%s0 + $0x2] sm:$0x1]
  %v40 = vld [vmem:[%s0 + $0xa] sm:$0x1]
  %v41 = vld [vmem:[%s0 + $0x12] sm:$0x1]
  %v42 = vld [vmem:[%s0 + $0x1a] sm:$0x1]
  %v43 = vld [vmem:[%s0 + $0x22] sm:$0x1]
  %v44 = vld [vmem:[%s0 + $0x2a] sm:$0x1]
  %v45 = vld [vmem:[%s0 + $0x32] sm:$0x1]
  %v46 = vld [vmem:[%s0 + $0x3a] sm:$0x1]
  %v47 = vld [vmem:[%s0 + $0x3] sm:$0x1]
  %v48 = vld [vmem:[%s0 + $0xb] sm:$0x1]
  %v49 = vld [vmem:[%s0 + $0x13] sm:$0x1]
  %v50 = vld [vmem:[%s0 + $0x1b] sm:$0x1]
  %v51 = vld [vmem:[%s0 + $0x23] sm:$0x1]
  %v52 = vld [vmem:[%s0 + $0x2b] sm:$0x1]
  %v53 = vld [vmem:[%s0 + $0x33] sm:$0x1]
  %v54 = vld [vmem:[%s0 + $0x3b] sm:$0x1]
  %v55 = vld [vmem:[%s0 + $0x4] sm:$0x1]
  %v56 = vld [vmem:[%s0 + $0xc] sm:$0x1]
  %v57 = vld [vmem:[%s0 + $0x14] sm:$0x1]
  %v58 = vld [vmem:[%s0 + $0x1c] sm:$0x1]
  %v59 = vld [vmem:[%s0 + $0x24] sm:$0x1]
  %v60 = vld [vmem:[%s0 + $0x2c] sm:$0x1]
  %v61 = vld [vmem:[%s0 + $0x34] sm:$0x1]
  %v62 = vld [vmem:[%s0 + $0x3c] sm:$0x1]
  %v63 = vld [vmem:[%s0 + $0x5] sm:$0x1]
  %v64 = vld [vmem:[%s0 + $0xd] sm:$0x1]
  %v65 = vld [vmem:[%s0 + $0x15] sm:$0x1]
  %v66 = vld [vmem:[%s0 + $0x1d] sm:$0x1]
  %v67 = vld [vmem:[%s0 + $0x25] sm:$0x1]
  %v68 = vld [vmem:[%s0 + $0x2d] sm:$0x1]
  %v69 = vld [vmem:[%s0 + $0x35] sm:$0x1]
  %v70 = vld [vmem:[%s0 + $0x3d] sm:$0x1]
  %v71 = vld [vmem:[%s0 + $0x6] sm:$0x1]
  %v72 = vld [vmem:[%s0 + $0xe] sm:$0x1]
  %v73 = vld [vmem:[%s0 + $0x16] sm:$0x1]
  %v74 = vld [vmem:[%s0 + $0x1e] sm:$0x1]
  %v75 = vld [vmem:[%s0 + $0x26] sm:$0x1]
  %v76 = vld [vmem:[%s0 + $0x2e] sm:$0x1]
  %v77 = vld [vmem:[%s0 + $0x36] sm:$0x1]
  %v78 = vld [vmem:[%s0 + $0x3e] sm:$0x1]
  %v79 = vld [vmem:[%s0 + $0x7] sm:$0x1]
  %v80 = vld [vmem:[%s0 + $0xf] sm:$0x1]
  %v81 = vld [vmem:[%s0 + $0x17] sm:$0x1]
  %v82 = vld [vmem:[%s0 + $0x1f] sm:$0x1]
  %v83 = vld [vmem:[%s0 + $0x27] sm:$0x1]
  %v84 = vld [vmem:[%s0 + $0x2f] sm:$0x1]
  %v85 = vld [vmem:[%s0 + $0x37] sm:$0x1]
  %v86 = vld [vmem:[%s0 + $0x3f] sm:$0x1]
  %v88 = vlaneseq
  %v89 = vshrl.u32 %v88, 7
  %v90 = vsub.s32 0, %v89
  %v91 = vrot.slane %v21, %v90
  %v101 = vrot.slane %v24, 7
  %vm102 = vcmask 1041409
  %v103 = vsel %vm102, %v101, %v23
  %v104 = vrot.slane %v25, 6
  %vm105 = vcmask 1042434
  %v106 = vsel %vm105, %v104, %v103
  %v107 = vrot.slane %v26, 5
  %vm108 = vcmask 1043459
  %v109 = vsel %vm108, %v107, %v106
  %v110 = vrot.slane %v27, 4
  %vm111 = vcmask 1044484
  %v112 = vsel %vm111, %v110, %v109
  %v113 = vrot.slane %v28, 3
  %vm114 = vcmask 1045509
  %v115 = vsel %vm114, %v113, %v112
  %v116 = vrot.slane %v29, 2
  %vm117 = vcmask 1046534
  %v118 = vsel %vm117, %v116, %v115
  %v119 = vrot.slane %v30, 1
  %vm120 = vcmask 1047559
  %v121 = vsel %vm120, %v119, %v118
  %vm122 = vcmask 130048
  %v123 = vsel %vm122, %v121, 0
  %125 = vmatprep.subr.mxu0 0.0
  %126 = vmatpush1.msra.mxu0 %v19
  %127 = vmatprep.subr.mxu0 0.0
  %128 = vmatpush1.msra.mxu0 %v20
  %129 = vmatprep.subr.mxu0 0.0
  %130 = vmatpush1.msra.mxu0 0.0
  %131 = vmatprep.subr.mxu0 0.0
  %132 = vmatpush1.msra.mxu0 0.0
  %133 = vmatprep.subr.mxu0 0.0
  %134 = vmatpush1.msra.mxu0 0.0
  %135 = vmatprep.subr.mxu0 0.0
  %136 = vmatpush1.msra.mxu0 0.0
  %137 = vmatprep.subr.mxu0 0.0
  %138 = vmatpush1.msra.mxu0 0.0
  %139 = vmatprep.subr.mxu0 0.0
  %140 = vmatpush1.msra.mxu0 0.0
  %141 = vmatprep.subr.mxu0 0.0
  %142 = vmatpush1.msra.mxu0 0.0
  %143 = vmatprep.subr.mxu0 0.0
  %144 = vmatpush1.msra.mxu0 0.0
  %145 = vmatprep.subr.mxu0 0.0
  %146 = vmatpush1.msra.mxu0 0.0
  %147 = vmatprep.subr.mxu0 0.0
  %148 = vmatpush1.msra.mxu0 0.0
  %149 = vmatprep.subr.mxu0 0.0
  %150 = vmatpush1.msra.mxu0 0.0
  %151 = vmatprep.subr.mxu0 0.0
  %152 = vmatpush1.msra.mxu0 0.0
  %153 = vmatprep.subr.mxu0 0.0
  %154 = vmatpush1.msra.mxu0 0.0
  %155 = vmatprep.subr.mxu0 0.0
  %156 = vmatpush1.msra.mxu0 0.0
  %157 = vmatprep.subr.mxu0 0.0
  %158 = vmatpush1.msra.mxu0 0.0
  %159 = vmatprep.subr.mxu0 0.0
  %160 = vmatpush1.msra.mxu0 0.0
  %161 = vmatprep.subr.mxu0 0.0
  %162 = vmatpush1.msra.mxu0 0.0
  %163 = vmatprep.subr.mxu0 0.0
  %164 = vmatpush1.msra.mxu0 0.0
  %165 = vmatprep.subr.mxu0 0.0
  %166 = vmatpush1.msra.mxu0 0.0
  %167 = vmatprep.subr.mxu0 0.0
  %168 = vmatpush1.msra.mxu0 0.0
  %169 = vmatprep.subr.mxu0 0.0
  %170 = vmatpush1.msra.mxu0 0.0
  %171 = vmatprep.subr.mxu0 0.0
  %172 = vmatpush1.msra.mxu0 0.0
  %173 = vmatprep.subr.mxu0 0.0
  %174 = vmatpush1.msra.mxu0 0.0
  %175 = vmatprep.subr.mxu0 0.0
  %176 = vmatpush1.msra.mxu0 0.0
  %177 = vmatprep.subr.mxu0 0.0
  %178 = vmatpush1.msra.mxu0 0.0
  %179 = vmatprep.subr.mxu0 0.0
  %180 = vmatpush1.msra.mxu0 0.0
  %181 = vmatprep.subr.mxu0 0.0
  %182 = vmatpush1.msra.mxu0 0.0
  %183 = vmatprep.subr.mxu0 0.0
  %184 = vmatpush1.msra.mxu0 0.0
  %185 = vmatprep.subr.mxu0 0.0
  %186 = vmatpush1.msra.mxu0 0.0
  %187 = vmatprep.subr.mxu0 0.0
  %188 = vmatpush1.msra.mxu0 0.0
  %189 = vmatprep.mubr.f32.mxu0 0.0
  %190 = vmatmul.mubr.f32.gmra.mrb[0].mxu0 %v123
  %v191 = vpop.f32.mrb[0].mxu0
  %v192 = vadd.f32 %v91, %v191
  %v193 = vpop.f32.mrb[0].mxu0
  %194 = vdwg.mxu0
  %v195 = vtanh.pop %v192
  %v197 = vlaneseq
  %v198 = vshrl.u32 %v197, 7
  %v199 = vsub.s32 0, %v198
  %v200 = vrot.slane %v22, %v199
  %v202 = vmul.f32 %v195, %v200
  %vm203 = vcmask 64512
  %v204 = vsel %vm203, %v202, 0.0
  %205 = vadd.xlane.f32.xlu0 %v204
  %v206 = vpop.xlane.xlu0 %205
  %v215 = vrot.slane %v32, 7
  %v216 = vsel %vm102, %v215, %v31
  %v217 = vrot.slane %v33, 6
  %v218 = vsel %vm105, %v217, %v216
  %v219 = vrot.slane %v34, 5
  %v220 = vsel %vm108, %v219, %v218
  %v221 = vrot.slane %v35, 4
  %v222 = vsel %vm111, %v221, %v220
  %v223 = vrot.slane %v36, 3
  %v224 = vsel %vm114, %v223, %v222
  %v225 = vrot.slane %v37, 2
  %v226 = vsel %vm117, %v225, %v224
  %v227 = vrot.slane %v38, 1
  %v228 = vsel %vm120, %v227, %v226
  %v229 = vsel %vm122, %v228, 0
  %231 = vmatprep.subr.mxu0 0.0
  %232 = vmatpush1.msra.mxu0 %v19
  %233 = vmatprep.subr.mxu0 0.0
  %234 = vmatpush1.msra.mxu0 %v20
  %235 = vmatprep.subr.mxu0 0.0
  %236 = vmatpush1.msra.mxu0 0.0
  %237 = vmatprep.subr.mxu0 0.0
  %238 = vmatpush1.msra.mxu0 0.0
  %239 = vmatprep.subr.mxu0 0.0
  %240 = vmatpush1.msra.mxu0 0.0
  %241 = vmatprep.subr.mxu0 0.0
  %242 = vmatpush1.msra.mxu0 0.0
  %243 = vmatprep.subr.mxu0 0.0
  %244 = vmatpush1.msra.mxu0 0.0
  %245 = vmatprep.subr.mxu0 0.0
  %246 = vmatpush1.msra.mxu0 0.0
  %247 = vmatprep.subr.mxu0 0.0
  %248 = vmatpush1.msra.mxu0 0.0
  %249 = vmatprep.subr.mxu0 0.0
  %250 = vmatpush1.msra.mxu0 0.0
  %251 = vmatprep.subr.mxu0 0.0
  %252 = vmatpush1.msra.mxu0 0.0
  %253 = vmatprep.subr.mxu0 0.0
  %254 = vmatpush1.msra.mxu0 0.0
  %255 = vmatprep.subr.mxu0 0.0
  %256 = vmatpush1.msra.mxu0 0.0
  %257 = vmatprep.subr.mxu0 0.0
  %258 = vmatpush1.msra.mxu0 0.0
  %259 = vmatprep.subr.mxu0 0.0
  %260 = vmatpush1.msra.mxu0 0.0
  %261 = vmatprep.subr.mxu0 0.0
  %262 = vmatpush1.msra.mxu0 0.0
  %263 = vmatprep.subr.mxu0 0.0
  %264 = vmatpush1.msra.mxu0 0.0
  %265 = vmatprep.subr.mxu0 0.0
  %266 = vmatpush1.msra.mxu0 0.0
  %267 = vmatprep.subr.mxu0 0.0
  %268 = vmatpush1.msra.mxu0 0.0
  %269 = vmatprep.subr.mxu0 0.0
  %270 = vmatpush1.msra.mxu0 0.0
  %271 = vmatprep.subr.mxu0 0.0
  %272 = vmatpush1.msra.mxu0 0.0
  %273 = vmatprep.subr.mxu0 0.0
  %274 = vmatpush1.msra.mxu0 0.0
  %275 = vmatprep.subr.mxu0 0.0
  %276 = vmatpush1.msra.mxu0 0.0
  %277 = vmatprep.subr.mxu0 0.0
  %278 = vmatpush1.msra.mxu0 0.0
  %279 = vmatprep.subr.mxu0 0.0
  %280 = vmatpush1.msra.mxu0 0.0
  %281 = vmatprep.subr.mxu0 0.0
  %282 = vmatpush1.msra.mxu0 0.0
  %283 = vmatprep.subr.mxu0 0.0
  %284 = vmatpush1.msra.mxu0 0.0
  %285 = vmatprep.subr.mxu0 0.0
  %286 = vmatpush1.msra.mxu0 0.0
  %287 = vmatprep.subr.mxu0 0.0
  %288 = vmatpush1.msra.mxu0 0.0
  %289 = vmatprep.subr.mxu0 0.0
  %290 = vmatpush1.msra.mxu0 0.0
  %291 = vmatprep.subr.mxu0 0.0
  %292 = vmatpush1.msra.mxu0 0.0
  %293 = vmatprep.subr.mxu0 0.0
  %294 = vmatpush1.msra.mxu0 0.0
  %295 = vmatprep.mubr.f32.mxu0 0.0
  %296 = vmatmul.mubr.f32.gmra.mrb[0].mxu0 %v229
  %v297 = vpop.f32.mrb[0].mxu0
  %v298 = vadd.f32 %v91, %v297
  %v299 = vpop.f32.mrb[0].mxu0
  %300 = vdwg.mxu0
  %v301 = vtanh.pop %v298
  %v302 = vmul.f32 %v301, %v200
  %v303 = vsel %vm203, %v302, 0.0
  %304 = vadd.xlane.f32.xlu0 %v303
  %v305 = vpop.xlane.xlu0 %304
  %v314 = vrot.slane %v40, 7
  %v315 = vsel %vm102, %v314, %v39
  %v316 = vrot.slane %v41, 6
  %v317 = vsel %vm105, %v316, %v315
  %v318 = vrot.slane %v42, 5
  %v319 = vsel %vm108, %v318, %v317
  %v320 = vrot.slane %v43, 4
  %v321 = vsel %vm111, %v320, %v319
  %v322 = vrot.slane %v44, 3
  %v323 = vsel %vm114, %v322, %v321
  %v324 = vrot.slane %v45, 2
  %v325 = vsel %vm117, %v324, %v323
  %v326 = vrot.slane %v46, 1
  %v327 = vsel %vm120, %v326, %v325
  %v328 = vsel %vm122, %v327, 0
  %330 = vmatprep.subr.mxu0 0.0
  %331 = vmatpush1.msra.mxu0 %v19
  %332 = vmatprep.subr.mxu0 0.0
  %333 = vmatpush1.msra.mxu0 %v20
  %334 = vmatprep.subr.mxu0 0.0
  %335 = vmatpush1.msra.mxu0 0.0
  %336 = vmatprep.subr.mxu0 0.0
  %337 = vmatpush1.msra.mxu0 0.0
  %338 = vmatprep.subr.mxu0 0.0
  %339 = vmatpush1.msra.mxu0 0.0
  %340 = vmatprep.subr.mxu0 0.0
  %341 = vmatpush1.msra.mxu0 0.0
  %342 = vmatprep.subr.mxu0 0.0
  %343 = vmatpush1.msra.mxu0 0.0
  %344 = vmatprep.subr.mxu0 0.0
  %345 = vmatpush1.msra.mxu0 0.0
  %346 = vmatprep.subr.mxu0 0.0
  %347 = vmatpush1.msra.mxu0 0.0
  %348 = vmatprep.subr.mxu0 0.0
  %349 = vmatpush1.msra.mxu0 0.0
  %350 = vmatprep.subr.mxu0 0.0
  %351 = vmatpush1.msra.mxu0 0.0
  %352 = vmatprep.subr.mxu0 0.0
  %353 = vmatpush1.msra.mxu0 0.0
  %354 = vmatprep.subr.mxu0 0.0
  %355 = vmatpush1.msra.mxu0 0.0
  %356 = vmatprep.subr.mxu0 0.0
  %357 = vmatpush1.msra.mxu0 0.0
  %358 = vmatprep.subr.mxu0 0.0
  %359 = vmatpush1.msra.mxu0 0.0
  %360 = vmatprep.subr.mxu0 0.0
  %361 = vmatpush1.msra.mxu0 0.0
  %362 = vmatprep.subr.mxu0 0.0
  %363 = vmatpush1.msra.mxu0 0.0
  %364 = vmatprep.subr.mxu0 0.0
  %365 = vmatpush1.msra.mxu0 0.0
  %366 = vmatprep.subr.mxu0 0.0
  %367 = vmatpush1.msra.mxu0 0.0
  %368 = vmatprep.subr.mxu0 0.0
  %369 = vmatpush1.msra.mxu0 0.0
  %370 = vmatprep.subr.mxu0 0.0
  %371 = vmatpush1.msra.mxu0 0.0
  %372 = vmatprep.subr.mxu0 0.0
  %373 = vmatpush1.msra.mxu0 0.0
  %374 = vmatprep.subr.mxu0 0.0
  %375 = vmatpush1.msra.mxu0 0.0
  %376 = vmatprep.subr.mxu0 0.0
  %377 = vmatpush1.msra.mxu0 0.0
  %378 = vmatprep.subr.mxu0 0.0
  %379 = vmatpush1.msra.mxu0 0.0
  %380 = vmatprep.subr.mxu0 0.0
  %381 = vmatpush1.msra.mxu0 0.0
  %382 = vmatprep.subr.mxu0 0.0
  %383 = vmatpush1.msra.mxu0 0.0
  %384 = vmatprep.subr.mxu0 0.0
  %385 = vmatpush1.msra.mxu0 0.0
  %386 = vmatprep.subr.mxu0 0.0
  %387 = vmatpush1.msra.mxu0 0.0
  %388 = vmatprep.subr.mxu0 0.0
  %389 = vmatpush1.msra.mxu0 0.0
  %390 = vmatprep.subr.mxu0 0.0
  %391 = vmatpush1.msra.mxu0 0.0
  %392 = vmatprep.subr.mxu0 0.0
  %393 = vmatpush1.msra.mxu0 0.0
  %394 = vmatprep.mubr.f32.mxu0 0.0
  %395 = vmatmul.mubr.f32.gmra.mrb[0].mxu0 %v328
  %v396 = vpop.f32.mrb[0].mxu0
  %v397 = vadd.f32 %v91, %v396
  %v398 = vpop.f32.mrb[0].mxu0
  %399 = vdwg.mxu0
  %v400 = vtanh.pop %v397
  %v401 = vmul.f32 %v400, %v200
  %v402 = vsel %vm203, %v401, 0.0
  %403 = vadd.xlane.f32.xlu0 %v402
  %v404 = vpop.xlane.xlu0 %403
  %v413 = vrot.slane %v48, 7
  %v414 = vsel %vm102, %v413, %v47
  %v415 = vrot.slane %v49, 6
  %v416 = vsel %vm105, %v415, %v414
  %v417 = vrot.slane %v50, 5
  %v418 = vsel %vm108, %v417, %v416
  %v419 = vrot.slane %v51, 4
  %v420 = vsel %vm111, %v419, %v418
  %v421 = vrot.slane %v52, 3
  %v422 = vsel %vm114, %v421, %v420
  %v423 = vrot.slane %v53, 2
  %v424 = vsel %vm117, %v423, %v422
  %v425 = vrot.slane %v54, 1
  %v426 = vsel %vm120, %v425, %v424
  %v427 = vsel %vm122, %v426, 0
  %429 = vmatprep.subr.mxu0 0.0
  %430 = vmatpush1.msra.mxu0 %v19
  %431 = vmatprep.subr.mxu0 0.0
  %432 = vmatpush1.msra.mxu0 %v20
  %433 = vmatprep.subr.mxu0 0.0
  %434 = vmatpush1.msra.mxu0 0.0
  %435 = vmatprep.subr.mxu0 0.0
  %436 = vmatpush1.msra.mxu0 0.0
  %437 = vmatprep.subr.mxu0 0.0
  %438 = vmatpush1.msra.mxu0 0.0
  %439 = vmatprep.subr.mxu0 0.0
  %440 = vmatpush1.msra.mxu0 0.0
  %441 = vmatprep.subr.mxu0 0.0
  %442 = vmatpush1.msra.mxu0 0.0
  %443 = vmatprep.subr.mxu0 0.0
  %444 = vmatpush1.msra.mxu0 0.0
  %445 = vmatprep.subr.mxu0 0.0
  %446 = vmatpush1.msra.mxu0 0.0
  %447 = vmatprep.subr.mxu0 0.0
  %448 = vmatpush1.msra.mxu0 0.0
  %449 = vmatprep.subr.mxu0 0.0
  %450 = vmatpush1.msra.mxu0 0.0
  %451 = vmatprep.subr.mxu0 0.0
  %452 = vmatpush1.msra.mxu0 0.0
  %453 = vmatprep.subr.mxu0 0.0
  %454 = vmatpush1.msra.mxu0 0.0
  %455 = vmatprep.subr.mxu0 0.0
  %456 = vmatpush1.msra.mxu0 0.0
  %457 = vmatprep.subr.mxu0 0.0
  %458 = vmatpush1.msra.mxu0 0.0
  %459 = vmatprep.subr.mxu0 0.0
  %460 = vmatpush1.msra.mxu0 0.0
  %461 = vmatprep.subr.mxu0 0.0
  %462 = vmatpush1.msra.mxu0 0.0
  %463 = vmatprep.subr.mxu0 0.0
  %464 = vmatpush1.msra.mxu0 0.0
  %465 = vmatprep.subr.mxu0 0.0
  %466 = vmatpush1.msra.mxu0 0.0
  %467 = vmatprep.subr.mxu0 0.0
  %468 = vmatpush1.msra.mxu0 0.0
  %469 = vmatprep.subr.mxu0 0.0
  %470 = vmatpush1.msra.mxu0 0.0
  %471 = vmatprep.subr.mxu0 0.0
  %472 = vmatpush1.msra.mxu0 0.0
  %473 = vmatprep.subr.mxu0 0.0
  %474 = vmatpush1.msra.mxu0 0.0
  %475 = vmatprep.subr.mxu0 0.0
  %476 = vmatpush1.msra.mxu0 0.0
  %477 = vmatprep.subr.mxu0 0.0
  %478 = vmatpush1.msra.mxu0 0.0
  %479 = vmatprep.subr.mxu0 0.0
  %480 = vmatpush1.msra.mxu0 0.0
  %481 = vmatprep.subr.mxu0 0.0
  %482 = vmatpush1.msra.mxu0 0.0
  %483 = vmatprep.subr.mxu0 0.0
  %484 = vmatpush1.msra.mxu0 0.0
  %485 = vmatprep.subr.mxu0 0.0
  %486 = vmatpush1.msra.mxu0 0.0
  %487 = vmatprep.subr.mxu0 0.0
  %488 = vmatpush1.msra.mxu0 0.0
  %489 = vmatprep.subr.mxu0 0.0
  %490 = vmatpush1.msra.mxu0 0.0
  %491 = vmatprep.subr.mxu0 0.0
  %492 = vmatpush1.msra.mxu0 0.0
  %493 = vmatprep.mubr.f32.mxu0 0.0
  %494 = vmatmul.mubr.f32.gmra.mrb[0].mxu0 %v427
  %v495 = vpop.f32.mrb[0].mxu0
  %v496 = vadd.f32 %v91, %v495
  %v497 = vpop.f32.mrb[0].mxu0
  %498 = vdwg.mxu0
  %v499 = vtanh.pop %v496
  %v500 = vmul.f32 %v499, %v200
  %v501 = vsel %vm203, %v500, 0.0
  %502 = vadd.xlane.f32.xlu0 %v501
  %v503 = vpop.xlane.xlu0 %502
  %v512 = vrot.slane %v56, 7
  %v513 = vsel %vm102, %v512, %v55
  %v514 = vrot.slane %v57, 6
  %v515 = vsel %vm105, %v514, %v513
  %v516 = vrot.slane %v58, 5
  %v517 = vsel %vm108, %v516, %v515
  %v518 = vrot.slane %v59, 4
  %v519 = vsel %vm111, %v518, %v517
  %v520 = vrot.slane %v60, 3
  %v521 = vsel %vm114, %v520, %v519
  %v522 = vrot.slane %v61, 2
  %v523 = vsel %vm117, %v522, %v521
  %v524 = vrot.slane %v62, 1
  %v525 = vsel %vm120, %v524, %v523
  %v526 = vsel %vm122, %v525, 0
  %528 = vmatprep.subr.mxu0 0.0
  %529 = vmatpush1.msra.mxu0 %v19
  %530 = vmatprep.subr.mxu0 0.0
  %531 = vmatpush1.msra.mxu0 %v20
  %532 = vmatprep.subr.mxu0 0.0
  %533 = vmatpush1.msra.mxu0 0.0
  %534 = vmatprep.subr.mxu0 0.0
  %535 = vmatpush1.msra.mxu0 0.0
  %536 = vmatprep.subr.mxu0 0.0
  %537 = vmatpush1.msra.mxu0 0.0
  %538 = vmatprep.subr.mxu0 0.0
  %539 = vmatpush1.msra.mxu0 0.0
  %540 = vmatprep.subr.mxu0 0.0
  %541 = vmatpush1.msra.mxu0 0.0
  %542 = vmatprep.subr.mxu0 0.0
  %543 = vmatpush1.msra.mxu0 0.0
  %544 = vmatprep.subr.mxu0 0.0
  %545 = vmatpush1.msra.mxu0 0.0
  %546 = vmatprep.subr.mxu0 0.0
  %547 = vmatpush1.msra.mxu0 0.0
  %548 = vmatprep.subr.mxu0 0.0
  %549 = vmatpush1.msra.mxu0 0.0
  %550 = vmatprep.subr.mxu0 0.0
  %551 = vmatpush1.msra.mxu0 0.0
  %552 = vmatprep.subr.mxu0 0.0
  %553 = vmatpush1.msra.mxu0 0.0
  %554 = vmatprep.subr.mxu0 0.0
  %555 = vmatpush1.msra.mxu0 0.0
  %556 = vmatprep.subr.mxu0 0.0
  %557 = vmatpush1.msra.mxu0 0.0
  %558 = vmatprep.subr.mxu0 0.0
  %559 = vmatpush1.msra.mxu0 0.0
  %560 = vmatprep.subr.mxu0 0.0
  %561 = vmatpush1.msra.mxu0 0.0
  %562 = vmatprep.subr.mxu0 0.0
  %563 = vmatpush1.msra.mxu0 0.0
  %564 = vmatprep.subr.mxu0 0.0
  %565 = vmatpush1.msra.mxu0 0.0
  %566 = vmatprep.subr.mxu0 0.0
  %567 = vmatpush1.msra.mxu0 0.0
  %568 = vmatprep.subr.mxu0 0.0
  %569 = vmatpush1.msra.mxu0 0.0
  %570 = vmatprep.subr.mxu0 0.0
  %571 = vmatpush1.msra.mxu0 0.0
  %572 = vmatprep.subr.mxu0 0.0
  %573 = vmatpush1.msra.mxu0 0.0
  %574 = vmatprep.subr.mxu0 0.0
  %575 = vmatpush1.msra.mxu0 0.0
  %576 = vmatprep.subr.mxu0 0.0
  %577 = vmatpush1.msra.mxu0 0.0
  %578 = vmatprep.subr.mxu0 0.0
  %579 = vmatpush1.msra.mxu0 0.0
  %580 = vmatprep.subr.mxu0 0.0
  %581 = vmatpush1.msra.mxu0 0.0
  %582 = vmatprep.subr.mxu0 0.0
  %583 = vmatpush1.msra.mxu0 0.0
  %584 = vmatprep.subr.mxu0 0.0
  %585 = vmatpush1.msra.mxu0 0.0
  %586 = vmatprep.subr.mxu0 0.0
  %587 = vmatpush1.msra.mxu0 0.0
  %588 = vmatprep.subr.mxu0 0.0
  %589 = vmatpush1.msra.mxu0 0.0
  %590 = vmatprep.subr.mxu0 0.0
  %591 = vmatpush1.msra.mxu0 0.0
  %592 = vmatprep.mubr.f32.mxu0 0.0
  %593 = vmatmul.mubr.f32.gmra.mrb[0].mxu0 %v526
  %v594 = vpop.f32.mrb[0].mxu0
  %v595 = vadd.f32 %v91, %v594
  %v596 = vpop.f32.mrb[0].mxu0
  %597 = vdwg.mxu0
  %v598 = vtanh.pop %v595
  %v599 = vmul.f32 %v598, %v200
  %v600 = vsel %vm203, %v599, 0.0
  %601 = vadd.xlane.f32.xlu0 %v600
  %v602 = vpop.xlane.xlu0 %601
  %v611 = vrot.slane %v64, 7
  %v612 = vsel %vm102, %v611, %v63
  %v613 = vrot.slane %v65, 6
  %v614 = vsel %vm105, %v613, %v612
  %v615 = vrot.slane %v66, 5
  %v616 = vsel %vm108, %v615, %v614
  %v617 = vrot.slane %v67, 4
  %v618 = vsel %vm111, %v617, %v616
  %v619 = vrot.slane %v68, 3
  %v620 = vsel %vm114, %v619, %v618
  %v621 = vrot.slane %v69, 2
  %v622 = vsel %vm117, %v621, %v620
  %v623 = vrot.slane %v70, 1
  %v624 = vsel %vm120, %v623, %v622
  %v625 = vsel %vm122, %v624, 0
  %627 = vmatprep.subr.mxu0 0.0
  %628 = vmatpush1.msra.mxu0 %v19
  %629 = vmatprep.subr.mxu0 0.0
  %630 = vmatpush1.msra.mxu0 %v20
  %631 = vmatprep.subr.mxu0 0.0
  %632 = vmatpush1.msra.mxu0 0.0
  %633 = vmatprep.subr.mxu0 0.0
  %634 = vmatpush1.msra.mxu0 0.0
  %635 = vmatprep.subr.mxu0 0.0
  %636 = vmatpush1.msra.mxu0 0.0
  %637 = vmatprep.subr.mxu0 0.0
  %638 = vmatpush1.msra.mxu0 0.0
  %639 = vmatprep.subr.mxu0 0.0
  %640 = vmatpush1.msra.mxu0 0.0
  %641 = vmatprep.subr.mxu0 0.0
  %642 = vmatpush1.msra.mxu0 0.0
  %643 = vmatprep.subr.mxu0 0.0
  %644 = vmatpush1.msra.mxu0 0.0
  %645 = vmatprep.subr.mxu0 0.0
  %646 = vmatpush1.msra.mxu0 0.0
  %647 = vmatprep.subr.mxu0 0.0
  %648 = vmatpush1.msra.mxu0 0.0
  %649 = vmatprep.subr.mxu0 0.0
  %650 = vmatpush1.msra.mxu0 0.0
  %651 = vmatprep.subr.mxu0 0.0
  %652 = vmatpush1.msra.mxu0 0.0
  %653 = vmatprep.subr.mxu0 0.0
  %654 = vmatpush1.msra.mxu0 0.0
  %655 = vmatprep.subr.mxu0 0.0
  %656 = vmatpush1.msra.mxu0 0.0
  %657 = vmatprep.subr.mxu0 0.0
  %658 = vmatpush1.msra.mxu0 0.0
  %659 = vmatprep.subr.mxu0 0.0
  %660 = vmatpush1.msra.mxu0 0.0
  %661 = vmatprep.subr.mxu0 0.0
  %662 = vmatpush1.msra.mxu0 0.0
  %663 = vmatprep.subr.mxu0 0.0
  %664 = vmatpush1.msra.mxu0 0.0
  %665 = vmatprep.subr.mxu0 0.0
  %666 = vmatpush1.msra.mxu0 0.0
  %667 = vmatprep.subr.mxu0 0.0
  %668 = vmatpush1.msra.mxu0 0.0
  %669 = vmatprep.subr.mxu0 0.0
  %670 = vmatpush1.msra.mxu0 0.0
  %671 = vmatprep.subr.mxu0 0.0
  %672 = vmatpush1.msra.mxu0 0.0
  %673 = vmatprep.subr.mxu0 0.0
  %674 = vmatpush1.msra.mxu0 0.0
  %675 = vmatprep.subr.mxu0 0.0
  %676 = vmatpush1.msra.mxu0 0.0
  %677 = vmatprep.subr.mxu0 0.0
  %678 = vmatpush1.msra.mxu0 0.0
  %679 = vmatprep.subr.mxu0 0.0
  %680 = vmatpush1.msra.mxu0 0.0
  %681 = vmatprep.subr.mxu0 0.0
  %682 = vmatpush1.msra.mxu0 0.0
  %683 = vmatprep.subr.mxu0 0.0
  %684 = vmatpush1.msra.mxu0 0.0
  %685 = vmatprep.subr.mxu0 0.0
  %686 = vmatpush1.msra.mxu0 0.0
  %687 = vmatprep.subr.mxu0 0.0
  %688 = vmatpush1.msra.mxu0 0.0
  %689 = vmatprep.subr.mxu0 0.0
  %690 = vmatpush1.msra.mxu0 0.0
  %691 = vmatprep.mubr.f32.mxu0 0.0
  %692 = vmatmul.mubr.f32.gmra.mrb[0].mxu0 %v625
  %v693 = vpop.f32.mrb[0].mxu0
  %v694 = vadd.f32 %v91, %v693
  %v695 = vpop.f32.mrb[0].mxu0
  %696 = vdwg.mxu0
  %v697 = vtanh.pop %v694
  %v698 = vmul.f32 %v697, %v200
  %v699 = vsel %vm203, %v698, 0.0
  %700 = vadd.xlane.f32.xlu0 %v699
  %v701 = vpop.xlane.xlu0 %700
  %v710 = vrot.slane %v72, 7
  %v711 = vsel %vm102, %v710, %v71
  %v712 = vrot.slane %v73, 6
  %v713 = vsel %vm105, %v712, %v711
  %v714 = vrot.slane %v74, 5
  %v715 = vsel %vm108, %v714, %v713
  %v716 = vrot.slane %v75, 4
  %v717 = vsel %vm111, %v716, %v715
  %v718 = vrot.slane %v76, 3
  %v719 = vsel %vm114, %v718, %v717
  %v720 = vrot.slane %v77, 2
  %v721 = vsel %vm117, %v720, %v719
  %v722 = vrot.slane %v78, 1
  %v723 = vsel %vm120, %v722, %v721
  %v724 = vsel %vm122, %v723, 0
  %726 = vmatprep.subr.mxu0 0.0
  %727 = vmatpush1.msra.mxu0 %v19
  %728 = vmatprep.subr.mxu0 0.0
  %729 = vmatpush1.msra.mxu0 %v20
  %730 = vmatprep.subr.mxu0 0.0
  %731 = vmatpush1.msra.mxu0 0.0
  %732 = vmatprep.subr.mxu0 0.0
  %733 = vmatpush1.msra.mxu0 0.0
  %734 = vmatprep.subr.mxu0 0.0
  %735 = vmatpush1.msra.mxu0 0.0
  %736 = vmatprep.subr.mxu0 0.0
  %737 = vmatpush1.msra.mxu0 0.0
  %738 = vmatprep.subr.mxu0 0.0
  %739 = vmatpush1.msra.mxu0 0.0
  %740 = vmatprep.subr.mxu0 0.0
  %741 = vmatpush1.msra.mxu0 0.0
  %742 = vmatprep.subr.mxu0 0.0
  %743 = vmatpush1.msra.mxu0 0.0
  %744 = vmatprep.subr.mxu0 0.0
  %745 = vmatpush1.msra.mxu0 0.0
  %746 = vmatprep.subr.mxu0 0.0
  %747 = vmatpush1.msra.mxu0 0.0
  %748 = vmatprep.subr.mxu0 0.0
  %749 = vmatpush1.msra.mxu0 0.0
  %750 = vmatprep.subr.mxu0 0.0
  %751 = vmatpush1.msra.mxu0 0.0
  %752 = vmatprep.subr.mxu0 0.0
  %753 = vmatpush1.msra.mxu0 0.0
  %754 = vmatprep.subr.mxu0 0.0
  %755 = vmatpush1.msra.mxu0 0.0
  %756 = vmatprep.subr.mxu0 0.0
  %757 = vmatpush1.msra.mxu0 0.0
  %758 = vmatprep.subr.mxu0 0.0
  %759 = vmatpush1.msra.mxu0 0.0
  %760 = vmatprep.subr.mxu0 0.0
  %761 = vmatpush1.msra.mxu0 0.0
  %762 = vmatprep.subr.mxu0 0.0
  %763 = vmatpush1.msra.mxu0 0.0
  %764 = vmatprep.subr.mxu0 0.0
  %765 = vmatpush1.msra.mxu0 0.0
  %766 = vmatprep.subr.mxu0 0.0
  %767 = vmatpush1.msra.mxu0 0.0
  %768 = vmatprep.subr.mxu0 0.0
  %769 = vmatpush1.msra.mxu0 0.0
  %770 = vmatprep.subr.mxu0 0.0
  %771 = vmatpush1.msra.mxu0 0.0
  %772 = vmatprep.subr.mxu0 0.0
  %773 = vmatpush1.msra.mxu0 0.0
  %774 = vmatprep.subr.mxu0 0.0
  %775 = vmatpush1.msra.mxu0 0.0
  %776 = vmatprep.subr.mxu0 0.0
  %777 = vmatpush1.msra.mxu0 0.0
  %778 = vmatprep.subr.mxu0 0.0
  %779 = vmatpush1.msra.mxu0 0.0
  %780 = vmatprep.subr.mxu0 0.0
  %781 = vmatpush1.msra.mxu0 0.0
  %782 = vmatprep.subr.mxu0 0.0
  %783 = vmatpush1.msra.mxu0 0.0
  %784 = vmatprep.subr.mxu0 0.0
  %785 = vmatpush1.msra.mxu0 0.0
  %786 = vmatprep.subr.mxu0 0.0
  %787 = vmatpush1.msra.mxu0 0.0
  %788 = vmatprep.subr.mxu0 0.0
  %789 = vmatpush1.msra.mxu0 0.0
  %790 = vmatprep.mubr.f32.mxu0 0.0
  %791 = vmatmul.mubr.f32.gmra.mrb[0].mxu0 %v724
  %v792 = vpop.f32.mrb[0].mxu0
  %v793 = vadd.f32 %v91, %v792
  %v794 = vpop.f32.mrb[0].mxu0
  %795 = vdwg.mxu0
  %v796 = vtanh.pop %v793
  %v797 = vmul.f32 %v796, %v200
  %v798 = vsel %vm203, %v797, 0.0
  %799 = vadd.xlane.f32.xlu0 %v798
  %v800 = vpop.xlane.xlu0 %799
  %v809 = vrot.slane %v80, 7
  %v810 = vsel %vm102, %v809, %v79
  %v811 = vrot.slane %v81, 6
  %v812 = vsel %vm105, %v811, %v810
  %v813 = vrot.slane %v82, 5
  %v814 = vsel %vm108, %v813, %v812
  %v815 = vrot.slane %v83, 4
  %v816 = vsel %vm111, %v815, %v814
  %v817 = vrot.slane %v84, 3
  %v818 = vsel %vm114, %v817, %v816
  %v819 = vrot.slane %v85, 2
  %v820 = vsel %vm117, %v819, %v818
  %v821 = vrot.slane %v86, 1
  %v822 = vsel %vm120, %v821, %v820
  %v823 = vsel %vm122, %v822, 0
  %825 = vmatprep.subr.mxu0 0.0
  %826 = vmatpush1.msra.mxu0 %v19
  %827 = vmatprep.subr.mxu0 0.0
  %828 = vmatpush1.msra.mxu0 %v20
  %829 = vmatprep.subr.mxu0 0.0
  %830 = vmatpush1.msra.mxu0 0.0
  %831 = vmatprep.subr.mxu0 0.0
  %832 = vmatpush1.msra.mxu0 0.0
  %833 = vmatprep.subr.mxu0 0.0
  %834 = vmatpush1.msra.mxu0 0.0
  %835 = vmatprep.subr.mxu0 0.0
  %836 = vmatpush1.msra.mxu0 0.0
  %837 = vmatprep.subr.mxu0 0.0
  %838 = vmatpush1.msra.mxu0 0.0
  %839 = vmatprep.subr.mxu0 0.0
  %840 = vmatpush1.msra.mxu0 0.0
  %841 = vmatprep.subr.mxu0 0.0
  %842 = vmatpush1.msra.mxu0 0.0
  %843 = vmatprep.subr.mxu0 0.0
  %844 = vmatpush1.msra.mxu0 0.0
  %845 = vmatprep.subr.mxu0 0.0
  %846 = vmatpush1.msra.mxu0 0.0
  %847 = vmatprep.subr.mxu0 0.0
  %848 = vmatpush1.msra.mxu0 0.0
  %849 = vmatprep.subr.mxu0 0.0
  %850 = vmatpush1.msra.mxu0 0.0
  %851 = vmatprep.subr.mxu0 0.0
  %852 = vmatpush1.msra.mxu0 0.0
  %853 = vmatprep.subr.mxu0 0.0
  %854 = vmatpush1.msra.mxu0 0.0
  %855 = vmatprep.subr.mxu0 0.0
  %856 = vmatpush1.msra.mxu0 0.0
  %857 = vmatprep.subr.mxu0 0.0
  %858 = vmatpush1.msra.mxu0 0.0
  %859 = vmatprep.subr.mxu0 0.0
  %860 = vmatpush1.msra.mxu0 0.0
  %861 = vmatprep.subr.mxu0 0.0
  %862 = vmatpush1.msra.mxu0 0.0
  %863 = vmatprep.subr.mxu0 0.0
  %864 = vmatpush1.msra.mxu0 0.0
  %865 = vmatprep.subr.mxu0 0.0
  %866 = vmatpush1.msra.mxu0 0.0
  %867 = vmatprep.subr.mxu0 0.0
  %868 = vmatpush1.msra.mxu0 0.0
  %869 = vmatprep.subr.mxu0 0.0
  %870 = vmatpush1.msra.mxu0 0.0
  %871 = vmatprep.subr.mxu0 0.0
  %872 = vmatpush1.msra.mxu0 0.0
  %873 = vmatprep.subr.mxu0 0.0
  %874 = vmatpush1.msra.mxu0 0.0
  %875 = vmatprep.subr.mxu0 0.0
  %876 = vmatpush1.msra.mxu0 0.0
  %877 = vmatprep.subr.mxu0 0.0
  %878 = vmatpush1.msra.mxu0 0.0
  %879 = vmatprep.subr.mxu0 0.0
  %880 = vmatpush1.msra.mxu0 0.0
  %881 = vmatprep.subr.mxu0 0.0
  %882 = vmatpush1.msra.mxu0 0.0
  %883 = vmatprep.subr.mxu0 0.0
  %884 = vmatpush1.msra.mxu0 0.0
  %885 = vmatprep.subr.mxu0 0.0
  %886 = vmatpush1.msra.mxu0 0.0
  %887 = vmatprep.subr.mxu0 0.0
  %888 = vmatpush1.msra.mxu0 0.0
  %889 = vmatprep.mubr.f32.mxu0 0.0
  %890 = vmatmul.mubr.f32.gmra.mrb[0].mxu0 %v823
  %v891 = vpop.f32.mrb[0].mxu0
  %v892 = vadd.f32 %v91, %v891
  %v893 = vpop.f32.mrb[0].mxu0
  %894 = vdwg.mxu0
  %v895 = vtanh.pop %v892
  %v896 = vmul.f32 %v895, %v200
  %v897 = vsel %vm203, %v896, 0.0
  %898 = vadd.xlane.f32.xlu0 %v897
  %v899 = vpop.xlane.xlu0 %898
  %vm900 = vcmask 7168
  %v901 = vsel %vm900, %v206, %v305
  %vm902 = vcmask 15360
  %v903 = vsel %vm902, %v901, %v404
  %vm904 = vcmask 23552
  %v905 = vsel %vm904, %v903, %v503
  %vm906 = vcmask 31744
  %v907 = vsel %vm906, %v905, %v602
  %vm908 = vcmask 39936
  %v909 = vsel %vm908, %v907, %v701
  %vm910 = vcmask 48128
  %v911 = vsel %vm910, %v909, %v800
  %vm912 = vcmask 56320
  %v913 = vsel %vm912, %v911, %v899
  %v914 = vsel %vm203, %v913, -inf
  %915 = vmax.xlane.f32.xlu0 %v914
  %v916 = vpop.xlane.xlu0 %915
  %v917 = vsub.f32 %v913, %v916
  %v918 = vmul.f32 %v917, 1.442695
  %v919 = vpow.pop %v918
  %v920 = vsel %vm203, %v919, 0.0
  %921 = vadd.xlane.f32.xlu0 %v920
  %v922 = vpop.xlane.xlu0 %921
  %v923 = vrcp.pop %v922
  %v924 = vmul.f32 %v919, %v923
  %926 = vset.pattern.permute.xlu0 0
  %927 = vperm.xlu0 %926, %v924
  %v928 = vpop.permute.xlu0 %927
  %v931 = vmul.f32 %v928, %v121
  %v932 = vadd.f32 %v931, 0.0
  %933 = vset.pattern.permute.xlu0 1
  %934 = vperm.xlu0 %933, %v924
  %v935 = vpop.permute.xlu0 %934
  %v938 = vmul.f32 %v935, %v228
  %v939 = vadd.f32 %v932, %v938
  %940 = vset.pattern.permute.xlu0 2
  %941 = vperm.xlu0 %940, %v924
  %v942 = vpop.permute.xlu0 %941
  %v945 = vmul.f32 %v942, %v327
  %v946 = vadd.f32 %v939, %v945
  %947 = vset.pattern.permute.xlu0 3
  %948 = vperm.xlu0 %947, %v924
  %v949 = vpop.permute.xlu0 %948
  %v952 = vmul.f32 %v949, %v426
  %v953 = vadd.f32 %v946, %v952
  %954 = vset.pattern.permute.xlu0 4
  %955 = vperm.xlu0 %954, %v924
  %v956 = vpop.permute.xlu0 %955
  %v959 = vmul.f32 %v956, %v525
  %v960 = vadd.f32 %v953, %v959
  %961 = vset.pattern.permute.xlu0 5
  %962 = vperm.xlu0 %961, %v924
  %v963 = vpop.permute.xlu0 %962
  %v966 = vmul.f32 %v963, %v624
  %v967 = vadd.f32 %v960, %v966
  %968 = vset.pattern.permute.xlu0 6
  %969 = vperm.xlu0 %968, %v924
  %v970 = vpop.permute.xlu0 %969
  %v973 = vmul.f32 %v970, %v723
  %v974 = vadd.f32 %v967, %v973
  %975 = vset.pattern.permute.xlu0 7
  %976 = vperm.xlu0 %975, %v924
  %v977 = vpop.permute.xlu0 %976
  %v980 = vmul.f32 %v977, %v822
  %v981 = vadd.f32 %v974, %v980
  %982 = vst.msk [vmem:[%s4] sm:$0xff] %vm122, %v981
  %983 = vst.msk [vmem:[%s5] sm:$0xff] %vm203, %v924
  // Predicated region
  $region18: #{han_forward.5} parent=0 // pred_check
    _
  $region19: #{han_forward.5} parent=0 // pred_check_branch
    %985 = sbr.rel (0) target = $region21
  $region20: #{han_forward.5} parent=0 // pred_region
    _
  $region21: #{han_forward.5} parent=0 // pred_fallthru
    _
  // Predicated region
  $region22: #{han_forward.5} parent=0 // pred_check
    _
  $region23: #{han_forward.5} parent=0 // pred_check_branch
    %987 = sbr.rel (0) target = $region25
  $region24: #{han_forward.5} parent=0 // pred_region
    _
  $region25: #{han_forward.5} parent=0 // pred_fallthru
    _
  // Predicated region
  $region26: #{han_forward.5} parent=0 // pred_check
    _
  $region27: #{han_forward.5} parent=0 // pred_check_branch
    %989 = sbr.rel (0) target = $region29
  $region28: #{han_forward.5} parent=0 // pred_region
    _
  $region29: #{han_forward.5} parent=0 // pred_fallthru
    _
  // Predicated region
  $region30: #{han_forward.5} parent=0 // pred_check
    _
  $region31: #{han_forward.5} parent=0 // pred_check_branch
    %991 = sbr.rel (0) target = $region33
  $region32: #{han_forward.5} parent=0 // pred_region
    _
  $region33: #{han_forward.5} parent=0 // pred_fallthru
    _

// kernel: han_forward.4
$region0: #{han_forward.4}
  #allocation0 [shape = 'u32[]', space=smem, size = 0x4, offset = 0x4, fixed_abs, tag = 'smem constant byte address 0x4 - core index']
  #allocation1 [shape = 'u32[144,128]{1,0:T(1,128)}', space=vmem, size = 0x12000, scoped, tag = 'internal scratch']
  %s0 = inlined_call_operand.vmem [shape: f32[8,8,16], index: 0, kind: input, shape index: {}]
  %s1 = inlined_call_operand.vmem [shape: f32[16,48], index: 1, kind: input, shape index: {}]
  %s2 = inlined_call_operand.vmem [shape: f32[16,48], index: 2, kind: input, shape index: {}]
  %s3 = inlined_call_operand.vmem [shape: f32[1,48], index: 3, kind: input, shape index: {}]
  %s4 = inlined_call_operand.vmem [shape: f32[1,48], index: 4, kind: input, shape index: {}]
  %s5 = inlined_call_operand.vmem [shape: f32[8,8,16], index: 5, kind: output, shape index: {}]
  %s6 = sld [smem:[#allocation0]]
  $region30: #{han_forward.4} parent=0
    _
  %s8 = ssub.s32 1, %s6
  %s9 = scalar_select 0, %s8, %s6
  // Predicated region
  $region2: #{han_forward.4} parent=0 // pred_check
    _
  $region3: #{han_forward.4} parent=0 // pred_check_branch
    %11 = sbr.rel (0) target = $region5
  $region4: #{han_forward.4} parent=0 // pred_region
    _
  $region5: #{han_forward.4} parent=0 // pred_fallthru
    _
  // Predicated region
  $region6: #{han_forward.4} parent=0 // pred_check
    _
  $region7: #{han_forward.4} parent=0 // pred_check_branch
    %13 = sbr.rel (0) target = $region9
  $region8: #{han_forward.4} parent=0 // pred_region
    _
  $region9: #{han_forward.4} parent=0 // pred_fallthru
    _
  // Predicated region
  $region10: #{han_forward.4} parent=0 // pred_check
    _
  $region11: #{han_forward.4} parent=0 // pred_check_branch
    %15 = sbr.rel (0) target = $region13
  $region12: #{han_forward.4} parent=0 // pred_region
    _
  $region13: #{han_forward.4} parent=0 // pred_fallthru
    _
  // Predicated region
  $region14: #{han_forward.4} parent=0 // pred_check
    _
  $region15: #{han_forward.4} parent=0 // pred_check_branch
    %17 = sbr.rel (0) target = $region17
  $region16: #{han_forward.4} parent=0 // pred_region
    _
  $region17: #{han_forward.4} parent=0 // pred_fallthru
    _
  // Predicated region
  $region18: #{han_forward.4} parent=0 // pred_check
    _
  $region19: #{han_forward.4} parent=0 // pred_check_branch
    %19 = sbr.rel (0) target = $region21
  $region20: #{han_forward.4} parent=0 // pred_region
    _
  $region21: #{han_forward.4} parent=0 // pred_fallthru
    _
  %v20 = vld [vmem:[%s1] sm:$0xff]
  %v21 = vld [vmem:[%s1 + $0x8] sm:$0xff]
  %v22 = vld [vmem:[%s2] sm:$0xff]
  %v23 = vld [vmem:[%s2 + $0x8] sm:$0xff]
  %v24 = vld [vmem:[%s3] sm:$0x1]
  %v25 = vld [vmem:[%s4] sm:$0x1]
  %v26 = vld [vmem:[%s0] sm:$0x1]
  %v27 = vld [vmem:[%s0 + $0x8] sm:$0x1]
  %v28 = vld [vmem:[%s0 + $0x10] sm:$0x1]
  %v29 = vld [vmem:[%s0 + $0x18] sm:$0x1]
  %v30 = vld [vmem:[%s0 + $0x20] sm:$0x1]
  %v31 = vld [vmem:[%s0 + $0x28] sm:$0x1]
  %v32 = vld [vmem:[%s0 + $0x30] sm:$0x1]
  %v33 = vld [vmem:[%s0 + $0x38] sm:$0x1]
  %v35 = vlaneseq
  %v36 = vshrl.u32 %v35, 7
  %v37 = vsub.s32 0, %v36
  %v38 = vrot.slane %v24, %v37
  %v48 = vrot.slane %v27, 7
  %vm49 = vcmask 1041409
  %v50 = vsel %vm49, %v48, %v26
  %v51 = vrot.slane %v28, 6
  %vm52 = vcmask 1042434
  %v53 = vsel %vm52, %v51, %v50
  %v54 = vrot.slane %v29, 5
  %vm55 = vcmask 1043459
  %v56 = vsel %vm55, %v54, %v53
  %v57 = vrot.slane %v30, 4
  %vm58 = vcmask 1044484
  %v59 = vsel %vm58, %v57, %v56
  %v60 = vrot.slane %v31, 3
  %vm61 = vcmask 1045509
  %v62 = vsel %vm61, %v60, %v59
  %v63 = vrot.slane %v32, 2
  %vm64 = vcmask 1046534
  %v65 = vsel %vm64, %v63, %v62
  %v66 = vrot.slane %v33, 1
  %vm67 = vcmask 1047559
  %v68 = vsel %vm67, %v66, %v65
  %vm69 = vcmask 130048
  %v70 = vsel %vm69, %v68, 0
  %72 = vmatprep.subr.mxu0 0.0
  %73 = vmatpush1.msra.mxu0 %v20
  %74 = vmatprep.subr.mxu0 0.0
  %75 = vmatpush1.msra.mxu0 %v21
  %76 = vmatprep.subr.mxu0 0.0
  %77 = vmatpush1.msra.mxu0 0.0
  %78 = vmatprep.subr.mxu0 0.0
  %79 = vmatpush1.msra.mxu0 0.0
  %80 = vmatprep.subr.mxu0 0.0
  %81 = vmatpush1.msra.mxu0 0.0
  %82 = vmatprep.subr.mxu0 0.0
  %83 = vmatpush1.msra.mxu0 0.0
  %84 = vmatprep.subr.mxu0 0.0
  %85 = vmatpush1.msra.mxu0 0.0
  %86 = vmatprep.subr.mxu0 0.0
  %87 = vmatpush1.msra.mxu0 0.0
  %88 = vmatprep.subr.mxu0 0.0
  %89 = vmatpush1.msra.mxu0 0.0
  %90 = vmatprep.subr.mxu0 0.0
  %91 = vmatpush1.msra.mxu0 0.0
  %92 = vmatprep.subr.mxu0 0.0
  %93 = vmatpush1.msra.mxu0 0.0
  %94 = vmatprep.subr.mxu0 0.0
  %95 = vmatpush1.msra.mxu0 0.0
  %96 = vmatprep.subr.mxu0 0.0
  %97 = vmatpush1.msra.mxu0 0.0
  %98 = vmatprep.subr.mxu0 0.0
  %99 = vmatpush1.msra.mxu0 0.0
  %100 = vmatprep.subr.mxu0 0.0
  %101 = vmatpush1.msra.mxu0 0.0
  %102 = vmatprep.subr.mxu0 0.0
  %103 = vmatpush1.msra.mxu0 0.0
  %104 = vmatprep.subr.mxu0 0.0
  %105 = vmatpush1.msra.mxu0 0.0
  %106 = vmatprep.subr.mxu0 0.0
  %107 = vmatpush1.msra.mxu0 0.0
  %108 = vmatprep.subr.mxu0 0.0
  %109 = vmatpush1.msra.mxu0 0.0
  %110 = vmatprep.subr.mxu0 0.0
  %111 = vmatpush1.msra.mxu0 0.0
  %112 = vmatprep.subr.mxu0 0.0
  %113 = vmatpush1.msra.mxu0 0.0
  %114 = vmatprep.subr.mxu0 0.0
  %115 = vmatpush1.msra.mxu0 0.0
  %116 = vmatprep.subr.mxu0 0.0
  %117 = vmatpush1.msra.mxu0 0.0
  %118 = vmatprep.subr.mxu0 0.0
  %119 = vmatpush1.msra.mxu0 0.0
  %120 = vmatprep.subr.mxu0 0.0
  %121 = vmatpush1.msra.mxu0 0.0
  %122 = vmatprep.subr.mxu0 0.0
  %123 = vmatpush1.msra.mxu0 0.0
  %124 = vmatprep.subr.mxu0 0.0
  %125 = vmatpush1.msra.mxu0 0.0
  %126 = vmatprep.subr.mxu0 0.0
  %127 = vmatpush1.msra.mxu0 0.0
  %128 = vmatprep.subr.mxu0 0.0
  %129 = vmatpush1.msra.mxu0 0.0
  %130 = vmatprep.subr.mxu0 0.0
  %131 = vmatpush1.msra.mxu0 0.0
  %132 = vmatprep.subr.mxu0 0.0
  %133 = vmatpush1.msra.mxu0 0.0
  %134 = vmatprep.subr.mxu0 0.0
  %135 = vmatpush1.msra.mxu0 0.0
  %136 = vmatprep.mubr.f32.mxu0 0.0
  %137 = vmatmul.mubr.f32.gmra.mrb[0].mxu0 %v70
  %v138 = vpop.f32.mrb[0].mxu0
  %v139 = vadd.f32 %v38, %v138
  %v140 = vpop.f32.mrb[0].mxu0
  %141 = vdwg.mxu0
  %v142 = vld [vmem:[%s0 + $0x1] sm:$0x1]
  %v143 = vld [vmem:[%s0 + $0x9] sm:$0x1]
  %v144 = vld [vmem:[%s0 + $0x11] sm:$0x1]
  %v145 = vld [vmem:[%s0 + $0x19] sm:$0x1]
  %v146 = vld [vmem:[%s0 + $0x21] sm:$0x1]
  %v147 = vld [vmem:[%s0 + $0x29] sm:$0x1]
  %v148 = vld [vmem:[%s0 + $0x31] sm:$0x1]
  %v149 = vld [vmem:[%s0 + $0x39] sm:$0x1]
  %v158 = vrot.slane %v143, 7
  %v159 = vsel %vm49, %v158, %v142
  %v160 = vrot.slane %v144, 6
  %v161 = vsel %vm52, %v160, %v159
  %v162 = vrot.slane %v145, 5
  %v163 = vsel %vm55, %v162, %v161
  %v164 = vrot.slane %v146, 4
  %v165 = vsel %vm58, %v164, %v163
  %v166 = vrot.slane %v147, 3
  %v167 = vsel %vm61, %v166, %v165
  %v168 = vrot.slane %v148, 2
  %v169 = vsel %vm64, %v168, %v167
  %v170 = vrot.slane %v149, 1
  %v171 = vsel %vm67, %v170, %v169
  %v172 = vsel %vm69, %v171, 0
  %174 = vmatprep.subr.mxu0 0.0
  %175 = vmatpush1.msra.mxu0 %v20
  %176 = vmatprep.subr.mxu0 0.0
  %177 = vmatpush1.msra.mxu0 %v21
  %178 = vmatprep.subr.mxu0 0.0
  %179 = vmatpush1.msra.mxu0 0.0
  %180 = vmatprep.subr.mxu0 0.0
  %181 = vmatpush1.msra.mxu0 0.0
  %182 = vmatprep.subr.mxu0 0.0
  %183 = vmatpush1.msra.mxu0 0.0
  %184 = vmatprep.subr.mxu0 0.0
  %185 = vmatpush1.msra.mxu0 0.0
  %186 = vmatprep.subr.mxu0 0.0
  %187 = vmatpush1.msra.mxu0 0.0
  %188 = vmatprep.subr.mxu0 0.0
  %189 = vmatpush1.msra.mxu0 0.0
  %190 = vmatprep.subr.mxu0 0.0
  %191 = vmatpush1.msra.mxu0 0.0
  %192 = vmatprep.subr.mxu0 0.0
  %193 = vmatpush1.msra.mxu0 0.0
  %194 = vmatprep.subr.mxu0 0.0
  %195 = vmatpush1.msra.mxu0 0.0
  %196 = vmatprep.subr.mxu0 0.0
  %197 = vmatpush1.msra.mxu0 0.0
  %198 = vmatprep.subr.mxu0 0.0
  %199 = vmatpush1.msra.mxu0 0.0
  %200 = vmatprep.subr.mxu0 0.0
  %201 = vmatpush1.msra.mxu0 0.0
  %202 = vmatprep.subr.mxu0 0.0
  %203 = vmatpush1.msra.mxu0 0.0
  %204 = vmatprep.subr.mxu0 0.0
  %205 = vmatpush1.msra.mxu0 0.0
  %206 = vmatprep.subr.mxu0 0.0
  %207 = vmatpush1.msra.mxu0 0.0
  %208 = vmatprep.subr.mxu0 0.0
  %209 = vmatpush1.msra.mxu0 0.0
  %210 = vmatprep.subr.mxu0 0.0
  %211 = vmatpush1.msra.mxu0 0.0
  %212 = vmatprep.subr.mxu0 0.0
  %213 = vmatpush1.msra.mxu0 0.0
  %214 = vmatprep.subr.mxu0 0.0
  %215 = vmatpush1.msra.mxu0 0.0
  %216 = vmatprep.subr.mxu0 0.0
  %217 = vmatpush1.msra.mxu0 0.0
  %218 = vmatprep.subr.mxu0 0.0
  %219 = vmatpush1.msra.mxu0 0.0
  %220 = vmatprep.subr.mxu0 0.0
  %221 = vmatpush1.msra.mxu0 0.0
  %222 = vmatprep.subr.mxu0 0.0
  %223 = vmatpush1.msra.mxu0 0.0
  %224 = vmatprep.subr.mxu0 0.0
  %225 = vmatpush1.msra.mxu0 0.0
  %226 = vmatprep.subr.mxu0 0.0
  %227 = vmatpush1.msra.mxu0 0.0
  %228 = vmatprep.subr.mxu0 0.0
  %229 = vmatpush1.msra.mxu0 0.0
  %230 = vmatprep.subr.mxu0 0.0
  %231 = vmatpush1.msra.mxu0 0.0
  %232 = vmatprep.subr.mxu0 0.0
  %233 = vmatpush1.msra.mxu0 0.0
  %234 = vmatprep.subr.mxu0 0.0
  %235 = vmatpush1.msra.mxu0 0.0
  %236 = vmatprep.subr.mxu0 0.0
  %237 = vmatpush1.msra.mxu0 0.0
  %238 = vmatprep.mubr.f32.mxu0 0.0
  %239 = vmatmul.mubr.f32.gmra.mrb[0].mxu0 %v172
  %v240 = vpop.f32.mrb[0].mxu0
  %v241 = vadd.f32 %v38, %v240
  %v242 = vpop.f32.mrb[0].mxu0
  %243 = vdwg.mxu0
  %v244 = vld [vmem:[%s0 + $0x2] sm:$0x1]
  %v245 = vld [vmem:[%s0 + $0xa] sm:$0x1]
  %v246 = vld [vmem:[%s0 + $0x12] sm:$0x1]
  %v247 = vld [vmem:[%s0 + $0x1a] sm:$0x1]
  %v248 = vld [vmem:[%s0 + $0x22] sm:$0x1]
  %v249 = vld [vmem:[%s0 + $0x2a] sm:$0x1]
  %v250 = vld [vmem:[%s0 + $0x32] sm:$0x1]
  %v251 = vld [vmem:[%s0 + $0x3a] sm:$0x1]
  %v260 = vrot.slane %v245, 7
  %v261 = vsel %vm49, %v260, %v244
  %v262 = vrot.slane %v246, 6
  %v263 = vsel %vm52, %v262, %v261
  %v264 = vrot.slane %v247, 5
  %v265 = vsel %vm55, %v264, %v263
  %v266 = vrot.slane %v248, 4
  %v267 = vsel %vm58, %v266, %v265
  %v268 = vrot.slane %v249, 3
  %v269 = vsel %vm61, %v268, %v267
  %v270 = vrot.slane %v250, 2
  %v271 = vsel %vm64, %v270, %v269
  %v272 = vrot.slane %v251, 1
  %v273 = vsel %vm67, %v272, %v271
  %v274 = vsel %vm69, %v273, 0
  %276 = vmatprep.subr.mxu0 0.0
  %277 = vmatpush1.msra.mxu0 %v20
  %278 = vmatprep.subr.mxu0 0.0
  %279 = vmatpush1.msra.mxu0 %v21
  %280 = vmatprep.subr.mxu0 0.0
  %281 = vmatpush1.msra.mxu0 0.0
  %282 = vmatprep.subr.mxu0 0.0
  %283 = vmatpush1.msra.mxu0 0.0
  %284 = vmatprep.subr.mxu0 0.0
  %285 = vmatpush1.msra.mxu0 0.0
  %286 = vmatprep.subr.mxu0 0.0
  %287 = vmatpush1.msra.mxu0 0.0
  %288 = vmatprep.subr.mxu0 0.0
  %289 = vmatpush1.msra.mxu0 0.0
  %290 = vmatprep.subr.mxu0 0.0
  %291 = vmatpush1.msra.mxu0 0.0
  %292 = vmatprep.subr.mxu0 0.0
  %293 = vmatpush1.msra.mxu0 0.0
  %294 = vmatprep.subr.mxu0 0.0
  %295 = vmatpush1.msra.mxu0 0.0
  %296 = vmatprep.subr.mxu0 0.0
  %297 = vmatpush1.msra.mxu0 0.0
  %298 = vmatprep.subr.mxu0 0.0
  %299 = vmatpush1.msra.mxu0 0.0
  %300 = vmatprep.subr.mxu0 0.0
  %301 = vmatpush1.msra.mxu0 0.0
  %302 = vmatprep.subr.mxu0 0.0
  %303 = vmatpush1.msra.mxu0 0.0
  %304 = vmatprep.subr.mxu0 0.0
  %305 = vmatpush1.msra.mxu0 0.0
  %306 = vmatprep.subr.mxu0 0.0
  %307 = vmatpush1.msra.mxu0 0.0
  %308 = vmatprep.subr.mxu0 0.0
  %309 = vmatpush1.msra.mxu0 0.0
  %310 = vmatprep.subr.mxu0 0.0
  %311 = vmatpush1.msra.mxu0 0.0
  %312 = vmatprep.subr.mxu0 0.0
  %313 = vmatpush1.msra.mxu0 0.0
  %314 = vmatprep.subr.mxu0 0.0
  %315 = vmatpush1.msra.mxu0 0.0
  %316 = vmatprep.subr.mxu0 0.0
  %317 = vmatpush1.msra.mxu0 0.0
  %318 = vmatprep.subr.mxu0 0.0
  %319 = vmatpush1.msra.mxu0 0.0
  %320 = vmatprep.subr.mxu0 0.0
  %321 = vmatpush1.msra.mxu0 0.0
  %322 = vmatprep.subr.mxu0 0.0
  %323 = vmatpush1.msra.mxu0 0.0
  %324 = vmatprep.subr.mxu0 0.0
  %325 = vmatpush1.msra.mxu0 0.0
  %326 = vmatprep.subr.mxu0 0.0
  %327 = vmatpush1.msra.mxu0 0.0
  %328 = vmatprep.subr.mxu0 0.0
  %329 = vmatpush1.msra.mxu0 0.0
  %330 = vmatprep.subr.mxu0 0.0
  %331 = vmatpush1.msra.mxu0 0.0
  %332 = vmatprep.subr.mxu0 0.0
  %333 = vmatpush1.msra.mxu0 0.0
  %334 = vmatprep.subr.mxu0 0.0
  %335 = vmatpush1.msra.mxu0 0.0
  %336 = vmatprep.subr.mxu0 0.0
  %337 = vmatpush1.msra.mxu0 0.0
  %338 = vmatprep.subr.mxu0 0.0
  %339 = vmatpush1.msra.mxu0 0.0
  %340 = vmatprep.mubr.f32.mxu0 0.0
  %341 = vmatmul.mubr.f32.gmra.mrb[0].mxu0 %v274
  %v342 = vpop.f32.mrb[0].mxu0
  %v343 = vadd.f32 %v38, %v342
  %v344 = vpop.f32.mrb[0].mxu0
  %345 = vdwg.mxu0
  %v346 = vld [vmem:[%s0 + $0x3] sm:$0x1]
  %v347 = vld [vmem:[%s0 + $0xb] sm:$0x1]
  %v348 = vld [vmem:[%s0 + $0x13] sm:$0x1]
  %v349 = vld [vmem:[%s0 + $0x1b] sm:$0x1]
  %v350 = vld [vmem:[%s0 + $0x23] sm:$0x1]
  %v351 = vld [vmem:[%s0 + $0x2b] sm:$0x1]
  %v352 = vld [vmem:[%s0 + $0x33] sm:$0x1]
  %v353 = vld [vmem:[%s0 + $0x3b] sm:$0x1]
  %v362 = vrot.slane %v347, 7
  %v363 = vsel %vm49, %v362, %v346
  %v364 = vrot.slane %v348, 6
  %v365 = vsel %vm52, %v364, %v363
  %v366 = vrot.slane %v349, 5
  %v367 = vsel %vm55, %v366, %v365
  %v368 = vrot.slane %v350, 4
  %v369 = vsel %vm58, %v368, %v367
  %v370 = vrot.slane %v351, 3
  %v371 = vsel %vm61, %v370, %v369
  %v372 = vrot.slane %v352, 2
  %v373 = vsel %vm64, %v372, %v371
  %v374 = vrot.slane %v353, 1
  %v375 = vsel %vm67, %v374, %v373
  %v376 = vsel %vm69, %v375, 0
  %378 = vmatprep.subr.mxu0 0.0
  %379 = vmatpush1.msra.mxu0 %v20
  %380 = vmatprep.subr.mxu0 0.0
  %381 = vmatpush1.msra.mxu0 %v21
  %382 = vmatprep.subr.mxu0 0.0
  %383 = vmatpush1.msra.mxu0 0.0
  %384 = vmatprep.subr.mxu0 0.0
  %385 = vmatpush1.msra.mxu0 0.0
  %386 = vmatprep.subr.mxu0 0.0
  %387 = vmatpush1.msra.mxu0 0.0
  %388 = vmatprep.subr.mxu0 0.0
  %389 = vmatpush1.msra.mxu0 0.0
  %390 = vmatprep.subr.mxu0 0.0
  %391 = vmatpush1.msra.mxu0 0.0
  %392 = vmatprep.subr.mxu0 0.0
  %393 = vmatpush1.msra.mxu0 0.0
  %394 = vmatprep.subr.mxu0 0.0
  %395 = vmatpush1.msra.mxu0 0.0
  %396 = vmatprep.subr.mxu0 0.0
  %397 = vmatpush1.msra.mxu0 0.0
  %398 = vmatprep.subr.mxu0 0.0
  %399 = vmatpush1.msra.mxu0 0.0
  %400 = vmatprep.subr.mxu0 0.0
  %401 = vmatpush1.msra.mxu0 0.0
  %402 = vmatprep.subr.mxu0 0.0
  %403 = vmatpush1.msra.mxu0 0.0
  %404 = vmatprep.subr.mxu0 0.0
  %405 = vmatpush1.msra.mxu0 0.0
  %406 = vmatprep.subr.mxu0 0.0
  %407 = vmatpush1.msra.mxu0 0.0
  %408 = vmatprep.subr.mxu0 0.0
  %409 = vmatpush1.msra.mxu0 0.0
  %410 = vmatprep.subr.mxu0 0.0
  %411 = vmatpush1.msra.mxu0 0.0
  %412 = vmatprep.subr.mxu0 0.0
  %413 = vmatpush1.msra.mxu0 0.0
  %414 = vmatprep.subr.mxu0 0.0
  %415 = vmatpush1.msra.mxu0 0.0
  %416 = vmatprep.subr.mxu0 0.0
  %417 = vmatpush1.msra.mxu0 0.0
  %418 = vmatprep.subr.mxu0 0.0
  %419 = vmatpush1.msra.mxu0 0.0
  %420 = vmatprep.subr.mxu0 0.0
  %421 = vmatpush1.msra.mxu0 0.0
  %422 = vmatprep.subr.mxu0 0.0
  %423 = vmatpush1.msra.mxu0 0.0
  %424 = vmatprep.subr.mxu0 0.0
  %425 = vmatpush1.msra.mxu0 0.0
  %426 = vmatprep.subr.mxu0 0.0
  %427 = vmatpush1.msra.mxu0 0.0
  %428 = vmatprep.subr.mxu0 0.0
  %429 = vmatpush1.msra.mxu0 0.0
  %430 = vmatprep.subr.mxu0 0.0
  %431 = vmatpush1.msra.mxu0 0.0
  %432 = vmatprep.subr.mxu0 0.0
  %433 = vmatpush1.msra.mxu0 0.0
  %434 = vmatprep.subr.mxu0 0.0
  %435 = vmatpush1.msra.mxu0 0.0
  %436 = vmatprep.subr.mxu0 0.0
  %437 = vmatpush1.msra.mxu0 0.0
  %438 = vmatprep.subr.mxu0 0.0
  %439 = vmatpush1.msra.mxu0 0.0
  %440 = vmatprep.subr.mxu0 0.0
  %441 = vmatpush1.msra.mxu0 0.0
  %442 = vmatprep.mubr.f32.mxu0 0.0
  %443 = vmatmul.mubr.f32.gmra.mrb[0].mxu0 %v376
  %v444 = vpop.f32.mrb[0].mxu0
  %v445 = vadd.f32 %v38, %v444
  %v446 = vpop.f32.mrb[0].mxu0
  %447 = vdwg.mxu0
  %v448 = vld [vmem:[%s0 + $0x4] sm:$0x1]
  %v449 = vld [vmem:[%s0 + $0xc] sm:$0x1]
  %v450 = vld [vmem:[%s0 + $0x14] sm:$0x1]
  %v451 = vld [vmem:[%s0 + $0x1c] sm:$0x1]
  %v452 = vld [vmem:[%s0 + $0x24] sm:$0x1]
  %v453 = vld [vmem:[%s0 + $0x2c] sm:$0x1]
  %v454 = vld [vmem:[%s0 + $0x34] sm:$0x1]
  %v455 = vld [vmem:[%s0 + $0x3c] sm:$0x1]
  %v464 = vrot.slane %v449, 7
  %v465 = vsel %vm49, %v464, %v448
  %v466 = vrot.slane %v450, 6
  %v467 = vsel %vm52, %v466, %v465
  %v468 = vrot.slane %v451, 5
  %v469 = vsel %vm55, %v468, %v467
  %v470 = vrot.slane %v452, 4
  %v471 = vsel %vm58, %v470, %v469
  %v472 = vrot.slane %v453, 3
  %v473 = vsel %vm61, %v472, %v471
  %v474 = vrot.slane %v454, 2
  %v475 = vsel %vm64, %v474, %v473
  %v476 = vrot.slane %v455, 1
  %v477 = vsel %vm67, %v476, %v475
  %v478 = vsel %vm69, %v477, 0
  %480 = vmatprep.subr.mxu0 0.0
  %481 = vmatpush1.msra.mxu0 %v20
  %482 = vmatprep.subr.mxu0 0.0
  %483 = vmatpush1.msra.mxu0 %v21
  %484 = vmatprep.subr.mxu0 0.0
  %485 = vmatpush1.msra.mxu0 0.0
  %486 = vmatprep.subr.mxu0 0.0
  %487 = vmatpush1.msra.mxu0 0.0
  %488 = vmatprep.subr.mxu0 0.0
  %489 = vmatpush1.msra.mxu0 0.0
  %490 = vmatprep.subr.mxu0 0.0
  %491 = vmatpush1.msra.mxu0 0.0
  %492 = vmatprep.subr.mxu0 0.0
  %493 = vmatpush1.msra.mxu0 0.0
  %494 = vmatprep.subr.mxu0 0.0
  %495 = vmatpush1.msra.mxu0 0.0
  %496 = vmatprep.subr.mxu0 0.0
  %497 = vmatpush1.msra.mxu0 0.0
  %498 = vmatprep.subr.mxu0 0.0
  %499 = vmatpush1.msra.mxu0 0.0
  %500 = vmatprep.subr.mxu0 0.0
  %501 = vmatpush1.msra.mxu0 0.0
  %502 = vmatprep.subr.mxu0 0.0
  %503 = vmatpush1.msra.mxu0 0.0
  %504 = vmatprep.subr.mxu0 0.0
  %505 = vmatpush1.msra.mxu0 0.0
  %506 = vmatprep.subr.mxu0 0.0
  %507 = vmatpush1.msra.mxu0 0.0
  %508 = vmatprep.subr.mxu0 0.0
  %509 = vmatpush1.msra.mxu0 0.0
  %510 = vmatprep.subr.mxu0 0.0
  %511 = vmatpush1.msra.mxu0 0.0
  %512 = vmatprep.subr.mxu0 0.0
  %513 = vmatpush1.msra.mxu0 0.0
  %514 = vmatprep.subr.mxu0 0.0
  %515 = vmatpush1.msra.mxu0 0.0
  %516 = vmatprep.subr.mxu0 0.0
  %517 = vmatpush1.msra.mxu0 0.0
  %518 = vmatprep.subr.mxu0 0.0
  %519 = vmatpush1.msra.mxu0 0.0
  %520 = vmatprep.subr.mxu0 0.0
  %521 = vmatpush1.msra.mxu0 0.0
  %522 = vmatprep.subr.mxu0 0.0
  %523 = vmatpush1.msra.mxu0 0.0
  %524 = vmatprep.subr.mxu0 0.0
  %525 = vmatpush1.msra.mxu0 0.0
  %526 = vmatprep.subr.mxu0 0.0
  %527 = vmatpush1.msra.mxu0 0.0
  %528 = vmatprep.subr.mxu0 0.0
  %529 = vmatpush1.msra.mxu0 0.0
  %530 = vmatprep.subr.mxu0 0.0
  %531 = vmatpush1.msra.mxu0 0.0
  %532 = vmatprep.subr.mxu0 0.0
  %533 = vmatpush1.msra.mxu0 0.0
  %534 = vmatprep.subr.mxu0 0.0
  %535 = vmatpush1.msra.mxu0 0.0
  %536 = vmatprep.subr.mxu0 0.0
  %537 = vmatpush1.msra.mxu0 0.0
  %538 = vmatprep.subr.mxu0 0.0
  %539 = vmatpush1.msra.mxu0 0.0
  %540 = vmatprep.subr.mxu0 0.0
  %541 = vmatpush1.msra.mxu0 0.0
  %542 = vmatprep.subr.mxu0 0.0
  %543 = vmatpush1.msra.mxu0 0.0
  %544 = vmatprep.mubr.f32.mxu0 0.0
  %545 = vmatmul.mubr.f32.gmra.mrb[0].mxu0 %v478
  %v546 = vpop.f32.mrb[0].mxu0
  %v547 = vadd.f32 %v38, %v546
  %v548 = vpop.f32.mrb[0].mxu0
  %549 = vdwg.mxu0
  %v550 = vld [vmem:[%s0 + $0x5] sm:$0x1]
  %v551 = vld [vmem:[%s0 + $0xd] sm:$0x1]
  %v552 = vld [vmem:[%s0 + $0x15] sm:$0x1]
  %v553 = vld [vmem:[%s0 + $0x1d] sm:$0x1]
  %v554 = vld [vmem:[%s0 + $0x25] sm:$0x1]
  %v555 = vld [vmem:[%s0 + $0x2d] sm:$0x1]
  %v556 = vld [vmem:[%s0 + $0x35] sm:$0x1]
  %v557 = vld [vmem:[%s0 + $0x3d] sm:$0x1]
  %v566 = vrot.slane %v551, 7
  %v567 = vsel %vm49, %v566, %v550
  %v568 = vrot.slane %v552, 6
  %v569 = vsel %vm52, %v568, %v567
  %v570 = vrot.slane %v553, 5
  %v571 = vsel %vm55, %v570, %v569
  %v572 = vrot.slane %v554, 4
  %v573 = vsel %vm58, %v572, %v571
  %v574 = vrot.slane %v555, 3
  %v575 = vsel %vm61, %v574, %v573
  %v576 = vrot.slane %v556, 2
  %v577 = vsel %vm64, %v576, %v575
  %v578 = vrot.slane %v557, 1
  %v579 = vsel %vm67, %v578, %v577
  %v580 = vsel %vm69, %v579, 0
  %582 = vmatprep.subr.mxu0 0.0
  %583 = vmatpush1.msra.mxu0 %v20
  %584 = vmatprep.subr.mxu0 0.0
  %585 = vmatpush1.msra.mxu0 %v21
  %586 = vmatprep.subr.mxu0 0.0
  %587 = vmatpush1.msra.mxu0 0.0
  %588 = vmatprep.subr.mxu0 0.0
  %589 = vmatpush1.msra.mxu0 0.0
  %590 = vmatprep.subr.mxu0 0.0
  %591 = vmatpush1.msra.mxu0 0.0
  %592 = vmatprep.subr.mxu0 0.0
  %593 = vmatpush1.msra.mxu0 0.0
  %594 = vmatprep.subr.mxu0 0.0
  %595 = vmatpush1.msra.mxu0 0.0
  %596 = vmatprep.subr.mxu0 0.0
  %597 = vmatpush1.msra.mxu0 0.0
  %598 = vmatprep.subr.mxu0 0.0
  %599 = vmatpush1.msra.mxu0 0.0
  %600 = vmatprep.subr.mxu0 0.0
  %601 = vmatpush1.msra.mxu0 0.0
  %602 = vmatprep.subr.mxu0 0.0
  %603 = vmatpush1.msra.mxu0 0.0
  %604 = vmatprep.subr.mxu0 0.0
  %605 = vmatpush1.msra.mxu0 0.0
  %606 = vmatprep.subr.mxu0 0.0
  %607 = vmatpush1.msra.mxu0 0.0
  %608 = vmatprep.subr.mxu0 0.0
  %609 = vmatpush1.msra.mxu0 0.0
  %610 = vmatprep.subr.mxu0 0.0
  %611 = vmatpush1.msra.mxu0 0.0
  %612 = vmatprep.subr.mxu0 0.0
  %613 = vmatpush1.msra.mxu0 0.0
  %614 = vmatprep.subr.mxu0 0.0
  %615 = vmatpush1.msra.mxu0 0.0
  %616 = vmatprep.subr.mxu0 0.0
  %617 = vmatpush1.msra.mxu0 0.0
  %618 = vmatprep.subr.mxu0 0.0
  %619 = vmatpush1.msra.mxu0 0.0
  %620 = vmatprep.subr.mxu0 0.0
  %621 = vmatpush1.msra.mxu0 0.0
  %622 = vmatprep.subr.mxu0 0.0
  %623 = vmatpush1.msra.mxu0 0.0
  %624 = vmatprep.subr.mxu0 0.0
  %625 = vmatpush1.msra.mxu0 0.0
  %626 = vmatprep.subr.mxu0 0.0
  %627 = vmatpush1.msra.mxu0 0.0
  %628 = vmatprep.subr.mxu0 0.0
  %629 = vmatpush1.msra.mxu0 0.0
  %630 = vmatprep.subr.mxu0 0.0
  %631 = vmatpush1.msra.mxu0 0.0
  %632 = vmatprep.subr.mxu0 0.0
  %633 = vmatpush1.msra.mxu0 0.0
  %634 = vmatprep.subr.mxu0 0.0
  %635 = vmatpush1.msra.mxu0 0.0
  %636 = vmatprep.subr.mxu0 0.0
  %637 = vmatpush1.msra.mxu0 0.0
  %638 = vmatprep.subr.mxu0 0.0
  %639 = vmatpush1.msra.mxu0 0.0
  %640 = vmatprep.subr.mxu0 0.0
  %641 = vmatpush1.msra.mxu0 0.0
  %642 = vmatprep.subr.mxu0 0.0
  %643 = vmatpush1.msra.mxu0 0.0
  %644 = vmatprep.subr.mxu0 0.0
  %645 = vmatpush1.msra.mxu0 0.0
  %646 = vmatprep.mubr.f32.mxu0 0.0
  %647 = vmatmul.mubr.f32.gmra.mrb[0].mxu0 %v580
  %v648 = vpop.f32.mrb[0].mxu0
  %v649 = vadd.f32 %v38, %v648
  %v650 = vpop.f32.mrb[0].mxu0
  %651 = vdwg.mxu0
  %v652 = vld [vmem:[%s0 + $0x6] sm:$0x1]
  %v653 = vld [vmem:[%s0 + $0xe] sm:$0x1]
  %v654 = vld [vmem:[%s0 + $0x16] sm:$0x1]
  %v655 = vld [vmem:[%s0 + $0x1e] sm:$0x1]
  %v656 = vld [vmem:[%s0 + $0x26] sm:$0x1]
  %v657 = vld [vmem:[%s0 + $0x2e] sm:$0x1]
  %v658 = vld [vmem:[%s0 + $0x36] sm:$0x1]
  %v659 = vld [vmem:[%s0 + $0x3e] sm:$0x1]
  %v668 = vrot.slane %v653, 7
  %v669 = vsel %vm49, %v668, %v652
  %v670 = vrot.slane %v654, 6
  %v671 = vsel %vm52, %v670, %v669
  %v672 = vrot.slane %v655, 5
  %v673 = vsel %vm55, %v672, %v671
  %v674 = vrot.slane %v656, 4
  %v675 = vsel %vm58, %v674, %v673
  %v676 = vrot.slane %v657, 3
  %v677 = vsel %vm61, %v676, %v675
  %v678 = vrot.slane %v658, 2
  %v679 = vsel %vm64, %v678, %v677
  %v680 = vrot.slane %v659, 1
  %v681 = vsel %vm67, %v680, %v679
  %v682 = vsel %vm69, %v681, 0
  %684 = vmatprep.subr.mxu0 0.0
  %685 = vmatpush1.msra.mxu0 %v20
  %686 = vmatprep.subr.mxu0 0.0
  %687 = vmatpush1.msra.mxu0 %v21
  %688 = vmatprep.subr.mxu0 0.0
  %689 = vmatpush1.msra.mxu0 0.0
  %690 = vmatprep.subr.mxu0 0.0
  %691 = vmatpush1.msra.mxu0 0.0
  %692 = vmatprep.subr.mxu0 0.0
  %693 = vmatpush1.msra.mxu0 0.0
  %694 = vmatprep.subr.mxu0 0.0
  %695 = vmatpush1.msra.mxu0 0.0
  %696 = vmatprep.subr.mxu0 0.0
  %697 = vmatpush1.msra.mxu0 0.0
  %698 = vmatprep.subr.mxu0 0.0
  %699 = vmatpush1.msra.mxu0 0.0
  %700 = vmatprep.subr.mxu0 0.0
  %701 = vmatpush1.msra.mxu0 0.0
  %702 = vmatprep.subr.mxu0 0.0
  %703 = vmatpush1.msra.mxu0 0.0
  %704 = vmatprep.subr.mxu0 0.0
  %705 = vmatpush1.msra.mxu0 0.0
  %706 = vmatprep.subr.mxu0 0.0
  %707 = vmatpush1.msra.mxu0 0.0
  %708 = vmatprep.subr.mxu0 0.0
  %709 = vmatpush1.msra.mxu0 0.0
  %710 = vmatprep.subr.mxu0 0.0
  %711 = vmatpush1.msra.mxu0 0.0
  %712 = vmatprep.subr.mxu0 0.0
  %713 = vmatpush1.msra.mxu0 0.0
  %714 = vmatprep.subr.mxu0 0.0
  %715 = vmatpush1.msra.mxu0 0.0
  %716 = vmatprep.subr.mxu0 0.0
  %717 = vmatpush1.msra.mxu0 0.0
  %718 = vmatprep.subr.mxu0 0.0
  %719 = vmatpush1.msra.mxu0 0.0
  %720 = vmatprep.subr.mxu0 0.0
  %721 = vmatpush1.msra.mxu0 0.0
  %722 = vmatprep.subr.mxu0 0.0
  %723 = vmatpush1.msra.mxu0 0.0
  %724 = vmatprep.subr.mxu0 0.0
  %725 = vmatpush1.msra.mxu0 0.0
  %726 = vmatprep.subr.mxu0 0.0
  %727 = vmatpush1.msra.mxu0 0.0
  %728 = vmatprep.subr.mxu0 0.0
  %729 = vmatpush1.msra.mxu0 0.0
  %730 = vmatprep.subr.mxu0 0.0
  %731 = vmatpush1.msra.mxu0 0.0
  %732 = vmatprep.subr.mxu0 0.0
  %733 = vmatpush1.msra.mxu0 0.0
  %734 = vmatprep.subr.mxu0 0.0
  %735 = vmatpush1.msra.mxu0 0.0
  %736 = vmatprep.subr.mxu0 0.0
  %737 = vmatpush1.msra.mxu0 0.0
  %738 = vmatprep.subr.mxu0 0.0
  %739 = vmatpush1.msra.mxu0 0.0
  %740 = vmatprep.subr.mxu0 0.0
  %741 = vmatpush1.msra.mxu0 0.0
  %742 = vmatprep.subr.mxu0 0.0
  %743 = vmatpush1.msra.mxu0 0.0
  %744 = vmatprep.subr.mxu0 0.0
  %745 = vmatpush1.msra.mxu0 0.0
  %746 = vmatprep.subr.mxu0 0.0
  %747 = vmatpush1.msra.mxu0 0.0
  %748 = vmatprep.mubr.f32.mxu0 0.0
  %749 = vmatmul.mubr.f32.gmra.mrb[0].mxu0 %v682
  %v750 = vpop.f32.mrb[0].mxu0
  %v751 = vadd.f32 %v38, %v750
  %v752 = vpop.f32.mrb[0].mxu0
  %753 = vdwg.mxu0
  %v754 = vld [vmem:[%s0 + $0x7] sm:$0x1]
  %v755 = vld [vmem:[%s0 + $0xf] sm:$0x1]
  %v756 = vld [vmem:[%s0 + $0x17] sm:$0x1]
  %v757 = vld [vmem:[%s0 + $0x1f] sm:$0x1]
  %v758 = vld [vmem:[%s0 + $0x27] sm:$0x1]
  %v759 = vld [vmem:[%s0 + $0x2f] sm:$0x1]
  %v760 = vld [vmem:[%s0 + $0x37] sm:$0x1]
  %v761 = vld [vmem:[%s0 + $0x3f] sm:$0x1]
  %v770 = vrot.slane %v755, 7
  %v771 = vsel %vm49, %v770, %v754
  %v772 = vrot.slane %v756, 6
  %v773 = vsel %vm52, %v772, %v771
  %v774 = vrot.slane %v757, 5
  %v775 = vsel %vm55, %v774, %v773
  %v776 = vrot.slane %v758, 4
  %v777 = vsel %vm58, %v776, %v775
  %v778 = vrot.slane %v759, 3
  %v779 = vsel %vm61, %v778, %v777
  %v780 = vrot.slane %v760, 2
  %v781 = vsel %vm64, %v780, %v779
  %v782 = vrot.slane %v761, 1
  %v783 = vsel %vm67, %v782, %v781
  %v784 = vsel %vm69, %v783, 0
  %786 = vmatprep.subr.mxu0 0.0
  %787 = vmatpush1.msra.mxu0 %v20
  %788 = vmatprep.subr.mxu0 0.0
  %789 = vmatpush1.msra.mxu0 %v21
  %790 = vmatprep.subr.mxu0 0.0
  %791 = vmatpush1.msra.mxu0 0.0
  %792 = vmatprep.subr.mxu0 0.0
  %793 = vmatpush1.msra.mxu0 0.0
  %794 = vmatprep.subr.mxu0 0.0
  %795 = vmatpush1.msra.mxu0 0.0
  %796 = vmatprep.subr.mxu0 0.0
  %797 = vmatpush1.msra.mxu0 0.0
  %798 = vmatprep.subr.mxu0 0.0
  %799 = vmatpush1.msra.mxu0 0.0
  %800 = vmatprep.subr.mxu0 0.0
  %801 = vmatpush1.msra.mxu0 0.0
  %802 = vmatprep.subr.mxu0 0.0
  %803 = vmatpush1.msra.mxu0 0.0
  %804 = vmatprep.subr.mxu0 0.0
  %805 = vmatpush1.msra.mxu0 0.0
  %806 = vmatprep.subr.mxu0 0.0
  %807 = vmatpush1.msra.mxu0 0.0
  %808 = vmatprep.subr.mxu0 0.0
  %809 = vmatpush1.msra.mxu0 0.0
  %810 = vmatprep.subr.mxu0 0.0
  %811 = vmatpush1.msra.mxu0 0.0
  %812 = vmatprep.subr.mxu0 0.0
  %813 = vmatpush1.msra.mxu0 0.0
  %814 = vmatprep.subr.mxu0 0.0
  %815 = vmatpush1.msra.mxu0 0.0
  %816 = vmatprep.subr.mxu0 0.0
  %817 = vmatpush1.msra.mxu0 0.0
  %818 = vmatprep.subr.mxu0 0.0
  %819 = vmatpush1.msra.mxu0 0.0
  %820 = vmatprep.subr.mxu0 0.0
  %821 = vmatpush1.msra.mxu0 0.0
  %822 = vmatprep.subr.mxu0 0.0
  %823 = vmatpush1.msra.mxu0 0.0
  %824 = vmatprep.subr.mxu0 0.0
  %825 = vmatpush1.msra.mxu0 0.0
  %826 = vmatprep.subr.mxu0 0.0
  %827 = vmatpush1.msra.mxu0 0.0
  %828 = vmatprep.subr.mxu0 0.0
  %829 = vmatpush1.msra.mxu0 0.0
  %830 = vmatprep.subr.mxu0 0.0
  %831 = vmatpush1.msra.mxu0 0.0
  %832 = vmatprep.subr.mxu0 0.0
  %833 = vmatpush1.msra.mxu0 0.0
  %834 = vmatprep.subr.mxu0 0.0
  %835 = vmatpush1.msra.mxu0 0.0
  %836 = vmatprep.subr.mxu0 0.0
  %837 = vmatpush1.msra.mxu0 0.0
  %838 = vmatprep.subr.mxu0 0.0
  %839 = vmatpush1.msra.mxu0 0.0
  %840 = vmatprep.subr.mxu0 0.0
  %841 = vmatpush1.msra.mxu0 0.0
  %842 = vmatprep.subr.mxu0 0.0
  %843 = vmatpush1.msra.mxu0 0.0
  %844 = vmatprep.subr.mxu0 0.0
  %845 = vmatpush1.msra.mxu0 0.0
  %846 = vmatprep.subr.mxu0 0.0
  %847 = vmatpush1.msra.mxu0 0.0
  %848 = vmatprep.subr.mxu0 0.0
  %849 = vmatpush1.msra.mxu0 0.0
  %850 = vmatprep.mubr.f32.mxu0 0.0
  %851 = vmatmul.mubr.f32.gmra.mrb[0].mxu0 %v784
  %v852 = vpop.f32.mrb[0].mxu0
  %v853 = vadd.f32 %v38, %v852
  %v854 = vpop.f32.mrb[0].mxu0
  %855 = vdwg.mxu0
  %v857 = vlaneseq
  %v858 = vshrl.u32 %v857, 7
  %v859 = vsub.s32 0, %v858
  %v860 = vrot.slane %v25, %v859
  %v863 = vsel %vm69, 0.0, 0
  %865 = vmatprep.subr.mxu0 0.0
  %866 = vmatpush1.msra.mxu0 %v22
  %867 = vmatprep.subr.mxu0 0.0
  %868 = vmatpush1.msra.mxu0 %v23
  %869 = vmatprep.subr.mxu0 0.0
  %870 = vmatpush1.msra.mxu0 0.0
  %871 = vmatprep.subr.mxu0 0.0
  %872 = vmatpush1.msra.mxu0 0.0
  %873 = vmatprep.subr.mxu0 0.0
  %874 = vmatpush1.msra.mxu0 0.0
  %875 = vmatprep.subr.mxu0 0.0
  %876 = vmatpush1.msra.mxu0 0.0
  %877 = vmatprep.subr.mxu0 0.0
  %878 = vmatpush1.msra.mxu0 0.0
  %879 = vmatprep.subr.mxu0 0.0
  %880 = vmatpush1.msra.mxu0 0.0
  %881 = vmatprep.subr.mxu0 0.0
  %882 = vmatpush1.msra.mxu0 0.0
  %883 = vmatprep.subr.mxu0 0.0
  %884 = vmatpush1.msra.mxu0 0.0
  %885 = vmatprep.subr.mxu0 0.0
  %886 = vmatpush1.msra.mxu0 0.0
  %887 = vmatprep.subr.mxu0 0.0
  %888 = vmatpush1.msra.mxu0 0.0
  %889 = vmatprep.subr.mxu0 0.0
  %890 = vmatpush1.msra.mxu0 0.0
  %891 = vmatprep.subr.mxu0 0.0
  %892 = vmatpush1.msra.mxu0 0.0
  %893 = vmatprep.subr.mxu0 0.0
  %894 = vmatpush1.msra.mxu0 0.0
  %895 = vmatprep.subr.mxu0 0.0
  %896 = vmatpush1.msra.mxu0 0.0
  %897 = vmatprep.subr.mxu0 0.0
  %898 = vmatpush1.msra.mxu0 0.0
  %899 = vmatprep.subr.mxu0 0.0
  %900 = vmatpush1.msra.mxu0 0.0
  %901 = vmatprep.subr.mxu0 0.0
  %902 = vmatpush1.msra.mxu0 0.0
  %903 = vmatprep.subr.mxu0 0.0
  %904 = vmatpush1.msra.mxu0 0.0
  %905 = vmatprep.subr.mxu0 0.0
  %906 = vmatpush1.msra.mxu0 0.0
  %907 = vmatprep.subr.mxu0 0.0
  %908 = vmatpush1.msra.mxu0 0.0
  %909 = vmatprep.subr.mxu0 0.0
  %910 = vmatpush1.msra.mxu0 0.0
  %911 = vmatprep.subr.mxu0 0.0
  %912 = vmatpush1.msra.mxu0 0.0
  %913 = vmatprep.subr.mxu0 0.0
  %914 = vmatpush1.msra.mxu0 0.0
  %915 = vmatprep.subr.mxu0 0.0
  %916 = vmatpush1.msra.mxu0 0.0
  %917 = vmatprep.subr.mxu0 0.0
  %918 = vmatpush1.msra.mxu0 0.0
  %919 = vmatprep.subr.mxu0 0.0
  %920 = vmatpush1.msra.mxu0 0.0
  %921 = vmatprep.subr.mxu0 0.0
  %922 = vmatpush1.msra.mxu0 0.0
  %923 = vmatprep.subr.mxu0 0.0
  %924 = vmatpush1.msra.mxu0 0.0
  %925 = vmatprep.subr.mxu0 0.0
  %926 = vmatpush1.msra.mxu0 0.0
  %927 = vmatprep.subr.mxu0 0.0
  %928 = vmatpush1.msra.mxu0 0.0
  %929 = vmatprep.mubr.f32.mxu0 0.0
  %930 = vmatmul.mubr.f32.gmra.mrb[0].mxu0 %v863
  %v931 = vpop.f32.mrb[0].mxu0
  %v932 = vadd.f32 %v860, %v931
  %v933 = vpop.f32.mrb[0].mxu0
  %934 = vdwg.mxu0
  %v935 = vadd.f32 %v139, %v932
  %v936 = vxor.u32 %v935, 2147483648
  %v937 = vmul.f32 %v936, 1.442695
  %v938 = vpow.pop %v937
  %v939 = vadd.f32 %v938, 1.0
  %v940 = vrcp.pop %v939
  %v941 = vmul.f32 1.0, %v940
  %943 = vrot.lane.b32.xlu0 %v932, 112
  %v944 = vpop.permute.xlu0 %943
  %v946 = vmul.f32 %v941, %v944
  %948 = vrot.lane.b32.xlu0 %v946, 16
  %v949 = vpop.permute.xlu0 %948
  %v951 = vadd.f32 %v139, %v949
  %v952 = vtanh.pop %v951
  %v953 = vsub.f32 1.0, %v941
  %955 = vrot.lane.b32.xlu0 %v952, 120
  %v956 = vpop.permute.xlu0 %955
  %v958 = vmul.f32 %v953, %v956
  %v959 = vmul.f32 %v941, 0.0
  %v960 = vadd.f32 %v958, %v959
  %v962 = vcombine.high %v960, %v960
  %v964 = vunpack.c.l.s4 1966171168
  %v965 = vunpack.c.0.s8 %v964
  %v966 = vlaneseq
  %v967 = vshrl.u32 %v966, 7
  %v968 = vsub.s32 %v965, %v967
  %v969 = vrot.slane %v960, %v968
  %v971 = vunpack.c.l.s4 1966171168
  %v972 = vunpack.c.0.s8 %v971
  %v973 = vlaneseq
  %v974 = vshrl.u32 %v973, 7
  %v975 = vsub.s32 %v972, %v974
  %v976 = vrot.slane %v962, %v975
  %v977 = vcombine.high %v969, %v969
  %v978 = vcombine.high %v976, %v976
  %v980 = vunpack.c.l.s4 1966171168
  %v981 = vunpack.c.0.s8 %v980
  %v982 = vlaneseq
  %v983 = vshrl.u32 %v982, 7
  %v984 = vsub.s32 %v981, %v983
  %v985 = vrot.slane %v969, %v984
  %v987 = vunpack.c.l.s4 1966171168
  %v988 = vunpack.c.0.s8 %v987
  %v989 = vlaneseq
  %v990 = vshrl.u32 %v989, 7
  %v991 = vsub.s32 %v988, %v990
  %v992 = vrot.slane %v976, %v991
  %v994 = vunpack.c.l.s4 1966171168
  %v995 = vunpack.c.0.s8 %v994
  %v996 = vlaneseq
  %v997 = vshrl.u32 %v996, 7
  %v998 = vsub.s32 %v995, %v997
  %v999 = vrot.slane %v977, %v998
  %v1001 = vunpack.c.l.s4 1966171168
  %v1002 = vunpack.c.0.s8 %v1001
  %v1003 = vlaneseq
  %v1004 = vshrl.u32 %v1003, 7
  %v1005 = vsub.s32 %v1002, %v1004
  %v1006 = vrot.slane %v978, %v1005
  %v1007 = vcombine.high %v985, %v985
  %v1008 = vcombine.high %v992, %v992
  %v1009 = vcombine.high %v999, %v999
  %v1010 = vcombine.high %v1006, %v1006
  %v1011 = vlaneseq
  %v1012 = vshrl.u32 %v1011, 7
  %v1013 = vsub.s32 0, %v1012
  %v1014 = vrot.slane %v985, %v1013
  %v1015 = vlaneseq
  %v1016 = vshrl.u32 %v1015, 7
  %v1017 = vsub.s32 0, %v1016
  %v1018 = vrot.slane %v999, %v1017
  %v1019 = vlaneseq
  %v1020 = vshrl.u32 %v1019, 7
  %v1021 = vsub.s32 0, %v1020
  %v1022 = vrot.slane %v1007, %v1021
  %v1023 = vlaneseq
  %v1024 = vshrl.u32 %v1023, 7
  %v1025 = vsub.s32 0, %v1024
  %v1026 = vrot.slane %v1009, %v1025
  %v1027 = vlaneseq
  %v1028 = vshrl.u32 %v1027, 7
  %v1029 = vsub.s32 0, %v1028
  %v1030 = vrot.slane %v992, %v1029
  %v1031 = vlaneseq
  %v1032 = vshrl.u32 %v1031, 7
  %v1033 = vsub.s32 0, %v1032
  %v1034 = vrot.slane %v1006, %v1033
  %v1035 = vlaneseq
  %v1036 = vshrl.u32 %v1035, 7
  %v1037 = vsub.s32 0, %v1036
  %v1038 = vrot.slane %v1008, %v1037
  %v1039 = vlaneseq
  %v1040 = vshrl.u32 %v1039, 7
  %v1041 = vsub.s32 0, %v1040
  %v1042 = vrot.slane %v1010, %v1041
  %1043 = vrot.lane.b32.xlu0 %v1014, 120
  %v1044 = vpop.permute.xlu0 %1043
  %1045 = vrot.lane.b32.xlu0 %v1018, 120
  %v1046 = vpop.permute.xlu0 %1045
  %1047 = vrot.lane.b32.xlu0 %v1022, 120
  %v1048 = vpop.permute.xlu0 %1047
  %1049 = vrot.lane.b32.xlu0 %v1026, 120
  %v1050 = vpop.permute.xlu0 %1049
  %1051 = vrot.lane.b32.xlu0 %v1030, 120
  %v1052 = vpop.permute.xlu0 %1051
  %1053 = vrot.lane.b32.xlu0 %v1034, 120
  %v1054 = vpop.permute.xlu0 %1053
  %1055 = vrot.lane.b32.xlu0 %v1038, 120
  %v1056 = vpop.permute.xlu0 %1055
  %1057 = vrot.lane.b32.xlu0 %v1042, 120
  %v1058 = vpop.permute.xlu0 %1057
  %vm1067 = vcmask 57344
  %1068 = vst.msk [vmem:[%s5] sm:$0x1] %vm1067, %v1044
  %1069 = vst.msk [vmem:[%s5 + $0x8] sm:$0x1] %vm1067, %v1046
  %1070 = vst.msk [vmem:[%s5 + $0x10] sm:$0x1] %vm1067, %v1048
  %1071 = vst.msk [vmem:[%s5 + $0x18] sm:$0x1] %vm1067, %v1050
  %1072 = vst.msk [vmem:[%s5 + $0x20] sm:$0x1] %vm1067, %v1052
  %1073 = vst.msk [vmem:[%s5 + $0x28] sm:$0x1] %vm1067, %v1054
  %1074 = vst.msk [vmem:[%s5 + $0x30] sm:$0x1] %vm1067, %v1056
  %1075 = vst.msk [vmem:[%s5 + $0x38] sm:$0x1] %vm1067, %v1058
  %v1076 = vadd.f32 %v853, %v932
  %v1077 = vxor.u32 %v1076, 2147483648
  %v1078 = vmul.f32 %v1077, 1.442695
  %v1079 = vpow.pop %v1078
  %v1080 = vadd.f32 %v1079, 1.0
  %v1081 = vrcp.pop %v1080
  %v1082 = vmul.f32 1.0, %v1081
  %v1083 = vmul.f32 %v1082, %v944
  %1085 = vrot.lane.b32.xlu0 %v1083, 16
  %v1086 = vpop.permute.xlu0 %1085
  %v1088 = vadd.f32 %v853, %v1086
  %v1089 = vtanh.pop %v1088
  %v1090 = vsub.f32 1.0, %v1082
  %1092 = vrot.lane.b32.xlu0 %v1089, 120
  %v1093 = vpop.permute.xlu0 %1092
  %v1095 = vmul.f32 %v1090, %v1093
  %v1096 = vmul.f32 %v1082, 0.0
  %v1097 = vadd.f32 %v1095, %v1096
  %v1099 = vcombine.high %v1097, %v1097
  %v1101 = vunpack.c.l.s4 1966171168
  %v1102 = vunpack.c.0.s8 %v1101
  %v1103 = vlaneseq
  %v1104 = vshrl.u32 %v1103, 7
  %v1105 = vsub.s32 %v1102, %v1104
  %v1106 = vrot.slane %v1097, %v1105
  %v1108 = vunpack.c.l.s4 1966171168
  %v1109 = vunpack.c.0.s8 %v1108
  %v1110 = vlaneseq
  %v1111 = vshrl.u32 %v1110, 7
  %v1112 = vsub.s32 %v1109, %v1111
  %v1113 = vrot.slane %v1099, %v1112
  %v1114 = vcombine.high %v1106, %v1106
  %v1115 = vcombine.high %v1113, %v1113
  %v1117 = vunpack.c.l.s4 1966171168
  %v1118 = vunpack.c.0.s8 %v1117
  %v1119 = vlaneseq
  %v1120 = vshrl.u32 %v1119, 7
  %v1121 = vsub.s32 %v1118, %v1120
  %v1122 = vrot.slane %v1106, %v1121
  %v1124 = vunpack.c.l.s4 1966171168
  %v1125 = vunpack.c.0.s8 %v1124
  %v1126 = vlaneseq
  %v1127 = vshrl.u32 %v1126, 7
  %v1128 = vsub.s32 %v1125, %v1127
  %v1129 = vrot.slane %v1113, %v1128
  %v1131 = vunpack.c.l.s4 1966171168
  %v1132 = vunpack.c.0.s8 %v1131
  %v1133 = vlaneseq
  %v1134 = vshrl.u32 %v1133, 7
  %v1135 = vsub.s32 %v1132, %v1134
  %v1136 = vrot.slane %v1114, %v1135
  %v1138 = vunpack.c.l.s4 1966171168
  %v1139 = vunpack.c.0.s8 %v1138
  %v1140 = vlaneseq
  %v1141 = vshrl.u32 %v1140, 7
  %v1142 = vsub.s32 %v1139, %v1141
  %v1143 = vrot.slane %v1115, %v1142
  %v1144 = vcombine.high %v1122, %v1122
  %v1145 = vcombine.high %v1129, %v1129
  %v1146 = vcombine.high %v1136, %v1136
  %v1147 = vcombine.high %v1143, %v1143
  %v1148 = vlaneseq
  %v1149 = vshrl.u32 %v1148, 7
  %v1150 = vsub.s32 0, %v1149
  %v1151 = vrot.slane %v1122, %v1150
  %v1152 = vlaneseq
  %v1153 = vshrl.u32 %v1152, 7
  %v1154 = vsub.s32 0, %v1153
  %v1155 = vrot.slane %v1136, %v1154
  %v1156 = vlaneseq
  %v1157 = vshrl.u32 %v1156, 7
  %v1158 = vsub.s32 0, %v1157
  %v1159 = vrot.slane %v1144, %v1158
  %v1160 = vlaneseq
  %v1161 = vshrl.u32 %v1160, 7
  %v1162 = vsub.s32 0, %v1161
  %v1163 = vrot.slane %v1146, %v1162
  %v1164 = vlaneseq
  %v1165 = vshrl.u32 %v1164, 7
  %v1166 = vsub.s32 0, %v1165
  %v1167 = vrot.slane %v1129, %v1166
  %v1168 = vlaneseq
  %v1169 = vshrl.u32 %v1168, 7
  %v1170 = vsub.s32 0, %v1169
  %v1171 = vrot.slane %v1143, %v1170
  %v1172 = vlaneseq
  %v1173 = vshrl.u32 %v1172, 7
  %v1174 = vsub.s32 0, %v1173
  %v1175 = vrot.slane %v1145, %v1174
  %v1176 = vlaneseq
  %v1177 = vshrl.u32 %v1176, 7
  %v1178 = vsub.s32 0, %v1177
  %v1179 = vrot.slane %v1147, %v1178
  %1180 = vrot.lane.b32.xlu0 %v1151, 104
  %v1181 = vpop.permute.xlu0 %1180
  %1182 = vrot.lane.b32.xlu0 %v1155, 104
  %v1183 = vpop.permute.xlu0 %1182
  %1184 = vrot.lane.b32.xlu0 %v1159, 104
  %v1185 = vpop.permute.xlu0 %1184
  %1186 = vrot.lane.b32.xlu0 %v1163, 104
  %v1187 = vpop.permute.xlu0 %1186
  %1188 = vrot.lane.b32.xlu0 %v1167, 104
  %v1189 = vpop.permute.xlu0 %1188
  %1190 = vrot.lane.b32.xlu0 %v1171, 104
  %v1191 = vpop.permute.xlu0 %1190
  %1192 = vrot.lane.b32.xlu0 %v1175, 104
  %v1193 = vpop.permute.xlu0 %1192
  %1194 = vrot.lane.b32.xlu0 %v1179, 104
  %v1195 = vpop.permute.xlu0 %1194
  %vm1204 = vcmask 122944
  %1205 = vst.msk [vmem:[%s5 + $0x7] sm:$0x1] %vm1204, %v1181
  %1206 = vst.msk [vmem:[%s5 + $0xf] sm:$0x1] %vm1204, %v1183
  %1207 = vst.msk [vmem:[%s5 + $0x17] sm:$0x1] %vm1204, %v1185
  %1208 = vst.msk [vmem:[%s5 + $0x1f] sm:$0x1] %vm1204, %v1187
  %1209 = vst.msk [vmem:[%s5 + $0x27] sm:$0x1] %vm1204, %v1189
  %1210 = vst.msk [vmem:[%s5 + $0x2f] sm:$0x1] %vm1204, %v1191
  %1211 = vst.msk [vmem:[%s5 + $0x37] sm:$0x1] %vm1204, %v1193
  %1212 = vst.msk [vmem:[%s5 + $0x3f] sm:$0x1] %vm1204, %v1195
  %1213 = vrot.lane.b32.xlu0 %v960, 120
  %v1214 = vpop.permute.xlu0 %1213
  %1216 = vrot.lane.b32.xlu0 %v1097, 104
  %v1217 = vpop.permute.xlu0 %1216
  %vm1219 = vcmask 64512
  %v1220 = vsel %vm1219, %v1214, %v1217
  %v1222 = vsel %vm69, %v1220, 0
  %1224 = vmatprep.subr.mxu0 0.0
  %1225 = vmatpush1.msra.mxu0 %v22
  %1226 = vmatprep.subr.mxu0 0.0
  %1227 = vmatpush1.msra.mxu0 %v23
  %1228 = vmatprep.subr.mxu0 0.0
  %1229 = vmatpush1.msra.mxu0 0.0
  %1230 = vmatprep.subr.mxu0 0.0
  %1231 = vmatpush1.msra.mxu0 0.0
  %1232 = vmatprep.subr.mxu0 0.0
  %1233 = vmatpush1.msra.mxu0 0.0
  %1234 = vmatprep.subr.mxu0 0.0
  %1235 = vmatpush1.msra.mxu0 0.0
  %1236 = vmatprep.subr.mxu0 0.0
  %1237 = vmatpush1.msra.mxu0 0.0
  %1238 = vmatprep.subr.mxu0 0.0
  %1239 = vmatpush1.msra.mxu0 0.0
  %1240 = vmatprep.subr.mxu0 0.0
  %1241 = vmatpush1.msra.mxu0 0.0
  %1242 = vmatprep.subr.mxu0 0.0
  %1243 = vmatpush1.msra.mxu0 0.0
  %1244 = vmatprep.subr.mxu0 0.0
  %1245 = vmatpush1.msra.mxu0 0.0
  %1246 = vmatprep.subr.mxu0 0.0
  %1247 = vmatpush1.msra.mxu0 0.0
  %1248 = vmatprep.subr.mxu0 0.0
  %1249 = vmatpush1.msra.mxu0 0.0
  %1250 = vmatprep.subr.mxu0 0.0
  %1251 = vmatpush1.msra.mxu0 0.0
  %1252 = vmatprep.subr.mxu0 0.0
  %1253 = vmatpush1.msra.mxu0 0.0
  %1254 = vmatprep.subr.mxu0 0.0
  %1255 = vmatpush1.msra.mxu0 0.0
  %1256 = vmatprep.subr.mxu0 0.0
  %1257 = vmatpush1.msra.mxu0 0.0
  %1258 = vmatprep.subr.mxu0 0.0
  %1259 = vmatpush1.msra.mxu0 0.0
  %1260 = vmatprep.subr.mxu0 0.0
  %1261 = vmatpush1.msra.mxu0 0.0
  %1262 = vmatprep.subr.mxu0 0.0
  %1263 = vmatpush1.msra.mxu0 0.0
  %1264 = vmatprep.subr.mxu0 0.0
  %1265 = vmatpush1.msra.mxu0 0.0
  %1266 = vmatprep.subr.mxu0 0.0
  %1267 = vmatpush1.msra.mxu0 0.0
  %1268 = vmatprep.subr.mxu0 0.0
  %1269 = vmatpush1.msra.mxu0 0.0
  %1270 = vmatprep.subr.mxu0 0.0
  %1271 = vmatpush1.msra.mxu0 0.0
  %1272 = vmatprep.subr.mxu0 0.0
  %1273 = vmatpush1.msra.mxu0 0.0
  %1274 = vmatprep.subr.mxu0 0.0
  %1275 = vmatpush1.msra.mxu0 0.0
  %1276 = vmatprep.subr.mxu0 0.0
  %1277 = vmatpush1.msra.mxu0 0.0
  %1278 = vmatprep.subr.mxu0 0.0
  %1279 = vmatpush1.msra.mxu0 0.0
  %1280 = vmatprep.subr.mxu0 0.0
  %1281 = vmatpush1.msra.mxu0 0.0
  %1282 = vmatprep.subr.mxu0 0.0
  %1283 = vmatpush1.msra.mxu0 0.0
  %1284 = vmatprep.subr.mxu0 0.0
  %1285 = vmatpush1.msra.mxu0 0.0
  %1286 = vmatprep.subr.mxu0 0.0
  %1287 = vmatpush1.msra.mxu0 0.0
  %1288 = vmatprep.mubr.f32.mxu0 0.0
  %1289 = vmatmul.mubr.f32.gmra.mrb[0].mxu0 %v1222
  %v1290 = vpop.f32.mrb[0].mxu0
  %v1291 = vadd.f32 %v860, %v1290
  %v1292 = vpop.f32.mrb[0].mxu0
  %1293 = vdwg.mxu0
  %v1294 = vadd.f32 %v241, %v1291
  %v1295 = vxor.u32 %v1294, 2147483648
  %v1296 = vmul.f32 %v1295, 1.442695
  %v1297 = vpow.pop %v1296
  %v1298 = vadd.f32 %v1297, 1.0
  %v1299 = vrcp.pop %v1298
  %v1300 = vmul.f32 1.0, %v1299
  %1302 = vrot.lane.b32.xlu0 %v1291, 112
  %v1303 = vpop.permute.xlu0 %1302
  %v1305 = vmul.f32 %v1300, %v1303
  %1307 = vrot.lane.b32.xlu0 %v1305, 16
  %v1308 = vpop.permute.xlu0 %1307
  %v1310 = vadd.f32 %v241, %v1308
  %v1311 = vtanh.pop %v1310
  %v1312 = vsub.f32 1.0, %v1300
  %1314 = vrot.lane.b32.xlu0 %v1311, 120
  %v1315 = vpop.permute.xlu0 %1314
  %v1317 = vmul.f32 %v1312, %v1315
  %v1318 = vmul.f32 %v1300, %v960
  %v1319 = vadd.f32 %v1317, %v1318
  %v1321 = vcombine.high %v1319, %v1319
  %v1323 = vunpack.c.l.s4 1966171168
  %v1324 = vunpack.c.0.s8 %v1323
  %v1325 = vlaneseq
  %v1326 = vshrl.u32 %v1325, 7
  %v1327 = vsub.s32 %v1324, %v1326
  %v1328 = vrot.slane %v1319, %v1327
  %v1330 = vunpack.c.l.s4 1966171168
  %v1331 = vunpack.c.0.s8 %v1330
  %v1332 = vlaneseq
  %v1333 = vshrl.u32 %v1332, 7
  %v1334 = vsub.s32 %v1331, %v1333
  %v1335 = vrot.slane %v1321, %v1334
  %v1336 = vcombine.high %v1328, %v1328
  %v1337 = vcombine.high %v1335, %v1335
  %v1339 = vunpack.c.l.s4 1966171168
  %v1340 = vunpack.c.0.s8 %v1339
  %v1341 = vlaneseq
  %v1342 = vshrl.u32 %v1341, 7
  %v1343 = vsub.s32 %v1340, %v1342
  %v1344 = vrot.slane %v1328, %v1343
  %v1346 = vunpack.c.l.s4 1966171168
  %v1347 = vunpack.c.0.s8 %v1346
  %v1348 = vlaneseq
  %v1349 = vshrl.u32 %v1348, 7
  %v1350 = vsub.s32 %v1347, %v1349
  %v1351 = vrot.slane %v1335, %v1350
  %v1353 = vunpack.c.l.s4 1966171168
  %v1354 = vunpack.c.0.s8 %v1353
  %v1355 = vlaneseq
  %v1356 = vshrl.u32 %v1355, 7
  %v1357 = vsub.s32 %v1354, %v1356
  %v1358 = vrot.slane %v1336, %v1357
  %v1360 = vunpack.c.l.s4 1966171168
  %v1361 = vunpack.c.0.s8 %v1360
  %v1362 = vlaneseq
  %v1363 = vshrl.u32 %v1362, 7
  %v1364 = vsub.s32 %v1361, %v1363
  %v1365 = vrot.slane %v1337, %v1364
  %v1366 = vcombine.high %v1344, %v1344
  %v1367 = vcombine.high %v1351, %v1351
  %v1368 = vcombine.high %v1358, %v1358
  %v1369 = vcombine.high %v1365, %v1365
  %v1370 = vlaneseq
  %v1371 = vshrl.u32 %v1370, 7
  %v1372 = vsub.s32 0, %v1371
  %v1373 = vrot.slane %v1344, %v1372
  %v1374 = vlaneseq
  %v1375 = vshrl.u32 %v1374, 7
  %v1376 = vsub.s32 0, %v1375
  %v1377 = vrot.slane %v1358, %v1376
  %v1378 = vlaneseq
  %v1379 = vshrl.u32 %v1378, 7
  %v1380 = vsub.s32 0, %v1379
  %v1381 = vrot.slane %v1366, %v1380
  %v1382 = vlaneseq
  %v1383 = vshrl.u32 %v1382, 7
  %v1384 = vsub.s32 0, %v1383
  %v1385 = vrot.slane %v1368, %v1384
  %v1386 = vlaneseq
  %v1387 = vshrl.u32 %v1386, 7
  %v1388 = vsub.s32 0, %v1387
  %v1389 = vrot.slane %v1351, %v1388
  %v1390 = vlaneseq
  %v1391 = vshrl.u32 %v1390, 7
  %v1392 = vsub.s32 0, %v1391
  %v1393 = vrot.slane %v1365, %v1392
  %v1394 = vlaneseq
  %v1395 = vshrl.u32 %v1394, 7
  %v1396 = vsub.s32 0, %v1395
  %v1397 = vrot.slane %v1367, %v1396
  %v1398 = vlaneseq
  %v1399 = vshrl.u32 %v1398, 7
  %v1400 = vsub.s32 0, %v1399
  %v1401 = vrot.slane %v1369, %v1400
  %1402 = vrot.lane.b32.xlu0 %v1373, 120
  %v1403 = vpop.permute.xlu0 %1402
  %1404 = vrot.lane.b32.xlu0 %v1377, 120
  %v1405 = vpop.permute.xlu0 %1404
  %1406 = vrot.lane.b32.xlu0 %v1381, 120
  %v1407 = vpop.permute.xlu0 %1406
  %1408 = vrot.lane.b32.xlu0 %v1385, 120
  %v1409 = vpop.permute.xlu0 %1408
  %1410 = vrot.lane.b32.xlu0 %v1389, 120
  %v1411 = vpop.permute.xlu0 %1410
  %1412 = vrot.lane.b32.xlu0 %v1393, 120
  %v1413 = vpop.permute.xlu0 %1412
  %1414 = vrot.lane.b32.xlu0 %v1397, 120
  %v1415 = vpop.permute.xlu0 %1414
  %1416 = vrot.lane.b32.xlu0 %v1401, 120
  %v1417 = vpop.permute.xlu0 %1416
  %1426 = vst.msk [vmem:[%s5 + $0x1] sm:$0x1] %vm1067, %v1403
  %1427 = vst.msk [vmem:[%s5 + $0x9] sm:$0x1] %vm1067, %v1405
  %1428 = vst.msk [vmem:[%s5 + $0x11] sm:$0x1] %vm1067, %v1407
  %1429 = vst.msk [vmem:[%s5 + $0x19] sm:$0x1] %vm1067, %v1409
  %1430 = vst.msk [vmem:[%s5 + $0x21] sm:$0x1] %vm1067, %v1411
  %1431 = vst.msk [vmem:[%s5 + $0x29] sm:$0x1] %vm1067, %v1413
  %1432 = vst.msk [vmem:[%s5 + $0x31] sm:$0x1] %vm1067, %v1415
  %1433 = vst.msk [vmem:[%s5 + $0x39] sm:$0x1] %vm1067, %v1417
  %v1434 = vadd.f32 %v751, %v1291
  %v1435 = vxor.u32 %v1434, 2147483648
  %v1436 = vmul.f32 %v1435, 1.442695
  %v1437 = vpow.pop %v1436
  %v1438 = vadd.f32 %v1437, 1.0
  %v1439 = vrcp.pop %v1438
  %v1440 = vmul.f32 1.0, %v1439
  %v1441 = vmul.f32 %v1440, %v1303
  %1443 = vrot.lane.b32.xlu0 %v1441, 16
  %v1444 = vpop.permute.xlu0 %1443
  %v1446 = vadd.f32 %v751, %v1444
  %v1447 = vtanh.pop %v1446
  %v1448 = vsub.f32 1.0, %v1440
  %1450 = vrot.lane.b32.xlu0 %v1447, 120
  %v1451 = vpop.permute.xlu0 %1450
  %v1453 = vmul.f32 %v1448, %v1451
  %v1454 = vmul.f32 %v1440, %v1097
  %v1455 = vadd.f32 %v1453, %v1454
  %v1457 = vcombine.high %v1455, %v1455
  %v1459 = vunpack.c.l.s4 1966171168
  %v1460 = vunpack.c.0.s8 %v1459
  %v1461 = vlaneseq
  %v1462 = vshrl.u32 %v1461, 7
  %v1463 = vsub.s32 %v1460, %v1462
  %v1464 = vrot.slane %v1455, %v1463
  %v1466 = vunpack.c.l.s4 1966171168
  %v1467 = vunpack.c.0.s8 %v1466
  %v1468 = vlaneseq
  %v1469 = vshrl.u32 %v1468, 7
  %v1470 = vsub.s32 %v1467, %v1469
  %v1471 = vrot.slane %v1457, %v1470
  %v1472 = vcombine.high %v1464, %v1464
  %v1473 = vcombine.high %v1471, %v1471
  %v1475 = vunpack.c.l.s4 1966171168
  %v1476 = vunpack.c.0.s8 %v1475
  %v1477 = vlaneseq
  %v1478 = vshrl.u32 %v1477, 7
  %v1479 = vsub.s32 %v1476, %v1478
  %v1480 = vrot.slane %v1464, %v1479
  %v1482 = vunpack.c.l.s4 1966171168
  %v1483 = vunpack.c.0.s8 %v1482
  %v1484 = vlaneseq
  %v1485 = vshrl.u32 %v1484, 7
  %v1486 = vsub.s32 %v1483, %v1485
  %v1487 = vrot.slane %v1471, %v1486
  %v1489 = vunpack.c.l.s4 1966171168
  %v1490 = vunpack.c.0.s8 %v1489
  %v1491 = vlaneseq
  %v1492 = vshrl.u32 %v1491, 7
  %v1493 = vsub.s32 %v1490, %v1492
  %v1494 = vrot.slane %v1472, %v1493
  %v1496 = vunpack.c.l.s4 1966171168
  %v1497 = vunpack.c.0.s8 %v1496
  %v1498 = vlaneseq
  %v1499 = vshrl.u32 %v1498, 7
  %v1500 = vsub.s32 %v1497, %v1499
  %v1501 = vrot.slane %v1473, %v1500
  %v1502 = vcombine.high %v1480, %v1480
  %v1503 = vcombine.high %v1487, %v1487
  %v1504 = vcombine.high %v1494, %v1494
  %v1505 = vcombine.high %v1501, %v1501
  %v1506 = vlaneseq
  %v1507 = vshrl.u32 %v1506, 7
  %v1508 = vsub.s32 0, %v1507
  %v1509 = vrot.slane %v1480, %v1508
  %v1510 = vlaneseq
  %v1511 = vshrl.u32 %v1510, 7
  %v1512 = vsub.s32 0, %v1511
  %v1513 = vrot.slane %v1494, %v1512
  %v1514 = vlaneseq
  %v1515 = vshrl.u32 %v1514, 7
  %v1516 = vsub.s32 0, %v1515
  %v1517 = vrot.slane %v1502, %v1516
  %v1518 = vlaneseq
  %v1519 = vshrl.u32 %v1518, 7
  %v1520 = vsub.s32 0, %v1519
  %v1521 = vrot.slane %v1504, %v1520
  %v1522 = vlaneseq
  %v1523 = vshrl.u32 %v1522, 7
  %v1524 = vsub.s32 0, %v1523
  %v1525 = vrot.slane %v1487, %v1524
  %v1526 = vlaneseq
  %v1527 = vshrl.u32 %v1526, 7
  %v1528 = vsub.s32 0, %v1527
  %v1529 = vrot.slane %v1501, %v1528
  %v1530 = vlaneseq
  %v1531 = vshrl.u32 %v1530, 7
  %v1532 = vsub.s32 0, %v1531
  %v1533 = vrot.slane %v1503, %v1532
  %v1534 = vlaneseq
  %v1535 = vshrl.u32 %v1534, 7
  %v1536 = vsub.s32 0, %v1535
  %v1537 = vrot.slane %v1505, %v1536
  %1538 = vrot.lane.b32.xlu0 %v1509, 104
  %v1539 = vpop.permute.xlu0 %1538
  %1540 = vrot.lane.b32.xlu0 %v1513, 104
  %v1541 = vpop.permute.xlu0 %1540
  %1542 = vrot.lane.b32.xlu0 %v1517, 104
  %v1543 = vpop.permute.xlu0 %1542
  %1544 = vrot.lane.b32.xlu0 %v1521, 104
  %v1545 = vpop.permute.xlu0 %1544
  %1546 = vrot.lane.b32.xlu0 %v1525, 104
  %v1547 = vpop.permute.xlu0 %1546
  %1548 = vrot.lane.b32.xlu0 %v1529, 104
  %v1549 = vpop.permute.xlu0 %1548
  %1550 = vrot.lane.b32.xlu0 %v1533, 104
  %v1551 = vpop.permute.xlu0 %1550
  %1552 = vrot.lane.b32.xlu0 %v1537, 104
  %v1553 = vpop.permute.xlu0 %1552
  %1562 = vst.msk [vmem:[%s5 + $0x6] sm:$0x1] %vm1204, %v1539
  %1563 = vst.msk [vmem:[%s5 + $0xe] sm:$0x1] %vm1204, %v1541
  %1564 = vst.msk [vmem:[%s5 + $0x16] sm:$0x1] %vm1204, %v1543
  %1565 = vst.msk [vmem:[%s5 + $0x1e] sm:$0x1] %vm1204, %v1545
  %1566 = vst.msk [vmem:[%s5 + $0x26] sm:$0x1] %vm1204, %v1547
  %1567 = vst.msk [vmem:[%s5 + $0x2e] sm:$0x1] %vm1204, %v1549
  %1568 = vst.msk [vmem:[%s5 + $0x36] sm:$0x1] %vm1204, %v1551
  %1569 = vst.msk [vmem:[%s5 + $0x3e] sm:$0x1] %vm1204, %v1553
  %1570 = vrot.lane.b32.xlu0 %v1319, 120
  %v1571 = vpop.permute.xlu0 %1570
  %1573 = vrot.lane.b32.xlu0 %v1455, 104
  %v1574 = vpop.permute.xlu0 %1573
  %v1576 = vsel %vm1219, %v1571, %v1574
  %v1578 = vsel %vm69, %v1576, 0
  %1580 = vmatprep.subr.mxu0 0.0
  %1581 = vmatpush1.msra.mxu0 %v22
  %1582 = vmatprep.subr.mxu0 0.0
  %1583 = vmatpush1.msra.mxu0 %v23
  %1584 = vmatprep.subr.mxu0 0.0
  %1585 = vmatpush1.msra.mxu0 0.0
  %1586 = vmatprep.subr.mxu0 0.0
  %1587 = vmatpush1.msra.mxu0 0.0
  %1588 = vmatprep.subr.mxu0 0.0
  %1589 = vmatpush1.msra.mxu0 0.0
  %1590 = vmatprep.subr.mxu0 0.0
  %1591 = vmatpush1.msra.mxu0 0.0
  %1592 = vmatprep.subr.mxu0 0.0
  %1593 = vmatpush1.msra.mxu0 0.0
  %1594 = vmatprep.subr.mxu0 0.0
  %1595 = vmatpush1.msra.mxu0 0.0
  %1596 = vmatprep.subr.mxu0 0.0
  %1597 = vmatpush1.msra.mxu0 0.0
  %1598 = vmatprep.subr.mxu0 0.0
  %1599 = vmatpush1.msra.mxu0 0.0
  %1600 = vmatprep.subr.mxu0 0.0
  %1601 = vmatpush1.msra.mxu0 0.0
  %1602 = vmatprep.subr.mxu0 0.0
  %1603 = vmatpush1.msra.mxu0 0.0
  %1604 = vmatprep.subr.mxu0 0.0
  %1605 = vmatpush1.msra.mxu0 0.0
  %1606 = vmatprep.subr.mxu0 0.0
  %1607 = vmatpush1.msra.mxu0 0.0
  %1608 = vmatprep.subr.mxu0 0.0
  %1609 = vmatpush1.msra.mxu0 0.0
  %1610 = vmatprep.subr.mxu0 0.0
  %1611 = vmatpush1.msra.mxu0 0.0
  %1612 = vmatprep.subr.mxu0 0.0
  %1613 = vmatpush1.msra.mxu0 0.0
  %1614 = vmatprep.subr.mxu0 0.0
  %1615 = vmatpush1.msra.mxu0 0.0
  %1616 = vmatprep.subr.mxu0 0.0
  %1617 = vmatpush1.msra.mxu0 0.0
  %1618 = vmatprep.subr.mxu0 0.0
  %1619 = vmatpush1.msra.mxu0 0.0
  %1620 = vmatprep.subr.mxu0 0.0
  %1621 = vmatpush1.msra.mxu0 0.0
  %1622 = vmatprep.subr.mxu0 0.0
  %1623 = vmatpush1.msra.mxu0 0.0
  %1624 = vmatprep.subr.mxu0 0.0
  %1625 = vmatpush1.msra.mxu0 0.0
  %1626 = vmatprep.subr.mxu0 0.0
  %1627 = vmatpush1.msra.mxu0 0.0
  %1628 = vmatprep.subr.mxu0 0.0
  %1629 = vmatpush1.msra.mxu0 0.0
  %1630 = vmatprep.subr.mxu0 0.0
  %1631 = vmatpush1.msra.mxu0 0.0
  %1632 = vmatprep.subr.mxu0 0.0
  %1633 = vmatpush1.msra.mxu0 0.0
  %1634 = vmatprep.subr.mxu0 0.0
  %1635 = vmatpush1.msra.mxu0 0.0
  %1636 = vmatprep.subr.mxu0 0.0
  %1637 = vmatpush1.msra.mxu0 0.0
  %1638 = vmatprep.subr.mxu0 0.0
  %1639 = vmatpush1.msra.mxu0 0.0
  %1640 = vmatprep.subr.mxu0 0.0
  %1641 = vmatpush1.msra.mxu0 0.0
  %1642 = vmatprep.subr.mxu0 0.0
  %1643 = vmatpush1.msra.mxu0 0.0
  %1644 = vmatprep.mubr.f32.mxu0 0.0
  %1645 = vmatmul.mubr.f32.gmra.mrb[0].mxu0 %v1578
  %v1646 = vpop.f32.mrb[0].mxu0
  %v1647 = vadd.f32 %v860, %v1646
  %v1648 = vpop.f32.mrb[0].mxu0
  %1649 = vdwg.mxu0
  %v1650 = vadd.f32 %v343, %v1647
  %v1651 = vxor.u32 %v1650, 2147483648
  %v1652 = vmul.f32 %v1651, 1.442695
  %v1653 = vpow.pop %v1652
  %v1654 = vadd.f32 %v1653, 1.0
  %v1655 = vrcp.pop %v1654
  %v1656 = vmul.f32 1.0, %v1655
  %1658 = vrot.lane.b32.xlu0 %v1647, 112
  %v1659 = vpop.permute.xlu0 %1658
  %v1661 = vmul.f32 %v1656, %v1659
  %1663 = vrot.lane.b32.xlu0 %v1661, 16
  %v1664 = vpop.permute.xlu0 %1663
  %v1666 = vadd.f32 %v343, %v1664
  %v1667 = vtanh.pop %v1666
  %v1668 = vsub.f32 1.0, %v1656
  %1670 = vrot.lane.b32.xlu0 %v1667, 120
  %v1671 = vpop.permute.xlu0 %1670
  %v1673 = vmul.f32 %v1668, %v1671
  %v1674 = vmul.f32 %v1656, %v1319
  %v1675 = vadd.f32 %v1673, %v1674
  %v1677 = vcombine.high %v1675, %v1675
  %v1679 = vunpack.c.l.s4 1966171168
  %v1680 = vunpack.c.0.s8 %v1679
  %v1681 = vlaneseq
  %v1682 = vshrl.u32 %v1681, 7
  %v1683 = vsub.s32 %v1680, %v1682
  %v1684 = vrot.slane %v1675, %v1683
  %v1686 = vunpack.c.l.s4 1966171168
  %v1687 = vunpack.c.0.s8 %v1686
  %v1688 = vlaneseq
  %v1689 = vshrl.u32 %v1688, 7
  %v1690 = vsub.s32 %v1687, %v1689
  %v1691 = vrot.slane %v1677, %v1690
  %v1692 = vcombine.high %v1684, %v1684
  %v1693 = vcombine.high %v1691, %v1691
  %v1695 = vunpack.c.l.s4 1966171168
  %v1696 = vunpack.c.0.s8 %v1695
  %v1697 = vlaneseq
  %v1698 = vshrl.u32 %v1697, 7
  %v1699 = vsub.s32 %v1696, %v1698
  %v1700 = vrot.slane %v1684, %v1699
  %v1702 = vunpack.c.l.s4 1966171168
  %v1703 = vunpack.c.0.s8 %v1702
  %v1704 = vlaneseq
  %v1705 = vshrl.u32 %v1704, 7
  %v1706 = vsub.s32 %v1703, %v1705
  %v1707 = vrot.slane %v1691, %v1706
  %v1709 = vunpack.c.l.s4 1966171168
  %v1710 = vunpack.c.0.s8 %v1709
  %v1711 = vlaneseq
  %v1712 = vshrl.u32 %v1711, 7
  %v1713 = vsub.s32 %v1710, %v1712
  %v1714 = vrot.slane %v1692, %v1713
  %v1716 = vunpack.c.l.s4 1966171168
  %v1717 = vunpack.c.0.s8 %v1716
  %v1718 = vlaneseq
  %v1719 = vshrl.u32 %v1718, 7
  %v1720 = vsub.s32 %v1717, %v1719
  %v1721 = vrot.slane %v1693, %v1720
  %v1722 = vcombine.high %v1700, %v1700
  %v1723 = vcombine.high %v1707, %v1707
  %v1724 = vcombine.high %v1714, %v1714
  %v1725 = vcombine.high %v1721, %v1721
  %v1726 = vlaneseq
  %v1727 = vshrl.u32 %v1726, 7
  %v1728 = vsub.s32 0, %v1727
  %v1729 = vrot.slane %v1700, %v1728
  %v1730 = vlaneseq
  %v1731 = vshrl.u32 %v1730, 7
  %v1732 = vsub.s32 0, %v1731
  %v1733 = vrot.slane %v1714, %v1732
  %v1734 = vlaneseq
  %v1735 = vshrl.u32 %v1734, 7
  %v1736 = vsub.s32 0, %v1735
  %v1737 = vrot.slane %v1722, %v1736
  %v1738 = vlaneseq
  %v1739 = vshrl.u32 %v1738, 7
  %v1740 = vsub.s32 0, %v1739
  %v1741 = vrot.slane %v1724, %v1740
  %v1742 = vlaneseq
  %v1743 = vshrl.u32 %v1742, 7
  %v1744 = vsub.s32 0, %v1743
  %v1745 = vrot.slane %v1707, %v1744
  %v1746 = vlaneseq
  %v1747 = vshrl.u32 %v1746, 7
  %v1748 = vsub.s32 0, %v1747
  %v1749 = vrot.slane %v1721, %v1748
  %v1750 = vlaneseq
  %v1751 = vshrl.u32 %v1750, 7
  %v1752 = vsub.s32 0, %v1751
  %v1753 = vrot.slane %v1723, %v1752
  %v1754 = vlaneseq
  %v1755 = vshrl.u32 %v1754, 7
  %v1756 = vsub.s32 0, %v1755
  %v1757 = vrot.slane %v1725, %v1756
  %1758 = vrot.lane.b32.xlu0 %v1729, 120
  %v1759 = vpop.permute.xlu0 %1758
  %1760 = vrot.lane.b32.xlu0 %v1733, 120
  %v1761 = vpop.permute.xlu0 %1760
  %1762 = vrot.lane.b32.xlu0 %v1737, 120
  %v1763 = vpop.permute.xlu0 %1762
  %1764 = vrot.lane.b32.xlu0 %v1741, 120
  %v1765 = vpop.permute.xlu0 %1764
  %1766 = vrot.lane.b32.xlu0 %v1745, 120
  %v1767 = vpop.permute.xlu0 %1766
  %1768 = vrot.lane.b32.xlu0 %v1749, 120
  %v1769 = vpop.permute.xlu0 %1768
  %1770 = vrot.lane.b32.xlu0 %v1753, 120
  %v1771 = vpop.permute.xlu0 %1770
  %1772 = vrot.lane.b32.xlu0 %v1757, 120
  %v1773 = vpop.permute.xlu0 %1772
  %1782 = vst.msk [vmem:[%s5 + $0x2] sm:$0x1] %vm1067, %v1759
  %1783 = vst.msk [vmem:[%s5 + $0xa] sm:$0x1] %vm1067, %v1761
  %1784 = vst.msk [vmem:[%s5 + $0x12] sm:$0x1] %vm1067, %v1763
  %1785 = vst.msk [vmem:[%s5 + $0x1a] sm:$0x1] %vm1067, %v1765
  %1786 = vst.msk [vmem:[%s5 + $0x22] sm:$0x1] %vm1067, %v1767
  %1787 = vst.msk [vmem:[%s5 + $0x2a] sm:$0x1] %vm1067, %v1769
  %1788 = vst.msk [vmem:[%s5 + $0x32] sm:$0x1] %vm1067, %v1771
  %1789 = vst.msk [vmem:[%s5 + $0x3a] sm:$0x1] %vm1067, %v1773
  %v1790 = vadd.f32 %v649, %v1647
  %v1791 = vxor.u32 %v1790, 2147483648
  %v1792 = vmul.f32 %v1791, 1.442695
  %v1793 = vpow.pop %v1792
  %v1794 = vadd.f32 %v1793, 1.0
  %v1795 = vrcp.pop %v1794
  %v1796 = vmul.f32 1.0, %v1795
  %v1797 = vmul.f32 %v1796, %v1659
  %1799 = vrot.lane.b32.xlu0 %v1797, 16
  %v1800 = vpop.permute.xlu0 %1799
  %v1802 = vadd.f32 %v649, %v1800
  %v1803 = vtanh.pop %v1802
  %v1804 = vsub.f32 1.0, %v1796
  %1806 = vrot.lane.b32.xlu0 %v1803, 120
  %v1807 = vpop.permute.xlu0 %1806
  %v1809 = vmul.f32 %v1804, %v1807
  %v1810 = vmul.f32 %v1796, %v1455
  %v1811 = vadd.f32 %v1809, %v1810
  %v1813 = vcombine.high %v1811, %v1811
  %v1815 = vunpack.c.l.s4 1966171168
  %v1816 = vunpack.c.0.s8 %v1815
  %v1817 = vlaneseq
  %v1818 = vshrl.u32 %v1817, 7
  %v1819 = vsub.s32 %v1816, %v1818
  %v1820 = vrot.slane %v1811, %v1819
  %v1822 = vunpack.c.l.s4 1966171168
  %v1823 = vunpack.c.0.s8 %v1822
  %v1824 = vlaneseq
  %v1825 = vshrl.u32 %v1824, 7
  %v1826 = vsub.s32 %v1823, %v1825
  %v1827 = vrot.slane %v1813, %v1826
  %v1828 = vcombine.high %v1820, %v1820
  %v1829 = vcombine.high %v1827, %v1827
  %v1831 = vunpack.c.l.s4 1966171168
  %v1832 = vunpack.c.0.s8 %v1831
  %v1833 = vlaneseq
  %v1834 = vshrl.u32 %v1833, 7
  %v1835 = vsub.s32 %v1832, %v1834
  %v1836 = vrot.slane %v1820, %v1835
  %v1838 = vunpack.c.l.s4 1966171168
  %v1839 = vunpack.c.0.s8 %v1838
  %v1840 = vlaneseq
  %v1841 = vshrl.u32 %v1840, 7
  %v1842 = vsub.s32 %v1839, %v1841
  %v1843 = vrot.slane %v1827, %v1842
  %v1845 = vunpack.c.l.s4 1966171168
  %v1846 = vunpack.c.0.s8 %v1845
  %v1847 = vlaneseq
  %v1848 = vshrl.u32 %v1847, 7
  %v1849 = vsub.s32 %v1846, %v1848
  %v1850 = vrot.slane %v1828, %v1849
  %v1852 = vunpack.c.l.s4 1966171168
  %v1853 = vunpack.c.0.s8 %v1852
  %v1854 = vlaneseq
  %v1855 = vshrl.u32 %v1854, 7
  %v1856 = vsub.s32 %v1853, %v1855
  %v1857 = vrot.slane %v1829, %v1856
  %v1858 = vcombine.high %v1836, %v1836
  %v1859 = vcombine.high %v1843, %v1843
  %v1860 = vcombine.high %v1850, %v1850
  %v1861 = vcombine.high %v1857, %v1857
  %v1862 = vlaneseq
  %v1863 = vshrl.u32 %v1862, 7
  %v1864 = vsub.s32 0, %v1863
  %v1865 = vrot.slane %v1836, %v1864
  %v1866 = vlaneseq
  %v1867 = vshrl.u32 %v1866, 7
  %v1868 = vsub.s32 0, %v1867
  %v1869 = vrot.slane %v1850, %v1868
  %v1870 = vlaneseq
  %v1871 = vshrl.u32 %v1870, 7
  %v1872 = vsub.s32 0, %v1871
  %v1873 = vrot.slane %v1858, %v1872
  %v1874 = vlaneseq
  %v1875 = vshrl.u32 %v1874, 7
  %v1876 = vsub.s32 0, %v1875
  %v1877 = vrot.slane %v1860, %v1876
  %v1878 = vlaneseq
  %v1879 = vshrl.u32 %v1878, 7
  %v1880 = vsub.s32 0, %v1879
  %v1881 = vrot.slane %v1843, %v1880
  %v1882 = vlaneseq
  %v1883 = vshrl.u32 %v1882, 7
  %v1884 = vsub.s32 0, %v1883
  %v1885 = vrot.slane %v1857, %v1884
  %v1886 = vlaneseq
  %v1887 = vshrl.u32 %v1886, 7
  %v1888 = vsub.s32 0, %v1887
  %v1889 = vrot.slane %v1859, %v1888
  %v1890 = vlaneseq
  %v1891 = vshrl.u32 %v1890, 7
  %v1892 = vsub.s32 0, %v1891
  %v1893 = vrot.slane %v1861, %v1892
  %1894 = vrot.lane.b32.xlu0 %v1865, 104
  %v1895 = vpop.permute.xlu0 %1894
  %1896 = vrot.lane.b32.xlu0 %v1869, 104
  %v1897 = vpop.permute.xlu0 %1896
  %1898 = vrot.lane.b32.xlu0 %v1873, 104
  %v1899 = vpop.permute.xlu0 %1898
  %1900 = vrot.lane.b32.xlu0 %v1877, 104
  %v1901 = vpop.permute.xlu0 %1900
  %1902 = vrot.lane.b32.xlu0 %v1881, 104
  %v1903 = vpop.permute.xlu0 %1902
  %1904 = vrot.lane.b32.xlu0 %v1885, 104
  %v1905 = vpop.permute.xlu0 %1904
  %1906 = vrot.lane.b32.xlu0 %v1889, 104
  %v1907 = vpop.permute.xlu0 %1906
  %1908 = vrot.lane.b32.xlu0 %v1893, 104
  %v1909 = vpop.permute.xlu0 %1908
  %1918 = vst.msk [vmem:[%s5 + $0x5] sm:$0x1] %vm1204, %v1895
  %1919 = vst.msk [vmem:[%s5 + $0xd] sm:$0x1] %vm1204, %v1897
  %1920 = vst.msk [vmem:[%s5 + $0x15] sm:$0x1] %vm1204, %v1899
  %1921 = vst.msk [vmem:[%s5 + $0x1d] sm:$0x1] %vm1204, %v1901
  %1922 = vst.msk [vmem:[%s5 + $0x25] sm:$0x1] %vm1204, %v1903
  %1923 = vst.msk [vmem:[%s5 + $0x2d] sm:$0x1] %vm1204, %v1905
  %1924 = vst.msk [vmem:[%s5 + $0x35] sm:$0x1] %vm1204, %v1907
  %1925 = vst.msk [vmem:[%s5 + $0x3d] sm:$0x1] %vm1204, %v1909
  %1926 = vrot.lane.b32.xlu0 %v1675, 120
  %v1927 = vpop.permute.xlu0 %1926
  %1929 = vrot.lane.b32.xlu0 %v1811, 104
  %v1930 = vpop.permute.xlu0 %1929
  %v1932 = vsel %vm1219, %v1927, %v1930
  %v1934 = vsel %vm69, %v1932, 0
  %1936 = vmatprep.subr.mxu0 0.0
  %1937 = vmatpush1.msra.mxu0 %v22
  %1938 = vmatprep.subr.mxu0 0.0
  %1939 = vmatpush1.msra.mxu0 %v23
  %1940 = vmatprep.subr.mxu0 0.0
  %1941 = vmatpush1.msra.mxu0 0.0
  %1942 = vmatprep.subr.mxu0 0.0
  %1943 = vmatpush1.msra.mxu0 0.0
  %1944 = vmatprep.subr.mxu0 0.0
  %1945 = vmatpush1.msra.mxu0 0.0
  %1946 = vmatprep.subr.mxu0 0.0
  %1947 = vmatpush1.msra.mxu0 0.0
  %1948 = vmatprep.subr.mxu0 0.0
  %1949 = vmatpush1.msra.mxu0 0.0
  %1950 = vmatprep.subr.mxu0 0.0
  %1951 = vmatpush1.msra.mxu0 0.0
  %1952 = vmatprep.subr.mxu0 0.0
  %1953 = vmatpush1.msra.mxu0 0.0
  %1954 = vmatprep.subr.mxu0 0.0
  %1955 = vmatpush1.msra.mxu0 0.0
  %1956 = vmatprep.subr.mxu0 0.0
  %1957 = vmatpush1.msra.mxu0 0.0
  %1958 = vmatprep.subr.mxu0 0.0
  %1959 = vmatpush1.msra.mxu0 0.0
  %1960 = vmatprep.subr.mxu0 0.0
  %1961 = vmatpush1.msra.mxu0 0.0
  %1962 = vmatprep.subr.mxu0 0.0
  %1963 = vmatpush1.msra.mxu0 0.0
  %1964 = vmatprep.subr.mxu0 0.0
  %1965 = vmatpush1.msra.mxu0 0.0
  %1966 = vmatprep.subr.mxu0 0.0
  %1967 = vmatpush1.msra.mxu0 0.0
  %1968 = vmatprep.subr.mxu0 0.0
  %1969 = vmatpush1.msra.mxu0 0.0
  %1970 = vmatprep.subr.mxu0 0.0
  %1971 = vmatpush1.msra.mxu0 0.0
  %1972 = vmatprep.subr.mxu0 0.0
  %1973 = vmatpush1.msra.mxu0 0.0
  %1974 = vmatprep.subr.mxu0 0.0
  %1975 = vmatpush1.msra.mxu0 0.0
  %1976 = vmatprep.subr.mxu0 0.0
  %1977 = vmatpush1.msra.mxu0 0.0
  %1978 = vmatprep.subr.mxu0 0.0
  %1979 = vmatpush1.msra.mxu0 0.0
  %1980 = vmatprep.subr.mxu0 0.0
  %1981 = vmatpush1.msra.mxu0 0.0
  %1982 = vmatprep.subr.mxu0 0.0
  %1983 = vmatpush1.msra.mxu0 0.0
  %1984 = vmatprep.subr.mxu0 0.0
  %1985 = vmatpush1.msra.mxu0 0.0
  %1986 = vmatprep.subr.mxu0 0.0
  %1987 = vmatpush1.msra.mxu0 0.0
  %1988 = vmatprep.subr.mxu0 0.0
  %1989 = vmatpush1.msra.mxu0 0.0
  %1990 = vmatprep.subr.mxu0 0.0
  %1991 = vmatpush1.msra.mxu0 0.0
  %1992 = vmatprep.subr.mxu0 0.0
  %1993 = vmatpush1.msra.mxu0 0.0
  %1994 = vmatprep.subr.mxu0 0.0
  %1995 = vmatpush1.msra.mxu0 0.0
  %1996 = vmatprep.subr.mxu0 0.0
  %1997 = vmatpush1.msra.mxu0 0.0
  %1998 = vmatprep.subr.mxu0 0.0
  %1999 = vmatpush1.msra.mxu0 0.0
  %2000 = vmatprep.mubr.f32.mxu0 0.0
  %2001 = vmatmul.mubr.f32.gmra.mrb[0].mxu0 %v1934
  %v2002 = vpop.f32.mrb[0].mxu0
  %v2003 = vadd.f32 %v860, %v2002
  %v2004 = vpop.f32.mrb[0].mxu0
  %2005 = vdwg.mxu0
  %v2006 = vadd.f32 %v445, %v2003
  %v2007 = vxor.u32 %v2006, 2147483648
  %v2008 = vmul.f32 %v2007, 1.442695
  %v2009 = vpow.pop %v2008
  %v2010 = vadd.f32 %v2009, 1.0
  %v2011 = vrcp.pop %v2010
  %v2012 = vmul.f32 1.0, %v2011
  %2014 = vrot.lane.b32.xlu0 %v2003, 112
  %v2015 = vpop.permute.xlu0 %2014
  %v2017 = vmul.f32 %v2012, %v2015
  %2019 = vrot.lane.b32.xlu0 %v2017, 16
  %v2020 = vpop.permute.xlu0 %2019
  %v2022 = vadd.f32 %v445, %v2020
  %v2023 = vtanh.pop %v2022
  %v2024 = vsub.f32 1.0, %v2012
  %2026 = vrot.lane.b32.xlu0 %v2023, 120
  %v2027 = vpop.permute.xlu0 %2026
  %v2029 = vmul.f32 %v2024, %v2027
  %v2030 = vmul.f32 %v2012, %v1675
  %v2031 = vadd.f32 %v2029, %v2030
  %v2033 = vcombine.high %v2031, %v2031
  %v2035 = vunpack.c.l.s4 1966171168
  %v2036 = vunpack.c.0.s8 %v2035
  %v2037 = vlaneseq
  %v2038 = vshrl.u32 %v2037, 7
  %v2039 = vsub.s32 %v2036, %v2038
  %v2040 = vrot.slane %v2031, %v2039
  %v2042 = vunpack.c.l.s4 1966171168
  %v2043 = vunpack.c.0.s8 %v2042
  %v2044 = vlaneseq
  %v2045 = vshrl.u32 %v2044, 7
  %v2046 = vsub.s32 %v2043, %v2045
  %v2047 = vrot.slane %v2033, %v2046
  %v2048 = vcombine.high %v2040, %v2040
  %v2049 = vcombine.high %v2047, %v2047
  %v2051 = vunpack.c.l.s4 1966171168
  %v2052 = vunpack.c.0.s8 %v2051
  %v2053 = vlaneseq
  %v2054 = vshrl.u32 %v2053, 7
  %v2055 = vsub.s32 %v2052, %v2054
  %v2056 = vrot.slane %v2040, %v2055
  %v2058 = vunpack.c.l.s4 1966171168
  %v2059 = vunpack.c.0.s8 %v2058
  %v2060 = vlaneseq
  %v2061 = vshrl.u32 %v2060, 7
  %v2062 = vsub.s32 %v2059, %v2061
  %v2063 = vrot.slane %v2047, %v2062
  %v2065 = vunpack.c.l.s4 1966171168
  %v2066 = vunpack.c.0.s8 %v2065
  %v2067 = vlaneseq
  %v2068 = vshrl.u32 %v2067, 7
  %v2069 = vsub.s32 %v2066, %v2068
  %v2070 = vrot.slane %v2048, %v2069
  %v2072 = vunpack.c.l.s4 1966171168
  %v2073 = vunpack.c.0.s8 %v2072
  %v2074 = vlaneseq
  %v2075 = vshrl.u32 %v2074, 7
  %v2076 = vsub.s32 %v2073, %v2075
  %v2077 = vrot.slane %v2049, %v2076
  %v2078 = vcombine.high %v2056, %v2056
  %v2079 = vcombine.high %v2063, %v2063
  %v2080 = vcombine.high %v2070, %v2070
  %v2081 = vcombine.high %v2077, %v2077
  %v2082 = vlaneseq
  %v2083 = vshrl.u32 %v2082, 7
  %v2084 = vsub.s32 0, %v2083
  %v2085 = vrot.slane %v2056, %v2084
  %v2086 = vlaneseq
  %v2087 = vshrl.u32 %v2086, 7
  %v2088 = vsub.s32 0, %v2087
  %v2089 = vrot.slane %v2070, %v2088
  %v2090 = vlaneseq
  %v2091 = vshrl.u32 %v2090, 7
  %v2092 = vsub.s32 0, %v2091
  %v2093 = vrot.slane %v2078, %v2092
  %v2094 = vlaneseq
  %v2095 = vshrl.u32 %v2094, 7
  %v2096 = vsub.s32 0, %v2095
  %v2097 = vrot.slane %v2080, %v2096
  %v2098 = vlaneseq
  %v2099 = vshrl.u32 %v2098, 7
  %v2100 = vsub.s32 0, %v2099
  %v2101 = vrot.slane %v2063, %v2100
  %v2102 = vlaneseq
  %v2103 = vshrl.u32 %v2102, 7
  %v2104 = vsub.s32 0, %v2103
  %v2105 = vrot.slane %v2077, %v2104
  %v2106 = vlaneseq
  %v2107 = vshrl.u32 %v2106, 7
  %v2108 = vsub.s32 0, %v2107
  %v2109 = vrot.slane %v2079, %v2108
  %v2110 = vlaneseq
  %v2111 = vshrl.u32 %v2110, 7
  %v2112 = vsub.s32 0, %v2111
  %v2113 = vrot.slane %v2081, %v2112
  %2114 = vrot.lane.b32.xlu0 %v2085, 120
  %v2115 = vpop.permute.xlu0 %2114
  %2116 = vrot.lane.b32.xlu0 %v2089, 120
  %v2117 = vpop.permute.xlu0 %2116
  %2118 = vrot.lane.b32.xlu0 %v2093, 120
  %v2119 = vpop.permute.xlu0 %2118
  %2120 = vrot.lane.b32.xlu0 %v2097, 120
  %v2121 = vpop.permute.xlu0 %2120
  %2122 = vrot.lane.b32.xlu0 %v2101, 120
  %v2123 = vpop.permute.xlu0 %2122
  %2124 = vrot.lane.b32.xlu0 %v2105, 120
  %v2125 = vpop.permute.xlu0 %2124
  %2126 = vrot.lane.b32.xlu0 %v2109, 120
  %v2127 = vpop.permute.xlu0 %2126
  %2128 = vrot.lane.b32.xlu0 %v2113, 120
  %v2129 = vpop.permute.xlu0 %2128
  %2138 = vst.msk [vmem:[%s5 + $0x3] sm:$0x1] %vm1067, %v2115
  %2139 = vst.msk [vmem:[%s5 + $0xb] sm:$0x1] %vm1067, %v2117
  %2140 = vst.msk [vmem:[%s5 + $0x13] sm:$0x1] %vm1067, %v2119
  %2141 = vst.msk [vmem:[%s5 + $0x1b] sm:$0x1] %vm1067, %v2121
  %2142 = vst.msk [vmem:[%s5 + $0x23] sm:$0x1] %vm1067, %v2123
  %2143 = vst.msk [vmem:[%s5 + $0x2b] sm:$0x1] %vm1067, %v2125
  %2144 = vst.msk [vmem:[%s5 + $0x33] sm:$0x1] %vm1067, %v2127
  %2145 = vst.msk [vmem:[%s5 + $0x3b] sm:$0x1] %vm1067, %v2129
  %v2146 = vadd.f32 %v547, %v2003
  %v2147 = vxor.u32 %v2146, 2147483648
  %v2148 = vmul.f32 %v2147, 1.442695
  %v2149 = vpow.pop %v2148
  %v2150 = vadd.f32 %v2149, 1.0
  %v2151 = vrcp.pop %v2150
  %v2152 = vmul.f32 1.0, %v2151
  %v2153 = vmul.f32 %v2152, %v2015
  %2155 = vrot.lane.b32.xlu0 %v2153, 16
  %v2156 = vpop.permute.xlu0 %2155
  %v2158 = vadd.f32 %v547, %v2156
  %v2159 = vtanh.pop %v2158
  %v2160 = vsub.f32 1.0, %v2152
  %2162 = vrot.lane.b32.xlu0 %v2159, 120
  %v2163 = vpop.permute.xlu0 %2162
  %v2165 = vmul.f32 %v2160, %v2163
  %v2166 = vmul.f32 %v2152, %v1811
  %v2167 = vadd.f32 %v2165, %v2166
  %v2169 = vcombine.high %v2167, %v2167
  %v2171 = vunpack.c.l.s4 1966171168
  %v2172 = vunpack.c.0.s8 %v2171
  %v2173 = vlaneseq
  %v2174 = vshrl.u32 %v2173, 7
  %v2175 = vsub.s32 %v2172, %v2174
  %v2176 = vrot.slane %v2167, %v2175
  %v2178 = vunpack.c.l.s4 1966171168
  %v2179 = vunpack.c.0.s8 %v2178
  %v2180 = vlaneseq
  %v2181 = vshrl.u32 %v2180, 7
  %v2182 = vsub.s32 %v2179, %v2181
  %v2183 = vrot.slane %v2169, %v2182
  %v2184 = vcombine.high %v2176, %v2176
  %v2185 = vcombine.high %v2183, %v2183
  %v2187 = vunpack.c.l.s4 1966171168
  %v2188 = vunpack.c.0.s8 %v2187
  %v2189 = vlaneseq
  %v2190 = vshrl.u32 %v2189, 7
  %v2191 = vsub.s32 %v2188, %v2190
  %v2192 = vrot.slane %v2176, %v2191
  %v2194 = vunpack.c.l.s4 1966171168
  %v2195 = vunpack.c.0.s8 %v2194
  %v2196 = vlaneseq
  %v2197 = vshrl.u32 %v2196, 7
  %v2198 = vsub.s32 %v2195, %v2197
  %v2199 = vrot.slane %v2183, %v2198
  %v2201 = vunpack.c.l.s4 1966171168
  %v2202 = vunpack.c.0.s8 %v2201
  %v2203 = vlaneseq
  %v2204 = vshrl.u32 %v2203, 7
  %v2205 = vsub.s32 %v2202, %v2204
  %v2206 = vrot.slane %v2184, %v2205
  %v2208 = vunpack.c.l.s4 1966171168
  %v2209 = vunpack.c.0.s8 %v2208
  %v2210 = vlaneseq
  %v2211 = vshrl.u32 %v2210, 7
  %v2212 = vsub.s32 %v2209, %v2211
  %v2213 = vrot.slane %v2185, %v2212
  %v2214 = vcombine.high %v2192, %v2192
  %v2215 = vcombine.high %v2199, %v2199
  %v2216 = vcombine.high %v2206, %v2206
  %v2217 = vcombine.high %v2213, %v2213
  %v2218 = vlaneseq
  %v2219 = vshrl.u32 %v2218, 7
  %v2220 = vsub.s32 0, %v2219
  %v2221 = vrot.slane %v2192, %v2220
  %v2222 = vlaneseq
  %v2223 = vshrl.u32 %v2222, 7
  %v2224 = vsub.s32 0, %v2223
  %v2225 = vrot.slane %v2206, %v2224
  %v2226 = vlaneseq
  %v2227 = vshrl.u32 %v2226, 7
  %v2228 = vsub.s32 0, %v2227
  %v2229 = vrot.slane %v2214, %v2228
  %v2230 = vlaneseq
  %v2231 = vshrl.u32 %v2230, 7
  %v2232 = vsub.s32 0, %v2231
  %v2233 = vrot.slane %v2216, %v2232
  %v2234 = vlaneseq
  %v2235 = vshrl.u32 %v2234, 7
  %v2236 = vsub.s32 0, %v2235
  %v2237 = vrot.slane %v2199, %v2236
  %v2238 = vlaneseq
  %v2239 = vshrl.u32 %v2238, 7
  %v2240 = vsub.s32 0, %v2239
  %v2241 = vrot.slane %v2213, %v2240
  %v2242 = vlaneseq
  %v2243 = vshrl.u32 %v2242, 7
  %v2244 = vsub.s32 0, %v2243
  %v2245 = vrot.slane %v2215, %v2244
  %v2246 = vlaneseq
  %v2247 = vshrl.u32 %v2246, 7
  %v2248 = vsub.s32 0, %v2247
  %v2249 = vrot.slane %v2217, %v2248
  %2250 = vrot.lane.b32.xlu0 %v2221, 104
  %v2251 = vpop.permute.xlu0 %2250
  %2252 = vrot.lane.b32.xlu0 %v2225, 104
  %v2253 = vpop.permute.xlu0 %2252
  %2254 = vrot.lane.b32.xlu0 %v2229, 104
  %v2255 = vpop.permute.xlu0 %2254
  %2256 = vrot.lane.b32.xlu0 %v2233, 104
  %v2257 = vpop.permute.xlu0 %2256
  %2258 = vrot.lane.b32.xlu0 %v2237, 104
  %v2259 = vpop.permute.xlu0 %2258
  %2260 = vrot.lane.b32.xlu0 %v2241, 104
  %v2261 = vpop.permute.xlu0 %2260
  %2262 = vrot.lane.b32.xlu0 %v2245, 104
  %v2263 = vpop.permute.xlu0 %2262
  %2264 = vrot.lane.b32.xlu0 %v2249, 104
  %v2265 = vpop.permute.xlu0 %2264
  %2274 = vst.msk [vmem:[%s5 + $0x4] sm:$0x1] %vm1204, %v2251
  %2275 = vst.msk [vmem:[%s5 + $0xc] sm:$0x1] %vm1204, %v2253
  %2276 = vst.msk [vmem:[%s5 + $0x14] sm:$0x1] %vm1204, %v2255
  %2277 = vst.msk [vmem:[%s5 + $0x1c] sm:$0x1] %vm1204, %v2257
  %2278 = vst.msk [vmem:[%s5 + $0x24] sm:$0x1] %vm1204, %v2259
  %2279 = vst.msk [vmem:[%s5 + $0x2c] sm:$0x1] %vm1204, %v2261
  %2280 = vst.msk [vmem:[%s5 + $0x34] sm:$0x1] %vm1204, %v2263
  %2281 = vst.msk [vmem:[%s5 + $0x3c] sm:$0x1] %vm1204, %v2265
  %2282 = vrot.lane.b32.xlu0 %v2031, 120
  %v2283 = vpop.permute.xlu0 %2282
  %2285 = vrot.lane.b32.xlu0 %v2167, 104
  %v2286 = vpop.permute.xlu0 %2285
  %v2288 = vsel %vm1219, %v2283, %v2286
  %v2290 = vsel %vm69, %v2288, 0
  %2292 = vmatprep.subr.mxu0 0.0
  %2293 = vmatpush1.msra.mxu0 %v22
  %2294 = vmatprep.subr.mxu0 0.0
  %2295 = vmatpush1.msra.mxu0 %v23
  %2296 = vmatprep.subr.mxu0 0.0
  %2297 = vmatpush1.msra.mxu0 0.0
  %2298 = vmatprep.subr.mxu0 0.0
  %2299 = vmatpush1.msra.mxu0 0.0
  %2300 = vmatprep.subr.mxu0 0.0
  %2301 = vmatpush1.msra.mxu0 0.0
  %2302 = vmatprep.subr.mxu0 0.0
  %2303 = vmatpush1.msra.mxu0 0.0
  %2304 = vmatprep.subr.mxu0 0.0
  %2305 = vmatpush1.msra.mxu0 0.0
  %2306 = vmatprep.subr.mxu0 0.0
  %2307 = vmatpush1.msra.mxu0 0.0
  %2308 = vmatprep.subr.mxu0 0.0
  %2309 = vmatpush1.msra.mxu0 0.0
  %2310 = vmatprep.subr.mxu0 0.0
  %2311 = vmatpush1.msra.mxu0 0.0
  %2312 = vmatprep.subr.mxu0 0.0
  %2313 = vmatpush1.msra.mxu0 0.0
  %2314 = vmatprep.subr.mxu0 0.0
  %2315 = vmatpush1.msra.mxu0 0.0
  %2316 = vmatprep.subr.mxu0 0.0
  %2317 = vmatpush1.msra.mxu0 0.0
  %2318 = vmatprep.subr.mxu0 0.0
  %2319 = vmatpush1.msra.mxu0 0.0
  %2320 = vmatprep.subr.mxu0 0.0
  %2321 = vmatpush1.msra.mxu0 0.0
  %2322 = vmatprep.subr.mxu0 0.0
  %2323 = vmatpush1.msra.mxu0 0.0
  %2324 = vmatprep.subr.mxu0 0.0
  %2325 = vmatpush1.msra.mxu0 0.0
  %2326 = vmatprep.subr.mxu0 0.0
  %2327 = vmatpush1.msra.mxu0 0.0
  %2328 = vmatprep.subr.mxu0 0.0
  %2329 = vmatpush1.msra.mxu0 0.0
  %2330 = vmatprep.subr.mxu0 0.0
  %2331 = vmatpush1.msra.mxu0 0.0
  %2332 = vmatprep.subr.mxu0 0.0
  %2333 = vmatpush1.msra.mxu0 0.0
  %2334 = vmatprep.subr.mxu0 0.0
  %2335 = vmatpush1.msra.mxu0 0.0
  %2336 = vmatprep.subr.mxu0 0.0
  %2337 = vmatpush1.msra.mxu0 0.0
  %2338 = vmatprep.subr.mxu0 0.0
  %2339 = vmatpush1.msra.mxu0 0.0
  %2340 = vmatprep.subr.mxu0 0.0
  %2341 = vmatpush1.msra.mxu0 0.0
  %2342 = vmatprep.subr.mxu0 0.0
  %2343 = vmatpush1.msra.mxu0 0.0
  %2344 = vmatprep.subr.mxu0 0.0
  %2345 = vmatpush1.msra.mxu0 0.0
  %2346 = vmatprep.subr.mxu0 0.0
  %2347 = vmatpush1.msra.mxu0 0.0
  %2348 = vmatprep.subr.mxu0 0.0
  %2349 = vmatpush1.msra.mxu0 0.0
  %2350 = vmatprep.subr.mxu0 0.0
  %2351 = vmatpush1.msra.mxu0 0.0
  %2352 = vmatprep.subr.mxu0 0.0
  %2353 = vmatpush1.msra.mxu0 0.0
  %2354 = vmatprep.subr.mxu0 0.0
  %2355 = vmatpush1.msra.mxu0 0.0
  %2356 = vmatprep.mubr.f32.mxu0 0.0
  %2357 = vmatmul.mubr.f32.gmra.mrb[0].mxu0 %v2290
  %v2358 = vpop.f32.mrb[0].mxu0
  %v2359 = vadd.f32 %v860, %v2358
  %v2360 = vpop.f32.mrb[0].mxu0
  %2361 = vdwg.mxu0
  %v2362 = vadd.f32 %v547, %v2359
  %v2363 = vxor.u32 %v2362, 2147483648
  %v2364 = vmul.f32 %v2363, 1.442695
  %v2365 = vpow.pop %v2364
  %v2366 = vadd.f32 %v2365, 1.0
  %v2367 = vrcp.pop %v2366
  %v2368 = vmul.f32 1.0, %v2367
  %2370 = vrot.lane.b32.xlu0 %v2359, 112
  %v2371 = vpop.permute.xlu0 %2370
  %v2373 = vmul.f32 %v2368, %v2371
  %2375 = vrot.lane.b32.xlu0 %v2373, 16
  %v2376 = vpop.permute.xlu0 %2375
  %v2378 = vadd.f32 %v547, %v2376
  %v2379 = vtanh.pop %v2378
  %v2380 = vsub.f32 1.0, %v2368
  %2382 = vrot.lane.b32.xlu0 %v2379, 120
  %v2383 = vpop.permute.xlu0 %2382
  %v2385 = vmul.f32 %v2380, %v2383
  %v2386 = vmul.f32 %v2368, %v2031
  %v2387 = vadd.f32 %v2385, %v2386
  %v2389 = vcombine.high %v2387, %v2387
  %v2391 = vunpack.c.l.s4 1966171168
  %v2392 = vunpack.c.0.s8 %v2391
  %v2393 = vlaneseq
  %v2394 = vshrl.u32 %v2393, 7
  %v2395 = vsub.s32 %v2392, %v2394
  %v2396 = vrot.slane %v2387, %v2395
  %v2398 = vunpack.c.l.s4 1966171168
  %v2399 = vunpack.c.0.s8 %v2398
  %v2400 = vlaneseq
  %v2401 = vshrl.u32 %v2400, 7
  %v2402 = vsub.s32 %v2399, %v2401
  %v2403 = vrot.slane %v2389, %v2402
  %v2404 = vcombine.high %v2396, %v2396
  %v2405 = vcombine.high %v2403, %v2403
  %v2407 = vunpack.c.l.s4 1966171168
  %v2408 = vunpack.c.0.s8 %v2407
  %v2409 = vlaneseq
  %v2410 = vshrl.u32 %v2409, 7
  %v2411 = vsub.s32 %v2408, %v2410
  %v2412 = vrot.slane %v2396, %v2411
  %v2414 = vunpack.c.l.s4 1966171168
  %v2415 = vunpack.c.0.s8 %v2414
  %v2416 = vlaneseq
  %v2417 = vshrl.u32 %v2416, 7
  %v2418 = vsub.s32 %v2415, %v2417
  %v2419 = vrot.slane %v2403, %v2418
  %v2421 = vunpack.c.l.s4 1966171168
  %v2422 = vunpack.c.0.s8 %v2421
  %v2423 = vlaneseq
  %v2424 = vshrl.u32 %v2423, 7
  %v2425 = vsub.s32 %v2422, %v2424
  %v2426 = vrot.slane %v2404, %v2425
  %v2428 = vunpack.c.l.s4 1966171168
  %v2429 = vunpack.c.0.s8 %v2428
  %v2430 = vlaneseq
  %v2431 = vshrl.u32 %v2430, 7
  %v2432 = vsub.s32 %v2429, %v2431
  %v2433 = vrot.slane %v2405, %v2432
  %v2434 = vcombine.high %v2412, %v2412
  %v2435 = vcombine.high %v2419, %v2419
  %v2436 = vcombine.high %v2426, %v2426
  %v2437 = vcombine.high %v2433, %v2433
  %v2438 = vlaneseq
  %v2439 = vshrl.u32 %v2438, 7
  %v2440 = vsub.s32 0, %v2439
  %v2441 = vrot.slane %v2412, %v2440
  %v2442 = vlaneseq
  %v2443 = vshrl.u32 %v2442, 7
  %v2444 = vsub.s32 0, %v2443
  %v2445 = vrot.slane %v2426, %v2444
  %v2446 = vlaneseq
  %v2447 = vshrl.u32 %v2446, 7
  %v2448 = vsub.s32 0, %v2447
  %v2449 = vrot.slane %v2434, %v2448
  %v2450 = vlaneseq
  %v2451 = vshrl.u32 %v2450, 7
  %v2452 = vsub.s32 0, %v2451
  %v2453 = vrot.slane %v2436, %v2452
  %v2454 = vlaneseq
  %v2455 = vshrl.u32 %v2454, 7
  %v2456 = vsub.s32 0, %v2455
  %v2457 = vrot.slane %v2419, %v2456
  %v2458 = vlaneseq
  %v2459 = vshrl.u32 %v2458, 7
  %v2460 = vsub.s32 0, %v2459
  %v2461 = vrot.slane %v2433, %v2460
  %v2462 = vlaneseq
  %v2463 = vshrl.u32 %v2462, 7
  %v2464 = vsub.s32 0, %v2463
  %v2465 = vrot.slane %v2435, %v2464
  %v2466 = vlaneseq
  %v2467 = vshrl.u32 %v2466, 7
  %v2468 = vsub.s32 0, %v2467
  %v2469 = vrot.slane %v2437, %v2468
  %2470 = vrot.lane.b32.xlu0 %v2441, 120
  %v2471 = vpop.permute.xlu0 %2470
  %2472 = vrot.lane.b32.xlu0 %v2445, 120
  %v2473 = vpop.permute.xlu0 %2472
  %2474 = vrot.lane.b32.xlu0 %v2449, 120
  %v2475 = vpop.permute.xlu0 %2474
  %2476 = vrot.lane.b32.xlu0 %v2453, 120
  %v2477 = vpop.permute.xlu0 %2476
  %2478 = vrot.lane.b32.xlu0 %v2457, 120
  %v2479 = vpop.permute.xlu0 %2478
  %2480 = vrot.lane.b32.xlu0 %v2461, 120
  %v2481 = vpop.permute.xlu0 %2480
  %2482 = vrot.lane.b32.xlu0 %v2465, 120
  %v2483 = vpop.permute.xlu0 %2482
  %2484 = vrot.lane.b32.xlu0 %v2469, 120
  %v2485 = vpop.permute.xlu0 %2484
  %2494 = vst.msk [vmem:[%s5 + $0x4] sm:$0x1] %vm1067, %v2471
  %2495 = vst.msk [vmem:[%s5 + $0xc] sm:$0x1] %vm1067, %v2473
  %2496 = vst.msk [vmem:[%s5 + $0x14] sm:$0x1] %vm1067, %v2475
  %2497 = vst.msk [vmem:[%s5 + $0x1c] sm:$0x1] %vm1067, %v2477
  %2498 = vst.msk [vmem:[%s5 + $0x24] sm:$0x1] %vm1067, %v2479
  %2499 = vst.msk [vmem:[%s5 + $0x2c] sm:$0x1] %vm1067, %v2481
  %2500 = vst.msk [vmem:[%s5 + $0x34] sm:$0x1] %vm1067, %v2483
  %2501 = vst.msk [vmem:[%s5 + $0x3c] sm:$0x1] %vm1067, %v2485
  %v2502 = vadd.f32 %v445, %v2359
  %v2503 = vxor.u32 %v2502, 2147483648
  %v2504 = vmul.f32 %v2503, 1.442695
  %v2505 = vpow.pop %v2504
  %v2506 = vadd.f32 %v2505, 1.0
  %v2507 = vrcp.pop %v2506
  %v2508 = vmul.f32 1.0, %v2507
  %v2509 = vmul.f32 %v2508, %v2371
  %2511 = vrot.lane.b32.xlu0 %v2509, 16
  %v2512 = vpop.permute.xlu0 %2511
  %v2514 = vadd.f32 %v445, %v2512
  %v2515 = vtanh.pop %v2514
  %v2516 = vsub.f32 1.0, %v2508
  %2518 = vrot.lane.b32.xlu0 %v2515, 120
  %v2519 = vpop.permute.xlu0 %2518
  %v2521 = vmul.f32 %v2516, %v2519
  %v2522 = vmul.f32 %v2508, %v2167
  %v2523 = vadd.f32 %v2521, %v2522
  %v2525 = vcombine.high %v2523, %v2523
  %v2527 = vunpack.c.l.s4 1966171168
  %v2528 = vunpack.c.0.s8 %v2527
  %v2529 = vlaneseq
  %v2530 = vshrl.u32 %v2529, 7
  %v2531 = vsub.s32 %v2528, %v2530
  %v2532 = vrot.slane %v2523, %v2531
  %v2534 = vunpack.c.l.s4 1966171168
  %v2535 = vunpack.c.0.s8 %v2534
  %v2536 = vlaneseq
  %v2537 = vshrl.u32 %v2536, 7
  %v2538 = vsub.s32 %v2535, %v2537
  %v2539 = vrot.slane %v2525, %v2538
  %v2540 = vcombine.high %v2532, %v2532
  %v2541 = vcombine.high %v2539, %v2539
  %v2543 = vunpack.c.l.s4 1966171168
  %v2544 = vunpack.c.0.s8 %v2543
  %v2545 = vlaneseq
  %v2546 = vshrl.u32 %v2545, 7
  %v2547 = vsub.s32 %v2544, %v2546
  %v2548 = vrot.slane %v2532, %v2547
  %v2550 = vunpack.c.l.s4 1966171168
  %v2551 = vunpack.c.0.s8 %v2550
  %v2552 = vlaneseq
  %v2553 = vshrl.u32 %v2552, 7
  %v2554 = vsub.s32 %v2551, %v2553
  %v2555 = vrot.slane %v2539, %v2554
  %v2557 = vunpack.c.l.s4 1966171168
  %v2558 = vunpack.c.0.s8 %v2557
  %v2559 = vlaneseq
  %v2560 = vshrl.u32 %v2559, 7
  %v2561 = vsub.s32 %v2558, %v2560
  %v2562 = vrot.slane %v2540, %v2561
  %v2564 = vunpack.c.l.s4 1966171168
  %v2565 = vunpack.c.0.s8 %v2564
  %v2566 = vlaneseq
  %v2567 = vshrl.u32 %v2566, 7
  %v2568 = vsub.s32 %v2565, %v2567
  %v2569 = vrot.slane %v2541, %v2568
  %v2570 = vcombine.high %v2548, %v2548
  %v2571 = vcombine.high %v2555, %v2555
  %v2572 = vcombine.high %v2562, %v2562
  %v2573 = vcombine.high %v2569, %v2569
  %v2574 = vlaneseq
  %v2575 = vshrl.u32 %v2574, 7
  %v2576 = vsub.s32 0, %v2575
  %v2577 = vrot.slane %v2548, %v2576
  %v2578 = vlaneseq
  %v2579 = vshrl.u32 %v2578, 7
  %v2580 = vsub.s32 0, %v2579
  %v2581 = vrot.slane %v2562, %v2580
  %v2582 = vlaneseq
  %v2583 = vshrl.u32 %v2582, 7
  %v2584 = vsub.s32 0, %v2583
  %v2585 = vrot.slane %v2570, %v2584
  %v2586 = vlaneseq
  %v2587 = vshrl.u32 %v2586, 7
  %v2588 = vsub.s32 0, %v2587
  %v2589 = vrot.slane %v2572, %v2588
  %v2590 = vlaneseq
  %v2591 = vshrl.u32 %v2590, 7
  %v2592 = vsub.s32 0, %v2591
  %v2593 = vrot.slane %v2555, %v2592
  %v2594 = vlaneseq
  %v2595 = vshrl.u32 %v2594, 7
  %v2596 = vsub.s32 0, %v2595
  %v2597 = vrot.slane %v2569, %v2596
  %v2598 = vlaneseq
  %v2599 = vshrl.u32 %v2598, 7
  %v2600 = vsub.s32 0, %v2599
  %v2601 = vrot.slane %v2571, %v2600
  %v2602 = vlaneseq
  %v2603 = vshrl.u32 %v2602, 7
  %v2604 = vsub.s32 0, %v2603
  %v2605 = vrot.slane %v2573, %v2604
  %2606 = vrot.lane.b32.xlu0 %v2577, 104
  %v2607 = vpop.permute.xlu0 %2606
  %2608 = vrot.lane.b32.xlu0 %v2581, 104
  %v2609 = vpop.permute.xlu0 %2608
  %2610 = vrot.lane.b32.xlu0 %v2585, 104
  %v2611 = vpop.permute.xlu0 %2610
  %2612 = vrot.lane.b32.xlu0 %v2589, 104
  %v2613 = vpop.permute.xlu0 %2612
  %2614 = vrot.lane.b32.xlu0 %v2593, 104
  %v2615 = vpop.permute.xlu0 %2614
  %2616 = vrot.lane.b32.xlu0 %v2597, 104
  %v2617 = vpop.permute.xlu0 %2616
  %2618 = vrot.lane.b32.xlu0 %v2601, 104
  %v2619 = vpop.permute.xlu0 %2618
  %2620 = vrot.lane.b32.xlu0 %v2605, 104
  %v2621 = vpop.permute.xlu0 %2620
  %2630 = vst.msk [vmem:[%s5 + $0x3] sm:$0x1] %vm1204, %v2607
  %2631 = vst.msk [vmem:[%s5 + $0xb] sm:$0x1] %vm1204, %v2609
  %2632 = vst.msk [vmem:[%s5 + $0x13] sm:$0x1] %vm1204, %v2611
  %2633 = vst.msk [vmem:[%s5 + $0x1b] sm:$0x1] %vm1204, %v2613
  %2634 = vst.msk [vmem:[%s5 + $0x23] sm:$0x1] %vm1204, %v2615
  %2635 = vst.msk [vmem:[%s5 + $0x2b] sm:$0x1] %vm1204, %v2617
  %2636 = vst.msk [vmem:[%s5 + $0x33] sm:$0x1] %vm1204, %v2619
  %2637 = vst.msk [vmem:[%s5 + $0x3b] sm:$0x1] %vm1204, %v2621
  %2638 = vrot.lane.b32.xlu0 %v2387, 120
  %v2639 = vpop.permute.xlu0 %2638
  %2641 = vrot.lane.b32.xlu0 %v2523, 104
  %v2642 = vpop.permute.xlu0 %2641
  %v2644 = vsel %vm1219, %v2639, %v2642
  %v2646 = vsel %vm69, %v2644, 0
  %2648 = vmatprep.subr.mxu0 0.0
  %2649 = vmatpush1.msra.mxu0 %v22
  %2650 = vmatprep.subr.mxu0 0.0
  %2651 = vmatpush1.msra.mxu0 %v23
  %2652 = vmatprep.subr.mxu0 0.0
  %2653 = vmatpush1.msra.mxu0 0.0
  %2654 = vmatprep.subr.mxu0 0.0
  %2655 = vmatpush1.msra.mxu0 0.0
  %2656 = vmatprep.subr.mxu0 0.0
  %2657 = vmatpush1.msra.mxu0 0.0
  %2658 = vmatprep.subr.mxu0 0.0
  %2659 = vmatpush1.msra.mxu0 0.0
  %2660 = vmatprep.subr.mxu0 0.0
  %2661 = vmatpush1.msra.mxu0 0.0
  %2662 = vmatprep.subr.mxu0 0.0
  %2663 = vmatpush1.msra.mxu0 0.0
  %2664 = vmatprep.subr.mxu0 0.0
  %2665 = vmatpush1.msra.mxu0 0.0
  %2666 = vmatprep.subr.mxu0 0.0
  %2667 = vmatpush1.msra.mxu0 0.0
  %2668 = vmatprep.subr.mxu0 0.0
  %2669 = vmatpush1.msra.mxu0 0.0
  %2670 = vmatprep.subr.mxu0 0.0
  %2671 = vmatpush1.msra.mxu0 0.0
  %2672 = vmatprep.subr.mxu0 0.0
  %2673 = vmatpush1.msra.mxu0 0.0
  %2674 = vmatprep.subr.mxu0 0.0
  %2675 = vmatpush1.msra.mxu0 0.0
  %2676 = vmatprep.subr.mxu0 0.0
  %2677 = vmatpush1.msra.mxu0 0.0
  %2678 = vmatprep.subr.mxu0 0.0
  %2679 = vmatpush1.msra.mxu0 0.0
  %2680 = vmatprep.subr.mxu0 0.0
  %2681 = vmatpush1.msra.mxu0 0.0
  %2682 = vmatprep.subr.mxu0 0.0
  %2683 = vmatpush1.msra.mxu0 0.0
  %2684 = vmatprep.subr.mxu0 0.0
  %2685 = vmatpush1.msra.mxu0 0.0
  %2686 = vmatprep.subr.mxu0 0.0
  %2687 = vmatpush1.msra.mxu0 0.0
  %2688 = vmatprep.subr.mxu0 0.0
  %2689 = vmatpush1.msra.mxu0 0.0
  %2690 = vmatprep.subr.mxu0 0.0
  %2691 = vmatpush1.msra.mxu0 0.0
  %2692 = vmatprep.subr.mxu0 0.0
  %2693 = vmatpush1.msra.mxu0 0.0
  %2694 = vmatprep.subr.mxu0 0.0
  %2695 = vmatpush1.msra.mxu0 0.0
  %2696 = vmatprep.subr.mxu0 0.0
  %2697 = vmatpush1.msra.mxu0 0.0
  %2698 = vmatprep.subr.mxu0 0.0
  %2699 = vmatpush1.msra.mxu0 0.0
  %2700 = vmatprep.subr.mxu0 0.0
  %2701 = vmatpush1.msra.mxu0 0.0
  %2702 = vmatprep.subr.mxu0 0.0
  %2703 = vmatpush1.msra.mxu0 0.0
  %2704 = vmatprep.subr.mxu0 0.0
  %2705 = vmatpush1.msra.mxu0 0.0
  %2706 = vmatprep.subr.mxu0 0.0
  %2707 = vmatpush1.msra.mxu0 0.0
  %2708 = vmatprep.subr.mxu0 0.0
  %2709 = vmatpush1.msra.mxu0 0.0
  %2710 = vmatprep.subr.mxu0 0.0
  %2711 = vmatpush1.msra.mxu0 0.0
  %2712 = vmatprep.mubr.f32.mxu0 0.0
  %2713 = vmatmul.mubr.f32.gmra.mrb[0].mxu0 %v2646
  %v2714 = vpop.f32.mrb[0].mxu0
  %v2715 = vadd.f32 %v860, %v2714
  %v2716 = vpop.f32.mrb[0].mxu0
  %2717 = vdwg.mxu0
  %v2718 = vadd.f32 %v649, %v2715
  %v2719 = vxor.u32 %v2718, 2147483648
  %v2720 = vmul.f32 %v2719, 1.442695
  %v2721 = vpow.pop %v2720
  %v2722 = vadd.f32 %v2721, 1.0
  %v2723 = vrcp.pop %v2722
  %v2724 = vmul.f32 1.0, %v2723
  %2726 = vrot.lane.b32.xlu0 %v2715, 112
  %v2727 = vpop.permute.xlu0 %2726
  %v2729 = vmul.f32 %v2724, %v2727
  %2731 = vrot.lane.b32.xlu0 %v2729, 16
  %v2732 = vpop.permute.xlu0 %2731
  %v2734 = vadd.f32 %v649, %v2732
  %v2735 = vtanh.pop %v2734
  %v2736 = vsub.f32 1.0, %v2724
  %2738 = vrot.lane.b32.xlu0 %v2735, 120
  %v2739 = vpop.permute.xlu0 %2738
  %v2741 = vmul.f32 %v2736, %v2739
  %v2742 = vmul.f32 %v2724, %v2387
  %v2743 = vadd.f32 %v2741, %v2742
  %v2745 = vcombine.high %v2743, %v2743
  %v2747 = vunpack.c.l.s4 1966171168
  %v2748 = vunpack.c.0.s8 %v2747
  %v2749 = vlaneseq
  %v2750 = vshrl.u32 %v2749, 7
  %v2751 = vsub.s32 %v2748, %v2750
  %v2752 = vrot.slane %v2743, %v2751
  %v2754 = vunpack.c.l.s4 1966171168
  %v2755 = vunpack.c.0.s8 %v2754
  %v2756 = vlaneseq
  %v2757 = vshrl.u32 %v2756, 7
  %v2758 = vsub.s32 %v2755, %v2757
  %v2759 = vrot.slane %v2745, %v2758
  %v2760 = vcombine.high %v2752, %v2752
  %v2761 = vcombine.high %v2759, %v2759
  %v2763 = vunpack.c.l.s4 1966171168
  %v2764 = vunpack.c.0.s8 %v2763
  %v2765 = vlaneseq
  %v2766 = vshrl.u32 %v2765, 7
  %v2767 = vsub.s32 %v2764, %v2766
  %v2768 = vrot.slane %v2752, %v2767
  %v2770 = vunpack.c.l.s4 1966171168
  %v2771 = vunpack.c.0.s8 %v2770
  %v2772 = vlaneseq
  %v2773 = vshrl.u32 %v2772, 7
  %v2774 = vsub.s32 %v2771, %v2773
  %v2775 = vrot.slane %v2759, %v2774
  %v2777 = vunpack.c.l.s4 1966171168
  %v2778 = vunpack.c.0.s8 %v2777
  %v2779 = vlaneseq
  %v2780 = vshrl.u32 %v2779, 7
  %v2781 = vsub.s32 %v2778, %v2780
  %v2782 = vrot.slane %v2760, %v2781
  %v2784 = vunpack.c.l.s4 1966171168
  %v2785 = vunpack.c.0.s8 %v2784
  %v2786 = vlaneseq
  %v2787 = vshrl.u32 %v2786, 7
  %v2788 = vsub.s32 %v2785, %v2787
  %v2789 = vrot.slane %v2761, %v2788
  %v2790 = vcombine.high %v2768, %v2768
  %v2791 = vcombine.high %v2775, %v2775
  %v2792 = vcombine.high %v2782, %v2782
  %v2793 = vcombine.high %v2789, %v2789
  %v2794 = vlaneseq
  %v2795 = vshrl.u32 %v2794, 7
  %v2796 = vsub.s32 0, %v2795
  %v2797 = vrot.slane %v2768, %v2796
  %v2798 = vlaneseq
  %v2799 = vshrl.u32 %v2798, 7
  %v2800 = vsub.s32 0, %v2799
  %v2801 = vrot.slane %v2782, %v2800
  %v2802 = vlaneseq
  %v2803 = vshrl.u32 %v2802, 7
  %v2804 = vsub.s32 0, %v2803
  %v2805 = vrot.slane %v2790, %v2804
  %v2806 = vlaneseq
  %v2807 = vshrl.u32 %v2806, 7
  %v2808 = vsub.s32 0, %v2807
  %v2809 = vrot.slane %v2792, %v2808
  %v2810 = vlaneseq
  %v2811 = vshrl.u32 %v2810, 7
  %v2812 = vsub.s32 0, %v2811
  %v2813 = vrot.slane %v2775, %v2812
  %v2814 = vlaneseq
  %v2815 = vshrl.u32 %v2814, 7
  %v2816 = vsub.s32 0, %v2815
  %v2817 = vrot.slane %v2789, %v2816
  %v2818 = vlaneseq
  %v2819 = vshrl.u32 %v2818, 7
  %v2820 = vsub.s32 0, %v2819
  %v2821 = vrot.slane %v2791, %v2820
  %v2822 = vlaneseq
  %v2823 = vshrl.u32 %v2822, 7
  %v2824 = vsub.s32 0, %v2823
  %v2825 = vrot.slane %v2793, %v2824
  %2826 = vrot.lane.b32.xlu0 %v2797, 120
  %v2827 = vpop.permute.xlu0 %2826
  %2828 = vrot.lane.b32.xlu0 %v2801, 120
  %v2829 = vpop.permute.xlu0 %2828
  %2830 = vrot.lane.b32.xlu0 %v2805, 120
  %v2831 = vpop.permute.xlu0 %2830
  %2832 = vrot.lane.b32.xlu0 %v2809, 120
  %v2833 = vpop.permute.xlu0 %2832
  %2834 = vrot.lane.b32.xlu0 %v2813, 120
  %v2835 = vpop.permute.xlu0 %2834
  %2836 = vrot.lane.b32.xlu0 %v2817, 120
  %v2837 = vpop.permute.xlu0 %2836
  %2838 = vrot.lane.b32.xlu0 %v2821, 120
  %v2839 = vpop.permute.xlu0 %2838
  %2840 = vrot.lane.b32.xlu0 %v2825, 120
  %v2841 = vpop.permute.xlu0 %2840
  %2850 = vst.msk [vmem:[%s5 + $0x5] sm:$0x1] %vm1067, %v2827
  %2851 = vst.msk [vmem:[%s5 + $0xd] sm:$0x1] %vm1067, %v2829
  %2852 = vst.msk [vmem:[%s5 + $0x15] sm:$0x1] %vm1067, %v2831
  %2853 = vst.msk [vmem:[%s5 + $0x1d] sm:$0x1] %vm1067, %v2833
  %2854 = vst.msk [vmem:[%s5 + $0x25] sm:$0x1] %vm1067, %v2835
  %2855 = vst.msk [vmem:[%s5 + $0x2d] sm:$0x1] %vm1067, %v2837
  %2856 = vst.msk [vmem:[%s5 + $0x35] sm:$0x1] %vm1067, %v2839
  %2857 = vst.msk [vmem:[%s5 + $0x3d] sm:$0x1] %vm1067, %v2841
  %v2858 = vadd.f32 %v343, %v2715
  %v2859 = vxor.u32 %v2858, 2147483648
  %v2860 = vmul.f32 %v2859, 1.442695
  %v2861 = vpow.pop %v2860
  %v2862 = vadd.f32 %v2861, 1.0
  %v2863 = vrcp.pop %v2862
  %v2864 = vmul.f32 1.0, %v2863
  %v2865 = vmul.f32 %v2864, %v2727
  %2867 = vrot.lane.b32.xlu0 %v2865, 16
  %v2868 = vpop.permute.xlu0 %2867
  %v2870 = vadd.f32 %v343, %v2868
  %v2871 = vtanh.pop %v2870
  %v2872 = vsub.f32 1.0, %v2864
  %2874 = vrot.lane.b32.xlu0 %v2871, 120
  %v2875 = vpop.permute.xlu0 %2874
  %v2877 = vmul.f32 %v2872, %v2875
  %v2878 = vmul.f32 %v2864, %v2523
  %v2879 = vadd.f32 %v2877, %v2878
  %v2881 = vcombine.high %v2879, %v2879
  %v2883 = vunpack.c.l.s4 1966171168
  %v2884 = vunpack.c.0.s8 %v2883
  %v2885 = vlaneseq
  %v2886 = vshrl.u32 %v2885, 7
  %v2887 = vsub.s32 %v2884, %v2886
  %v2888 = vrot.slane %v2879, %v2887
  %v2890 = vunpack.c.l.s4 1966171168
  %v2891 = vunpack.c.0.s8 %v2890
  %v2892 = vlaneseq
  %v2893 = vshrl.u32 %v2892, 7
  %v2894 = vsub.s32 %v2891, %v2893
  %v2895 = vrot.slane %v2881, %v2894
  %v2896 = vcombine.high %v2888, %v2888
  %v2897 = vcombine.high %v2895, %v2895
  %v2899 = vunpack.c.l.s4 1966171168
  %v2900 = vunpack.c.0.s8 %v2899
  %v2901 = vlaneseq
  %v2902 = vshrl.u32 %v2901, 7
  %v2903 = vsub.s32 %v2900, %v2902
  %v2904 = vrot.slane %v2888, %v2903
  %v2906 = vunpack.c.l.s4 1966171168
  %v2907 = vunpack.c.0.s8 %v2906
  %v2908 = vlaneseq
  %v2909 = vshrl.u32 %v2908, 7
  %v2910 = vsub.s32 %v2907, %v2909
  %v2911 = vrot.slane %v2895, %v2910
  %v2913 = vunpack.c.l.s4 1966171168
  %v2914 = vunpack.c.0.s8 %v2913
  %v2915 = vlaneseq
  %v2916 = vshrl.u32 %v2915, 7
  %v2917 = vsub.s32 %v2914, %v2916
  %v2918 = vrot.slane %v2896, %v2917
  %v2920 = vunpack.c.l.s4 1966171168
  %v2921 = vunpack.c.0.s8 %v2920
  %v2922 = vlaneseq
  %v2923 = vshrl.u32 %v2922, 7
  %v2924 = vsub.s32 %v2921, %v2923
  %v2925 = vrot.slane %v2897, %v2924
  %v2926 = vcombine.high %v2904, %v2904
  %v2927 = vcombine.high %v2911, %v2911
  %v2928 = vcombine.high %v2918, %v2918
  %v2929 = vcombine.high %v2925, %v2925
  %v2930 = vlaneseq
  %v2931 = vshrl.u32 %v2930, 7
  %v2932 = vsub.s32 0, %v2931
  %v2933 = vrot.slane %v2904, %v2932
  %v2934 = vlaneseq
  %v2935 = vshrl.u32 %v2934, 7
  %v2936 = vsub.s32 0, %v2935
  %v2937 = vrot.slane %v2918, %v2936
  %v2938 = vlaneseq
  %v2939 = vshrl.u32 %v2938, 7
  %v2940 = vsub.s32 0, %v2939
  %v2941 = vrot.slane %v2926, %v2940
  %v2942 = vlaneseq
  %v2943 = vshrl.u32 %v2942, 7
  %v2944 = vsub.s32 0, %v2943
  %v2945 = vrot.slane %v2928, %v2944
  %v2946 = vlaneseq
  %v2947 = vshrl.u32 %v2946, 7
  %v2948 = vsub.s32 0, %v2947
  %v2949 = vrot.slane %v2911, %v2948
  %v2950 = vlaneseq
  %v2951 = vshrl.u32 %v2950, 7
  %v2952 = vsub.s32 0, %v2951
  %v2953 = vrot.slane %v2925, %v2952
  %v2954 = vlaneseq
  %v2955 = vshrl.u32 %v2954, 7
  %v2956 = vsub.s32 0, %v2955
  %v2957 = vrot.slane %v2927, %v2956
  %v2958 = vlaneseq
  %v2959 = vshrl.u32 %v2958, 7
  %v2960 = vsub.s32 0, %v2959
  %v2961 = vrot.slane %v2929, %v2960
  %2962 = vrot.lane.b32.xlu0 %v2933, 104
  %v2963 = vpop.permute.xlu0 %2962
  %2964 = vrot.lane.b32.xlu0 %v2937, 104
  %v2965 = vpop.permute.xlu0 %2964
  %2966 = vrot.lane.b32.xlu0 %v2941, 104
  %v2967 = vpop.permute.xlu0 %2966
  %2968 = vrot.lane.b32.xlu0 %v2945, 104
  %v2969 = vpop.permute.xlu0 %2968
  %2970 = vrot.lane.b32.xlu0 %v2949, 104
  %v2971 = vpop.permute.xlu0 %2970
  %2972 = vrot.lane.b32.xlu0 %v2953, 104
  %v2973 = vpop.permute.xlu0 %2972
  %2974 = vrot.lane.b32.xlu0 %v2957, 104
  %v2975 = vpop.permute.xlu0 %2974
  %2976 = vrot.lane.b32.xlu0 %v2961, 104
  %v2977 = vpop.permute.xlu0 %2976
  %2986 = vst.msk [vmem:[%s5 + $0x2] sm:$0x1] %vm1204, %v2963
  %2987 = vst.msk [vmem:[%s5 + $0xa] sm:$0x1] %vm1204, %v2965
  %2988 = vst.msk [vmem:[%s5 + $0x12] sm:$0x1] %vm1204, %v2967
  %2989 = vst.msk [vmem:[%s5 + $0x1a] sm:$0x1] %vm1204, %v2969
  %2990 = vst.msk [vmem:[%s5 + $0x22] sm:$0x1] %vm1204, %v2971
  %2991 = vst.msk [vmem:[%s5 + $0x2a] sm:$0x1] %vm1204, %v2973
  %2992 = vst.msk [vmem:[%s5 + $0x32] sm:$0x1] %vm1204, %v2975
  %2993 = vst.msk [vmem:[%s5 + $0x3a] sm:$0x1] %vm1204, %v2977
  %2994 = vrot.lane.b32.xlu0 %v2743, 120
  %v2995 = vpop.permute.xlu0 %2994
  %2997 = vrot.lane.b32.xlu0 %v2879, 104
  %v2998 = vpop.permute.xlu0 %2997
  %v3000 = vsel %vm1219, %v2995, %v2998
  %v3002 = vsel %vm69, %v3000, 0
  %3004 = vmatprep.subr.mxu0 0.0
  %3005 = vmatpush1.msra.mxu0 %v22
  %3006 = vmatprep.subr.mxu0 0.0
  %3007 = vmatpush1.msra.mxu0 %v23
  %3008 = vmatprep.subr.mxu0 0.0
  %3009 = vmatpush1.msra.mxu0 0.0
  %3010 = vmatprep.subr.mxu0 0.0
  %3011 = vmatpush1.msra.mxu0 0.0
  %3012 = vmatprep.subr.mxu0 0.0
  %3013 = vmatpush1.msra.mxu0 0.0
  %3014 = vmatprep.subr.mxu0 0.0
  %3015 = vmatpush1.msra.mxu0 0.0
  %3016 = vmatprep.subr.mxu0 0.0
  %3017 = vmatpush1.msra.mxu0 0.0
  %3018 = vmatprep.subr.mxu0 0.0
  %3019 = vmatpush1.msra.mxu0 0.0
  %3020 = vmatprep.subr.mxu0 0.0
  %3021 = vmatpush1.msra.mxu0 0.0
  %3022 = vmatprep.subr.mxu0 0.0
  %3023 = vmatpush1.msra.mxu0 0.0
  %3024 = vmatprep.subr.mxu0 0.0
  %3025 = vmatpush1.msra.mxu0 0.0
  %3026 = vmatprep.subr.mxu0 0.0
  %3027 = vmatpush1.msra.mxu0 0.0
  %3028 = vmatprep.subr.mxu0 0.0
  %3029 = vmatpush1.msra.mxu0 0.0
  %3030 = vmatprep.subr.mxu0 0.0
  %3031 = vmatpush1.msra.mxu0 0.0
  %3032 = vmatprep.subr.mxu0 0.0
  %3033 = vmatpush1.msra.mxu0 0.0
  %3034 = vmatprep.subr.mxu0 0.0
  %3035 = vmatpush1.msra.mxu0 0.0
  %3036 = vmatprep.subr.mxu0 0.0
  %3037 = vmatpush1.msra.mxu0 0.0
  %3038 = vmatprep.subr.mxu0 0.0
  %3039 = vmatpush1.msra.mxu0 0.0
  %3040 = vmatprep.subr.mxu0 0.0
  %3041 = vmatpush1.msra.mxu0 0.0
  %3042 = vmatprep.subr.mxu0 0.0
  %3043 = vmatpush1.msra.mxu0 0.0
  %3044 = vmatprep.subr.mxu0 0.0
  %3045 = vmatpush1.msra.mxu0 0.0
  %3046 = vmatprep.subr.mxu0 0.0
  %3047 = vmatpush1.msra.mxu0 0.0
  %3048 = vmatprep.subr.mxu0 0.0
  %3049 = vmatpush1.msra.mxu0 0.0
  %3050 = vmatprep.subr.mxu0 0.0
  %3051 = vmatpush1.msra.mxu0 0.0
  %3052 = vmatprep.subr.mxu0 0.0
  %3053 = vmatpush1.msra.mxu0 0.0
  %3054 = vmatprep.subr.mxu0 0.0
  %3055 = vmatpush1.msra.mxu0 0.0
  %3056 = vmatprep.subr.mxu0 0.0
  %3057 = vmatpush1.msra.mxu0 0.0
  %3058 = vmatprep.subr.mxu0 0.0
  %3059 = vmatpush1.msra.mxu0 0.0
  %3060 = vmatprep.subr.mxu0 0.0
  %3061 = vmatpush1.msra.mxu0 0.0
  %3062 = vmatprep.subr.mxu0 0.0
  %3063 = vmatpush1.msra.mxu0 0.0
  %3064 = vmatprep.subr.mxu0 0.0
  %3065 = vmatpush1.msra.mxu0 0.0
  %3066 = vmatprep.subr.mxu0 0.0
  %3067 = vmatpush1.msra.mxu0 0.0
  %3068 = vmatprep.mubr.f32.mxu0 0.0
  %3069 = vmatmul.mubr.f32.gmra.mrb[0].mxu0 %v3002
  %v3070 = vpop.f32.mrb[0].mxu0
  %v3071 = vadd.f32 %v860, %v3070
  %v3072 = vpop.f32.mrb[0].mxu0
  %3073 = vdwg.mxu0
  %v3074 = vadd.f32 %v751, %v3071
  %v3075 = vxor.u32 %v3074, 2147483648
  %v3076 = vmul.f32 %v3075, 1.442695
  %v3077 = vpow.pop %v3076
  %v3078 = vadd.f32 %v3077, 1.0
  %v3079 = vrcp.pop %v3078
  %v3080 = vmul.f32 1.0, %v3079
  %3082 = vrot.lane.b32.xlu0 %v3071, 112
  %v3083 = vpop.permute.xlu0 %3082
  %v3085 = vmul.f32 %v3080, %v3083
  %3087 = vrot.lane.b32.xlu0 %v3085, 16
  %v3088 = vpop.permute.xlu0 %3087
  %v3090 = vadd.f32 %v751, %v3088
  %v3091 = vtanh.pop %v3090
  %v3092 = vsub.f32 1.0, %v3080
  %3094 = vrot.lane.b32.xlu0 %v3091, 120
  %v3095 = vpop.permute.xlu0 %3094
  %v3097 = vmul.f32 %v3092, %v3095
  %v3098 = vmul.f32 %v3080, %v2743
  %v3099 = vadd.f32 %v3097, %v3098
  %v3101 = vcombine.high %v3099, %v3099
  %v3103 = vunpack.c.l.s4 1966171168
  %v3104 = vunpack.c.0.s8 %v3103
  %v3105 = vlaneseq
  %v3106 = vshrl.u32 %v3105, 7
  %v3107 = vsub.s32 %v3104, %v3106
  %v3108 = vrot.slane %v3099, %v3107
  %v3110 = vunpack.c.l.s4 1966171168
  %v3111 = vunpack.c.0.s8 %v3110
  %v3112 = vlaneseq
  %v3113 = vshrl.u32 %v3112, 7
  %v3114 = vsub.s32 %v3111, %v3113
  %v3115 = vrot.slane %v3101, %v3114
  %v3116 = vcombine.high %v3108, %v3108
  %v3117 = vcombine.high %v3115, %v3115
  %v3119 = vunpack.c.l.s4 1966171168
  %v3120 = vunpack.c.0.s8 %v3119
  %v3121 = vlaneseq
  %v3122 = vshrl.u32 %v3121, 7
  %v3123 = vsub.s32 %v3120, %v3122
  %v3124 = vrot.slane %v3108, %v3123
  %v3126 = vunpack.c.l.s4 1966171168
  %v3127 = vunpack.c.0.s8 %v3126
  %v3128 = vlaneseq
  %v3129 = vshrl.u32 %v3128, 7
  %v3130 = vsub.s32 %v3127, %v3129
  %v3131 = vrot.slane %v3115, %v3130
  %v3133 = vunpack.c.l.s4 1966171168
  %v3134 = vunpack.c.0.s8 %v3133
  %v3135 = vlaneseq
  %v3136 = vshrl.u32 %v3135, 7
  %v3137 = vsub.s32 %v3134, %v3136
  %v3138 = vrot.slane %v3116, %v3137
  %v3140 = vunpack.c.l.s4 1966171168
  %v3141 = vunpack.c.0.s8 %v3140
  %v3142 = vlaneseq
  %v3143 = vshrl.u32 %v3142, 7
  %v3144 = vsub.s32 %v3141, %v3143
  %v3145 = vrot.slane %v3117, %v3144
  %v3146 = vcombine.high %v3124, %v3124
  %v3147 = vcombine.high %v3131, %v3131
  %v3148 = vcombine.high %v3138, %v3138
  %v3149 = vcombine.high %v3145, %v3145
  %v3150 = vlaneseq
  %v3151 = vshrl.u32 %v3150, 7
  %v3152 = vsub.s32 0, %v3151
  %v3153 = vrot.slane %v3124, %v3152
  %v3154 = vlaneseq
  %v3155 = vshrl.u32 %v3154, 7
  %v3156 = vsub.s32 0, %v3155
  %v3157 = vrot.slane %v3138, %v3156
  %v3158 = vlaneseq
  %v3159 = vshrl.u32 %v3158, 7
  %v3160 = vsub.s32 0, %v3159
  %v3161 = vrot.slane %v3146, %v3160
  %v3162 = vlaneseq
  %v3163 = vshrl.u32 %v3162, 7
  %v3164 = vsub.s32 0, %v3163
  %v3165 = vrot.slane %v3148, %v3164
  %v3166 = vlaneseq
  %v3167 = vshrl.u32 %v3166, 7
  %v3168 = vsub.s32 0, %v3167
  %v3169 = vrot.slane %v3131, %v3168
  %v3170 = vlaneseq
  %v3171 = vshrl.u32 %v3170, 7
  %v3172 = vsub.s32 0, %v3171
  %v3173 = vrot.slane %v3145, %v3172
  %v3174 = vlaneseq
  %v3175 = vshrl.u32 %v3174, 7
  %v3176 = vsub.s32 0, %v3175
  %v3177 = vrot.slane %v3147, %v3176
  %v3178 = vlaneseq
  %v3179 = vshrl.u32 %v3178, 7
  %v3180 = vsub.s32 0, %v3179
  %v3181 = vrot.slane %v3149, %v3180
  %3182 = vrot.lane.b32.xlu0 %v3153, 120
  %v3183 = vpop.permute.xlu0 %3182
  %3184 = vrot.lane.b32.xlu0 %v3157, 120
  %v3185 = vpop.permute.xlu0 %3184
  %3186 = vrot.lane.b32.xlu0 %v3161, 120
  %v3187 = vpop.permute.xlu0 %3186
  %3188 = vrot.lane.b32.xlu0 %v3165, 120
  %v3189 = vpop.permute.xlu0 %3188
  %3190 = vrot.lane.b32.xlu0 %v3169, 120
  %v3191 = vpop.permute.xlu0 %3190
  %3192 = vrot.lane.b32.xlu0 %v3173, 120
  %v3193 = vpop.permute.xlu0 %3192
  %3194 = vrot.lane.b32.xlu0 %v3177, 120
  %v3195 = vpop.permute.xlu0 %3194
  %3196 = vrot.lane.b32.xlu0 %v3181, 120
  %v3197 = vpop.permute.xlu0 %3196
  %3206 = vst.msk [vmem:[%s5 + $0x6] sm:$0x1] %vm1067, %v3183
  %3207 = vst.msk [vmem:[%s5 + $0xe] sm:$0x1] %vm1067, %v3185
  %3208 = vst.msk [vmem:[%s5 + $0x16] sm:$0x1] %vm1067, %v3187
  %3209 = vst.msk [vmem:[%s5 + $0x1e] sm:$0x1] %vm1067, %v3189
  %3210 = vst.msk [vmem:[%s5 + $0x26] sm:$0x1] %vm1067, %v3191
  %3211 = vst.msk [vmem:[%s5 + $0x2e] sm:$0x1] %vm1067, %v3193
  %3212 = vst.msk [vmem:[%s5 + $0x36] sm:$0x1] %vm1067, %v3195
  %3213 = vst.msk [vmem:[%s5 + $0x3e] sm:$0x1] %vm1067, %v3197
  %v3214 = vadd.f32 %v241, %v3071
  %v3215 = vxor.u32 %v3214, 2147483648
  %v3216 = vmul.f32 %v3215, 1.442695
  %v3217 = vpow.pop %v3216
  %v3218 = vadd.f32 %v3217, 1.0
  %v3219 = vrcp.pop %v3218
  %v3220 = vmul.f32 1.0, %v3219
  %v3221 = vmul.f32 %v3220, %v3083
  %3223 = vrot.lane.b32.xlu0 %v3221, 16
  %v3224 = vpop.permute.xlu0 %3223
  %v3226 = vadd.f32 %v241, %v3224
  %v3227 = vtanh.pop %v3226
  %v3228 = vsub.f32 1.0, %v3220
  %3230 = vrot.lane.b32.xlu0 %v3227, 120
  %v3231 = vpop.permute.xlu0 %3230
  %v3233 = vmul.f32 %v3228, %v3231
  %v3234 = vmul.f32 %v3220, %v2879
  %v3235 = vadd.f32 %v3233, %v3234
  %v3237 = vcombine.high %v3235, %v3235
  %v3239 = vunpack.c.l.s4 1966171168
  %v3240 = vunpack.c.0.s8 %v3239
  %v3241 = vlaneseq
  %v3242 = vshrl.u32 %v3241, 7
  %v3243 = vsub.s32 %v3240, %v3242
  %v3244 = vrot.slane %v3235, %v3243
  %v3246 = vunpack.c.l.s4 1966171168
  %v3247 = vunpack.c.0.s8 %v3246
  %v3248 = vlaneseq
  %v3249 = vshrl.u32 %v3248, 7
  %v3250 = vsub.s32 %v3247, %v3249
  %v3251 = vrot.slane %v3237, %v3250
  %v3252 = vcombine.high %v3244, %v3244
  %v3253 = vcombine.high %v3251, %v3251
  %v3255 = vunpack.c.l.s4 1966171168
  %v3256 = vunpack.c.0.s8 %v3255
  %v3257 = vlaneseq
  %v3258 = vshrl.u32 %v3257, 7
  %v3259 = vsub.s32 %v3256, %v3258
  %v3260 = vrot.slane %v3244, %v3259
  %v3262 = vunpack.c.l.s4 1966171168
  %v3263 = vunpack.c.0.s8 %v3262
  %v3264 = vlaneseq
  %v3265 = vshrl.u32 %v3264, 7
  %v3266 = vsub.s32 %v3263, %v3265
  %v3267 = vrot.slane %v3251, %v3266
  %v3269 = vunpack.c.l.s4 1966171168
  %v3270 = vunpack.c.0.s8 %v3269
  %v3271 = vlaneseq
  %v3272 = vshrl.u32 %v3271, 7
  %v3273 = vsub.s32 %v3270, %v3272
  %v3274 = vrot.slane %v3252, %v3273
  %v3276 = vunpack.c.l.s4 1966171168
  %v3277 = vunpack.c.0.s8 %v3276
  %v3278 = vlaneseq
  %v3279 = vshrl.u32 %v3278, 7
  %v3280 = vsub.s32 %v3277, %v3279
  %v3281 = vrot.slane %v3253, %v3280
  %v3282 = vcombine.high %v3260, %v3260
  %v3283 = vcombine.high %v3267, %v3267
  %v3284 = vcombine.high %v3274, %v3274
  %v3285 = vcombine.high %v3281, %v3281
  %v3286 = vlaneseq
  %v3287 = vshrl.u32 %v3286, 7
  %v3288 = vsub.s32 0, %v3287
  %v3289 = vrot.slane %v3260, %v3288
  %v3290 = vlaneseq
  %v3291 = vshrl.u32 %v3290, 7
  %v3292 = vsub.s32 0, %v3291
  %v3293 = vrot.slane %v3274, %v3292
  %v3294 = vlaneseq
  %v3295 = vshrl.u32 %v3294, 7
  %v3296 = vsub.s32 0, %v3295
  %v3297 = vrot.slane %v3282, %v3296
  %v3298 = vlaneseq
  %v3299 = vshrl.u32 %v3298, 7
  %v3300 = vsub.s32 0, %v3299
  %v3301 = vrot.slane %v3284, %v3300
  %v3302 = vlaneseq
  %v3303 = vshrl.u32 %v3302, 7
  %v3304 = vsub.s32 0, %v3303
  %v3305 = vrot.slane %v3267, %v3304
  %v3306 = vlaneseq
  %v3307 = vshrl.u32 %v3306, 7
  %v3308 = vsub.s32 0, %v3307
  %v3309 = vrot.slane %v3281, %v3308
  %v3310 = vlaneseq
  %v3311 = vshrl.u32 %v3310, 7
  %v3312 = vsub.s32 0, %v3311
  %v3313 = vrot.slane %v3283, %v3312
  %v3314 = vlaneseq
  %v3315 = vshrl.u32 %v3314, 7
  %v3316 = vsub.s32 0, %v3315
  %v3317 = vrot.slane %v3285, %v3316
  %3318 = vrot.lane.b32.xlu0 %v3289, 104
  %v3319 = vpop.permute.xlu0 %3318
  %3320 = vrot.lane.b32.xlu0 %v3293, 104
  %v3321 = vpop.permute.xlu0 %3320
  %3322 = vrot.lane.b32.xlu0 %v3297, 104
  %v3323 = vpop.permute.xlu0 %3322
  %3324 = vrot.lane.b32.xlu0 %v3301, 104
  %v3325 = vpop.permute.xlu0 %3324
  %3326 = vrot.lane.b32.xlu0 %v3305, 104
  %v3327 = vpop.permute.xlu0 %3326
  %3328 = vrot.lane.b32.xlu0 %v3309, 104
  %v3329 = vpop.permute.xlu0 %3328
  %3330 = vrot.lane.b32.xlu0 %v3313, 104
  %v3331 = vpop.permute.xlu0 %3330
  %3332 = vrot.lane.b32.xlu0 %v3317, 104
  %v3333 = vpop.permute.xlu0 %3332
  %3342 = vst.msk [vmem:[%s5 + $0x1] sm:$0x1] %vm1204, %v3319
  %3343 = vst.msk [vmem:[%s5 + $0x9] sm:$0x1] %vm1204, %v3321
  %3344 = vst.msk [vmem:[%s5 + $0x11] sm:$0x1] %vm1204, %v3323
  %3345 = vst.msk [vmem:[%s5 + $0x19] sm:$0x1] %vm1204, %v3325
  %3346 = vst.msk [vmem:[%s5 + $0x21] sm:$0x1] %vm1204, %v3327
  %3347 = vst.msk [vmem:[%s5 + $0x29] sm:$0x1] %vm1204, %v3329
  %3348 = vst.msk [vmem:[%s5 + $0x31] sm:$0x1] %vm1204, %v3331
  %3349 = vst.msk [vmem:[%s5 + $0x39] sm:$0x1] %vm1204, %v3333
  %3350 = vrot.lane.b32.xlu0 %v3099, 120
  %v3351 = vpop.permute.xlu0 %3350
  %3353 = vrot.lane.b32.xlu0 %v3235, 104
  %v3354 = vpop.permute.xlu0 %3353
  %v3356 = vsel %vm1219, %v3351, %v3354
  %v3358 = vsel %vm69, %v3356, 0
  %3360 = vmatprep.subr.mxu0 0.0
  %3361 = vmatpush1.msra.mxu0 %v22
  %3362 = vmatprep.subr.mxu0 0.0
  %3363 = vmatpush1.msra.mxu0 %v23
  %3364 = vmatprep.subr.mxu0 0.0
  %3365 = vmatpush1.msra.mxu0 0.0
  %3366 = vmatprep.subr.mxu0 0.0
  %3367 = vmatpush1.msra.mxu0 0.0
  %3368 = vmatprep.subr.mxu0 0.0
  %3369 = vmatpush1.msra.mxu0 0.0
  %3370 = vmatprep.subr.mxu0 0.0
  %3371 = vmatpush1.msra.mxu0 0.0
  %3372 = vmatprep.subr.mxu0 0.0
  %3373 = vmatpush1.msra.mxu0 0.0
  %3374 = vmatprep.subr.mxu0 0.0
  %3375 = vmatpush1.msra.mxu0 0.0
  %3376 = vmatprep.subr.mxu0 0.0
  %3377 = vmatpush1.msra.mxu0 0.0
  %3378 = vmatprep.subr.mxu0 0.0
  %3379 = vmatpush1.msra.mxu0 0.0
  %3380 = vmatprep.subr.mxu0 0.0
  %3381 = vmatpush1.msra.mxu0 0.0
  %3382 = vmatprep.subr.mxu0 0.0
  %3383 = vmatpush1.msra.mxu0 0.0
  %3384 = vmatprep.subr.mxu0 0.0
  %3385 = vmatpush1.msra.mxu0 0.0
  %3386 = vmatprep.subr.mxu0 0.0
  %3387 = vmatpush1.msra.mxu0 0.0
  %3388 = vmatprep.subr.mxu0 0.0
  %3389 = vmatpush1.msra.mxu0 0.0
  %3390 = vmatprep.subr.mxu0 0.0
  %3391 = vmatpush1.msra.mxu0 0.0
  %3392 = vmatprep.subr.mxu0 0.0
  %3393 = vmatpush1.msra.mxu0 0.0
  %3394 = vmatprep.subr.mxu0 0.0
  %3395 = vmatpush1.msra.mxu0 0.0
  %3396 = vmatprep.subr.mxu0 0.0
  %3397 = vmatpush1.msra.mxu0 0.0
  %3398 = vmatprep.subr.mxu0 0.0
  %3399 = vmatpush1.msra.mxu0 0.0
  %3400 = vmatprep.subr.mxu0 0.0
  %3401 = vmatpush1.msra.mxu0 0.0
  %3402 = vmatprep.subr.mxu0 0.0
  %3403 = vmatpush1.msra.mxu0 0.0
  %3404 = vmatprep.subr.mxu0 0.0
  %3405 = vmatpush1.msra.mxu0 0.0
  %3406 = vmatprep.subr.mxu0 0.0
  %3407 = vmatpush1.msra.mxu0 0.0
  %3408 = vmatprep.subr.mxu0 0.0
  %3409 = vmatpush1.msra.mxu0 0.0
  %3410 = vmatprep.subr.mxu0 0.0
  %3411 = vmatpush1.msra.mxu0 0.0
  %3412 = vmatprep.subr.mxu0 0.0
  %3413 = vmatpush1.msra.mxu0 0.0
  %3414 = vmatprep.subr.mxu0 0.0
  %3415 = vmatpush1.msra.mxu0 0.0
  %3416 = vmatprep.subr.mxu0 0.0
  %3417 = vmatpush1.msra.mxu0 0.0
  %3418 = vmatprep.subr.mxu0 0.0
  %3419 = vmatpush1.msra.mxu0 0.0
  %3420 = vmatprep.subr.mxu0 0.0
  %3421 = vmatpush1.msra.mxu0 0.0
  %3422 = vmatprep.subr.mxu0 0.0
  %3423 = vmatpush1.msra.mxu0 0.0
  %3424 = vmatprep.mubr.f32.mxu0 0.0
  %3425 = vmatmul.mubr.f32.gmra.mrb[0].mxu0 %v3358
  %v3426 = vpop.f32.mrb[0].mxu0
  %v3427 = vadd.f32 %v860, %v3426
  %v3428 = vpop.f32.mrb[0].mxu0
  %3429 = vdwg.mxu0
  %v3430 = vadd.f32 %v853, %v3427
  %v3431 = vxor.u32 %v3430, 2147483648
  %v3432 = vmul.f32 %v3431, 1.442695
  %v3433 = vpow.pop %v3432
  %v3434 = vadd.f32 %v3433, 1.0
  %v3435 = vrcp.pop %v3434
  %v3436 = vmul.f32 1.0, %v3435
  %3438 = vrot.lane.b32.xlu0 %v3427, 112
  %v3439 = vpop.permute.xlu0 %3438
  %v3441 = vmul.f32 %v3436, %v3439
  %3443 = vrot.lane.b32.xlu0 %v3441, 16
  %v3444 = vpop.permute.xlu0 %3443
  %v3446 = vadd.f32 %v853, %v3444
  %v3447 = vtanh.pop %v3446
  %v3448 = vsub.f32 1.0, %v3436
  %3450 = vrot.lane.b32.xlu0 %v3447, 120
  %v3451 = vpop.permute.xlu0 %3450
  %v3453 = vmul.f32 %v3448, %v3451
  %v3454 = vmul.f32 %v3436, %v3099
  %v3455 = vadd.f32 %v3453, %v3454
  %v3457 = vcombine.high %v3455, %v3455
  %v3459 = vunpack.c.l.s4 1966171168
  %v3460 = vunpack.c.0.s8 %v3459
  %v3461 = vlaneseq
  %v3462 = vshrl.u32 %v3461, 7
  %v3463 = vsub.s32 %v3460, %v3462
  %v3464 = vrot.slane %v3455, %v3463
  %v3466 = vunpack.c.l.s4 1966171168
  %v3467 = vunpack.c.0.s8 %v3466
  %v3468 = vlaneseq
  %v3469 = vshrl.u32 %v3468, 7
  %v3470 = vsub.s32 %v3467, %v3469
  %v3471 = vrot.slane %v3457, %v3470
  %v3472 = vcombine.high %v3464, %v3464
  %v3473 = vcombine.high %v3471, %v3471
  %v3475 = vunpack.c.l.s4 1966171168
  %v3476 = vunpack.c.0.s8 %v3475
  %v3477 = vlaneseq
  %v3478 = vshrl.u32 %v3477, 7
  %v3479 = vsub.s32 %v3476, %v3478
  %v3480 = vrot.slane %v3464, %v3479
  %v3482 = vunpack.c.l.s4 1966171168
  %v3483 = vunpack.c.0.s8 %v3482
  %v3484 = vlaneseq
  %v3485 = vshrl.u32 %v3484, 7
  %v3486 = vsub.s32 %v3483, %v3485
  %v3487 = vrot.slane %v3471, %v3486
  %v3489 = vunpack.c.l.s4 1966171168
  %v3490 = vunpack.c.0.s8 %v3489
  %v3491 = vlaneseq
  %v3492 = vshrl.u32 %v3491, 7
  %v3493 = vsub.s32 %v3490, %v3492
  %v3494 = vrot.slane %v3472, %v3493
  %v3496 = vunpack.c.l.s4 1966171168
  %v3497 = vunpack.c.0.s8 %v3496
  %v3498 = vlaneseq
  %v3499 = vshrl.u32 %v3498, 7
  %v3500 = vsub.s32 %v3497, %v3499
  %v3501 = vrot.slane %v3473, %v3500
  %v3502 = vcombine.high %v3480, %v3480
  %v3503 = vcombine.high %v3487, %v3487
  %v3504 = vcombine.high %v3494, %v3494
  %v3505 = vcombine.high %v3501, %v3501
  %v3506 = vlaneseq
  %v3507 = vshrl.u32 %v3506, 7
  %v3508 = vsub.s32 0, %v3507
  %v3509 = vrot.slane %v3480, %v3508
  %v3510 = vlaneseq
  %v3511 = vshrl.u32 %v3510, 7
  %v3512 = vsub.s32 0, %v3511
  %v3513 = vrot.slane %v3494, %v3512
  %v3514 = vlaneseq
  %v3515 = vshrl.u32 %v3514, 7
  %v3516 = vsub.s32 0, %v3515
  %v3517 = vrot.slane %v3502, %v3516
  %v3518 = vlaneseq
  %v3519 = vshrl.u32 %v3518, 7
  %v3520 = vsub.s32 0, %v3519
  %v3521 = vrot.slane %v3504, %v3520
  %v3522 = vlaneseq
  %v3523 = vshrl.u32 %v3522, 7
  %v3524 = vsub.s32 0, %v3523
  %v3525 = vrot.slane %v3487, %v3524
  %v3526 = vlaneseq
  %v3527 = vshrl.u32 %v3526, 7
  %v3528 = vsub.s32 0, %v3527
  %v3529 = vrot.slane %v3501, %v3528
  %v3530 = vlaneseq
  %v3531 = vshrl.u32 %v3530, 7
  %v3532 = vsub.s32 0, %v3531
  %v3533 = vrot.slane %v3503, %v3532
  %v3534 = vlaneseq
  %v3535 = vshrl.u32 %v3534, 7
  %v3536 = vsub.s32 0, %v3535
  %v3537 = vrot.slane %v3505, %v3536
  %3538 = vrot.lane.b32.xlu0 %v3509, 120
  %v3539 = vpop.permute.xlu0 %3538
  %3540 = vrot.lane.b32.xlu0 %v3513, 120
  %v3541 = vpop.permute.xlu0 %3540
  %3542 = vrot.lane.b32.xlu0 %v3517, 120
  %v3543 = vpop.permute.xlu0 %3542
  %3544 = vrot.lane.b32.xlu0 %v3521, 120
  %v3545 = vpop.permute.xlu0 %3544
  %3546 = vrot.lane.b32.xlu0 %v3525, 120
  %v3547 = vpop.permute.xlu0 %3546
  %3548 = vrot.lane.b32.xlu0 %v3529, 120
  %v3549 = vpop.permute.xlu0 %3548
  %3550 = vrot.lane.b32.xlu0 %v3533, 120
  %v3551 = vpop.permute.xlu0 %3550
  %3552 = vrot.lane.b32.xlu0 %v3537, 120
  %v3553 = vpop.permute.xlu0 %3552
  %3562 = vst.msk [vmem:[%s5 + $0x7] sm:$0x1] %vm1067, %v3539
  %3563 = vst.msk [vmem:[%s5 + $0xf] sm:$0x1] %vm1067, %v3541
  %3564 = vst.msk [vmem:[%s5 + $0x17] sm:$0x1] %vm1067, %v3543
  %3565 = vst.msk [vmem:[%s5 + $0x1f] sm:$0x1] %vm1067, %v3545
  %3566 = vst.msk [vmem:[%s5 + $0x27] sm:$0x1] %vm1067, %v3547
  %3567 = vst.msk [vmem:[%s5 + $0x2f] sm:$0x1] %vm1067, %v3549
  %3568 = vst.msk [vmem:[%s5 + $0x37] sm:$0x1] %vm1067, %v3551
  %3569 = vst.msk [vmem:[%s5 + $0x3f] sm:$0x1] %vm1067, %v3553
  %v3570 = vadd.f32 %v139, %v3427
  %v3571 = vxor.u32 %v3570, 2147483648
  %v3572 = vmul.f32 %v3571, 1.442695
  %v3573 = vpow.pop %v3572
  %v3574 = vadd.f32 %v3573, 1.0
  %v3575 = vrcp.pop %v3574
  %v3576 = vmul.f32 1.0, %v3575
  %v3577 = vmul.f32 %v3576, %v3439
  %3579 = vrot.lane.b32.xlu0 %v3577, 16
  %v3580 = vpop.permute.xlu0 %3579
  %v3582 = vadd.f32 %v139, %v3580
  %v3583 = vtanh.pop %v3582
  %v3584 = vsub.f32 1.0, %v3576
  %3586 = vrot.lane.b32.xlu0 %v3583, 120
  %v3587 = vpop.permute.xlu0 %3586
  %v3589 = vmul.f32 %v3584, %v3587
  %v3590 = vmul.f32 %v3576, %v3235
  %v3591 = vadd.f32 %v3589, %v3590
  %v3593 = vcombine.high %v3591, %v3591
  %v3595 = vunpack.c.l.s4 1966171168
  %v3596 = vunpack.c.0.s8 %v3595
  %v3597 = vlaneseq
  %v3598 = vshrl.u32 %v3597, 7
  %v3599 = vsub.s32 %v3596, %v3598
  %v3600 = vrot.slane %v3591, %v3599
  %v3602 = vunpack.c.l.s4 1966171168
  %v3603 = vunpack.c.0.s8 %v3602
  %v3604 = vlaneseq
  %v3605 = vshrl.u32 %v3604, 7
  %v3606 = vsub.s32 %v3603, %v3605
  %v3607 = vrot.slane %v3593, %v3606
  %v3608 = vcombine.high %v3600, %v3600
  %v3609 = vcombine.high %v3607, %v3607
  %v3611 = vunpack.c.l.s4 1966171168
  %v3612 = vunpack.c.0.s8 %v3611
  %v3613 = vlaneseq
  %v3614 = vshrl.u32 %v3613, 7
  %v3615 = vsub.s32 %v3612, %v3614
  %v3616 = vrot.slane %v3600, %v3615
  %v3618 = vunpack.c.l.s4 1966171168
  %v3619 = vunpack.c.0.s8 %v3618
  %v3620 = vlaneseq
  %v3621 = vshrl.u32 %v3620, 7
  %v3622 = vsub.s32 %v3619, %v3621
  %v3623 = vrot.slane %v3607, %v3622
  %v3625 = vunpack.c.l.s4 1966171168
  %v3626 = vunpack.c.0.s8 %v3625
  %v3627 = vlaneseq
  %v3628 = vshrl.u32 %v3627, 7
  %v3629 = vsub.s32 %v3626, %v3628
  %v3630 = vrot.slane %v3608, %v3629
  %v3632 = vunpack.c.l.s4 1966171168
  %v3633 = vunpack.c.0.s8 %v3632
  %v3634 = vlaneseq
  %v3635 = vshrl.u32 %v3634, 7
  %v3636 = vsub.s32 %v3633, %v3635
  %v3637 = vrot.slane %v3609, %v3636
  %v3638 = vcombine.high %v3616, %v3616
  %v3639 = vcombine.high %v3623, %v3623
  %v3640 = vcombine.high %v3630, %v3630
  %v3641 = vcombine.high %v3637, %v3637
  %v3642 = vlaneseq
  %v3643 = vshrl.u32 %v3642, 7
  %v3644 = vsub.s32 0, %v3643
  %v3645 = vrot.slane %v3616, %v3644
  %v3646 = vlaneseq
  %v3647 = vshrl.u32 %v3646, 7
  %v3648 = vsub.s32 0, %v3647
  %v3649 = vrot.slane %v3630, %v3648
  %v3650 = vlaneseq
  %v3651 = vshrl.u32 %v3650, 7
  %v3652 = vsub.s32 0, %v3651
  %v3653 = vrot.slane %v3638, %v3652
  %v3654 = vlaneseq
  %v3655 = vshrl.u32 %v3654, 7
  %v3656 = vsub.s32 0, %v3655
  %v3657 = vrot.slane %v3640, %v3656
  %v3658 = vlaneseq
  %v3659 = vshrl.u32 %v3658, 7
  %v3660 = vsub.s32 0, %v3659
  %v3661 = vrot.slane %v3623, %v3660
  %v3662 = vlaneseq
  %v3663 = vshrl.u32 %v3662, 7
  %v3664 = vsub.s32 0, %v3663
  %v3665 = vrot.slane %v3637, %v3664
  %v3666 = vlaneseq
  %v3667 = vshrl.u32 %v3666, 7
  %v3668 = vsub.s32 0, %v3667
  %v3669 = vrot.slane %v3639, %v3668
  %v3670 = vlaneseq
  %v3671 = vshrl.u32 %v3670, 7
  %v3672 = vsub.s32 0, %v3671
  %v3673 = vrot.slane %v3641, %v3672
  %3674 = vrot.lane.b32.xlu0 %v3645, 104
  %v3675 = vpop.permute.xlu0 %3674
  %3676 = vrot.lane.b32.xlu0 %v3649, 104
  %v3677 = vpop.permute.xlu0 %3676
  %3678 = vrot.lane.b32.xlu0 %v3653, 104
  %v3679 = vpop.permute.xlu0 %3678
  %3680 = vrot.lane.b32.xlu0 %v3657, 104
  %v3681 = vpop.permute.xlu0 %3680
  %3682 = vrot.lane.b32.xlu0 %v3661, 104
  %v3683 = vpop.permute.xlu0 %3682
  %3684 = vrot.lane.b32.xlu0 %v3665, 104
  %v3685 = vpop.permute.xlu0 %3684
  %3686 = vrot.lane.b32.xlu0 %v3669, 104
  %v3687 = vpop.permute.xlu0 %3686
  %3688 = vrot.lane.b32.xlu0 %v3673, 104
  %v3689 = vpop.permute.xlu0 %3688
  %3698 = vst.msk [vmem:[%s5] sm:$0x1] %vm1204, %v3675
  %3699 = vst.msk [vmem:[%s5 + $0x8] sm:$0x1] %vm1204, %v3677
  %3700 = vst.msk [vmem:[%s5 + $0x10] sm:$0x1] %vm1204, %v3679
  %3701 = vst.msk [vmem:[%s5 + $0x18] sm:$0x1] %vm1204, %v3681
  %3702 = vst.msk [vmem:[%s5 + $0x20] sm:$0x1] %vm1204, %v3683
  %3703 = vst.msk [vmem:[%s5 + $0x28] sm:$0x1] %vm1204, %v3685
  %3704 = vst.msk [vmem:[%s5 + $0x30] sm:$0x1] %vm1204, %v3687
  %3705 = vst.msk [vmem:[%s5 + $0x38] sm:$0x1] %vm1204, %v3689
  // Predicated region
  $region22: #{han_forward.4} parent=0 // pred_check
    _
  $region23: #{han_forward.4} parent=0 // pred_check_branch
    %3707 = sbr.rel (0) target = $region25
  $region24: #{han_forward.4} parent=0 // pred_region
    _
  $region25: #{han_forward.4} parent=0 // pred_fallthru
    _
  // Predicated region
  $region26: #{han_forward.4} parent=0 // pred_check
    _
  $region27: #{han_forward.4} parent=0 // pred_check_branch
    %3709 = sbr.rel (0) target = $region29
  $region28: #{han_forward.4} parent=0 // pred_region
    _
  $region29: #{han_forward.4} parent=0 // pred_fallthru
    _

</llo_original>
